<compile_context>
chip_gen: v7x
topology: tpu7x:2x2x1
jax: 0.10.0
libtpu: 0.0.40
codegen_flags: <defaults>
</compile_context>

<pallas_src>
import jax
import jax.numpy as jnp
from jax.experimental import pallas as pl
from jax.experimental.pallas import tpu as pltpu

# ----------------------------- hyper-parameters ------------------------------
N_WORDS = 50
N_CHARS = 30
N_EMBED = 32          # n_embed == n_pretrained -> no pretrained concat branch
N_FEAT_EMBED = 32
N_CHAR_EMBED = 16
N_CHAR_HIDDEN = 32    # CharLSTM is bidirectional with hidden = n_char_hidden//2 per dir
N_LSTM_HIDDEN = 32
N_LSTM_LAYERS = 3
PAD_INDEX = 0
CHAR_PAD_INDEX = 0


# ------------------------------- kernel helpers -------------------------------
def _bidir_lstm_step(x_t, x_tb, m_t, m_tb, h2, c2, w2, b2, rows, hidden):
    """One fused fwd+bwd masked LSTM step.

    x_t / x_tb:  (rows, D)  input at forward time t / backward time T-1-t
    m_t / m_tb:  (rows, 1)  validity masks
    h2, c2:      (2*rows, hidden)  stacked [fwd; bwd] state
    w2:          (D+hidden, 8*hidden)  [ [W_ih;W_hh]_fwd | [W_ih;W_hh]_bwd ]
    b2:          (1, 8*hidden)         [ b_fwd | b_bwd ]
    """
    B, H = rows, hidden
    x2 = jnp.concatenate([x_t, x_tb], axis=0)                    # (2B, D)
    inp = jnp.concatenate([x2, h2], axis=-1)                     # (2B, D+H)
    gates = jnp.dot(inp, w2, preferred_element_type=jnp.float32) + b2  # (2B, 8H)
    # fwd rows use the first 4H columns, bwd rows the last 4H columns
    g = jnp.concatenate([gates[:B, :4 * H], gates[B:, 4 * H:]], axis=0)  # (2B, 4H)

    i = jax.nn.sigmoid(g[:, 0 * H:1 * H])
    f = jax.nn.sigmoid(g[:, 1 * H:2 * H])
    gc = jnp.tanh(g[:, 2 * H:3 * H])
    o = jax.nn.sigmoid(g[:, 3 * H:4 * H])

    c_new = f * c2 + i * gc
    h_new = o * jnp.tanh(c_new)

    m2 = jnp.concatenate([m_t, m_tb], axis=0)                    # (2B, 1)
    # masked update: padded steps keep previous state (pack_padded semantics)
    h2n = m2 * h_new + (1.0 - m2) * h2
    c2n = m2 * c_new + (1.0 - m2) * c2
    # pad_packed_sequence zero-fills padded output positions
    return h2n, c2n, m2 * h_new


def _encoder_bilstm_kernel(x_ref, m_ref, w_ref, b_ref, o_ref):
    """Fused 3-layer bidirectional masked LSTM encoder.

    x_ref: [T, B, D0]   m_ref: [T, B, 1]
    w_ref: [L, D0+H, 8H]   b_ref: [L, 1, 8H]   (D0 == 2H for every layer)
    o_ref: [T, B, 2H]
    """
    T, B, _ = x_ref.shape
    n_layers = w_ref.shape[0]
    H = o_ref.shape[-1] // 2

    x = x_ref[...]          # [T, B, D]
    m = m_ref[...]          # [T, B, 1]
    for layer in range(n_layers):
        w2 = w_ref[layer]
        b2 = b_ref[layer]
        h2 = jnp.zeros((2 * B, H), jnp.float32)
        c2 = jnp.zeros((2 * B, H), jnp.float32)
        ys_f = [None] * T
        ys_b = [None] * T
        for t in range(T):
            tb = T - 1 - t
            h2, c2, y = _bidir_lstm_step(x[t], x[tb], m[t], m[tb],
                                         h2, c2, w2, b2, B, H)
            ys_f[t] = y[:B]
            ys_b[tb] = y[B:]
        x = jnp.concatenate([jnp.stack(ys_f, axis=0),
                             jnp.stack(ys_b, axis=0)], axis=-1)  # [T, B, 2H]
    o_ref[...] = x


def _char_lstm_kernel(x_ref, m_ref, w_ref, b_ref, wp_ref, bp_ref, o_ref):
    """CharLSTM: fused bidirectional LSTM over characters + output projection.

    x_ref: [L, N, E]   m_ref: [L, N, 1]
    w_ref: [E+H, 8H]   b_ref: [1, 8H]
    wp_ref: [2H, F]    bp_ref: [1, F]
    o_ref: [N, F]
    """
    L, N, _ = x_ref.shape
    H = w_ref.shape[-1] // 8

    x = x_ref[...]
    m = m_ref[...]
    h2 = jnp.zeros((2 * N, H), jnp.float32)
    c2 = jnp.zeros((2 * N, H), jnp.float32)
    w2 = w_ref[...]
    b2 = b_ref[...]
    for t in range(L):
        tb = L - 1 - t
        h2, c2, _ = _bidir_lstm_step(x[t], x[tb], m[t], m[tb],
                                     h2, c2, w2, b2, N, H)
    # mask-carried state => fwd final hidden = hidden at last valid char,
    # bwd final hidden = hidden after processing char 0 (reversed iteration).
    h = jnp.concatenate([h2[:N], h2[N:]], axis=-1)               # (N, 2H)
    proj = jnp.dot(h, wp_ref[...], preferred_element_type=jnp.float32) + bp_ref[...]
    # zero embedding for empty (all-pad) words; m[0] == 1 iff word has >=1 char
    o_ref[...] = proj * m[0]


# ------------------------------- pallas wrappers -------------------------------
def _vmem_specs(n):
    return [pl.BlockSpec(memory_space=pltpu.MemorySpace.VMEM)] * n


def run_char_lstm(emb_tm, m_tm, w2, b2, wp, bp):
    _, N, _ = emb_tm.shape
    F = wp.shape[1]
    return pl.pallas_call(
        _char_lstm_kernel,
        out_shape=jax.ShapeDtypeStruct((N, F), jnp.float32),
        in_specs=_vmem_specs(6),
        out_specs=pl.BlockSpec(memory_space=pltpu.MemorySpace.VMEM),
    )(emb_tm, m_tm, w2, b2, wp, bp)


def run_encoder(x_tm, m_tm, w_enc, b_enc):
    T, B, _ = x_tm.shape
    H = w_enc.shape[-1] // 8
    return pl.pallas_call(
        _encoder_bilstm_kernel,
        out_shape=jax.ShapeDtypeStruct((T, B, 2 * H), jnp.float32),
        in_specs=_vmem_specs(4),
        out_specs=pl.BlockSpec(memory_space=pltpu.MemorySpace.VMEM),
    )(x_tm, m_tm, w_enc, b_enc)


# ------------------------------- JAX glue -------------------------------------
def pack_bidir(params_f, params_b):
    """Pack one biLSTM layer: ([W_ih;W_hh]_f | [W_ih;W_hh]_b), (b_f | b_b)."""
    w_f = jnp.concatenate([params_f[0], params_f[1]], axis=0)    # (D+H, 4H)
    w_b = jnp.concatenate([params_b[0], params_b[1]], axis=0)    # (D+H, 4H)
    w2 = jnp.concatenate([w_f, w_b], axis=1)                     # (D+H, 8H)
    b2 = jnp.concatenate([params_f[2], params_b[2]], axis=1)     # (1, 8H)
    return w2, b2


def char_lstm(chars, params):
    """CharLSTM feature embedding. chars: [B, S, L] -> [B, S, n_feat_embed]."""
    B, S, L = chars.shape
    flat = chars.reshape(B * S, L)
    mask = (flat != CHAR_PAD_INDEX).astype(jnp.float32)           # [N, L] (right-aligned)

    emb = jnp.take(params["char_embed"], flat, axis=0)            # [N, L, E]
    emb_tm = jnp.transpose(emb, (1, 0, 2))                        # [L, N, E]
    m_tm = jnp.transpose(mask, (1, 0))[:, :, None]                # [L, N, 1]

    w2, b2 = pack_bidir(params["char_lstm_f"], params["char_lstm_b"])
    feat = run_char_lstm(emb_tm, m_tm, w2, b2,
                         params["char_proj_w"], params["char_proj_b"])  # [N, F]
    return feat.reshape(B, S, -1)


def model_encode(words, chars, params):
    """Equivalent of Model.encode(words, feats=[chars]) in eval mode."""
    # Model.embed
    word_embed = jnp.take(params["word_embed"], words, axis=0)    # [B, S, n_embed]
    feat_embed = char_lstm(chars, params)                         # [B, S, n_feat_embed]
    x = jnp.concatenate([word_embed, feat_embed], axis=-1)        # [B, S, n_input]

    # Model.encode: packed 3-layer bidirectional (Variational)LSTM, eval mode
    mask = (words != PAD_INDEX).astype(jnp.float32)               # [B, S] (right-padded)
    x_tm = jnp.transpose(x, (1, 0, 2))                            # [T, B, D]
    m_tm = jnp.transpose(mask, (1, 0))[:, :, None]                # [T, B, 1]

    packed = [pack_bidir(params["enc_f"][l], params["enc_b"][l])
              for l in range(N_LSTM_LAYERS)]
    w_enc = jnp.stack([p[0] for p in packed], axis=0)             # [L, D+H, 8H]
    b_enc = jnp.stack([p[1] for p in packed], axis=0)             # [L, 1, 8H]

    y_tm = run_encoder(x_tm, m_tm, w_enc, b_enc)                  # [T, B, 2H]
    return jnp.transpose(y_tm, (1, 0, 2))                         # [B, S, 2*n_lstm_hidden]


model_encode_jit = jax.jit(model_encode)


# ------------------------------- parameters -----------------------------------
def init_lstm_params(key, input_size, hidden_size):
    k1, k2, k3 = jax.random.split(key, 3)
    w_ih = jax.random.uniform(k1, (input_size, 4 * hidden_size), jnp.float32, -0.1, 0.1)
    w_hh = jax.random.uniform(k2, (hidden_size, 4 * hidden_size), jnp.float32, -0.1, 0.1)
    b = jax.random.uniform(k3, (1, 4 * hidden_size), jnp.float32, -0.1, 0.1)
    return (w_ih, w_hh, b)


def init_params(key):
    keys = jax.random.split(key, 16)
    n_input = N_EMBED + N_FEAT_EMBED
    char_h = N_CHAR_HIDDEN // 2
    params = {
        "word_embed": jax.random.normal(keys[0], (N_WORDS, N_EMBED), jnp.float32) * 0.1,
        "char_embed": jax.random.normal(keys[1], (N_CHARS, N_CHAR_EMBED), jnp.float32) * 0.1,
        "char_lstm_f": init_lstm_params(keys[2], N_CHAR_EMBED, char_h),
        "char_lstm_b": init_lstm_params(keys[3], N_CHAR_EMBED, char_h),
        "char_proj_w": jax.random.normal(keys[4], (N_CHAR_HIDDEN, N_FEAT_EMBED), jnp.float32) * 0.1,
        "char_proj_b": jax.random.normal(keys[5], (1, N_FEAT_EMBED), jnp.float32) * 0.1,
        "enc_f": [],
        "enc_b": [],
    }
    for layer in range(N_LSTM_LAYERS):
        in_size = n_input if layer == 0 else 2 * N_LSTM_HIDDEN
        params["enc_f"].append(init_lstm_params(keys[6 + 2 * layer], in_size, N_LSTM_HIDDEN))
        params["enc_b"].append(init_lstm_params(keys[7 + 2 * layer], in_size, N_LSTM_HIDDEN))
    return params


# --------------------------------- main ---------------------------------------
if __name__ == "__main__":
    key = jax.random.PRNGKey(0)
    kp, kw, kc = jax.random.split(key, 3)

    B, S, L = 2, 8, 4
    lengths = jnp.array([8, 5], dtype=jnp.int32)            # sentence lengths (right padded)

    # word ids: valid positions in [1, N_WORDS), pads = 0
    word_ids = jax.random.randint(kw, (B, S), 1, N_WORDS, dtype=jnp.int32)
    valid = jnp.arange(S)[None, :] < lengths[:, None]
    words = jnp.where(valid, word_ids, PAD_INDEX)

    # char ids: per-word char lengths in [1, L], pads = 0; padded words all-pad
    char_ids = jax.random.randint(kc, (B, S, L), 1, N_CHARS, dtype=jnp.int32)
    char_lens = jax.random.randint(jax.random.fold_in(kc, 1), (B, S), 1, L + 1, dtype=jnp.int32)
    char_valid = (jnp.arange(L)[None, None, :] < char_lens[:, :, None]) & valid[:, :, None]
    chars = jnp.where(char_valid, char_ids, CHAR_PAD_INDEX)

    params = init_params(kp)

    out = model_encode_jit(words, chars, params)
    out = jax.block_until_ready(out)

    assert out.shape == (B, S, 2 * N_LSTM_HIDDEN), out.shape
    assert bool(jnp.all(jnp.isfinite(out)))
    # padded timesteps must be zero (pad_packed_sequence semantics)
    assert bool(jnp.all(out[1, 5:] == 0.0))
    print("KERNEL_OK")
</pallas_src>

<mosaic_0001>
module attributes {stable_mosaic.version = 11 : i64} {
  func.func @_char_lstm_kernel(%arg0: memref<4x16x16xf32, #tpu.memory_space<vmem>>, %arg1: memref<4x16x1xf32, #tpu.memory_space<vmem>>, %arg2: memref<32x128xf32, #tpu.memory_space<vmem>>, %arg3: memref<1x128xf32, #tpu.memory_space<vmem>>, %arg4: memref<32x32xf32, #tpu.memory_space<vmem>>, %arg5: memref<1x32xf32, #tpu.memory_space<vmem>>, %arg6: memref<16x32xf32, #tpu.memory_space<vmem>>) attributes {dimension_semantics = [], scalar_prefetch = 0 : i64, scratch_operands = 0 : i64, tpu.core_type = #tpu.core_type<tc>} {
    %c0 = arith.constant 0 : index
    %c0_0 = arith.constant 0 : index
    %c0_1 = arith.constant 0 : index
    %0 = vector.load %arg0[%c0, %c0_0, %c0_1] : memref<4x16x16xf32, #tpu.memory_space<vmem>>, vector<4x16x16xf32>
    %c0_2 = arith.constant 0 : index
    %c0_3 = arith.constant 0 : index
    %c0_4 = arith.constant 0 : index
    %1 = vector.load %arg1[%c0_2, %c0_3, %c0_4] : memref<4x16x1xf32, #tpu.memory_space<vmem>>, vector<4x16x1xf32>
    %cst = arith.constant 0.000000e+00 : f32
    %2 = vector.broadcast %cst : f32 to vector<32x16xf32>
    %cst_5 = arith.constant 0.000000e+00 : f32
    %3 = vector.broadcast %cst_5 : f32 to vector<32x16xf32>
    %c0_6 = arith.constant 0 : index
    %c0_7 = arith.constant 0 : index
    %4 = vector.load %arg2[%c0_6, %c0_7] : memref<32x128xf32, #tpu.memory_space<vmem>>, vector<32x128xf32>
    %c0_8 = arith.constant 0 : index
    %c0_9 = arith.constant 0 : index
    %5 = vector.load %arg3[%c0_8, %c0_9] : memref<1x128xf32, #tpu.memory_space<vmem>>, vector<1x128xf32>
    %6 = vector.extract_strided_slice %0 {offsets = [0, 0, 0], sizes = [1, 16, 16], strides = [1, 1, 1]} : vector<4x16x16xf32> to vector<1x16x16xf32>
    %7 = vector.shape_cast %6 : vector<1x16x16xf32> to vector<16x16xf32>
    %8 = vector.extract_strided_slice %0 {offsets = [3, 0, 0], sizes = [1, 16, 16], strides = [1, 1, 1]} : vector<4x16x16xf32> to vector<1x16x16xf32>
    %9 = vector.shape_cast %8 : vector<1x16x16xf32> to vector<16x16xf32>
    %10 = vector.extract_strided_slice %1 {offsets = [0, 0, 0], sizes = [1, 16, 1], strides = [1, 1, 1]} : vector<4x16x1xf32> to vector<1x16x1xf32>
    %11 = vector.shape_cast %10 : vector<1x16x1xf32> to vector<16x1xf32>
    %12 = vector.extract_strided_slice %1 {offsets = [3, 0, 0], sizes = [1, 16, 1], strides = [1, 1, 1]} : vector<4x16x1xf32> to vector<1x16x1xf32>
    %13 = vector.shape_cast %12 : vector<1x16x1xf32> to vector<16x1xf32>
    %14 = tpu.concatenate %7, %9 in 0 : vector<16x16xf32>, vector<16x16xf32> -> vector<32x16xf32>
    %15 = tpu.concatenate %14, %2 in 1 : vector<32x16xf32>, vector<32x16xf32> -> vector<32x32xf32>
    %cst_10 = arith.constant dense<0.000000e+00> : vector<32x128xf32>
    %16 = tpu.matmul %15, %4, %cst_10 {dimension_numbers = #tpu.dot_dimension_numbers<[1], [0], [0], [1], [0, 0, 1, 1], [], []>} : vector<32x32xf32>, vector<32x128xf32>, vector<32x128xf32> -> vector<32x128xf32>
    %17 = vector.broadcast %5 : vector<1x128xf32> to vector<32x128xf32>
    %18 = arith.addf %16, %17 : vector<32x128xf32>
    %19 = vector.extract_strided_slice %18 {offsets = [0, 0], sizes = [16, 64], strides = [1, 1]} : vector<32x128xf32> to vector<16x64xf32>
    %20 = vector.extract_strided_slice %18 {offsets = [16, 64], sizes = [16, 64], strides = [1, 1]} : vector<32x128xf32> to vector<16x64xf32>
    %21 = tpu.concatenate %19, %20 in 0 : vector<16x64xf32>, vector<16x64xf32> -> vector<32x64xf32>
    %22 = vector.extract_strided_slice %21 {offsets = [0, 0], sizes = [32, 16], strides = [1, 1]} : vector<32x64xf32> to vector<32x16xf32>
    %23 = arith.negf %22 : vector<32x16xf32>
    %24 = math.exp %23 : vector<32x16xf32>
    %cst_11 = arith.constant 1.000000e+00 : f32
    %25 = vector.broadcast %cst_11 : f32 to vector<32x16xf32>
    %26 = arith.addf %25, %24 : vector<32x16xf32>
    %27 = arith.divf %25, %26 : vector<32x16xf32>
    %28 = vector.extract_strided_slice %21 {offsets = [0, 16], sizes = [32, 16], strides = [1, 1]} : vector<32x64xf32> to vector<32x16xf32>
    %29 = arith.negf %28 : vector<32x16xf32>
    %30 = math.exp %29 : vector<32x16xf32>
    %cst_12 = arith.constant 1.000000e+00 : f32
    %31 = vector.broadcast %cst_12 : f32 to vector<32x16xf32>
    %32 = arith.addf %31, %30 : vector<32x16xf32>
    %33 = arith.divf %31, %32 : vector<32x16xf32>
    %34 = vector.extract_strided_slice %21 {offsets = [0, 32], sizes = [32, 16], strides = [1, 1]} : vector<32x64xf32> to vector<32x16xf32>
    %35 = math.tanh %34 : vector<32x16xf32>
    %36 = vector.extract_strided_slice %21 {offsets = [0, 48], sizes = [32, 16], strides = [1, 1]} : vector<32x64xf32> to vector<32x16xf32>
    %37 = arith.negf %36 : vector<32x16xf32>
    %38 = math.exp %37 : vector<32x16xf32>
    %cst_13 = arith.constant 1.000000e+00 : f32
    %39 = vector.broadcast %cst_13 : f32 to vector<32x16xf32>
    %40 = arith.addf %39, %38 : vector<32x16xf32>
    %41 = arith.divf %39, %40 : vector<32x16xf32>
    %42 = arith.mulf %33, %3 : vector<32x16xf32>
    %43 = arith.mulf %27, %35 : vector<32x16xf32>
    %44 = arith.addf %42, %43 : vector<32x16xf32>
    %45 = math.tanh %44 : vector<32x16xf32>
    %46 = arith.mulf %41, %45 : vector<32x16xf32>
    %47 = tpu.concatenate %11, %13 in 0 : vector<16x1xf32>, vector<16x1xf32> -> vector<32x1xf32>
    %48 = vector.broadcast %47 : vector<32x1xf32> to vector<32x16xf32>
    %49 = arith.mulf %48, %46 : vector<32x16xf32>
    %cst_14 = arith.constant 1.000000e+00 : f32
    %50 = vector.broadcast %cst_14 : f32 to vector<32x1xf32>
    %51 = arith.subf %50, %47 : vector<32x1xf32>
    %52 = vector.broadcast %51 : vector<32x1xf32> to vector<32x16xf32>
    %53 = arith.mulf %52, %2 : vector<32x16xf32>
    %54 = arith.addf %49, %53 : vector<32x16xf32>
    %55 = vector.broadcast %47 : vector<32x1xf32> to vector<32x16xf32>
    %56 = arith.mulf %55, %44 : vector<32x16xf32>
    %cst_15 = arith.constant 1.000000e+00 : f32
    %57 = vector.broadcast %cst_15 : f32 to vector<32x1xf32>
    %58 = arith.subf %57, %47 : vector<32x1xf32>
    %59 = vector.broadcast %58 : vector<32x1xf32> to vector<32x16xf32>
    %60 = arith.mulf %59, %3 : vector<32x16xf32>
    %61 = arith.addf %56, %60 : vector<32x16xf32>
    %62 = vector.extract_strided_slice %0 {offsets = [1, 0, 0], sizes = [1, 16, 16], strides = [1, 1, 1]} : vector<4x16x16xf32> to vector<1x16x16xf32>
    %63 = vector.shape_cast %62 : vector<1x16x16xf32> to vector<16x16xf32>
    %64 = vector.extract_strided_slice %0 {offsets = [2, 0, 0], sizes = [1, 16, 16], strides = [1, 1, 1]} : vector<4x16x16xf32> to vector<1x16x16xf32>
    %65 = vector.shape_cast %64 : vector<1x16x16xf32> to vector<16x16xf32>
    %66 = vector.extract_strided_slice %1 {offsets = [1, 0, 0], sizes = [1, 16, 1], strides = [1, 1, 1]} : vector<4x16x1xf32> to vector<1x16x1xf32>
    %67 = vector.shape_cast %66 : vector<1x16x1xf32> to vector<16x1xf32>
    %68 = vector.extract_strided_slice %1 {offsets = [2, 0, 0], sizes = [1, 16, 1], strides = [1, 1, 1]} : vector<4x16x1xf32> to vector<1x16x1xf32>
    %69 = vector.shape_cast %68 : vector<1x16x1xf32> to vector<16x1xf32>
    %70 = tpu.concatenate %63, %65 in 0 : vector<16x16xf32>, vector<16x16xf32> -> vector<32x16xf32>
    %71 = tpu.concatenate %70, %54 in 1 : vector<32x16xf32>, vector<32x16xf32> -> vector<32x32xf32>
    %cst_16 = arith.constant dense<0.000000e+00> : vector<32x128xf32>
    %72 = tpu.matmul %71, %4, %cst_16 {dimension_numbers = #tpu.dot_dimension_numbers<[1], [0], [0], [1], [0, 0, 1, 1], [], []>} : vector<32x32xf32>, vector<32x128xf32>, vector<32x128xf32> -> vector<32x128xf32>
    %73 = vector.broadcast %5 : vector<1x128xf32> to vector<32x128xf32>
    %74 = arith.addf %72, %73 : vector<32x128xf32>
    %75 = vector.extract_strided_slice %74 {offsets = [0, 0], sizes = [16, 64], strides = [1, 1]} : vector<32x128xf32> to vector<16x64xf32>
    %76 = vector.extract_strided_slice %74 {offsets = [16, 64], sizes = [16, 64], strides = [1, 1]} : vector<32x128xf32> to vector<16x64xf32>
    %77 = tpu.concatenate %75, %76 in 0 : vector<16x64xf32>, vector<16x64xf32> -> vector<32x64xf32>
    %78 = vector.extract_strided_slice %77 {offsets = [0, 0], sizes = [32, 16], strides = [1, 1]} : vector<32x64xf32> to vector<32x16xf32>
    %79 = arith.negf %78 : vector<32x16xf32>
    %80 = math.exp %79 : vector<32x16xf32>
    %cst_17 = arith.constant 1.000000e+00 : f32
    %81 = vector.broadcast %cst_17 : f32 to vector<32x16xf32>
    %82 = arith.addf %81, %80 : vector<32x16xf32>
    %83 = arith.divf %81, %82 : vector<32x16xf32>
    %84 = vector.extract_strided_slice %77 {offsets = [0, 16], sizes = [32, 16], strides = [1, 1]} : vector<32x64xf32> to vector<32x16xf32>
    %85 = arith.negf %84 : vector<32x16xf32>
    %86 = math.exp %85 : vector<32x16xf32>
    %cst_18 = arith.constant 1.000000e+00 : f32
    %87 = vector.broadcast %cst_18 : f32 to vector<32x16xf32>
    %88 = arith.addf %87, %86 : vector<32x16xf32>
    %89 = arith.divf %87, %88 : vector<32x16xf32>
    %90 = vector.extract_strided_slice %77 {offsets = [0, 32], sizes = [32, 16], strides = [1, 1]} : vector<32x64xf32> to vector<32x16xf32>
    %91 = math.tanh %90 : vector<32x16xf32>
    %92 = vector.extract_strided_slice %77 {offsets = [0, 48], sizes = [32, 16], strides = [1, 1]} : vector<32x64xf32> to vector<32x16xf32>
    %93 = arith.negf %92 : vector<32x16xf32>
    %94 = math.exp %93 : vector<32x16xf32>
    %cst_19 = arith.constant 1.000000e+00 : f32
    %95 = vector.broadcast %cst_19 : f32 to vector<32x16xf32>
    %96 = arith.addf %95, %94 : vector<32x16xf32>
    %97 = arith.divf %95, %96 : vector<32x16xf32>
    %98 = arith.mulf %89, %61 : vector<32x16xf32>
    %99 = arith.mulf %83, %91 : vector<32x16xf32>
    %100 = arith.addf %98, %99 : vector<32x16xf32>
    %101 = math.tanh %100 : vector<32x16xf32>
    %102 = arith.mulf %97, %101 : vector<32x16xf32>
    %103 = tpu.concatenate %67, %69 in 0 : vector<16x1xf32>, vector<16x1xf32> -> vector<32x1xf32>
    %104 = vector.broadcast %103 : vector<32x1xf32> to vector<32x16xf32>
    %105 = arith.mulf %104, %102 : vector<32x16xf32>
    %cst_20 = arith.constant 1.000000e+00 : f32
    %106 = vector.broadcast %cst_20 : f32 to vector<32x1xf32>
    %107 = arith.subf %106, %103 : vector<32x1xf32>
    %108 = vector.broadcast %107 : vector<32x1xf32> to vector<32x16xf32>
    %109 = arith.mulf %108, %54 : vector<32x16xf32>
    %110 = arith.addf %105, %109 : vector<32x16xf32>
    %111 = vector.broadcast %103 : vector<32x1xf32> to vector<32x16xf32>
    %112 = arith.mulf %111, %100 : vector<32x16xf32>
    %cst_21 = arith.constant 1.000000e+00 : f32
    %113 = vector.broadcast %cst_21 : f32 to vector<32x1xf32>
    %114 = arith.subf %113, %103 : vector<32x1xf32>
    %115 = vector.broadcast %114 : vector<32x1xf32> to vector<32x16xf32>
    %116 = arith.mulf %115, %61 : vector<32x16xf32>
    %117 = arith.addf %112, %116 : vector<32x16xf32>
    %118 = vector.extract_strided_slice %0 {offsets = [2, 0, 0], sizes = [1, 16, 16], strides = [1, 1, 1]} : vector<4x16x16xf32> to vector<1x16x16xf32>
    %119 = vector.shape_cast %118 : vector<1x16x16xf32> to vector<16x16xf32>
    %120 = vector.extract_strided_slice %0 {offsets = [1, 0, 0], sizes = [1, 16, 16], strides = [1, 1, 1]} : vector<4x16x16xf32> to vector<1x16x16xf32>
    %121 = vector.shape_cast %120 : vector<1x16x16xf32> to vector<16x16xf32>
    %122 = vector.extract_strided_slice %1 {offsets = [2, 0, 0], sizes = [1, 16, 1], strides = [1, 1, 1]} : vector<4x16x1xf32> to vector<1x16x1xf32>
    %123 = vector.shape_cast %122 : vector<1x16x1xf32> to vector<16x1xf32>
    %124 = vector.extract_strided_slice %1 {offsets = [1, 0, 0], sizes = [1, 16, 1], strides = [1, 1, 1]} : vector<4x16x1xf32> to vector<1x16x1xf32>
    %125 = vector.shape_cast %124 : vector<1x16x1xf32> to vector<16x1xf32>
    %126 = tpu.concatenate %119, %121 in 0 : vector<16x16xf32>, vector<16x16xf32> -> vector<32x16xf32>
    %127 = tpu.concatenate %126, %110 in 1 : vector<32x16xf32>, vector<32x16xf32> -> vector<32x32xf32>
    %cst_22 = arith.constant dense<0.000000e+00> : vector<32x128xf32>
    %128 = tpu.matmul %127, %4, %cst_22 {dimension_numbers = #tpu.dot_dimension_numbers<[1], [0], [0], [1], [0, 0, 1, 1], [], []>} : vector<32x32xf32>, vector<32x128xf32>, vector<32x128xf32> -> vector<32x128xf32>
    %129 = vector.broadcast %5 : vector<1x128xf32> to vector<32x128xf32>
    %130 = arith.addf %128, %129 : vector<32x128xf32>
    %131 = vector.extract_strided_slice %130 {offsets = [0, 0], sizes = [16, 64], strides = [1, 1]} : vector<32x128xf32> to vector<16x64xf32>
    %132 = vector.extract_strided_slice %130 {offsets = [16, 64], sizes = [16, 64], strides = [1, 1]} : vector<32x128xf32> to vector<16x64xf32>
    %133 = tpu.concatenate %131, %132 in 0 : vector<16x64xf32>, vector<16x64xf32> -> vector<32x64xf32>
    %134 = vector.extract_strided_slice %133 {offsets = [0, 0], sizes = [32, 16], strides = [1, 1]} : vector<32x64xf32> to vector<32x16xf32>
    %135 = arith.negf %134 : vector<32x16xf32>
    %136 = math.exp %135 : vector<32x16xf32>
    %cst_23 = arith.constant 1.000000e+00 : f32
    %137 = vector.broadcast %cst_23 : f32 to vector<32x16xf32>
    %138 = arith.addf %137, %136 : vector<32x16xf32>
    %139 = arith.divf %137, %138 : vector<32x16xf32>
    %140 = vector.extract_strided_slice %133 {offsets = [0, 16], sizes = [32, 16], strides = [1, 1]} : vector<32x64xf32> to vector<32x16xf32>
    %141 = arith.negf %140 : vector<32x16xf32>
    %142 = math.exp %141 : vector<32x16xf32>
    %cst_24 = arith.constant 1.000000e+00 : f32
    %143 = vector.broadcast %cst_24 : f32 to vector<32x16xf32>
    %144 = arith.addf %143, %142 : vector<32x16xf32>
    %145 = arith.divf %143, %144 : vector<32x16xf32>
    %146 = vector.extract_strided_slice %133 {offsets = [0, 32], sizes = [32, 16], strides = [1, 1]} : vector<32x64xf32> to vector<32x16xf32>
    %147 = math.tanh %146 : vector<32x16xf32>
    %148 = vector.extract_strided_slice %133 {offsets = [0, 48], sizes = [32, 16], strides = [1, 1]} : vector<32x64xf32> to vector<32x16xf32>
    %149 = arith.negf %148 : vector<32x16xf32>
    %150 = math.exp %149 : vector<32x16xf32>
    %cst_25 = arith.constant 1.000000e+00 : f32
    %151 = vector.broadcast %cst_25 : f32 to vector<32x16xf32>
    %152 = arith.addf %151, %150 : vector<32x16xf32>
    %153 = arith.divf %151, %152 : vector<32x16xf32>
    %154 = arith.mulf %145, %117 : vector<32x16xf32>
    %155 = arith.mulf %139, %147 : vector<32x16xf32>
    %156 = arith.addf %154, %155 : vector<32x16xf32>
    %157 = math.tanh %156 : vector<32x16xf32>
    %158 = arith.mulf %153, %157 : vector<32x16xf32>
    %159 = tpu.concatenate %123, %125 in 0 : vector<16x1xf32>, vector<16x1xf32> -> vector<32x1xf32>
    %160 = vector.broadcast %159 : vector<32x1xf32> to vector<32x16xf32>
    %161 = arith.mulf %160, %158 : vector<32x16xf32>
    %cst_26 = arith.constant 1.000000e+00 : f32
    %162 = vector.broadcast %cst_26 : f32 to vector<32x1xf32>
    %163 = arith.subf %162, %159 : vector<32x1xf32>
    %164 = vector.broadcast %163 : vector<32x1xf32> to vector<32x16xf32>
    %165 = arith.mulf %164, %110 : vector<32x16xf32>
    %166 = arith.addf %161, %165 : vector<32x16xf32>
    %167 = vector.broadcast %159 : vector<32x1xf32> to vector<32x16xf32>
    %168 = arith.mulf %167, %156 : vector<32x16xf32>
    %cst_27 = arith.constant 1.000000e+00 : f32
    %169 = vector.broadcast %cst_27 : f32 to vector<32x1xf32>
    %170 = arith.subf %169, %159 : vector<32x1xf32>
    %171 = vector.broadcast %170 : vector<32x1xf32> to vector<32x16xf32>
    %172 = arith.mulf %171, %117 : vector<32x16xf32>
    %173 = arith.addf %168, %172 : vector<32x16xf32>
    %174 = vector.extract_strided_slice %0 {offsets = [3, 0, 0], sizes = [1, 16, 16], strides = [1, 1, 1]} : vector<4x16x16xf32> to vector<1x16x16xf32>
    %175 = vector.shape_cast %174 : vector<1x16x16xf32> to vector<16x16xf32>
    %176 = vector.extract_strided_slice %0 {offsets = [0, 0, 0], sizes = [1, 16, 16], strides = [1, 1, 1]} : vector<4x16x16xf32> to vector<1x16x16xf32>
    %177 = vector.shape_cast %176 : vector<1x16x16xf32> to vector<16x16xf32>
    %178 = vector.extract_strided_slice %1 {offsets = [3, 0, 0], sizes = [1, 16, 1], strides = [1, 1, 1]} : vector<4x16x1xf32> to vector<1x16x1xf32>
    %179 = vector.shape_cast %178 : vector<1x16x1xf32> to vector<16x1xf32>
    %180 = vector.extract_strided_slice %1 {offsets = [0, 0, 0], sizes = [1, 16, 1], strides = [1, 1, 1]} : vector<4x16x1xf32> to vector<1x16x1xf32>
    %181 = vector.shape_cast %180 : vector<1x16x1xf32> to vector<16x1xf32>
    %182 = tpu.concatenate %175, %177 in 0 : vector<16x16xf32>, vector<16x16xf32> -> vector<32x16xf32>
    %183 = tpu.concatenate %182, %166 in 1 : vector<32x16xf32>, vector<32x16xf32> -> vector<32x32xf32>
    %cst_28 = arith.constant dense<0.000000e+00> : vector<32x128xf32>
    %184 = tpu.matmul %183, %4, %cst_28 {dimension_numbers = #tpu.dot_dimension_numbers<[1], [0], [0], [1], [0, 0, 1, 1], [], []>} : vector<32x32xf32>, vector<32x128xf32>, vector<32x128xf32> -> vector<32x128xf32>
    %185 = vector.broadcast %5 : vector<1x128xf32> to vector<32x128xf32>
    %186 = arith.addf %184, %185 : vector<32x128xf32>
    %187 = vector.extract_strided_slice %186 {offsets = [0, 0], sizes = [16, 64], strides = [1, 1]} : vector<32x128xf32> to vector<16x64xf32>
    %188 = vector.extract_strided_slice %186 {offsets = [16, 64], sizes = [16, 64], strides = [1, 1]} : vector<32x128xf32> to vector<16x64xf32>
    %189 = tpu.concatenate %187, %188 in 0 : vector<16x64xf32>, vector<16x64xf32> -> vector<32x64xf32>
    %190 = vector.extract_strided_slice %189 {offsets = [0, 0], sizes = [32, 16], strides = [1, 1]} : vector<32x64xf32> to vector<32x16xf32>
    %191 = arith.negf %190 : vector<32x16xf32>
    %192 = math.exp %191 : vector<32x16xf32>
    %cst_29 = arith.constant 1.000000e+00 : f32
    %193 = vector.broadcast %cst_29 : f32 to vector<32x16xf32>
    %194 = arith.addf %193, %192 : vector<32x16xf32>
    %195 = arith.divf %193, %194 : vector<32x16xf32>
    %196 = vector.extract_strided_slice %189 {offsets = [0, 16], sizes = [32, 16], strides = [1, 1]} : vector<32x64xf32> to vector<32x16xf32>
    %197 = arith.negf %196 : vector<32x16xf32>
    %198 = math.exp %197 : vector<32x16xf32>
    %cst_30 = arith.constant 1.000000e+00 : f32
    %199 = vector.broadcast %cst_30 : f32 to vector<32x16xf32>
    %200 = arith.addf %199, %198 : vector<32x16xf32>
    %201 = arith.divf %199, %200 : vector<32x16xf32>
    %202 = vector.extract_strided_slice %189 {offsets = [0, 32], sizes = [32, 16], strides = [1, 1]} : vector<32x64xf32> to vector<32x16xf32>
    %203 = math.tanh %202 : vector<32x16xf32>
    %204 = vector.extract_strided_slice %189 {offsets = [0, 48], sizes = [32, 16], strides = [1, 1]} : vector<32x64xf32> to vector<32x16xf32>
    %205 = arith.negf %204 : vector<32x16xf32>
    %206 = math.exp %205 : vector<32x16xf32>
    %cst_31 = arith.constant 1.000000e+00 : f32
    %207 = vector.broadcast %cst_31 : f32 to vector<32x16xf32>
    %208 = arith.addf %207, %206 : vector<32x16xf32>
    %209 = arith.divf %207, %208 : vector<32x16xf32>
    %210 = arith.mulf %201, %173 : vector<32x16xf32>
    %211 = arith.mulf %195, %203 : vector<32x16xf32>
    %212 = arith.addf %210, %211 : vector<32x16xf32>
    %213 = math.tanh %212 : vector<32x16xf32>
    %214 = arith.mulf %209, %213 : vector<32x16xf32>
    %215 = tpu.concatenate %179, %181 in 0 : vector<16x1xf32>, vector<16x1xf32> -> vector<32x1xf32>
    %216 = vector.broadcast %215 : vector<32x1xf32> to vector<32x16xf32>
    %217 = arith.mulf %216, %214 : vector<32x16xf32>
    %cst_32 = arith.constant 1.000000e+00 : f32
    %218 = vector.broadcast %cst_32 : f32 to vector<32x1xf32>
    %219 = arith.subf %218, %215 : vector<32x1xf32>
    %220 = vector.broadcast %219 : vector<32x1xf32> to vector<32x16xf32>
    %221 = arith.mulf %220, %166 : vector<32x16xf32>
    %222 = arith.addf %217, %221 : vector<32x16xf32>
    %223 = vector.extract_strided_slice %222 {offsets = [0, 0], sizes = [16, 16], strides = [1, 1]} : vector<32x16xf32> to vector<16x16xf32>
    %224 = vector.extract_strided_slice %222 {offsets = [16, 0], sizes = [16, 16], strides = [1, 1]} : vector<32x16xf32> to vector<16x16xf32>
    %225 = tpu.concatenate %223, %224 in 1 : vector<16x16xf32>, vector<16x16xf32> -> vector<16x32xf32>
    %c0_33 = arith.constant 0 : index
    %c0_34 = arith.constant 0 : index
    %226 = vector.load %arg4[%c0_33, %c0_34] : memref<32x32xf32, #tpu.memory_space<vmem>>, vector<32x32xf32>
    %cst_35 = arith.constant dense<0.000000e+00> : vector<16x32xf32>
    %227 = tpu.matmul %225, %226, %cst_35 {dimension_numbers = #tpu.dot_dimension_numbers<[1], [0], [0], [1], [0, 0, 1, 1], [], []>} : vector<16x32xf32>, vector<32x32xf32>, vector<16x32xf32> -> vector<16x32xf32>
    %c0_36 = arith.constant 0 : index
    %c0_37 = arith.constant 0 : index
    %228 = vector.load %arg5[%c0_36, %c0_37] : memref<1x32xf32, #tpu.memory_space<vmem>>, vector<1x32xf32>
    %229 = vector.broadcast %228 : vector<1x32xf32> to vector<16x32xf32>
    %230 = arith.addf %227, %229 : vector<16x32xf32>
    %231 = vector.extract_strided_slice %1 {offsets = [0, 0, 0], sizes = [1, 16, 1], strides = [1, 1, 1]} : vector<4x16x1xf32> to vector<1x16x1xf32>
    %232 = vector.shape_cast %231 : vector<1x16x1xf32> to vector<16x1xf32>
    %233 = vector.broadcast %232 : vector<16x1xf32> to vector<16x32xf32>
    %234 = arith.mulf %230, %233 : vector<16x32xf32>
    %c0_38 = arith.constant 0 : index
    %c0_39 = arith.constant 0 : index
    %235 = vector.load %arg6[%c0_38, %c0_39] : memref<16x32xf32, #tpu.memory_space<vmem>>, vector<16x32xf32>
    tpu.vector_store %arg6[%c0_38, %c0_39], %234 {strides = array<i32>} : memref<16x32xf32, #tpu.memory_space<vmem>>, vector<16x32xf32>,
    return
  }
}

module attributes {stable_mosaic.version = 11 : i64} {
  func.func @_encoder_bilstm_kernel(%arg0: memref<8x2x64xf32, #tpu.memory_space<vmem>>, %arg1: memref<8x2x1xf32, #tpu.memory_space<vmem>>, %arg2: memref<3x96x256xf32, #tpu.memory_space<vmem>>, %arg3: memref<3x1x256xf32, #tpu.memory_space<vmem>>, %arg4: memref<8x2x64xf32, #tpu.memory_space<vmem>>) attributes {dimension_semantics = [], scalar_prefetch = 0 : i64, scratch_operands = 0 : i64, tpu.core_type = #tpu.core_type<tc>} {
    %c0 = arith.constant 0 : index
    %c0_0 = arith.constant 0 : index
    %c0_1 = arith.constant 0 : index
    %0 = vector.load %arg0[%c0, %c0_0, %c0_1] : memref<8x2x64xf32, #tpu.memory_space<vmem>>, vector<8x2x64xf32>
    %c0_2 = arith.constant 0 : index
    %c0_3 = arith.constant 0 : index
    %c0_4 = arith.constant 0 : index
    %1 = vector.load %arg1[%c0_2, %c0_3, %c0_4] : memref<8x2x1xf32, #tpu.memory_space<vmem>>, vector<8x2x1xf32>
    %c0_5 = arith.constant 0 : index
    %c0_6 = arith.constant 0 : index
    %c0_7 = arith.constant 0 : index
    %2 = vector.load %arg2[%c0_5, %c0_6, %c0_7] : memref<3x96x256xf32, #tpu.memory_space<vmem>>, vector<1x96x256xf32>
    %3 = vector.shape_cast %2 : vector<1x96x256xf32> to vector<96x256xf32>
    %c0_8 = arith.constant 0 : index
    %c0_9 = arith.constant 0 : index
    %c0_10 = arith.constant 0 : index
    %4 = vector.load %arg3[%c0_8, %c0_9, %c0_10] : memref<3x1x256xf32, #tpu.memory_space<vmem>>, vector<1x1x256xf32>
    %5 = vector.shape_cast %4 : vector<1x1x256xf32> to vector<1x256xf32>
    %cst = arith.constant 0.000000e+00 : f32
    %6 = vector.broadcast %cst : f32 to vector<4x32xf32>
    %cst_11 = arith.constant 0.000000e+00 : f32
    %7 = vector.broadcast %cst_11 : f32 to vector<4x32xf32>
    %8 = vector.extract_strided_slice %0 {offsets = [0, 0, 0], sizes = [1, 2, 64], strides = [1, 1, 1]} : vector<8x2x64xf32> to vector<1x2x64xf32>
    %9 = vector.shape_cast %8 : vector<1x2x64xf32> to vector<2x64xf32>
    %10 = vector.extract_strided_slice %0 {offsets = [7, 0, 0], sizes = [1, 2, 64], strides = [1, 1, 1]} : vector<8x2x64xf32> to vector<1x2x64xf32>
    %11 = vector.shape_cast %10 : vector<1x2x64xf32> to vector<2x64xf32>
    %12 = vector.extract_strided_slice %1 {offsets = [0, 0, 0], sizes = [1, 2, 1], strides = [1, 1, 1]} : vector<8x2x1xf32> to vector<1x2x1xf32>
    %13 = vector.shape_cast %12 : vector<1x2x1xf32> to vector<2x1xf32>
    %14 = vector.extract_strided_slice %1 {offsets = [7, 0, 0], sizes = [1, 2, 1], strides = [1, 1, 1]} : vector<8x2x1xf32> to vector<1x2x1xf32>
    %15 = vector.shape_cast %14 : vector<1x2x1xf32> to vector<2x1xf32>
    %16 = tpu.concatenate %9, %11 in 0 : vector<2x64xf32>, vector<2x64xf32> -> vector<4x64xf32>
    %17 = tpu.concatenate %16, %6 in 1 : vector<4x64xf32>, vector<4x32xf32> -> vector<4x96xf32>
    %cst_12 = arith.constant dense<0.000000e+00> : vector<4x256xf32>
    %18 = tpu.matmul %17, %3, %cst_12 {dimension_numbers = #tpu.dot_dimension_numbers<[1], [0], [0], [1], [0, 0, 1, 1], [], []>} : vector<4x96xf32>, vector<96x256xf32>, vector<4x256xf32> -> vector<4x256xf32>
    %19 = vector.broadcast %5 : vector<1x256xf32> to vector<4x256xf32>
    %20 = arith.addf %18, %19 : vector<4x256xf32>
    %21 = vector.extract_strided_slice %20 {offsets = [0, 0], sizes = [2, 128], strides = [1, 1]} : vector<4x256xf32> to vector<2x128xf32>
    %22 = vector.extract_strided_slice %20 {offsets = [2, 128], sizes = [2, 128], strides = [1, 1]} : vector<4x256xf32> to vector<2x128xf32>
    %23 = tpu.concatenate %21, %22 in 0 : vector<2x128xf32>, vector<2x128xf32> -> vector<4x128xf32>
    %24 = vector.extract_strided_slice %23 {offsets = [0, 0], sizes = [4, 32], strides = [1, 1]} : vector<4x128xf32> to vector<4x32xf32>
    %25 = arith.negf %24 : vector<4x32xf32>
    %26 = math.exp %25 : vector<4x32xf32>
    %cst_13 = arith.constant 1.000000e+00 : f32
    %27 = vector.broadcast %cst_13 : f32 to vector<4x32xf32>
    %28 = arith.addf %27, %26 : vector<4x32xf32>
    %29 = arith.divf %27, %28 : vector<4x32xf32>
    %30 = vector.extract_strided_slice %23 {offsets = [0, 32], sizes = [4, 32], strides = [1, 1]} : vector<4x128xf32> to vector<4x32xf32>
    %31 = arith.negf %30 : vector<4x32xf32>
    %32 = math.exp %31 : vector<4x32xf32>
    %cst_14 = arith.constant 1.000000e+00 : f32
    %33 = vector.broadcast %cst_14 : f32 to vector<4x32xf32>
    %34 = arith.addf %33, %32 : vector<4x32xf32>
    %35 = arith.divf %33, %34 : vector<4x32xf32>
    %36 = vector.extract_strided_slice %23 {offsets = [0, 64], sizes = [4, 32], strides = [1, 1]} : vector<4x128xf32> to vector<4x32xf32>
    %37 = math.tanh %36 : vector<4x32xf32>
    %38 = vector.extract_strided_slice %23 {offsets = [0, 96], sizes = [4, 32], strides = [1, 1]} : vector<4x128xf32> to vector<4x32xf32>
    %39 = arith.negf %38 : vector<4x32xf32>
    %40 = math.exp %39 : vector<4x32xf32>
    %cst_15 = arith.constant 1.000000e+00 : f32
    %41 = vector.broadcast %cst_15 : f32 to vector<4x32xf32>
    %42 = arith.addf %41, %40 : vector<4x32xf32>
    %43 = arith.divf %41, %42 : vector<4x32xf32>
    %44 = arith.mulf %35, %7 : vector<4x32xf32>
    %45 = arith.mulf %29, %37 : vector<4x32xf32>
    %46 = arith.addf %44, %45 : vector<4x32xf32>
    %47 = math.tanh %46 : vector<4x32xf32>
    %48 = arith.mulf %43, %47 : vector<4x32xf32>
    %49 = tpu.concatenate %13, %15 in 0 : vector<2x1xf32>, vector<2x1xf32> -> vector<4x1xf32>
    %50 = vector.broadcast %49 : vector<4x1xf32> to vector<4x32xf32>
    %51 = arith.mulf %50, %48 : vector<4x32xf32>
    %cst_16 = arith.constant 1.000000e+00 : f32
    %52 = vector.broadcast %cst_16 : f32 to vector<4x1xf32>
    %53 = arith.subf %52, %49 : vector<4x1xf32>
    %54 = vector.broadcast %53 : vector<4x1xf32> to vector<4x32xf32>
    %55 = arith.mulf %54, %6 : vector<4x32xf32>
    %56 = arith.addf %51, %55 : vector<4x32xf32>
    %57 = vector.broadcast %49 : vector<4x1xf32> to vector<4x32xf32>
    %58 = arith.mulf %57, %46 : vector<4x32xf32>
    %cst_17 = arith.constant 1.000000e+00 : f32
    %59 = vector.broadcast %cst_17 : f32 to vector<4x1xf32>
    %60 = arith.subf %59, %49 : vector<4x1xf32>
    %61 = vector.broadcast %60 : vector<4x1xf32> to vector<4x32xf32>
    %62 = arith.mulf %61, %7 : vector<4x32xf32>
    %63 = arith.addf %58, %62 : vector<4x32xf32>
    %64 = vector.broadcast %49 : vector<4x1xf32> to vector<4x32xf32>
    %65 = arith.mulf %64, %48 : vector<4x32xf32>
    %66 = vector.extract_strided_slice %65 {offsets = [0, 0], sizes = [2, 32], strides = [1, 1]} : vector<4x32xf32> to vector<2x32xf32>
    %67 = vector.extract_strided_slice %65 {offsets = [2, 0], sizes = [2, 32], strides = [1, 1]} : vector<4x32xf32> to vector<2x32xf32>
    %68 = vector.extract_strided_slice %0 {offsets = [1, 0, 0], sizes = [1, 2, 64], strides = [1, 1, 1]} : vector<8x2x64xf32> to vector<1x2x64xf32>
    %69 = vector.shape_cast %68 : vector<1x2x64xf32> to vector<2x64xf32>
    %70 = vector.extract_strided_slice %0 {offsets = [6, 0, 0], sizes = [1, 2, 64], strides = [1, 1, 1]} : vector<8x2x64xf32> to vector<1x2x64xf32>
    %71 = vector.shape_cast %70 : vector<1x2x64xf32> to vector<2x64xf32>
    %72 = vector.extract_strided_slice %1 {offsets = [1, 0, 0], sizes = [1, 2, 1], strides = [1, 1, 1]} : vector<8x2x1xf32> to vector<1x2x1xf32>
    %73 = vector.shape_cast %72 : vector<1x2x1xf32> to vector<2x1xf32>
    %74 = vector.extract_strided_slice %1 {offsets = [6, 0, 0], sizes = [1, 2, 1], strides = [1, 1, 1]} : vector<8x2x1xf32> to vector<1x2x1xf32>
    %75 = vector.shape_cast %74 : vector<1x2x1xf32> to vector<2x1xf32>
    %76 = tpu.concatenate %69, %71 in 0 : vector<2x64xf32>, vector<2x64xf32> -> vector<4x64xf32>
    %77 = tpu.concatenate %76, %56 in 1 : vector<4x64xf32>, vector<4x32xf32> -> vector<4x96xf32>
    %cst_18 = arith.constant dense<0.000000e+00> : vector<4x256xf32>
    %78 = tpu.matmul %77, %3, %cst_18 {dimension_numbers = #tpu.dot_dimension_numbers<[1], [0], [0], [1], [0, 0, 1, 1], [], []>} : vector<4x96xf32>, vector<96x256xf32>, vector<4x256xf32> -> vector<4x256xf32>
    %79 = vector.broadcast %5 : vector<1x256xf32> to vector<4x256xf32>
    %80 = arith.addf %78, %79 : vector<4x256xf32>
    %81 = vector.extract_strided_slice %80 {offsets = [0, 0], sizes = [2, 128], strides = [1, 1]} : vector<4x256xf32> to vector<2x128xf32>
    %82 = vector.extract_strided_slice %80 {offsets = [2, 128], sizes = [2, 128], strides = [1, 1]} : vector<4x256xf32> to vector<2x128xf32>
    %83 = tpu.concatenate %81, %82 in 0 : vector<2x128xf32>, vector<2x128xf32> -> vector<4x128xf32>
    %84 = vector.extract_strided_slice %83 {offsets = [0, 0], sizes = [4, 32], strides = [1, 1]} : vector<4x128xf32> to vector<4x32xf32>
    %85 = arith.negf %84 : vector<4x32xf32>
    %86 = math.exp %85 : vector<4x32xf32>
    %cst_19 = arith.constant 1.000000e+00 : f32
    %87 = vector.broadcast %cst_19 : f32 to vector<4x32xf32>
    %88 = arith.addf %87, %86 : vector<4x32xf32>
    %89 = arith.divf %87, %88 : vector<4x32xf32>
    %90 = vector.extract_strided_slice %83 {offsets = [0, 32], sizes = [4, 32], strides = [1, 1]} : vector<4x128xf32> to vector<4x32xf32>
    %91 = arith.negf %90 : vector<4x32xf32>
    %92 = math.exp %91 : vector<4x32xf32>
    %cst_20 = arith.constant 1.000000e+00 : f32
    %93 = vector.broadcast %cst_20 : f32 to vector<4x32xf32>
    %94 = arith.addf %93, %92 : vector<4x32xf32>
    %95 = arith.divf %93, %94 : vector<4x32xf32>
    %96 = vector.extract_strided_slice %83 {offsets = [0, 64], sizes = [4, 32], strides = [1, 1]} : vector<4x128xf32> to vector<4x32xf32>
    %97 = math.tanh %96 : vector<4x32xf32>
    %98 = vector.extract_strided_slice %83 {offsets = [0, 96], sizes = [4, 32], strides = [1, 1]} : vector<4x128xf32> to vector<4x32xf32>
    %99 = arith.negf %98 : vector<4x32xf32>
    %100 = math.exp %99 : vector<4x32xf32>
    %cst_21 = arith.constant 1.000000e+00 : f32
    %101 = vector.broadcast %cst_21 : f32 to vector<4x32xf32>
    %102 = arith.addf %101, %100 : vector<4x32xf32>
    %103 = arith.divf %101, %102 : vector<4x32xf32>
    %104 = arith.mulf %95, %63 : vector<4x32xf32>
    %105 = arith.mulf %89, %97 : vector<4x32xf32>
    %106 = arith.addf %104, %105 : vector<4x32xf32>
    %107 = math.tanh %106 : vector<4x32xf32>
    %108 = arith.mulf %103, %107 : vector<4x32xf32>
    %109 = tpu.concatenate %73, %75 in 0 : vector<2x1xf32>, vector<2x1xf32> -> vector<4x1xf32>
    %110 = vector.broadcast %109 : vector<4x1xf32> to vector<4x32xf32>
    %111 = arith.mulf %110, %108 : vector<4x32xf32>
    %cst_22 = arith.constant 1.000000e+00 : f32
    %112 = vector.broadcast %cst_22 : f32 to vector<4x1xf32>
    %113 = arith.subf %112, %109 : vector<4x1xf32>
    %114 = vector.broadcast %113 : vector<4x1xf32> to vector<4x32xf32>
    %115 = arith.mulf %114, %56 : vector<4x32xf32>
    %116 = arith.addf %111, %115 : vector<4x32xf32>
    %117 = vector.broadcast %109 : vector<4x1xf32> to vector<4x32xf32>
    %118 = arith.mulf %117, %106 : vector<4x32xf32>
    %cst_23 = arith.constant 1.000000e+00 : f32
    %119 = vector.broadcast %cst_23 : f32 to vector<4x1xf32>
    %120 = arith.subf %119, %109 : vector<4x1xf32>
    %121 = vector.broadcast %120 : vector<4x1xf32> to vector<4x32xf32>
    %122 = arith.mulf %121, %63 : vector<4x32xf32>
    %123 = arith.addf %118, %122 : vector<4x32xf32>
    %124 = vector.broadcast %109 : vector<4x1xf32> to vector<4x32xf32>
    %125 = arith.mulf %124, %108 : vector<4x32xf32>
    %126 = vector.extract_strided_slice %125 {offsets = [0, 0], sizes = [2, 32], strides = [1, 1]} : vector<4x32xf32> to vector<2x32xf32>
    %127 = vector.extract_strided_slice %125 {offsets = [2, 0], sizes = [2, 32], strides = [1, 1]} : vector<4x32xf32> to vector<2x32xf32>
    %128 = vector.extract_strided_slice %0 {offsets = [2, 0, 0], sizes = [1, 2, 64], strides = [1, 1, 1]} : vector<8x2x64xf32> to vector<1x2x64xf32>
    %129 = vector.shape_cast %128 : vector<1x2x64xf32> to vector<2x64xf32>
    %130 = vector.extract_strided_slice %0 {offsets = [5, 0, 0], sizes = [1, 2, 64], strides = [1, 1, 1]} : vector<8x2x64xf32> to vector<1x2x64xf32>
    %131 = vector.shape_cast %130 : vector<1x2x64xf32> to vector<2x64xf32>
    %132 = vector.extract_strided_slice %1 {offsets = [2, 0, 0], sizes = [1, 2, 1], strides = [1, 1, 1]} : vector<8x2x1xf32> to vector<1x2x1xf32>
    %133 = vector.shape_cast %132 : vector<1x2x1xf32> to vector<2x1xf32>
    %134 = vector.extract_strided_slice %1 {offsets = [5, 0, 0], sizes = [1, 2, 1], strides = [1, 1, 1]} : vector<8x2x1xf32> to vector<1x2x1xf32>
    %135 = vector.shape_cast %134 : vector<1x2x1xf32> to vector<2x1xf32>
    %136 = tpu.concatenate %129, %131 in 0 : vector<2x64xf32>, vector<2x64xf32> -> vector<4x64xf32>
    %137 = tpu.concatenate %136, %116 in 1 : vector<4x64xf32>, vector<4x32xf32> -> vector<4x96xf32>
    %cst_24 = arith.constant dense<0.000000e+00> : vector<4x256xf32>
    %138 = tpu.matmul %137, %3, %cst_24 {dimension_numbers = #tpu.dot_dimension_numbers<[1], [0], [0], [1], [0, 0, 1, 1], [], []>} : vector<4x96xf32>, vector<96x256xf32>, vector<4x256xf32> -> vector<4x256xf32>
    %139 = vector.broadcast %5 : vector<1x256xf32> to vector<4x256xf32>
    %140 = arith.addf %138, %139 : vector<4x256xf32>
    %141 = vector.extract_strided_slice %140 {offsets = [0, 0], sizes = [2, 128], strides = [1, 1]} : vector<4x256xf32> to vector<2x128xf32>
    %142 = vector.extract_strided_slice %140 {offsets = [2, 128], sizes = [2, 128], strides = [1, 1]} : vector<4x256xf32> to vector<2x128xf32>
    %143 = tpu.concatenate %141, %142 in 0 : vector<2x128xf32>, vector<2x128xf32> -> vector<4x128xf32>
    %144 = vector.extract_strided_slice %143 {offsets = [0, 0], sizes = [4, 32], strides = [1, 1]} : vector<4x128xf32> to vector<4x32xf32>
    %145 = arith.negf %144 : vector<4x32xf32>
    %146 = math.exp %145 : vector<4x32xf32>
    %cst_25 = arith.constant 1.000000e+00 : f32
    %147 = vector.broadcast %cst_25 : f32 to vector<4x32xf32>
    %148 = arith.addf %147, %146 : vector<4x32xf32>
    %149 = arith.divf %147, %148 : vector<4x32xf32>
    %150 = vector.extract_strided_slice %143 {offsets = [0, 32], sizes = [4, 32], strides = [1, 1]} : vector<4x128xf32> to vector<4x32xf32>
    %151 = arith.negf %150 : vector<4x32xf32>
    %152 = math.exp %151 : vector<4x32xf32>
    %cst_26 = arith.constant 1.000000e+00 : f32
    %153 = vector.broadcast %cst_26 : f32 to vector<4x32xf32>
    %154 = arith.addf %153, %152 : vector<4x32xf32>
    %155 = arith.divf %153, %154 : vector<4x32xf32>
    %156 = vector.extract_strided_slice %143 {offsets = [0, 64], sizes = [4, 32], strides = [1, 1]} : vector<4x128xf32> to vector<4x32xf32>
    %157 = math.tanh %156 : vector<4x32xf32>
    %158 = vector.extract_strided_slice %143 {offsets = [0, 96], sizes = [4, 32], strides = [1, 1]} : vector<4x128xf32> to vector<4x32xf32>
    %159 = arith.negf %158 : vector<4x32xf32>
    %160 = math.exp %159 : vector<4x32xf32>
    %cst_27 = arith.constant 1.000000e+00 : f32
    %161 = vector.broadcast %cst_27 : f32 to vector<4x32xf32>
    %162 = arith.addf %161, %160 : vector<4x32xf32>
    %163 = arith.divf %161, %162 : vector<4x32xf32>
    %164 = arith.mulf %155, %123 : vector<4x32xf32>
    %165 = arith.mulf %149, %157 : vector<4x32xf32>
    %166 = arith.addf %164, %165 : vector<4x32xf32>
    %167 = math.tanh %166 : vector<4x32xf32>
    %168 = arith.mulf %163, %167 : vector<4x32xf32>
    %169 = tpu.concatenate %133, %135 in 0 : vector<2x1xf32>, vector<2x1xf32> -> vector<4x1xf32>
    %170 = vector.broadcast %169 : vector<4x1xf32> to vector<4x32xf32>
    %171 = arith.mulf %170, %168 : vector<4x32xf32>
    %cst_28 = arith.constant 1.000000e+00 : f32
    %172 = vector.broadcast %cst_28 : f32 to vector<4x1xf32>
    %173 = arith.subf %172, %169 : vector<4x1xf32>
    %174 = vector.broadcast %173 : vector<4x1xf32> to vector<4x32xf32>
    %175 = arith.mulf %174, %116 : vector<4x32xf32>
    %176 = arith.addf %171, %175 : vector<4x32xf32>
    %177 = vector.broadcast %169 : vector<4x1xf32> to vector<4x32xf32>
    %178 = arith.mulf %177, %166 : vector<4x32xf32>
    %cst_29 = arith.constant 1.000000e+00 : f32
    %179 = vector.broadcast %cst_29 : f32 to vector<4x1xf32>
    %180 = arith.subf %179, %169 : vector<4x1xf32>
    %181 = vector.broadcast %180 : vector<4x1xf32> to vector<4x32xf32>
    %182 = arith.mulf %181, %123 : vector<4x32xf32>
    %183 = arith.addf %178, %182 : vector<4x32xf32>
    %184 = vector.broadcast %169 : vector<4x1xf32> to vector<4x32xf32>
    %185 = arith.mulf %184, %168 : vector<4x32xf32>
    %186 = vector.extract_strided_slice %185 {offsets = [0, 0], sizes = [2, 32], strides = [1, 1]} : vector<4x32xf32> to vector<2x32xf32>
    %187 = vector.extract_strided_slice %185 {offsets = [2, 0], sizes = [2, 32], strides = [1, 1]} : vector<4x32xf32> to vector<2x32xf32>
    %188 = vector.extract_strided_slice %0 {offsets = [3, 0, 0], sizes = [1, 2, 64], strides = [1, 1, 1]} : vector<8x2x64xf32> to vector<1x2x64xf32>
    %189 = vector.shape_cast %188 : vector<1x2x64xf32> to vector<2x64xf32>
    %190 = vector.extract_strided_slice %0 {offsets = [4, 0, 0], sizes = [1, 2, 64], strides = [1, 1, 1]} : vector<8x2x64xf32> to vector<1x2x64xf32>
    %191 = vector.shape_cast %190 : vector<1x2x64xf32> to vector<2x64xf32>
    %192 = vector.extract_strided_slice %1 {offsets = [3, 0, 0], sizes = [1, 2, 1], strides = [1, 1, 1]} : vector<8x2x1xf32> to vector<1x2x1xf32>
    %193 = vector.shape_cast %192 : vector<1x2x1xf32> to vector<2x1xf32>
    %194 = vector.extract_strided_slice %1 {offsets = [4, 0, 0], sizes = [1, 2, 1], strides = [1, 1, 1]} : vector<8x2x1xf32> to vector<1x2x1xf32>
    %195 = vector.shape_cast %194 : vector<1x2x1xf32> to vector<2x1xf32>
    %196 = tpu.concatenate %189, %191 in 0 : vector<2x64xf32>, vector<2x64xf32> -> vector<4x64xf32>
    %197 = tpu.concatenate %196, %176 in 1 : vector<4x64xf32>, vector<4x32xf32> -> vector<4x96xf32>
    %cst_30 = arith.constant dense<0.000000e+00> : vector<4x256xf32>
    %198 = tpu.matmul %197, %3, %cst_30 {dimension_numbers = #tpu.dot_dimension_numbers<[1], [0], [0], [1], [0, 0, 1, 1], [], []>} : vector<4x96xf32>, vector<96x256xf32>, vector<4x256xf32> -> vector<4x256xf32>
    %199 = vector.broadcast %5 : vector<1x256xf32> to vector<4x256xf32>
    %200 = arith.addf %198, %199 : vector<4x256xf32>
    %201 = vector.extract_strided_slice %200 {offsets = [0, 0], sizes = [2, 128], strides = [1, 1]} : vector<4x256xf32> to vector<2x128xf32>
    %202 = vector.extract_strided_slice %200 {offsets = [2, 128], sizes = [2, 128], strides = [1, 1]} : vector<4x256xf32> to vector<2x128xf32>
    %203 = tpu.concatenate %201, %202 in 0 : vector<2x128xf32>, vector<2x128xf32> -> vector<4x128xf32>
    %204 = vector.extract_strided_slice %203 {offsets = [0, 0], sizes = [4, 32], strides = [1, 1]} : vector<4x128xf32> to vector<4x32xf32>
    %205 = arith.negf %204 : vector<4x32xf32>
    %206 = math.exp %205 : vector<4x32xf32>
    %cst_31 = arith.constant 1.000000e+00 : f32
    %207 = vector.broadcast %cst_31 : f32 to vector<4x32xf32>
    %208 = arith.addf %207, %206 : vector<4x32xf32>
    %209 = arith.divf %207, %208 : vector<4x32xf32>
    %210 = vector.extract_strided_slice %203 {offsets = [0, 32], sizes = [4, 32], strides = [1, 1]} : vector<4x128xf32> to vector<4x32xf32>
    %211 = arith.negf %210 : vector<4x32xf32>
    %212 = math.exp %211 : vector<4x32xf32>
    %cst_32 = arith.constant 1.000000e+00 : f32
    %213 = vector.broadcast %cst_32 : f32 to vector<4x32xf32>
    %214 = arith.addf %213, %212 : vector<4x32xf32>
    %215 = arith.divf %213, %214 : vector<4x32xf32>
    %216 = vector.extract_strided_slice %203 {offsets = [0, 64], sizes = [4, 32], strides = [1, 1]} : vector<4x128xf32> to vector<4x32xf32>
    %217 = math.tanh %216 : vector<4x32xf32>
    %218 = vector.extract_strided_slice %203 {offsets = [0, 96], sizes = [4, 32], strides = [1, 1]} : vector<4x128xf32> to vector<4x32xf32>
    %219 = arith.negf %218 : vector<4x32xf32>
    %220 = math.exp %219 : vector<4x32xf32>
    %cst_33 = arith.constant 1.000000e+00 : f32
    %221 = vector.broadcast %cst_33 : f32 to vector<4x32xf32>
    %222 = arith.addf %221, %220 : vector<4x32xf32>
    %223 = arith.divf %221, %222 : vector<4x32xf32>
    %224 = arith.mulf %215, %183 : vector<4x32xf32>
    %225 = arith.mulf %209, %217 : vector<4x32xf32>
    %226 = arith.addf %224, %225 : vector<4x32xf32>
    %227 = math.tanh %226 : vector<4x32xf32>
    %228 = arith.mulf %223, %227 : vector<4x32xf32>
    %229 = tpu.concatenate %193, %195 in 0 : vector<2x1xf32>, vector<2x1xf32> -> vector<4x1xf32>
    %230 = vector.broadcast %229 : vector<4x1xf32> to vector<4x32xf32>
    %231 = arith.mulf %230, %228 : vector<4x32xf32>
    %cst_34 = arith.constant 1.000000e+00 : f32
    %232 = vector.broadcast %cst_34 : f32 to vector<4x1xf32>
    %233 = arith.subf %232, %229 : vector<4x1xf32>
    %234 = vector.broadcast %233 : vector<4x1xf32> to vector<4x32xf32>
    %235 = arith.mulf %234, %176 : vector<4x32xf32>
    %236 = arith.addf %231, %235 : vector<4x32xf32>
    %237 = vector.broadcast %229 : vector<4x1xf32> to vector<4x32xf32>
    %238 = arith.mulf %237, %226 : vector<4x32xf32>
    %cst_35 = arith.constant 1.000000e+00 : f32
    %239 = vector.broadcast %cst_35 : f32 to vector<4x1xf32>
    %240 = arith.subf %239, %229 : vector<4x1xf32>
    %241 = vector.broadcast %240 : vector<4x1xf32> to vector<4x32xf32>
    %242 = arith.mulf %241, %183 : vector<4x32xf32>
    %243 = arith.addf %238, %242 : vector<4x32xf32>
    %244 = vector.broadcast %229 : vector<4x1xf32> to vector<4x32xf32>
    %245 = arith.mulf %244, %228 : vector<4x32xf32>
    %246 = vector.extract_strided_slice %245 {offsets = [0, 0], sizes = [2, 32], strides = [1, 1]} : vector<4x32xf32> to vector<2x32xf32>
    %247 = vector.extract_strided_slice %245 {offsets = [2, 0], sizes = [2, 32], strides = [1, 1]} : vector<4x32xf32> to vector<2x32xf32>
    %248 = vector.extract_strided_slice %0 {offsets = [4, 0, 0], sizes = [1, 2, 64], strides = [1, 1, 1]} : vector<8x2x64xf32> to vector<1x2x64xf32>
    %249 = vector.shape_cast %248 : vector<1x2x64xf32> to vector<2x64xf32>
    %250 = vector.extract_strided_slice %0 {offsets = [3, 0, 0], sizes = [1, 2, 64], strides = [1, 1, 1]} : vector<8x2x64xf32> to vector<1x2x64xf32>
    %251 = vector.shape_cast %250 : vector<1x2x64xf32> to vector<2x64xf32>
    %252 = vector.extract_strided_slice %1 {offsets = [4, 0, 0], sizes = [1, 2, 1], strides = [1, 1, 1]} : vector<8x2x1xf32> to vector<1x2x1xf32>
    %253 = vector.shape_cast %252 : vector<1x2x1xf32> to vector<2x1xf32>
    %254 = vector.extract_strided_slice %1 {offsets = [3, 0, 0], sizes = [1, 2, 1], strides = [1, 1, 1]} : vector<8x2x1xf32> to vector<1x2x1xf32>
    %255 = vector.shape_cast %254 : vector<1x2x1xf32> to vector<2x1xf32>
    %256 = tpu.concatenate %249, %251 in 0 : vector<2x64xf32>, vector<2x64xf32> -> vector<4x64xf32>
    %257 = tpu.concatenate %256, %236 in 1 : vector<4x64xf32>, vector<4x32xf32> -> vector<4x96xf32>
    %cst_36 = arith.constant dense<0.000000e+00> : vector<4x256xf32>
    %258 = tpu.matmul %257, %3, %cst_36 {dimension_numbers = #tpu.dot_dimension_numbers<[1], [0], [0], [1], [0, 0, 1, 1], [], []>} : vector<4x96xf32>, vector<96x256xf32>, vector<4x256xf32> -> vector<4x256xf32>
    %259 = vector.broadcast %5 : vector<1x256xf32> to vector<4x256xf32>
    %260 = arith.addf %258, %259 : vector<4x256xf32>
    %261 = vector.extract_strided_slice %260 {offsets = [0, 0], sizes = [2, 128], strides = [1, 1]} : vector<4x256xf32> to vector<2x128xf32>
    %262 = vector.extract_strided_slice %260 {offsets = [2, 128], sizes = [2, 128], strides = [1, 1]} : vector<4x256xf32> to vector<2x128xf32>
    %263 = tpu.concatenate %261, %262 in 0 : vector<2x128xf32>, vector<2x128xf32> -> vector<4x128xf32>
    %264 = vector.extract_strided_slice %263 {offsets = [0, 0], sizes = [4, 32], strides = [1, 1]} : vector<4x128xf32> to vector<4x32xf32>
    %265 = arith.negf %264 : vector<4x32xf32>
    %266 = math.exp %265 : vector<4x32xf32>
    %cst_37 = arith.constant 1.000000e+00 : f32
    %267 = vector.broadcast %cst_37 : f32 to vector<4x32xf32>
    %268 = arith.addf %267, %266 : vector<4x32xf32>
    %269 = arith.divf %267, %268 : vector<4x32xf32>
    %270 = vector.extract_strided_slice %263 {offsets = [0, 32], sizes = [4, 32], strides = [1, 1]} : vector<4x128xf32> to vector<4x32xf32>
    %271 = arith.negf %270 : vector<4x32xf32>
    %272 = math.exp %271 : vector<4x32xf32>
    %cst_38 = arith.constant 1.000000e+00 : f32
    %273 = vector.broadcast %cst_38 : f32 to vector<4x32xf32>
    %274 = arith.addf %273, %272 : vector<4x32xf32>
    %275 = arith.divf %273, %274 : vector<4x32xf32>
    %276 = vector.extract_strided_slice %263 {offsets = [0, 64], sizes = [4, 32], strides = [1, 1]} : vector<4x128xf32> to vector<4x32xf32>
    %277 = math.tanh %276 : vector<4x32xf32>
    %278 = vector.extract_strided_slice %263 {offsets = [0, 96], sizes = [4, 32], strides = [1, 1]} : vector<4x128xf32> to vector<4x32xf32>
    %279 = arith.negf %278 : vector<4x32xf32>
    %280 = math.exp %279 : vector<4x32xf32>
    %cst_39 = arith.constant 1.000000e+00 : f32
    %281 = vector.broadcast %cst_39 : f32 to vector<4x32xf32>
    %282 = arith.addf %281, %280 : vector<4x32xf32>
    %283 = arith.divf %281, %282 : vector<4x32xf32>
    %284 = arith.mulf %275, %243 : vector<4x32xf32>
    %285 = arith.mulf %269, %277 : vector<4x32xf32>
    %286 = arith.addf %284, %285 : vector<4x32xf32>
    %287 = math.tanh %286 : vector<4x32xf32>
    %288 = arith.mulf %283, %287 : vector<4x32xf32>
    %289 = tpu.concatenate %253, %255 in 0 : vector<2x1xf32>, vector<2x1xf32> -> vector<4x1xf32>
    %290 = vector.broadcast %289 : vector<4x1xf32> to vector<4x32xf32>
    %291 = arith.mulf %290, %288 : vector<4x32xf32>
    %cst_40 = arith.constant 1.000000e+00 : f32
    %292 = vector.broadcast %cst_40 : f32 to vector<4x1xf32>
    %293 = arith.subf %292, %289 : vector<4x1xf32>
    %294 = vector.broadcast %293 : vector<4x1xf32> to vector<4x32xf32>
    %295 = arith.mulf %294, %236 : vector<4x32xf32>
    %296 = arith.addf %291, %295 : vector<4x32xf32>
    %297 = vector.broadcast %289 : vector<4x1xf32> to vector<4x32xf32>
    %298 = arith.mulf %297, %286 : vector<4x32xf32>
    %cst_41 = arith.constant 1.000000e+00 : f32
    %299 = vector.broadcast %cst_41 : f32 to vector<4x1xf32>
    %300 = arith.subf %299, %289 : vector<4x1xf32>
    %301 = vector.broadcast %300 : vector<4x1xf32> to vector<4x32xf32>
    %302 = arith.mulf %301, %243 : vector<4x32xf32>
    %303 = arith.addf %298, %302 : vector<4x32xf32>
    %304 = vector.broadcast %289 : vector<4x1xf32> to vector<4x32xf32>
    %305 = arith.mulf %304, %288 : vector<4x32xf32>
    %306 = vector.extract_strided_slice %305 {offsets = [0, 0], sizes = [2, 32], strides = [1, 1]} : vector<4x32xf32> to vector<2x32xf32>
    %307 = vector.extract_strided_slice %305 {offsets = [2, 0], sizes = [2, 32], strides = [1, 1]} : vector<4x32xf32> to vector<2x32xf32>
    %308 = vector.extract_strided_slice %0 {offsets = [5, 0, 0], sizes = [1, 2, 64], strides = [1, 1, 1]} : vector<8x2x64xf32> to vector<1x2x64xf32>
    %309 = vector.shape_cast %308 : vector<1x2x64xf32> to vector<2x64xf32>
    %310 = vector.extract_strided_slice %0 {offsets = [2, 0, 0], sizes = [1, 2, 64], strides = [1, 1, 1]} : vector<8x2x64xf32> to vector<1x2x64xf32>
    %311 = vector.shape_cast %310 : vector<1x2x64xf32> to vector<2x64xf32>
    %312 = vector.extract_strided_slice %1 {offsets = [5, 0, 0], sizes = [1, 2, 1], strides = [1, 1, 1]} : vector<8x2x1xf32> to vector<1x2x1xf32>
    %313 = vector.shape_cast %312 : vector<1x2x1xf32> to vector<2x1xf32>
    %314 = vector.extract_strided_slice %1 {offsets = [2, 0, 0], sizes = [1, 2, 1], strides = [1, 1, 1]} : vector<8x2x1xf32> to vector<1x2x1xf32>
    %315 = vector.shape_cast %314 : vector<1x2x1xf32> to vector<2x1xf32>
    %316 = tpu.concatenate %309, %311 in 0 : vector<2x64xf32>, vector<2x64xf32> -> vector<4x64xf32>
    %317 = tpu.concatenate %316, %296 in 1 : vector<4x64xf32>, vector<4x32xf32> -> vector<4x96xf32>
    %cst_42 = arith.constant dense<0.000000e+00> : vector<4x256xf32>
    %318 = tpu.matmul %317, %3, %cst_42 {dimension_numbers = #tpu.dot_dimension_numbers<[1], [0], [0], [1], [0, 0, 1, 1], [], []>} : vector<4x96xf32>, vector<96x256xf32>, vector<4x256xf32> -> vector<4x256xf32>
    %319 = vector.broadcast %5 : vector<1x256xf32> to vector<4x256xf32>
    %320 = arith.addf %318, %319 : vector<4x256xf32>
    %321 = vector.extract_strided_slice %320 {offsets = [0, 0], sizes = [2, 128], strides = [1, 1]} : vector<4x256xf32> to vector<2x128xf32>
    %322 = vector.extract_strided_slice %320 {offsets = [2, 128], sizes = [2, 128], strides = [1, 1]} : vector<4x256xf32> to vector<2x128xf32>
    %323 = tpu.concatenate %321, %322 in 0 : vector<2x128xf32>, vector<2x128xf32> -> vector<4x128xf32>
    %324 = vector.extract_strided_slice %323 {offsets = [0, 0], sizes = [4, 32], strides = [1, 1]} : vector<4x128xf32> to vector<4x32xf32>
    %325 = arith.negf %324 : vector<4x32xf32>
    %326 = math.exp %325 : vector<4x32xf32>
    %cst_43 = arith.constant 1.000000e+00 : f32
    %327 = vector.broadcast %cst_43 : f32 to vector<4x32xf32>
    %328 = arith.addf %327, %326 : vector<4x32xf32>
    %329 = arith.divf %327, %328 : vector<4x32xf32>
    %330 = vector.extract_strided_slice %323 {offsets = [0, 32], sizes = [4, 32], strides = [1, 1]} : vector<4x128xf32> to vector<4x32xf32>
    %331 = arith.negf %330 : vector<4x32xf32>
    %332 = math.exp %331 : vector<4x32xf32>
    %cst_44 = arith.constant 1.000000e+00 : f32
    %333 = vector.broadcast %cst_44 : f32 to vector<4x32xf32>
    %334 = arith.addf %333, %332 : vector<4x32xf32>
    %335 = arith.divf %333, %334 : vector<4x32xf32>
    %336 = vector.extract_strided_slice %323 {offsets = [0, 64], sizes = [4, 32], strides = [1, 1]} : vector<4x128xf32> to vector<4x32xf32>
    %337 = math.tanh %336 : vector<4x32xf32>
    %338 = vector.extract_strided_slice %323 {offsets = [0, 96], sizes = [4, 32], strides = [1, 1]} : vector<4x128xf32> to vector<4x32xf32>
    %339 = arith.negf %338 : vector<4x32xf32>
    %340 = math.exp %339 : vector<4x32xf32>
    %cst_45 = arith.constant 1.000000e+00 : f32
    %341 = vector.broadcast %cst_45 : f32 to vector<4x32xf32>
    %342 = arith.addf %341, %340 : vector<4x32xf32>
    %343 = arith.divf %341, %342 : vector<4x32xf32>
    %344 = arith.mulf %335, %303 : vector<4x32xf32>
    %345 = arith.mulf %329, %337 : vector<4x32xf32>
    %346 = arith.addf %344, %345 : vector<4x32xf32>
    %347 = math.tanh %346 : vector<4x32xf32>
    %348 = arith.mulf %343, %347 : vector<4x32xf32>
    %349 = tpu.concatenate %313, %315 in 0 : vector<2x1xf32>, vector<2x1xf32> -> vector<4x1xf32>
    %350 = vector.broadcast %349 : vector<4x1xf32> to vector<4x32xf32>
    %351 = arith.mulf %350, %348 : vector<4x32xf32>
    %cst_46 = arith.constant 1.000000e+00 : f32
    %352 = vector.broadcast %cst_46 : f32 to vector<4x1xf32>
    %353 = arith.subf %352, %349 : vector<4x1xf32>
    %354 = vector.broadcast %353 : vector<4x1xf32> to vector<4x32xf32>
    %355 = arith.mulf %354, %296 : vector<4x32xf32>
    %356 = arith.addf %351, %355 : vector<4x32xf32>
    %357 = vector.broadcast %349 : vector<4x1xf32> to vector<4x32xf32>
    %358 = arith.mulf %357, %346 : vector<4x32xf32>
    %cst_47 = arith.constant 1.000000e+00 : f32
    %359 = vector.broadcast %cst_47 : f32 to vector<4x1xf32>
    %360 = arith.subf %359, %349 : vector<4x1xf32>
    %361 = vector.broadcast %360 : vector<4x1xf32> to vector<4x32xf32>
    %362 = arith.mulf %361, %303 : vector<4x32xf32>
    %363 = arith.addf %358, %362 : vector<4x32xf32>
    %364 = vector.broadcast %349 : vector<4x1xf32> to vector<4x32xf32>
    %365 = arith.mulf %364, %348 : vector<4x32xf32>
    %366 = vector.extract_strided_slice %365 {offsets = [0, 0], sizes = [2, 32], strides = [1, 1]} : vector<4x32xf32> to vector<2x32xf32>
    %367 = vector.extract_strided_slice %365 {offsets = [2, 0], sizes = [2, 32], strides = [1, 1]} : vector<4x32xf32> to vector<2x32xf32>
    %368 = vector.extract_strided_slice %0 {offsets = [6, 0, 0], sizes = [1, 2, 64], strides = [1, 1, 1]} : vector<8x2x64xf32> to vector<1x2x64xf32>
    %369 = vector.shape_cast %368 : vector<1x2x64xf32> to vector<2x64xf32>
    %370 = vector.extract_strided_slice %0 {offsets = [1, 0, 0], sizes = [1, 2, 64], strides = [1, 1, 1]} : vector<8x2x64xf32> to vector<1x2x64xf32>
    %371 = vector.shape_cast %370 : vector<1x2x64xf32> to vector<2x64xf32>
    %372 = vector.extract_strided_slice %1 {offsets = [6, 0, 0], sizes = [1, 2, 1], strides = [1, 1, 1]} : vector<8x2x1xf32> to vector<1x2x1xf32>
    %373 = vector.shape_cast %372 : vector<1x2x1xf32> to vector<2x1xf32>
    %374 = vector.extract_strided_slice %1 {offsets = [1, 0, 0], sizes = [1, 2, 1], strides = [1, 1, 1]} : vector<8x2x1xf32> to vector<1x2x1xf32>
    %375 = vector.shape_cast %374 : vector<1x2x1xf32> to vector<2x1xf32>
    %376 = tpu.concatenate %369, %371 in 0 : vector<2x64xf32>, vector<2x64xf32> -> vector<4x64xf32>
    %377 = tpu.concatenate %376, %356 in 1 : vector<4x64xf32>, vector<4x32xf32> -> vector<4x96xf32>
    %cst_48 = arith.constant dense<0.000000e+00> : vector<4x256xf32>
    %378 = tpu.matmul %377, %3, %cst_48 {dimension_numbers = #tpu.dot_dimension_numbers<[1], [0], [0], [1], [0, 0, 1, 1], [], []>} : vector<4x96xf32>, vector<96x256xf32>, vector<4x256xf32> -> vector<4x256xf32>
    %379 = vector.broadcast %5 : vector<1x256xf32> to vector<4x256xf32>
    %380 = arith.addf %378, %379 : vector<4x256xf32>
    %381 = vector.extract_strided_slice %380 {offsets = [0, 0], sizes = [2, 128], strides = [1, 1]} : vector<4x256xf32> to vector<2x128xf32>
    %382 = vector.extract_strided_slice %380 {offsets = [2, 128], sizes = [2, 128], strides = [1, 1]} : vector<4x256xf32> to vector<2x128xf32>
    %383 = tpu.concatenate %381, %382 in 0 : vector<2x128xf32>, vector<2x128xf32> -> vector<4x128xf32>
    %384 = vector.extract_strided_slice %383 {offsets = [0, 0], sizes = [4, 32], strides = [1, 1]} : vector<4x128xf32> to vector<4x32xf32>
    %385 = arith.negf %384 : vector<4x32xf32>
    %386 = math.exp %385 : vector<4x32xf32>
    %cst_49 = arith.constant 1.000000e+00 : f32
    %387 = vector.broadcast %cst_49 : f32 to vector<4x32xf32>
    %388 = arith.addf %387, %386 : vector<4x32xf32>
    %389 = arith.divf %387, %388 : vector<4x32xf32>
    %390 = vector.extract_strided_slice %383 {offsets = [0, 32], sizes = [4, 32], strides = [1, 1]} : vector<4x128xf32> to vector<4x32xf32>
    %391 = arith.negf %390 : vector<4x32xf32>
    %392 = math.exp %391 : vector<4x32xf32>
    %cst_50 = arith.constant 1.000000e+00 : f32
    %393 = vector.broadcast %cst_50 : f32 to vector<4x32xf32>
    %394 = arith.addf %393, %392 : vector<4x32xf32>
    %395 = arith.divf %393, %394 : vector<4x32xf32>
    %396 = vector.extract_strided_slice %383 {offsets = [0, 64], sizes = [4, 32], strides = [1, 1]} : vector<4x128xf32> to vector<4x32xf32>
    %397 = math.tanh %396 : vector<4x32xf32>
    %398 = vector.extract_strided_slice %383 {offsets = [0, 96], sizes = [4, 32], strides = [1, 1]} : vector<4x128xf32> to vector<4x32xf32>
    %399 = arith.negf %398 : vector<4x32xf32>
    %400 = math.exp %399 : vector<4x32xf32>
    %cst_51 = arith.constant 1.000000e+00 : f32
    %401 = vector.broadcast %cst_51 : f32 to vector<4x32xf32>
    %402 = arith.addf %401, %400 : vector<4x32xf32>
    %403 = arith.divf %401, %402 : vector<4x32xf32>
    %404 = arith.mulf %395, %363 : vector<4x32xf32>
    %405 = arith.mulf %389, %397 : vector<4x32xf32>
    %406 = arith.addf %404, %405 : vector<4x32xf32>
    %407 = math.tanh %406 : vector<4x32xf32>
    %408 = arith.mulf %403, %407 : vector<4x32xf32>
    %409 = tpu.concatenate %373, %375 in 0 : vector<2x1xf32>, vector<2x1xf32> -> vector<4x1xf32>
    %410 = vector.broadcast %409 : vector<4x1xf32> to vector<4x32xf32>
    %411 = arith.mulf %410, %408 : vector<4x32xf32>
    %cst_52 = arith.constant 1.000000e+00 : f32
    %412 = vector.broadcast %cst_52 : f32 to vector<4x1xf32>
    %413 = arith.subf %412, %409 : vector<4x1xf32>
    %414 = vector.broadcast %413 : vector<4x1xf32> to vector<4x32xf32>
    %415 = arith.mulf %414, %356 : vector<4x32xf32>
    %416 = arith.addf %411, %415 : vector<4x32xf32>
    %417 = vector.broadcast %409 : vector<4x1xf32> to vector<4x32xf32>
    %418 = arith.mulf %417, %406 : vector<4x32xf32>
    %cst_53 = arith.constant 1.000000e+00 : f32
    %419 = vector.broadcast %cst_53 : f32 to vector<4x1xf32>
    %420 = arith.subf %419, %409 : vector<4x1xf32>
    %421 = vector.broadcast %420 : vector<4x1xf32> to vector<4x32xf32>
    %422 = arith.mulf %421, %363 : vector<4x32xf32>
    %423 = arith.addf %418, %422 : vector<4x32xf32>
    %424 = vector.broadcast %409 : vector<4x1xf32> to vector<4x32xf32>
    %425 = arith.mulf %424, %408 : vector<4x32xf32>
    %426 = vector.extract_strided_slice %425 {offsets = [0, 0], sizes = [2, 32], strides = [1, 1]} : vector<4x32xf32> to vector<2x32xf32>
    %427 = vector.extract_strided_slice %425 {offsets = [2, 0], sizes = [2, 32], strides = [1, 1]} : vector<4x32xf32> to vector<2x32xf32>
    %428 = vector.extract_strided_slice %0 {offsets = [7, 0, 0], sizes = [1, 2, 64], strides = [1, 1, 1]} : vector<8x2x64xf32> to vector<1x2x64xf32>
    %429 = vector.shape_cast %428 : vector<1x2x64xf32> to vector<2x64xf32>
    %430 = vector.extract_strided_slice %0 {offsets = [0, 0, 0], sizes = [1, 2, 64], strides = [1, 1, 1]} : vector<8x2x64xf32> to vector<1x2x64xf32>
    %431 = vector.shape_cast %430 : vector<1x2x64xf32> to vector<2x64xf32>
    %432 = vector.extract_strided_slice %1 {offsets = [7, 0, 0], sizes = [1, 2, 1], strides = [1, 1, 1]} : vector<8x2x1xf32> to vector<1x2x1xf32>
    %433 = vector.shape_cast %432 : vector<1x2x1xf32> to vector<2x1xf32>
    %434 = vector.extract_strided_slice %1 {offsets = [0, 0, 0], sizes = [1, 2, 1], strides = [1, 1, 1]} : vector<8x2x1xf32> to vector<1x2x1xf32>
    %435 = vector.shape_cast %434 : vector<1x2x1xf32> to vector<2x1xf32>
    %436 = tpu.concatenate %429, %431 in 0 : vector<2x64xf32>, vector<2x64xf32> -> vector<4x64xf32>
    %437 = tpu.concatenate %436, %416 in 1 : vector<4x64xf32>, vector<4x32xf32> -> vector<4x96xf32>
    %cst_54 = arith.constant dense<0.000000e+00> : vector<4x256xf32>
    %438 = tpu.matmul %437, %3, %cst_54 {dimension_numbers = #tpu.dot_dimension_numbers<[1], [0], [0], [1], [0, 0, 1, 1], [], []>} : vector<4x96xf32>, vector<96x256xf32>, vector<4x256xf32> -> vector<4x256xf32>
    %439 = vector.broadcast %5 : vector<1x256xf32> to vector<4x256xf32>
    %440 = arith.addf %438, %439 : vector<4x256xf32>
    %441 = vector.extract_strided_slice %440 {offsets = [0, 0], sizes = [2, 128], strides = [1, 1]} : vector<4x256xf32> to vector<2x128xf32>
    %442 = vector.extract_strided_slice %440 {offsets = [2, 128], sizes = [2, 128], strides = [1, 1]} : vector<4x256xf32> to vector<2x128xf32>
    %443 = tpu.concatenate %441, %442 in 0 : vector<2x128xf32>, vector<2x128xf32> -> vector<4x128xf32>
    %444 = vector.extract_strided_slice %443 {offsets = [0, 0], sizes = [4, 32], strides = [1, 1]} : vector<4x128xf32> to vector<4x32xf32>
    %445 = arith.negf %444 : vector<4x32xf32>
    %446 = math.exp %445 : vector<4x32xf32>
    %cst_55 = arith.constant 1.000000e+00 : f32
    %447 = vector.broadcast %cst_55 : f32 to vector<4x32xf32>
    %448 = arith.addf %447, %446 : vector<4x32xf32>
    %449 = arith.divf %447, %448 : vector<4x32xf32>
    %450 = vector.extract_strided_slice %443 {offsets = [0, 32], sizes = [4, 32], strides = [1, 1]} : vector<4x128xf32> to vector<4x32xf32>
    %451 = arith.negf %450 : vector<4x32xf32>
    %452 = math.exp %451 : vector<4x32xf32>
    %cst_56 = arith.constant 1.000000e+00 : f32
    %453 = vector.broadcast %cst_56 : f32 to vector<4x32xf32>
    %454 = arith.addf %453, %452 : vector<4x32xf32>
    %455 = arith.divf %453, %454 : vector<4x32xf32>
    %456 = vector.extract_strided_slice %443 {offsets = [0, 64], sizes = [4, 32], strides = [1, 1]} : vector<4x128xf32> to vector<4x32xf32>
    %457 = math.tanh %456 : vector<4x32xf32>
    %458 = vector.extract_strided_slice %443 {offsets = [0, 96], sizes = [4, 32], strides = [1, 1]} : vector<4x128xf32> to vector<4x32xf32>
    %459 = arith.negf %458 : vector<4x32xf32>
    %460 = math.exp %459 : vector<4x32xf32>
    %cst_57 = arith.constant 1.000000e+00 : f32
    %461 = vector.broadcast %cst_57 : f32 to vector<4x32xf32>
    %462 = arith.addf %461, %460 : vector<4x32xf32>
    %463 = arith.divf %461, %462 : vector<4x32xf32>
    %464 = arith.mulf %455, %423 : vector<4x32xf32>
    %465 = arith.mulf %449, %457 : vector<4x32xf32>
    %466 = arith.addf %464, %465 : vector<4x32xf32>
    %467 = math.tanh %466 : vector<4x32xf32>
    %468 = arith.mulf %463, %467 : vector<4x32xf32>
    %469 = tpu.concatenate %433, %435 in 0 : vector<2x1xf32>, vector<2x1xf32> -> vector<4x1xf32>
    %470 = vector.broadcast %469 : vector<4x1xf32> to vector<4x32xf32>
    %471 = arith.mulf %470, %468 : vector<4x32xf32>
    %472 = vector.extract_strided_slice %471 {offsets = [0, 0], sizes = [2, 32], strides = [1, 1]} : vector<4x32xf32> to vector<2x32xf32>
    %473 = vector.extract_strided_slice %471 {offsets = [2, 0], sizes = [2, 32], strides = [1, 1]} : vector<4x32xf32> to vector<2x32xf32>
    %474 = vector.shape_cast %66 : vector<2x32xf32> to vector<1x2x32xf32>
    %475 = vector.shape_cast %126 : vector<2x32xf32> to vector<1x2x32xf32>
    %476 = vector.shape_cast %186 : vector<2x32xf32> to vector<1x2x32xf32>
    %477 = vector.shape_cast %246 : vector<2x32xf32> to vector<1x2x32xf32>
    %478 = vector.shape_cast %306 : vector<2x32xf32> to vector<1x2x32xf32>
    %479 = vector.shape_cast %366 : vector<2x32xf32> to vector<1x2x32xf32>
    %480 = vector.shape_cast %426 : vector<2x32xf32> to vector<1x2x32xf32>
    %481 = vector.shape_cast %472 : vector<2x32xf32> to vector<1x2x32xf32>
    %482 = tpu.concatenate %474, %475, %476, %477, %478, %479, %480, %481 in 0 : vector<1x2x32xf32>, vector<1x2x32xf32>, vector<1x2x32xf32>, vector<1x2x32xf32>, vector<1x2x32xf32>, vector<1x2x32xf32>, vector<1x2x32xf32>, vector<1x2x32xf32> -> vector<8x2x32xf32>
    %483 = vector.shape_cast %473 : vector<2x32xf32> to vector<1x2x32xf32>
    %484 = vector.shape_cast %427 : vector<2x32xf32> to vector<1x2x32xf32>
    %485 = vector.shape_cast %367 : vector<2x32xf32> to vector<1x2x32xf32>
    %486 = vector.shape_cast %307 : vector<2x32xf32> to vector<1x2x32xf32>
    %487 = vector.shape_cast %247 : vector<2x32xf32> to vector<1x2x32xf32>
    %488 = vector.shape_cast %187 : vector<2x32xf32> to vector<1x2x32xf32>
    %489 = vector.shape_cast %127 : vector<2x32xf32> to vector<1x2x32xf32>
    %490 = vector.shape_cast %67 : vector<2x32xf32> to vector<1x2x32xf32>
    %491 = tpu.concatenate %483, %484, %485, %486, %487, %488, %489, %490 in 0 : vector<1x2x32xf32>, vector<1x2x32xf32>, vector<1x2x32xf32>, vector<1x2x32xf32>, vector<1x2x32xf32>, vector<1x2x32xf32>, vector<1x2x32xf32>, vector<1x2x32xf32> -> vector<8x2x32xf32>
    %492 = tpu.concatenate %482, %491 in 2 : vector<8x2x32xf32>, vector<8x2x32xf32> -> vector<8x2x64xf32>
    %c1 = arith.constant 1 : index
    %c0_58 = arith.constant 0 : index
    %c0_59 = arith.constant 0 : index
    %493 = vector.load %arg2[%c1, %c0_58, %c0_59] : memref<3x96x256xf32, #tpu.memory_space<vmem>>, vector<1x96x256xf32>
    %494 = vector.shape_cast %493 : vector<1x96x256xf32> to vector<96x256xf32>
    %c1_60 = arith.constant 1 : index
    %c0_61 = arith.constant 0 : index
    %c0_62 = arith.constant 0 : index
    %495 = vector.load %arg3[%c1_60, %c0_61, %c0_62] : memref<3x1x256xf32, #tpu.memory_space<vmem>>, vector<1x1x256xf32>
    %496 = vector.shape_cast %495 : vector<1x1x256xf32> to vector<1x256xf32>
    %cst_63 = arith.constant 0.000000e+00 : f32
    %497 = vector.broadcast %cst_63 : f32 to vector<4x32xf32>
    %cst_64 = arith.constant 0.000000e+00 : f32
    %498 = vector.broadcast %cst_64 : f32 to vector<4x32xf32>
    %499 = vector.extract_strided_slice %492 {offsets = [0, 0, 0], sizes = [1, 2, 64], strides = [1, 1, 1]} : vector<8x2x64xf32> to vector<1x2x64xf32>
    %500 = vector.shape_cast %499 : vector<1x2x64xf32> to vector<2x64xf32>
    %501 = vector.extract_strided_slice %492 {offsets = [7, 0, 0], sizes = [1, 2, 64], strides = [1, 1, 1]} : vector<8x2x64xf32> to vector<1x2x64xf32>
    %502 = vector.shape_cast %501 : vector<1x2x64xf32> to vector<2x64xf32>
    %503 = vector.extract_strided_slice %1 {offsets = [0, 0, 0], sizes = [1, 2, 1], strides = [1, 1, 1]} : vector<8x2x1xf32> to vector<1x2x1xf32>
    %504 = vector.shape_cast %503 : vector<1x2x1xf32> to vector<2x1xf32>
    %505 = vector.extract_strided_slice %1 {offsets = [7, 0, 0], sizes = [1, 2, 1], strides = [1, 1, 1]} : vector<8x2x1xf32> to vector<1x2x1xf32>
    %506 = vector.shape_cast %505 : vector<1x2x1xf32> to vector<2x1xf32>
    %507 = tpu.concatenate %500, %502 in 0 : vector<2x64xf32>, vector<2x64xf32> -> vector<4x64xf32>
    %508 = tpu.concatenate %507, %497 in 1 : vector<4x64xf32>, vector<4x32xf32> -> vector<4x96xf32>
    %cst_65 = arith.constant dense<0.000000e+00> : vector<4x256xf32>
    %509 = tpu.matmul %508, %494, %cst_65 {dimension_numbers = #tpu.dot_dimension_numbers<[1], [0], [0], [1], [0, 0, 1, 1], [], []>} : vector<4x96xf32>, vector<96x256xf32>, vector<4x256xf32> -> vector<4x256xf32>
    %510 = vector.broadcast %496 : vector<1x256xf32> to vector<4x256xf32>
    %511 = arith.addf %509, %510 : vector<4x256xf32>
    %512 = vector.extract_strided_slice %511 {offsets = [0, 0], sizes = [2, 128], strides = [1, 1]} : vector<4x256xf32> to vector<2x128xf32>
    %513 = vector.extract_strided_slice %511 {offsets = [2, 128], sizes = [2, 128], strides = [1, 1]} : vector<4x256xf32> to vector<2x128xf32>
    %514 = tpu.concatenate %512, %513 in 0 : vector<2x128xf32>, vector<2x128xf32> -> vector<4x128xf32>
    %515 = vector.extract_strided_slice %514 {offsets = [0, 0], sizes = [4, 32], strides = [1, 1]} : vector<4x128xf32> to vector<4x32xf32>
    %516 = arith.negf %515 : vector<4x32xf32>
    %517 = math.exp %516 : vector<4x32xf32>
    %cst_66 = arith.constant 1.000000e+00 : f32
    %518 = vector.broadcast %cst_66 : f32 to vector<4x32xf32>
    %519 = arith.addf %518, %517 : vector<4x32xf32>
    %520 = arith.divf %518, %519 : vector<4x32xf32>
    %521 = vector.extract_strided_slice %514 {offsets = [0, 32], sizes = [4, 32], strides = [1, 1]} : vector<4x128xf32> to vector<4x32xf32>
    %522 = arith.negf %521 : vector<4x32xf32>
    %523 = math.exp %522 : vector<4x32xf32>
    %cst_67 = arith.constant 1.000000e+00 : f32
    %524 = vector.broadcast %cst_67 : f32 to vector<4x32xf32>
    %525 = arith.addf %524, %523 : vector<4x32xf32>
    %526 = arith.divf %524, %525 : vector<4x32xf32>
    %527 = vector.extract_strided_slice %514 {offsets = [0, 64], sizes = [4, 32], strides = [1, 1]} : vector<4x128xf32> to vector<4x32xf32>
    %528 = math.tanh %527 : vector<4x32xf32>
    %529 = vector.extract_strided_slice %514 {offsets = [0, 96], sizes = [4, 32], strides = [1, 1]} : vector<4x128xf32> to vector<4x32xf32>
    %530 = arith.negf %529 : vector<4x32xf32>
    %531 = math.exp %530 : vector<4x32xf32>
    %cst_68 = arith.constant 1.000000e+00 : f32
    %532 = vector.broadcast %cst_68 : f32 to vector<4x32xf32>
    %533 = arith.addf %532, %531 : vector<4x32xf32>
    %534 = arith.divf %532, %533 : vector<4x32xf32>
    %535 = arith.mulf %526, %498 : vector<4x32xf32>
    %536 = arith.mulf %520, %528 : vector<4x32xf32>
    %537 = arith.addf %535, %536 : vector<4x32xf32>
    %538 = math.tanh %537 : vector<4x32xf32>
    %539 = arith.mulf %534, %538 : vector<4x32xf32>
    %540 = tpu.concatenate %504, %506 in 0 : vector<2x1xf32>, vector<2x1xf32> -> vector<4x1xf32>
    %541 = vector.broadcast %540 : vector<4x1xf32> to vector<4x32xf32>
    %542 = arith.mulf %541, %539 : vector<4x32xf32>
    %cst_69 = arith.constant 1.000000e+00 : f32
    %543 = vector.broadcast %cst_69 : f32 to vector<4x1xf32>
    %544 = arith.subf %543, %540 : vector<4x1xf32>
    %545 = vector.broadcast %544 : vector<4x1xf32> to vector<4x32xf32>
    %546 = arith.mulf %545, %497 : vector<4x32xf32>
    %547 = arith.addf %542, %546 : vector<4x32xf32>
    %548 = vector.broadcast %540 : vector<4x1xf32> to vector<4x32xf32>
    %549 = arith.mulf %548, %537 : vector<4x32xf32>
    %cst_70 = arith.constant 1.000000e+00 : f32
    %550 = vector.broadcast %cst_70 : f32 to vector<4x1xf32>
    %551 = arith.subf %550, %540 : vector<4x1xf32>
    %552 = vector.broadcast %551 : vector<4x1xf32> to vector<4x32xf32>
    %553 = arith.mulf %552, %498 : vector<4x32xf32>
    %554 = arith.addf %549, %553 : vector<4x32xf32>
    %555 = vector.broadcast %540 : vector<4x1xf32> to vector<4x32xf32>
    %556 = arith.mulf %555, %539 : vector<4x32xf32>
    %557 = vector.extract_strided_slice %556 {offsets = [0, 0], sizes = [2, 32], strides = [1, 1]} : vector<4x32xf32> to vector<2x32xf32>
    %558 = vector.extract_strided_slice %556 {offsets = [2, 0], sizes = [2, 32], strides = [1, 1]} : vector<4x32xf32> to vector<2x32xf32>
    %559 = vector.extract_strided_slice %492 {offsets = [1, 0, 0], sizes = [1, 2, 64], strides = [1, 1, 1]} : vector<8x2x64xf32> to vector<1x2x64xf32>
    %560 = vector.shape_cast %559 : vector<1x2x64xf32> to vector<2x64xf32>
    %561 = vector.extract_strided_slice %492 {offsets = [6, 0, 0], sizes = [1, 2, 64], strides = [1, 1, 1]} : vector<8x2x64xf32> to vector<1x2x64xf32>
    %562 = vector.shape_cast %561 : vector<1x2x64xf32> to vector<2x64xf32>
    %563 = vector.extract_strided_slice %1 {offsets = [1, 0, 0], sizes = [1, 2, 1], strides = [1, 1, 1]} : vector<8x2x1xf32> to vector<1x2x1xf32>
    %564 = vector.shape_cast %563 : vector<1x2x1xf32> to vector<2x1xf32>
    %565 = vector.extract_strided_slice %1 {offsets = [6, 0, 0], sizes = [1, 2, 1], strides = [1, 1, 1]} : vector<8x2x1xf32> to vector<1x2x1xf32>
    %566 = vector.shape_cast %565 : vector<1x2x1xf32> to vector<2x1xf32>
    %567 = tpu.concatenate %560, %562 in 0 : vector<2x64xf32>, vector<2x64xf32> -> vector<4x64xf32>
    %568 = tpu.concatenate %567, %547 in 1 : vector<4x64xf32>, vector<4x32xf32> -> vector<4x96xf32>
    %cst_71 = arith.constant dense<0.000000e+00> : vector<4x256xf32>
    %569 = tpu.matmul %568, %494, %cst_71 {dimension_numbers = #tpu.dot_dimension_numbers<[1], [0], [0], [1], [0, 0, 1, 1], [], []>} : vector<4x96xf32>, vector<96x256xf32>, vector<4x256xf32> -> vector<4x256xf32>
    %570 = vector.broadcast %496 : vector<1x256xf32> to vector<4x256xf32>
    %571 = arith.addf %569, %570 : vector<4x256xf32>
    %572 = vector.extract_strided_slice %571 {offsets = [0, 0], sizes = [2, 128], strides = [1, 1]} : vector<4x256xf32> to vector<2x128xf32>
    %573 = vector.extract_strided_slice %571 {offsets = [2, 128], sizes = [2, 128], strides = [1, 1]} : vector<4x256xf32> to vector<2x128xf32>
    %574 = tpu.concatenate %572, %573 in 0 : vector<2x128xf32>, vector<2x128xf32> -> vector<4x128xf32>
    %575 = vector.extract_strided_slice %574 {offsets = [0, 0], sizes = [4, 32], strides = [1, 1]} : vector<4x128xf32> to vector<4x32xf32>
    %576 = arith.negf %575 : vector<4x32xf32>
    %577 = math.exp %576 : vector<4x32xf32>
    %cst_72 = arith.constant 1.000000e+00 : f32
    %578 = vector.broadcast %cst_72 : f32 to vector<4x32xf32>
    %579 = arith.addf %578, %577 : vector<4x32xf32>
    %580 = arith.divf %578, %579 : vector<4x32xf32>
    %581 = vector.extract_strided_slice %574 {offsets = [0, 32], sizes = [4, 32], strides = [1, 1]} : vector<4x128xf32> to vector<4x32xf32>
    %582 = arith.negf %581 : vector<4x32xf32>
    %583 = math.exp %582 : vector<4x32xf32>
    %cst_73 = arith.constant 1.000000e+00 : f32
    %584 = vector.broadcast %cst_73 : f32 to vector<4x32xf32>
    %585 = arith.addf %584, %583 : vector<4x32xf32>
    %586 = arith.divf %584, %585 : vector<4x32xf32>
    %587 = vector.extract_strided_slice %574 {offsets = [0, 64], sizes = [4, 32], strides = [1, 1]} : vector<4x128xf32> to vector<4x32xf32>
    %588 = math.tanh %587 : vector<4x32xf32>
    %589 = vector.extract_strided_slice %574 {offsets = [0, 96], sizes = [4, 32], strides = [1, 1]} : vector<4x128xf32> to vector<4x32xf32>
    %590 = arith.negf %589 : vector<4x32xf32>
    %591 = math.exp %590 : vector<4x32xf32>
    %cst_74 = arith.constant 1.000000e+00 : f32
    %592 = vector.broadcast %cst_74 : f32 to vector<4x32xf32>
    %593 = arith.addf %592, %591 : vector<4x32xf32>
    %594 = arith.divf %592, %593 : vector<4x32xf32>
    %595 = arith.mulf %586, %554 : vector<4x32xf32>
    %596 = arith.mulf %580, %588 : vector<4x32xf32>
    %597 = arith.addf %595, %596 : vector<4x32xf32>
    %598 = math.tanh %597 : vector<4x32xf32>
    %599 = arith.mulf %594, %598 : vector<4x32xf32>
    %600 = tpu.concatenate %564, %566 in 0 : vector<2x1xf32>, vector<2x1xf32> -> vector<4x1xf32>
    %601 = vector.broadcast %600 : vector<4x1xf32> to vector<4x32xf32>
    %602 = arith.mulf %601, %599 : vector<4x32xf32>
    %cst_75 = arith.constant 1.000000e+00 : f32
    %603 = vector.broadcast %cst_75 : f32 to vector<4x1xf32>
    %604 = arith.subf %603, %600 : vector<4x1xf32>
    %605 = vector.broadcast %604 : vector<4x1xf32> to vector<4x32xf32>
    %606 = arith.mulf %605, %547 : vector<4x32xf32>
    %607 = arith.addf %602, %606 : vector<4x32xf32>
    %608 = vector.broadcast %600 : vector<4x1xf32> to vector<4x32xf32>
    %609 = arith.mulf %608, %597 : vector<4x32xf32>
    %cst_76 = arith.constant 1.000000e+00 : f32
    %610 = vector.broadcast %cst_76 : f32 to vector<4x1xf32>
    %611 = arith.subf %610, %600 : vector<4x1xf32>
    %612 = vector.broadcast %611 : vector<4x1xf32> to vector<4x32xf32>
    %613 = arith.mulf %612, %554 : vector<4x32xf32>
    %614 = arith.addf %609, %613 : vector<4x32xf32>
    %615 = vector.broadcast %600 : vector<4x1xf32> to vector<4x32xf32>
    %616 = arith.mulf %615, %599 : vector<4x32xf32>
    %617 = vector.extract_strided_slice %616 {offsets = [0, 0], sizes = [2, 32], strides = [1, 1]} : vector<4x32xf32> to vector<2x32xf32>
    %618 = vector.extract_strided_slice %616 {offsets = [2, 0], sizes = [2, 32], strides = [1, 1]} : vector<4x32xf32> to vector<2x32xf32>
    %619 = vector.extract_strided_slice %492 {offsets = [2, 0, 0], sizes = [1, 2, 64], strides = [1, 1, 1]} : vector<8x2x64xf32> to vector<1x2x64xf32>
    %620 = vector.shape_cast %619 : vector<1x2x64xf32> to vector<2x64xf32>
    %621 = vector.extract_strided_slice %492 {offsets = [5, 0, 0], sizes = [1, 2, 64], strides = [1, 1, 1]} : vector<8x2x64xf32> to vector<1x2x64xf32>
    %622 = vector.shape_cast %621 : vector<1x2x64xf32> to vector<2x64xf32>
    %623 = vector.extract_strided_slice %1 {offsets = [2, 0, 0], sizes = [1, 2, 1], strides = [1, 1, 1]} : vector<8x2x1xf32> to vector<1x2x1xf32>
    %624 = vector.shape_cast %623 : vector<1x2x1xf32> to vector<2x1xf32>
    %625 = vector.extract_strided_slice %1 {offsets = [5, 0, 0], sizes = [1, 2, 1], strides = [1, 1, 1]} : vector<8x2x1xf32> to vector<1x2x1xf32>
    %626 = vector.shape_cast %625 : vector<1x2x1xf32> to vector<2x1xf32>
    %627 = tpu.concatenate %620, %622 in 0 : vector<2x64xf32>, vector<2x64xf32> -> vector<4x64xf32>
    %628 = tpu.concatenate %627, %607 in 1 : vector<4x64xf32>, vector<4x32xf32> -> vector<4x96xf32>
    %cst_77 = arith.constant dense<0.000000e+00> : vector<4x256xf32>
    %629 = tpu.matmul %628, %494, %cst_77 {dimension_numbers = #tpu.dot_dimension_numbers<[1], [0], [0], [1], [0, 0, 1, 1], [], []>} : vector<4x96xf32>, vector<96x256xf32>, vector<4x256xf32> -> vector<4x256xf32>
    %630 = vector.broadcast %496 : vector<1x256xf32> to vector<4x256xf32>
    %631 = arith.addf %629, %630 : vector<4x256xf32>
    %632 = vector.extract_strided_slice %631 {offsets = [0, 0], sizes = [2, 128], strides = [1, 1]} : vector<4x256xf32> to vector<2x128xf32>
    %633 = vector.extract_strided_slice %631 {offsets = [2, 128], sizes = [2, 128], strides = [1, 1]} : vector<4x256xf32> to vector<2x128xf32>
    %634 = tpu.concatenate %632, %633 in 0 : vector<2x128xf32>, vector<2x128xf32> -> vector<4x128xf32>
    %635 = vector.extract_strided_slice %634 {offsets = [0, 0], sizes = [4, 32], strides = [1, 1]} : vector<4x128xf32> to vector<4x32xf32>
    %636 = arith.negf %635 : vector<4x32xf32>
    %637 = math.exp %636 : vector<4x32xf32>
    %cst_78 = arith.constant 1.000000e+00 : f32
    %638 = vector.broadcast %cst_78 : f32 to vector<4x32xf32>
    %639 = arith.addf %638, %637 : vector<4x32xf32>
    %640 = arith.divf %638, %639 : vector<4x32xf32>
    %641 = vector.extract_strided_slice %634 {offsets = [0, 32], sizes = [4, 32], strides = [1, 1]} : vector<4x128xf32> to vector<4x32xf32>
    %642 = arith.negf %641 : vector<4x32xf32>
    %643 = math.exp %642 : vector<4x32xf32>
    %cst_79 = arith.constant 1.000000e+00 : f32
    %644 = vector.broadcast %cst_79 : f32 to vector<4x32xf32>
    %645 = arith.addf %644, %643 : vector<4x32xf32>
    %646 = arith.divf %644, %645 : vector<4x32xf32>
    %647 = vector.extract_strided_slice %634 {offsets = [0, 64], sizes = [4, 32], strides = [1, 1]} : vector<4x128xf32> to vector<4x32xf32>
    %648 = math.tanh %647 : vector<4x32xf32>
    %649 = vector.extract_strided_slice %634 {offsets = [0, 96], sizes = [4, 32], strides = [1, 1]} : vector<4x128xf32> to vector<4x32xf32>
    %650 = arith.negf %649 : vector<4x32xf32>
    %651 = math.exp %650 : vector<4x32xf32>
    %cst_80 = arith.constant 1.000000e+00 : f32
    %652 = vector.broadcast %cst_80 : f32 to vector<4x32xf32>
    %653 = arith.addf %652, %651 : vector<4x32xf32>
    %654 = arith.divf %652, %653 : vector<4x32xf32>
    %655 = arith.mulf %646, %614 : vector<4x32xf32>
    %656 = arith.mulf %640, %648 : vector<4x32xf32>
    %657 = arith.addf %655, %656 : vector<4x32xf32>
    %658 = math.tanh %657 : vector<4x32xf32>
    %659 = arith.mulf %654, %658 : vector<4x32xf32>
    %660 = tpu.concatenate %624, %626 in 0 : vector<2x1xf32>, vector<2x1xf32> -> vector<4x1xf32>
    %661 = vector.broadcast %660 : vector<4x1xf32> to vector<4x32xf32>
    %662 = arith.mulf %661, %659 : vector<4x32xf32>
    %cst_81 = arith.constant 1.000000e+00 : f32
    %663 = vector.broadcast %cst_81 : f32 to vector<4x1xf32>
    %664 = arith.subf %663, %660 : vector<4x1xf32>
    %665 = vector.broadcast %664 : vector<4x1xf32> to vector<4x32xf32>
    %666 = arith.mulf %665, %607 : vector<4x32xf32>
    %667 = arith.addf %662, %666 : vector<4x32xf32>
    %668 = vector.broadcast %660 : vector<4x1xf32> to vector<4x32xf32>
    %669 = arith.mulf %668, %657 : vector<4x32xf32>
    %cst_82 = arith.constant 1.000000e+00 : f32
    %670 = vector.broadcast %cst_82 : f32 to vector<4x1xf32>
    %671 = arith.subf %670, %660 : vector<4x1xf32>
    %672 = vector.broadcast %671 : vector<4x1xf32> to vector<4x32xf32>
    %673 = arith.mulf %672, %614 : vector<4x32xf32>
    %674 = arith.addf %669, %673 : vector<4x32xf32>
    %675 = vector.broadcast %660 : vector<4x1xf32> to vector<4x32xf32>
    %676 = arith.mulf %675, %659 : vector<4x32xf32>
    %677 = vector.extract_strided_slice %676 {offsets = [0, 0], sizes = [2, 32], strides = [1, 1]} : vector<4x32xf32> to vector<2x32xf32>
    %678 = vector.extract_strided_slice %676 {offsets = [2, 0], sizes = [2, 32], strides = [1, 1]} : vector<4x32xf32> to vector<2x32xf32>
    %679 = vector.extract_strided_slice %492 {offsets = [3, 0, 0], sizes = [1, 2, 64], strides = [1, 1, 1]} : vector<8x2x64xf32> to vector<1x2x64xf32>
    %680 = vector.shape_cast %679 : vector<1x2x64xf32> to vector<2x64xf32>
    %681 = vector.extract_strided_slice %492 {offsets = [4, 0, 0], sizes = [1, 2, 64], strides = [1, 1, 1]} : vector<8x2x64xf32> to vector<1x2x64xf32>
    %682 = vector.shape_cast %681 : vector<1x2x64xf32> to vector<2x64xf32>
    %683 = vector.extract_strided_slice %1 {offsets = [3, 0, 0], sizes = [1, 2, 1], strides = [1, 1, 1]} : vector<8x2x1xf32> to vector<1x2x1xf32>
    %684 = vector.shape_cast %683 : vector<1x2x1xf32> to vector<2x1xf32>
    %685 = vector.extract_strided_slice %1 {offsets = [4, 0, 0], sizes = [1, 2, 1], strides = [1, 1, 1]} : vector<8x2x1xf32> to vector<1x2x1xf32>
    %686 = vector.shape_cast %685 : vector<1x2x1xf32> to vector<2x1xf32>
    %687 = tpu.concatenate %680, %682 in 0 : vector<2x64xf32>, vector<2x64xf32> -> vector<4x64xf32>
    %688 = tpu.concatenate %687, %667 in 1 : vector<4x64xf32>, vector<4x32xf32> -> vector<4x96xf32>
    %cst_83 = arith.constant dense<0.000000e+00> : vector<4x256xf32>
    %689 = tpu.matmul %688, %494, %cst_83 {dimension_numbers = #tpu.dot_dimension_numbers<[1], [0], [0], [1], [0, 0, 1, 1], [], []>} : vector<4x96xf32>, vector<96x256xf32>, vector<4x256xf32> -> vector<4x256xf32>
    %690 = vector.broadcast %496 : vector<1x256xf32> to vector<4x256xf32>
    %691 = arith.addf %689, %690 : vector<4x256xf32>
    %692 = vector.extract_strided_slice %691 {offsets = [0, 0], sizes = [2, 128], strides = [1, 1]} : vector<4x256xf32> to vector<2x128xf32>
    %693 = vector.extract_strided_slice %691 {offsets = [2, 128], sizes = [2, 128], strides = [1, 1]} : vector<4x256xf32> to vector<2x128xf32>
    %694 = tpu.concatenate %692, %693 in 0 : vector<2x128xf32>, vector<2x128xf32> -> vector<4x128xf32>
    %695 = vector.extract_strided_slice %694 {offsets = [0, 0], sizes = [4, 32], strides = [1, 1]} : vector<4x128xf32> to vector<4x32xf32>
    %696 = arith.negf %695 : vector<4x32xf32>
    %697 = math.exp %696 : vector<4x32xf32>
    %cst_84 = arith.constant 1.000000e+00 : f32
    %698 = vector.broadcast %cst_84 : f32 to vector<4x32xf32>
    %699 = arith.addf %698, %697 : vector<4x32xf32>
    %700 = arith.divf %698, %699 : vector<4x32xf32>
    %701 = vector.extract_strided_slice %694 {offsets = [0, 32], sizes = [4, 32], strides = [1, 1]} : vector<4x128xf32> to vector<4x32xf32>
    %702 = arith.negf %701 : vector<4x32xf32>
    %703 = math.exp %702 : vector<4x32xf32>
    %cst_85 = arith.constant 1.000000e+00 : f32
    %704 = vector.broadcast %cst_85 : f32 to vector<4x32xf32>
    %705 = arith.addf %704, %703 : vector<4x32xf32>
    %706 = arith.divf %704, %705 : vector<4x32xf32>
    %707 = vector.extract_strided_slice %694 {offsets = [0, 64], sizes = [4, 32], strides = [1, 1]} : vector<4x128xf32> to vector<4x32xf32>
    %708 = math.tanh %707 : vector<4x32xf32>
    %709 = vector.extract_strided_slice %694 {offsets = [0, 96], sizes = [4, 32], strides = [1, 1]} : vector<4x128xf32> to vector<4x32xf32>
    %710 = arith.negf %709 : vector<4x32xf32>
    %711 = math.exp %710 : vector<4x32xf32>
    %cst_86 = arith.constant 1.000000e+00 : f32
    %712 = vector.broadcast %cst_86 : f32 to vector<4x32xf32>
    %713 = arith.addf %712, %711 : vector<4x32xf32>
    %714 = arith.divf %712, %713 : vector<4x32xf32>
    %715 = arith.mulf %706, %674 : vector<4x32xf32>
    %716 = arith.mulf %700, %708 : vector<4x32xf32>
    %717 = arith.addf %715, %716 : vector<4x32xf32>
    %718 = math.tanh %717 : vector<4x32xf32>
    %719 = arith.mulf %714, %718 : vector<4x32xf32>
    %720 = tpu.concatenate %684, %686 in 0 : vector<2x1xf32>, vector<2x1xf32> -> vector<4x1xf32>
    %721 = vector.broadcast %720 : vector<4x1xf32> to vector<4x32xf32>
    %722 = arith.mulf %721, %719 : vector<4x32xf32>
    %cst_87 = arith.constant 1.000000e+00 : f32
    %723 = vector.broadcast %cst_87 : f32 to vector<4x1xf32>
    %724 = arith.subf %723, %720 : vector<4x1xf32>
    %725 = vector.broadcast %724 : vector<4x1xf32> to vector<4x32xf32>
    %726 = arith.mulf %725, %667 : vector<4x32xf32>
    %727 = arith.addf %722, %726 : vector<4x32xf32>
    %728 = vector.broadcast %720 : vector<4x1xf32> to vector<4x32xf32>
    %729 = arith.mulf %728, %717 : vector<4x32xf32>
    %cst_88 = arith.constant 1.000000e+00 : f32
    %730 = vector.broadcast %cst_88 : f32 to vector<4x1xf32>
    %731 = arith.subf %730, %720 : vector<4x1xf32>
    %732 = vector.broadcast %731 : vector<4x1xf32> to vector<4x32xf32>
    %733 = arith.mulf %732, %674 : vector<4x32xf32>
    %734 = arith.addf %729, %733 : vector<4x32xf32>
    %735 = vector.broadcast %720 : vector<4x1xf32> to vector<4x32xf32>
    %736 = arith.mulf %735, %719 : vector<4x32xf32>
    %737 = vector.extract_strided_slice %736 {offsets = [0, 0], sizes = [2, 32], strides = [1, 1]} : vector<4x32xf32> to vector<2x32xf32>
    %738 = vector.extract_strided_slice %736 {offsets = [2, 0], sizes = [2, 32], strides = [1, 1]} : vector<4x32xf32> to vector<2x32xf32>
    %739 = vector.extract_strided_slice %492 {offsets = [4, 0, 0], sizes = [1, 2, 64], strides = [1, 1, 1]} : vector<8x2x64xf32> to vector<1x2x64xf32>
    %740 = vector.shape_cast %739 : vector<1x2x64xf32> to vector<2x64xf32>
    %741 = vector.extract_strided_slice %492 {offsets = [3, 0, 0], sizes = [1, 2, 64], strides = [1, 1, 1]} : vector<8x2x64xf32> to vector<1x2x64xf32>
    %742 = vector.shape_cast %741 : vector<1x2x64xf32> to vector<2x64xf32>
    %743 = vector.extract_strided_slice %1 {offsets = [4, 0, 0], sizes = [1, 2, 1], strides = [1, 1, 1]} : vector<8x2x1xf32> to vector<1x2x1xf32>
    %744 = vector.shape_cast %743 : vector<1x2x1xf32> to vector<2x1xf32>
    %745 = vector.extract_strided_slice %1 {offsets = [3, 0, 0], sizes = [1, 2, 1], strides = [1, 1, 1]} : vector<8x2x1xf32> to vector<1x2x1xf32>
    %746 = vector.shape_cast %745 : vector<1x2x1xf32> to vector<2x1xf32>
    %747 = tpu.concatenate %740, %742 in 0 : vector<2x64xf32>, vector<2x64xf32> -> vector<4x64xf32>
    %748 = tpu.concatenate %747, %727 in 1 : vector<4x64xf32>, vector<4x32xf32> -> vector<4x96xf32>
    %cst_89 = arith.constant dense<0.000000e+00> : vector<4x256xf32>
    %749 = tpu.matmul %748, %494, %cst_89 {dimension_numbers = #tpu.dot_dimension_numbers<[1], [0], [0], [1], [0, 0, 1, 1], [], []>} : vector<4x96xf32>, vector<96x256xf32>, vector<4x256xf32> -> vector<4x256xf32>
    %750 = vector.broadcast %496 : vector<1x256xf32> to vector<4x256xf32>
    %751 = arith.addf %749, %750 : vector<4x256xf32>
    %752 = vector.extract_strided_slice %751 {offsets = [0, 0], sizes = [2, 128], strides = [1, 1]} : vector<4x256xf32> to vector<2x128xf32>
    %753 = vector.extract_strided_slice %751 {offsets = [2, 128], sizes = [2, 128], strides = [1, 1]} : vector<4x256xf32> to vector<2x128xf32>
    %754 = tpu.concatenate %752, %753 in 0 : vector<2x128xf32>, vector<2x128xf32> -> vector<4x128xf32>
    %755 = vector.extract_strided_slice %754 {offsets = [0, 0], sizes = [4, 32], strides = [1, 1]} : vector<4x128xf32> to vector<4x32xf32>
    %756 = arith.negf %755 : vector<4x32xf32>
    %757 = math.exp %756 : vector<4x32xf32>
    %cst_90 = arith.constant 1.000000e+00 : f32
    %758 = vector.broadcast %cst_90 : f32 to vector<4x32xf32>
    %759 = arith.addf %758, %757 : vector<4x32xf32>
    %760 = arith.divf %758, %759 : vector<4x32xf32>
    %761 = vector.extract_strided_slice %754 {offsets = [0, 32], sizes = [4, 32], strides = [1, 1]} : vector<4x128xf32> to vector<4x32xf32>
    %762 = arith.negf %761 : vector<4x32xf32>
    %763 = math.exp %762 : vector<4x32xf32>
    %cst_91 = arith.constant 1.000000e+00 : f32
    %764 = vector.broadcast %cst_91 : f32 to vector<4x32xf32>
    %765 = arith.addf %764, %763 : vector<4x32xf32>
    %766 = arith.divf %764, %765 : vector<4x32xf32>
    %767 = vector.extract_strided_slice %754 {offsets = [0, 64], sizes = [4, 32], strides = [1, 1]} : vector<4x128xf32> to vector<4x32xf32>
    %768 = math.tanh %767 : vector<4x32xf32>
    %769 = vector.extract_strided_slice %754 {offsets = [0, 96], sizes = [4, 32], strides = [1, 1]} : vector<4x128xf32> to vector<4x32xf32>
    %770 = arith.negf %769 : vector<4x32xf32>
    %771 = math.exp %770 : vector<4x32xf32>
    %cst_92 = arith.constant 1.000000e+00 : f32
    %772 = vector.broadcast %cst_92 : f32 to vector<4x32xf32>
    %773 = arith.addf %772, %771 : vector<4x32xf32>
    %774 = arith.divf %772, %773 : vector<4x32xf32>
    %775 = arith.mulf %766, %734 : vector<4x32xf32>
    %776 = arith.mulf %760, %768 : vector<4x32xf32>
    %777 = arith.addf %775, %776 : vector<4x32xf32>
    %778 = math.tanh %777 : vector<4x32xf32>
    %779 = arith.mulf %774, %778 : vector<4x32xf32>
    %780 = tpu.concatenate %744, %746 in 0 : vector<2x1xf32>, vector<2x1xf32> -> vector<4x1xf32>
    %781 = vector.broadcast %780 : vector<4x1xf32> to vector<4x32xf32>
    %782 = arith.mulf %781, %779 : vector<4x32xf32>
    %cst_93 = arith.constant 1.000000e+00 : f32
    %783 = vector.broadcast %cst_93 : f32 to vector<4x1xf32>
    %784 = arith.subf %783, %780 : vector<4x1xf32>
    %785 = vector.broadcast %784 : vector<4x1xf32> to vector<4x32xf32>
    %786 = arith.mulf %785, %727 : vector<4x32xf32>
    %787 = arith.addf %782, %786 : vector<4x32xf32>
    %788 = vector.broadcast %780 : vector<4x1xf32> to vector<4x32xf32>
    %789 = arith.mulf %788, %777 : vector<4x32xf32>
    %cst_94 = arith.constant 1.000000e+00 : f32
    %790 = vector.broadcast %cst_94 : f32 to vector<4x1xf32>
    %791 = arith.subf %790, %780 : vector<4x1xf32>
    %792 = vector.broadcast %791 : vector<4x1xf32> to vector<4x32xf32>
    %793 = arith.mulf %792, %734 : vector<4x32xf32>
    %794 = arith.addf %789, %793 : vector<4x32xf32>
    %795 = vector.broadcast %780 : vector<4x1xf32> to vector<4x32xf32>
    %796 = arith.mulf %795, %779 : vector<4x32xf32>
    %797 = vector.extract_strided_slice %796 {offsets = [0, 0], sizes = [2, 32], strides = [1, 1]} : vector<4x32xf32> to vector<2x32xf32>
    %798 = vector.extract_strided_slice %796 {offsets = [2, 0], sizes = [2, 32], strides = [1, 1]} : vector<4x32xf32> to vector<2x32xf32>
    %799 = vector.extract_strided_slice %492 {offsets = [5, 0, 0], sizes = [1, 2, 64], strides = [1, 1, 1]} : vector<8x2x64xf32> to vector<1x2x64xf32>
    %800 = vector.shape_cast %799 : vector<1x2x64xf32> to vector<2x64xf32>
    %801 = vector.extract_strided_slice %492 {offsets = [2, 0, 0], sizes = [1, 2, 64], strides = [1, 1, 1]} : vector<8x2x64xf32> to vector<1x2x64xf32>
    %802 = vector.shape_cast %801 : vector<1x2x64xf32> to vector<2x64xf32>
    %803 = vector.extract_strided_slice %1 {offsets = [5, 0, 0], sizes = [1, 2, 1], strides = [1, 1, 1]} : vector<8x2x1xf32> to vector<1x2x1xf32>
    %804 = vector.shape_cast %803 : vector<1x2x1xf32> to vector<2x1xf32>
    %805 = vector.extract_strided_slice %1 {offsets = [2, 0, 0], sizes = [1, 2, 1], strides = [1, 1, 1]} : vector<8x2x1xf32> to vector<1x2x1xf32>
    %806 = vector.shape_cast %805 : vector<1x2x1xf32> to vector<2x1xf32>
    %807 = tpu.concatenate %800, %802 in 0 : vector<2x64xf32>, vector<2x64xf32> -> vector<4x64xf32>
    %808 = tpu.concatenate %807, %787 in 1 : vector<4x64xf32>, vector<4x32xf32> -> vector<4x96xf32>
    %cst_95 = arith.constant dense<0.000000e+00> : vector<4x256xf32>
    %809 = tpu.matmul %808, %494, %cst_95 {dimension_numbers = #tpu.dot_dimension_numbers<[1], [0], [0], [1], [0, 0, 1, 1], [], []>} : vector<4x96xf32>, vector<96x256xf32>, vector<4x256xf32> -> vector<4x256xf32>
    %810 = vector.broadcast %496 : vector<1x256xf32> to vector<4x256xf32>
    %811 = arith.addf %809, %810 : vector<4x256xf32>
    %812 = vector.extract_strided_slice %811 {offsets = [0, 0], sizes = [2, 128], strides = [1, 1]} : vector<4x256xf32> to vector<2x128xf32>
    %813 = vector.extract_strided_slice %811 {offsets = [2, 128], sizes = [2, 128], strides = [1, 1]} : vector<4x256xf32> to vector<2x128xf32>
    %814 = tpu.concatenate %812, %813 in 0 : vector<2x128xf32>, vector<2x128xf32> -> vector<4x128xf32>
    %815 = vector.extract_strided_slice %814 {offsets = [0, 0], sizes = [4, 32], strides = [1, 1]} : vector<4x128xf32> to vector<4x32xf32>
    %816 = arith.negf %815 : vector<4x32xf32>
    %817 = math.exp %816 : vector<4x32xf32>
    %cst_96 = arith.constant 1.000000e+00 : f32
    %818 = vector.broadcast %cst_96 : f32 to vector<4x32xf32>
    %819 = arith.addf %818, %817 : vector<4x32xf32>
    %820 = arith.divf %818, %819 : vector<4x32xf32>
    %821 = vector.extract_strided_slice %814 {offsets = [0, 32], sizes = [4, 32], strides = [1, 1]} : vector<4x128xf32> to vector<4x32xf32>
    %822 = arith.negf %821 : vector<4x32xf32>
    %823 = math.exp %822 : vector<4x32xf32>
    %cst_97 = arith.constant 1.000000e+00 : f32
    %824 = vector.broadcast %cst_97 : f32 to vector<4x32xf32>
    %825 = arith.addf %824, %823 : vector<4x32xf32>
    %826 = arith.divf %824, %825 : vector<4x32xf32>
    %827 = vector.extract_strided_slice %814 {offsets = [0, 64], sizes = [4, 32], strides = [1, 1]} : vector<4x128xf32> to vector<4x32xf32>
    %828 = math.tanh %827 : vector<4x32xf32>
    %829 = vector.extract_strided_slice %814 {offsets = [0, 96], sizes = [4, 32], strides = [1, 1]} : vector<4x128xf32> to vector<4x32xf32>
    %830 = arith.negf %829 : vector<4x32xf32>
    %831 = math.exp %830 : vector<4x32xf32>
    %cst_98 = arith.constant 1.000000e+00 : f32
    %832 = vector.broadcast %cst_98 : f32 to vector<4x32xf32>
    %833 = arith.addf %832, %831 : vector<4x32xf32>
    %834 = arith.divf %832, %833 : vector<4x32xf32>
    %835 = arith.mulf %826, %794 : vector<4x32xf32>
    %836 = arith.mulf %820, %828 : vector<4x32xf32>
    %837 = arith.addf %835, %836 : vector<4x32xf32>
    %838 = math.tanh %837 : vector<4x32xf32>
    %839 = arith.mulf %834, %838 : vector<4x32xf32>
    %840 = tpu.concatenate %804, %806 in 0 : vector<2x1xf32>, vector<2x1xf32> -> vector<4x1xf32>
    %841 = vector.broadcast %840 : vector<4x1xf32> to vector<4x32xf32>
    %842 = arith.mulf %841, %839 : vector<4x32xf32>
    %cst_99 = arith.constant 1.000000e+00 : f32
    %843 = vector.broadcast %cst_99 : f32 to vector<4x1xf32>
    %844 = arith.subf %843, %840 : vector<4x1xf32>
    %845 = vector.broadcast %844 : vector<4x1xf32> to vector<4x32xf32>
    %846 = arith.mulf %845, %787 : vector<4x32xf32>
    %847 = arith.addf %842, %846 : vector<4x32xf32>
    %848 = vector.broadcast %840 : vector<4x1xf32> to vector<4x32xf32>
    %849 = arith.mulf %848, %837 : vector<4x32xf32>
    %cst_100 = arith.constant 1.000000e+00 : f32
    %850 = vector.broadcast %cst_100 : f32 to vector<4x1xf32>
    %851 = arith.subf %850, %840 : vector<4x1xf32>
    %852 = vector.broadcast %851 : vector<4x1xf32> to vector<4x32xf32>
    %853 = arith.mulf %852, %794 : vector<4x32xf32>
    %854 = arith.addf %849, %853 : vector<4x32xf32>
    %855 = vector.broadcast %840 : vector<4x1xf32> to vector<4x32xf32>
    %856 = arith.mulf %855, %839 : vector<4x32xf32>
    %857 = vector.extract_strided_slice %856 {offsets = [0, 0], sizes = [2, 32], strides = [1, 1]} : vector<4x32xf32> to vector<2x32xf32>
    %858 = vector.extract_strided_slice %856 {offsets = [2, 0], sizes = [2, 32], strides = [1, 1]} : vector<4x32xf32> to vector<2x32xf32>
    %859 = vector.extract_strided_slice %492 {offsets = [6, 0, 0], sizes = [1, 2, 64], strides = [1, 1, 1]} : vector<8x2x64xf32> to vector<1x2x64xf32>
    %860 = vector.shape_cast %859 : vector<1x2x64xf32> to vector<2x64xf32>
    %861 = vector.extract_strided_slice %492 {offsets = [1, 0, 0], sizes = [1, 2, 64], strides = [1, 1, 1]} : vector<8x2x64xf32> to vector<1x2x64xf32>
    %862 = vector.shape_cast %861 : vector<1x2x64xf32> to vector<2x64xf32>
    %863 = vector.extract_strided_slice %1 {offsets = [6, 0, 0], sizes = [1, 2, 1], strides = [1, 1, 1]} : vector<8x2x1xf32> to vector<1x2x1xf32>
    %864 = vector.shape_cast %863 : vector<1x2x1xf32> to vector<2x1xf32>
    %865 = vector.extract_strided_slice %1 {offsets = [1, 0, 0], sizes = [1, 2, 1], strides = [1, 1, 1]} : vector<8x2x1xf32> to vector<1x2x1xf32>
    %866 = vector.shape_cast %865 : vector<1x2x1xf32> to vector<2x1xf32>
    %867 = tpu.concatenate %860, %862 in 0 : vector<2x64xf32>, vector<2x64xf32> -> vector<4x64xf32>
    %868 = tpu.concatenate %867, %847 in 1 : vector<4x64xf32>, vector<4x32xf32> -> vector<4x96xf32>
    %cst_101 = arith.constant dense<0.000000e+00> : vector<4x256xf32>
    %869 = tpu.matmul %868, %494, %cst_101 {dimension_numbers = #tpu.dot_dimension_numbers<[1], [0], [0], [1], [0, 0, 1, 1], [], []>} : vector<4x96xf32>, vector<96x256xf32>, vector<4x256xf32> -> vector<4x256xf32>
    %870 = vector.broadcast %496 : vector<1x256xf32> to vector<4x256xf32>
    %871 = arith.addf %869, %870 : vector<4x256xf32>
    %872 = vector.extract_strided_slice %871 {offsets = [0, 0], sizes = [2, 128], strides = [1, 1]} : vector<4x256xf32> to vector<2x128xf32>
    %873 = vector.extract_strided_slice %871 {offsets = [2, 128], sizes = [2, 128], strides = [1, 1]} : vector<4x256xf32> to vector<2x128xf32>
    %874 = tpu.concatenate %872, %873 in 0 : vector<2x128xf32>, vector<2x128xf32> -> vector<4x128xf32>
    %875 = vector.extract_strided_slice %874 {offsets = [0, 0], sizes = [4, 32], strides = [1, 1]} : vector<4x128xf32> to vector<4x32xf32>
    %876 = arith.negf %875 : vector<4x32xf32>
    %877 = math.exp %876 : vector<4x32xf32>
    %cst_102 = arith.constant 1.000000e+00 : f32
    %878 = vector.broadcast %cst_102 : f32 to vector<4x32xf32>
    %879 = arith.addf %878, %877 : vector<4x32xf32>
    %880 = arith.divf %878, %879 : vector<4x32xf32>
    %881 = vector.extract_strided_slice %874 {offsets = [0, 32], sizes = [4, 32], strides = [1, 1]} : vector<4x128xf32> to vector<4x32xf32>
    %882 = arith.negf %881 : vector<4x32xf32>
    %883 = math.exp %882 : vector<4x32xf32>
    %cst_103 = arith.constant 1.000000e+00 : f32
    %884 = vector.broadcast %cst_103 : f32 to vector<4x32xf32>
    %885 = arith.addf %884, %883 : vector<4x32xf32>
    %886 = arith.divf %884, %885 : vector<4x32xf32>
    %887 = vector.extract_strided_slice %874 {offsets = [0, 64], sizes = [4, 32], strides = [1, 1]} : vector<4x128xf32> to vector<4x32xf32>
    %888 = math.tanh %887 : vector<4x32xf32>
    %889 = vector.extract_strided_slice %874 {offsets = [0, 96], sizes = [4, 32], strides = [1, 1]} : vector<4x128xf32> to vector<4x32xf32>
    %890 = arith.negf %889 : vector<4x32xf32>
    %891 = math.exp %890 : vector<4x32xf32>
    %cst_104 = arith.constant 1.000000e+00 : f32
    %892 = vector.broadcast %cst_104 : f32 to vector<4x32xf32>
    %893 = arith.addf %892, %891 : vector<4x32xf32>
    %894 = arith.divf %892, %893 : vector<4x32xf32>
    %895 = arith.mulf %886, %854 : vector<4x32xf32>
    %896 = arith.mulf %880, %888 : vector<4x32xf32>
    %897 = arith.addf %895, %896 : vector<4x32xf32>
    %898 = math.tanh %897 : vector<4x32xf32>
    %899 = arith.mulf %894, %898 : vector<4x32xf32>
    %900 = tpu.concatenate %864, %866 in 0 : vector<2x1xf32>, vector<2x1xf32> -> vector<4x1xf32>
    %901 = vector.broadcast %900 : vector<4x1xf32> to vector<4x32xf32>
    %902 = arith.mulf %901, %899 : vector<4x32xf32>
    %cst_105 = arith.constant 1.000000e+00 : f32
    %903 = vector.broadcast %cst_105 : f32 to vector<4x1xf32>
    %904 = arith.subf %903, %900 : vector<4x1xf32>
    %905 = vector.broadcast %904 : vector<4x1xf32> to vector<4x32xf32>
    %906 = arith.mulf %905, %847 : vector<4x32xf32>
    %907 = arith.addf %902, %906 : vector<4x32xf32>
    %908 = vector.broadcast %900 : vector<4x1xf32> to vector<4x32xf32>
    %909 = arith.mulf %908, %897 : vector<4x32xf32>
    %cst_106 = arith.constant 1.000000e+00 : f32
    %910 = vector.broadcast %cst_106 : f32 to vector<4x1xf32>
    %911 = arith.subf %910, %900 : vector<4x1xf32>
    %912 = vector.broadcast %911 : vector<4x1xf32> to vector<4x32xf32>
    %913 = arith.mulf %912, %854 : vector<4x32xf32>
    %914 = arith.addf %909, %913 : vector<4x32xf32>
    %915 = vector.broadcast %900 : vector<4x1xf32> to vector<4x32xf32>
    %916 = arith.mulf %915, %899 : vector<4x32xf32>
    %917 = vector.extract_strided_slice %916 {offsets = [0, 0], sizes = [2, 32], strides = [1, 1]} : vector<4x32xf32> to vector<2x32xf32>
    %918 = vector.extract_strided_slice %916 {offsets = [2, 0], sizes = [2, 32], strides = [1, 1]} : vector<4x32xf32> to vector<2x32xf32>
    %919 = vector.extract_strided_slice %492 {offsets = [7, 0, 0], sizes = [1, 2, 64], strides = [1, 1, 1]} : vector<8x2x64xf32> to vector<1x2x64xf32>
    %920 = vector.shape_cast %919 : vector<1x2x64xf32> to vector<2x64xf32>
    %921 = vector.extract_strided_slice %492 {offsets = [0, 0, 0], sizes = [1, 2, 64], strides = [1, 1, 1]} : vector<8x2x64xf32> to vector<1x2x64xf32>
    %922 = vector.shape_cast %921 : vector<1x2x64xf32> to vector<2x64xf32>
    %923 = vector.extract_strided_slice %1 {offsets = [7, 0, 0], sizes = [1, 2, 1], strides = [1, 1, 1]} : vector<8x2x1xf32> to vector<1x2x1xf32>
    %924 = vector.shape_cast %923 : vector<1x2x1xf32> to vector<2x1xf32>
    %925 = vector.extract_strided_slice %1 {offsets = [0, 0, 0], sizes = [1, 2, 1], strides = [1, 1, 1]} : vector<8x2x1xf32> to vector<1x2x1xf32>
    %926 = vector.shape_cast %925 : vector<1x2x1xf32> to vector<2x1xf32>
    %927 = tpu.concatenate %920, %922 in 0 : vector<2x64xf32>, vector<2x64xf32> -> vector<4x64xf32>
    %928 = tpu.concatenate %927, %907 in 1 : vector<4x64xf32>, vector<4x32xf32> -> vector<4x96xf32>
    %cst_107 = arith.constant dense<0.000000e+00> : vector<4x256xf32>
    %929 = tpu.matmul %928, %494, %cst_107 {dimension_numbers = #tpu.dot_dimension_numbers<[1], [0], [0], [1], [0, 0, 1, 1], [], []>} : vector<4x96xf32>, vector<96x256xf32>, vector<4x256xf32> -> vector<4x256xf32>
    %930 = vector.broadcast %496 : vector<1x256xf32> to vector<4x256xf32>
    %931 = arith.addf %929, %930 : vector<4x256xf32>
    %932 = vector.extract_strided_slice %931 {offsets = [0, 0], sizes = [2, 128], strides = [1, 1]} : vector<4x256xf32> to vector<2x128xf32>
    %933 = vector.extract_strided_slice %931 {offsets = [2, 128], sizes = [2, 128], strides = [1, 1]} : vector<4x256xf32> to vector<2x128xf32>
    %934 = tpu.concatenate %932, %933 in 0 : vector<2x128xf32>, vector<2x128xf32> -> vector<4x128xf32>
    %935 = vector.extract_strided_slice %934 {offsets = [0, 0], sizes = [4, 32], strides = [1, 1]} : vector<4x128xf32> to vector<4x32xf32>
    %936 = arith.negf %935 : vector<4x32xf32>
    %937 = math.exp %936 : vector<4x32xf32>
    %cst_108 = arith.constant 1.000000e+00 : f32
    %938 = vector.broadcast %cst_108 : f32 to vector<4x32xf32>
    %939 = arith.addf %938, %937 : vector<4x32xf32>
    %940 = arith.divf %938, %939 : vector<4x32xf32>
    %941 = vector.extract_strided_slice %934 {offsets = [0, 32], sizes = [4, 32], strides = [1, 1]} : vector<4x128xf32> to vector<4x32xf32>
    %942 = arith.negf %941 : vector<4x32xf32>
    %943 = math.exp %942 : vector<4x32xf32>
    %cst_109 = arith.constant 1.000000e+00 : f32
    %944 = vector.broadcast %cst_109 : f32 to vector<4x32xf32>
    %945 = arith.addf %944, %943 : vector<4x32xf32>
    %946 = arith.divf %944, %945 : vector<4x32xf32>
    %947 = vector.extract_strided_slice %934 {offsets = [0, 64], sizes = [4, 32], strides = [1, 1]} : vector<4x128xf32> to vector<4x32xf32>
    %948 = math.tanh %947 : vector<4x32xf32>
    %949 = vector.extract_strided_slice %934 {offsets = [0, 96], sizes = [4, 32], strides = [1, 1]} : vector<4x128xf32> to vector<4x32xf32>
    %950 = arith.negf %949 : vector<4x32xf32>
    %951 = math.exp %950 : vector<4x32xf32>
    %cst_110 = arith.constant 1.000000e+00 : f32
    %952 = vector.broadcast %cst_110 : f32 to vector<4x32xf32>
    %953 = arith.addf %952, %951 : vector<4x32xf32>
    %954 = arith.divf %952, %953 : vector<4x32xf32>
    %955 = arith.mulf %946, %914 : vector<4x32xf32>
    %956 = arith.mulf %940, %948 : vector<4x32xf32>
    %957 = arith.addf %955, %956 : vector<4x32xf32>
    %958 = math.tanh %957 : vector<4x32xf32>
    %959 = arith.mulf %954, %958 : vector<4x32xf32>
    %960 = tpu.concatenate %924, %926 in 0 : vector<2x1xf32>, vector<2x1xf32> -> vector<4x1xf32>
    %961 = vector.broadcast %960 : vector<4x1xf32> to vector<4x32xf32>
    %962 = arith.mulf %961, %959 : vector<4x32xf32>
    %963 = vector.extract_strided_slice %962 {offsets = [0, 0], sizes = [2, 32], strides = [1, 1]} : vector<4x32xf32> to vector<2x32xf32>
    %964 = vector.extract_strided_slice %962 {offsets = [2, 0], sizes = [2, 32], strides = [1, 1]} : vector<4x32xf32> to vector<2x32xf32>
    %965 = vector.shape_cast %557 : vector<2x32xf32> to vector<1x2x32xf32>
    %966 = vector.shape_cast %617 : vector<2x32xf32> to vector<1x2x32xf32>
    %967 = vector.shape_cast %677 : vector<2x32xf32> to vector<1x2x32xf32>
    %968 = vector.shape_cast %737 : vector<2x32xf32> to vector<1x2x32xf32>
    %969 = vector.shape_cast %797 : vector<2x32xf32> to vector<1x2x32xf32>
    %970 = vector.shape_cast %857 : vector<2x32xf32> to vector<1x2x32xf32>
    %971 = vector.shape_cast %917 : vector<2x32xf32> to vector<1x2x32xf32>
    %972 = vector.shape_cast %963 : vector<2x32xf32> to vector<1x2x32xf32>
    %973 = tpu.concatenate %965, %966, %967, %968, %969, %970, %971, %972 in 0 : vector<1x2x32xf32>, vector<1x2x32xf32>, vector<1x2x32xf32>, vector<1x2x32xf32>, vector<1x2x32xf32>, vector<1x2x32xf32>, vector<1x2x32xf32>, vector<1x2x32xf32> -> vector<8x2x32xf32>
    %974 = vector.shape_cast %964 : vector<2x32xf32> to vector<1x2x32xf32>
    %975 = vector.shape_cast %918 : vector<2x32xf32> to vector<1x2x32xf32>
    %976 = vector.shape_cast %858 : vector<2x32xf32> to vector<1x2x32xf32>
    %977 = vector.shape_cast %798 : vector<2x32xf32> to vector<1x2x32xf32>
    %978 = vector.shape_cast %738 : vector<2x32xf32> to vector<1x2x32xf32>
    %979 = vector.shape_cast %678 : vector<2x32xf32> to vector<1x2x32xf32>
    %980 = vector.shape_cast %618 : vector<2x32xf32> to vector<1x2x32xf32>
    %981 = vector.shape_cast %558 : vector<2x32xf32> to vector<1x2x32xf32>
    %982 = tpu.concatenate %974, %975, %976, %977, %978, %979, %980, %981 in 0 : vector<1x2x32xf32>, vector<1x2x32xf32>, vector<1x2x32xf32>, vector<1x2x32xf32>, vector<1x2x32xf32>, vector<1x2x32xf32>, vector<1x2x32xf32>, vector<1x2x32xf32> -> vector<8x2x32xf32>
    %983 = tpu.concatenate %973, %982 in 2 : vector<8x2x32xf32>, vector<8x2x32xf32> -> vector<8x2x64xf32>
    %c2 = arith.constant 2 : index
    %c0_111 = arith.constant 0 : index
    %c0_112 = arith.constant 0 : index
    %984 = vector.load %arg2[%c2, %c0_111, %c0_112] : memref<3x96x256xf32, #tpu.memory_space<vmem>>, vector<1x96x256xf32>
    %985 = vector.shape_cast %984 : vector<1x96x256xf32> to vector<96x256xf32>
    %c2_113 = arith.constant 2 : index
    %c0_114 = arith.constant 0 : index
    %c0_115 = arith.constant 0 : index
    %986 = vector.load %arg3[%c2_113, %c0_114, %c0_115] : memref<3x1x256xf32, #tpu.memory_space<vmem>>, vector<1x1x256xf32>
    %987 = vector.shape_cast %986 : vector<1x1x256xf32> to vector<1x256xf32>
    %cst_116 = arith.constant 0.000000e+00 : f32
    %988 = vector.broadcast %cst_116 : f32 to vector<4x32xf32>
    %cst_117 = arith.constant 0.000000e+00 : f32
    %989 = vector.broadcast %cst_117 : f32 to vector<4x32xf32>
    %990 = vector.extract_strided_slice %983 {offsets = [0, 0, 0], sizes = [1, 2, 64], strides = [1, 1, 1]} : vector<8x2x64xf32> to vector<1x2x64xf32>
    %991 = vector.shape_cast %990 : vector<1x2x64xf32> to vector<2x64xf32>
    %992 = vector.extract_strided_slice %983 {offsets = [7, 0, 0], sizes = [1, 2, 64], strides = [1, 1, 1]} : vector<8x2x64xf32> to vector<1x2x64xf32>
    %993 = vector.shape_cast %992 : vector<1x2x64xf32> to vector<2x64xf32>
    %994 = vector.extract_strided_slice %1 {offsets = [0, 0, 0], sizes = [1, 2, 1], strides = [1, 1, 1]} : vector<8x2x1xf32> to vector<1x2x1xf32>
    %995 = vector.shape_cast %994 : vector<1x2x1xf32> to vector<2x1xf32>
    %996 = vector.extract_strided_slice %1 {offsets = [7, 0, 0], sizes = [1, 2, 1], strides = [1, 1, 1]} : vector<8x2x1xf32> to vector<1x2x1xf32>
    %997 = vector.shape_cast %996 : vector<1x2x1xf32> to vector<2x1xf32>
    %998 = tpu.concatenate %991, %993 in 0 : vector<2x64xf32>, vector<2x64xf32> -> vector<4x64xf32>
    %999 = tpu.concatenate %998, %988 in 1 : vector<4x64xf32>, vector<4x32xf32> -> vector<4x96xf32>
    %cst_118 = arith.constant dense<0.000000e+00> : vector<4x256xf32>
    %1000 = tpu.matmul %999, %985, %cst_118 {dimension_numbers = #tpu.dot_dimension_numbers<[1], [0], [0], [1], [0, 0, 1, 1], [], []>} : vector<4x96xf32>, vector<96x256xf32>, vector<4x256xf32> -> vector<4x256xf32>
    %1001 = vector.broadcast %987 : vector<1x256xf32> to vector<4x256xf32>
    %1002 = arith.addf %1000, %1001 : vector<4x256xf32>
    %1003 = vector.extract_strided_slice %1002 {offsets = [0, 0], sizes = [2, 128], strides = [1, 1]} : vector<4x256xf32> to vector<2x128xf32>
    %1004 = vector.extract_strided_slice %1002 {offsets = [2, 128], sizes = [2, 128], strides = [1, 1]} : vector<4x256xf32> to vector<2x128xf32>
    %1005 = tpu.concatenate %1003, %1004 in 0 : vector<2x128xf32>, vector<2x128xf32> -> vector<4x128xf32>
    %1006 = vector.extract_strided_slice %1005 {offsets = [0, 0], sizes = [4, 32], strides = [1, 1]} : vector<4x128xf32> to vector<4x32xf32>
    %1007 = arith.negf %1006 : vector<4x32xf32>
    %1008 = math.exp %1007 : vector<4x32xf32>
    %cst_119 = arith.constant 1.000000e+00 : f32
    %1009 = vector.broadcast %cst_119 : f32 to vector<4x32xf32>
    %1010 = arith.addf %1009, %1008 : vector<4x32xf32>
    %1011 = arith.divf %1009, %1010 : vector<4x32xf32>
    %1012 = vector.extract_strided_slice %1005 {offsets = [0, 32], sizes = [4, 32], strides = [1, 1]} : vector<4x128xf32> to vector<4x32xf32>
    %1013 = arith.negf %1012 : vector<4x32xf32>
    %1014 = math.exp %1013 : vector<4x32xf32>
    %cst_120 = arith.constant 1.000000e+00 : f32
    %1015 = vector.broadcast %cst_120 : f32 to vector<4x32xf32>
    %1016 = arith.addf %1015, %1014 : vector<4x32xf32>
    %1017 = arith.divf %1015, %1016 : vector<4x32xf32>
    %1018 = vector.extract_strided_slice %1005 {offsets = [0, 64], sizes = [4, 32], strides = [1, 1]} : vector<4x128xf32> to vector<4x32xf32>
    %1019 = math.tanh %1018 : vector<4x32xf32>
    %1020 = vector.extract_strided_slice %1005 {offsets = [0, 96], sizes = [4, 32], strides = [1, 1]} : vector<4x128xf32> to vector<4x32xf32>
    %1021 = arith.negf %1020 : vector<4x32xf32>
    %1022 = math.exp %1021 : vector<4x32xf32>
    %cst_121 = arith.constant 1.000000e+00 : f32
    %1023 = vector.broadcast %cst_121 : f32 to vector<4x32xf32>
    %1024 = arith.addf %1023, %1022 : vector<4x32xf32>
    %1025 = arith.divf %1023, %1024 : vector<4x32xf32>
    %1026 = arith.mulf %1017, %989 : vector<4x32xf32>
    %1027 = arith.mulf %1011, %1019 : vector<4x32xf32>
    %1028 = arith.addf %1026, %1027 : vector<4x32xf32>
    %1029 = math.tanh %1028 : vector<4x32xf32>
    %1030 = arith.mulf %1025, %1029 : vector<4x32xf32>
    %1031 = tpu.concatenate %995, %997 in 0 : vector<2x1xf32>, vector<2x1xf32> -> vector<4x1xf32>
    %1032 = vector.broadcast %1031 : vector<4x1xf32> to vector<4x32xf32>
    %1033 = arith.mulf %1032, %1030 : vector<4x32xf32>
    %cst_122 = arith.constant 1.000000e+00 : f32
    %1034 = vector.broadcast %cst_122 : f32 to vector<4x1xf32>
    %1035 = arith.subf %1034, %1031 : vector<4x1xf32>
    %1036 = vector.broadcast %1035 : vector<4x1xf32> to vector<4x32xf32>
    %1037 = arith.mulf %1036, %988 : vector<4x32xf32>
    %1038 = arith.addf %1033, %1037 : vector<4x32xf32>
    %1039 = vector.broadcast %1031 : vector<4x1xf32> to vector<4x32xf32>
    %1040 = arith.mulf %1039, %1028 : vector<4x32xf32>
    %cst_123 = arith.constant 1.000000e+00 : f32
    %1041 = vector.broadcast %cst_123 : f32 to vector<4x1xf32>
    %1042 = arith.subf %1041, %1031 : vector<4x1xf32>
    %1043 = vector.broadcast %1042 : vector<4x1xf32> to vector<4x32xf32>
    %1044 = arith.mulf %1043, %989 : vector<4x32xf32>
    %1045 = arith.addf %1040, %1044 : vector<4x32xf32>
    %1046 = vector.broadcast %1031 : vector<4x1xf32> to vector<4x32xf32>
    %1047 = arith.mulf %1046, %1030 : vector<4x32xf32>
    %1048 = vector.extract_strided_slice %1047 {offsets = [0, 0], sizes = [2, 32], strides = [1, 1]} : vector<4x32xf32> to vector<2x32xf32>
    %1049 = vector.extract_strided_slice %1047 {offsets = [2, 0], sizes = [2, 32], strides = [1, 1]} : vector<4x32xf32> to vector<2x32xf32>
    %1050 = vector.extract_strided_slice %983 {offsets = [1, 0, 0], sizes = [1, 2, 64], strides = [1, 1, 1]} : vector<8x2x64xf32> to vector<1x2x64xf32>
    %1051 = vector.shape_cast %1050 : vector<1x2x64xf32> to vector<2x64xf32>
    %1052 = vector.extract_strided_slice %983 {offsets = [6, 0, 0], sizes = [1, 2, 64], strides = [1, 1, 1]} : vector<8x2x64xf32> to vector<1x2x64xf32>
    %1053 = vector.shape_cast %1052 : vector<1x2x64xf32> to vector<2x64xf32>
    %1054 = vector.extract_strided_slice %1 {offsets = [1, 0, 0], sizes = [1, 2, 1], strides = [1, 1, 1]} : vector<8x2x1xf32> to vector<1x2x1xf32>
    %1055 = vector.shape_cast %1054 : vector<1x2x1xf32> to vector<2x1xf32>
    %1056 = vector.extract_strided_slice %1 {offsets = [6, 0, 0], sizes = [1, 2, 1], strides = [1, 1, 1]} : vector<8x2x1xf32> to vector<1x2x1xf32>
    %1057 = vector.shape_cast %1056 : vector<1x2x1xf32> to vector<2x1xf32>
    %1058 = tpu.concatenate %1051, %1053 in 0 : vector<2x64xf32>, vector<2x64xf32> -> vector<4x64xf32>
    %1059 = tpu.concatenate %1058, %1038 in 1 : vector<4x64xf32>, vector<4x32xf32> -> vector<4x96xf32>
    %cst_124 = arith.constant dense<0.000000e+00> : vector<4x256xf32>
    %1060 = tpu.matmul %1059, %985, %cst_124 {dimension_numbers = #tpu.dot_dimension_numbers<[1], [0], [0], [1], [0, 0, 1, 1], [], []>} : vector<4x96xf32>, vector<96x256xf32>, vector<4x256xf32> -> vector<4x256xf32>
    %1061 = vector.broadcast %987 : vector<1x256xf32> to vector<4x256xf32>
    %1062 = arith.addf %1060, %1061 : vector<4x256xf32>
    %1063 = vector.extract_strided_slice %1062 {offsets = [0, 0], sizes = [2, 128], strides = [1, 1]} : vector<4x256xf32> to vector<2x128xf32>
    %1064 = vector.extract_strided_slice %1062 {offsets = [2, 128], sizes = [2, 128], strides = [1, 1]} : vector<4x256xf32> to vector<2x128xf32>
    %1065 = tpu.concatenate %1063, %1064 in 0 : vector<2x128xf32>, vector<2x128xf32> -> vector<4x128xf32>
    %1066 = vector.extract_strided_slice %1065 {offsets = [0, 0], sizes = [4, 32], strides = [1, 1]} : vector<4x128xf32> to vector<4x32xf32>
    %1067 = arith.negf %1066 : vector<4x32xf32>
    %1068 = math.exp %1067 : vector<4x32xf32>
    %cst_125 = arith.constant 1.000000e+00 : f32
    %1069 = vector.broadcast %cst_125 : f32 to vector<4x32xf32>
    %1070 = arith.addf %1069, %1068 : vector<4x32xf32>
    %1071 = arith.divf %1069, %1070 : vector<4x32xf32>
    %1072 = vector.extract_strided_slice %1065 {offsets = [0, 32], sizes = [4, 32], strides = [1, 1]} : vector<4x128xf32> to vector<4x32xf32>
    %1073 = arith.negf %1072 : vector<4x32xf32>
    %1074 = math.exp %1073 : vector<4x32xf32>
    %cst_126 = arith.constant 1.000000e+00 : f32
    %1075 = vector.broadcast %cst_126 : f32 to vector<4x32xf32>
    %1076 = arith.addf %1075, %1074 : vector<4x32xf32>
    %1077 = arith.divf %1075, %1076 : vector<4x32xf32>
    %1078 = vector.extract_strided_slice %1065 {offsets = [0, 64], sizes = [4, 32], strides = [1, 1]} : vector<4x128xf32> to vector<4x32xf32>
    %1079 = math.tanh %1078 : vector<4x32xf32>
    %1080 = vector.extract_strided_slice %1065 {offsets = [0, 96], sizes = [4, 32], strides = [1, 1]} : vector<4x128xf32> to vector<4x32xf32>
    %1081 = arith.negf %1080 : vector<4x32xf32>
    %1082 = math.exp %1081 : vector<4x32xf32>
    %cst_127 = arith.constant 1.000000e+00 : f32
    %1083 = vector.broadcast %cst_127 : f32 to vector<4x32xf32>
    %1084 = arith.addf %1083, %1082 : vector<4x32xf32>
    %1085 = arith.divf %1083, %1084 : vector<4x32xf32>
    %1086 = arith.mulf %1077, %1045 : vector<4x32xf32>
    %1087 = arith.mulf %1071, %1079 : vector<4x32xf32>
    %1088 = arith.addf %1086, %1087 : vector<4x32xf32>
    %1089 = math.tanh %1088 : vector<4x32xf32>
    %1090 = arith.mulf %1085, %1089 : vector<4x32xf32>
    %1091 = tpu.concatenate %1055, %1057 in 0 : vector<2x1xf32>, vector<2x1xf32> -> vector<4x1xf32>
    %1092 = vector.broadcast %1091 : vector<4x1xf32> to vector<4x32xf32>
    %1093 = arith.mulf %1092, %1090 : vector<4x32xf32>
    %cst_128 = arith.constant 1.000000e+00 : f32
    %1094 = vector.broadcast %cst_128 : f32 to vector<4x1xf32>
    %1095 = arith.subf %1094, %1091 : vector<4x1xf32>
    %1096 = vector.broadcast %1095 : vector<4x1xf32> to vector<4x32xf32>
    %1097 = arith.mulf %1096, %1038 : vector<4x32xf32>
    %1098 = arith.addf %1093, %1097 : vector<4x32xf32>
    %1099 = vector.broadcast %1091 : vector<4x1xf32> to vector<4x32xf32>
    %1100 = arith.mulf %1099, %1088 : vector<4x32xf32>
    %cst_129 = arith.constant 1.000000e+00 : f32
    %1101 = vector.broadcast %cst_129 : f32 to vector<4x1xf32>
    %1102 = arith.subf %1101, %1091 : vector<4x1xf32>
    %1103 = vector.broadcast %1102 : vector<4x1xf32> to vector<4x32xf32>
    %1104 = arith.mulf %1103, %1045 : vector<4x32xf32>
    %1105 = arith.addf %1100, %1104 : vector<4x32xf32>
    %1106 = vector.broadcast %1091 : vector<4x1xf32> to vector<4x32xf32>
    %1107 = arith.mulf %1106, %1090 : vector<4x32xf32>
    %1108 = vector.extract_strided_slice %1107 {offsets = [0, 0], sizes = [2, 32], strides = [1, 1]} : vector<4x32xf32> to vector<2x32xf32>
    %1109 = vector.extract_strided_slice %1107 {offsets = [2, 0], sizes = [2, 32], strides = [1, 1]} : vector<4x32xf32> to vector<2x32xf32>
    %1110 = vector.extract_strided_slice %983 {offsets = [2, 0, 0], sizes = [1, 2, 64], strides = [1, 1, 1]} : vector<8x2x64xf32> to vector<1x2x64xf32>
    %1111 = vector.shape_cast %1110 : vector<1x2x64xf32> to vector<2x64xf32>
    %1112 = vector.extract_strided_slice %983 {offsets = [5, 0, 0], sizes = [1, 2, 64], strides = [1, 1, 1]} : vector<8x2x64xf32> to vector<1x2x64xf32>
    %1113 = vector.shape_cast %1112 : vector<1x2x64xf32> to vector<2x64xf32>
    %1114 = vector.extract_strided_slice %1 {offsets = [2, 0, 0], sizes = [1, 2, 1], strides = [1, 1, 1]} : vector<8x2x1xf32> to vector<1x2x1xf32>
    %1115 = vector.shape_cast %1114 : vector<1x2x1xf32> to vector<2x1xf32>
    %1116 = vector.extract_strided_slice %1 {offsets = [5, 0, 0], sizes = [1, 2, 1], strides = [1, 1, 1]} : vector<8x2x1xf32> to vector<1x2x1xf32>
    %1117 = vector.shape_cast %1116 : vector<1x2x1xf32> to vector<2x1xf32>
    %1118 = tpu.concatenate %1111, %1113 in 0 : vector<2x64xf32>, vector<2x64xf32> -> vector<4x64xf32>
    %1119 = tpu.concatenate %1118, %1098 in 1 : vector<4x64xf32>, vector<4x32xf32> -> vector<4x96xf32>
    %cst_130 = arith.constant dense<0.000000e+00> : vector<4x256xf32>
    %1120 = tpu.matmul %1119, %985, %cst_130 {dimension_numbers = #tpu.dot_dimension_numbers<[1], [0], [0], [1], [0, 0, 1, 1], [], []>} : vector<4x96xf32>, vector<96x256xf32>, vector<4x256xf32> -> vector<4x256xf32>
    %1121 = vector.broadcast %987 : vector<1x256xf32> to vector<4x256xf32>
    %1122 = arith.addf %1120, %1121 : vector<4x256xf32>
    %1123 = vector.extract_strided_slice %1122 {offsets = [0, 0], sizes = [2, 128], strides = [1, 1]} : vector<4x256xf32> to vector<2x128xf32>
    %1124 = vector.extract_strided_slice %1122 {offsets = [2, 128], sizes = [2, 128], strides = [1, 1]} : vector<4x256xf32> to vector<2x128xf32>
    %1125 = tpu.concatenate %1123, %1124 in 0 : vector<2x128xf32>, vector<2x128xf32> -> vector<4x128xf32>
    %1126 = vector.extract_strided_slice %1125 {offsets = [0, 0], sizes = [4, 32], strides = [1, 1]} : vector<4x128xf32> to vector<4x32xf32>
    %1127 = arith.negf %1126 : vector<4x32xf32>
    %1128 = math.exp %1127 : vector<4x32xf32>
    %cst_131 = arith.constant 1.000000e+00 : f32
    %1129 = vector.broadcast %cst_131 : f32 to vector<4x32xf32>
    %1130 = arith.addf %1129, %1128 : vector<4x32xf32>
    %1131 = arith.divf %1129, %1130 : vector<4x32xf32>
    %1132 = vector.extract_strided_slice %1125 {offsets = [0, 32], sizes = [4, 32], strides = [1, 1]} : vector<4x128xf32> to vector<4x32xf32>
    %1133 = arith.negf %1132 : vector<4x32xf32>
    %1134 = math.exp %1133 : vector<4x32xf32>
    %cst_132 = arith.constant 1.000000e+00 : f32
    %1135 = vector.broadcast %cst_132 : f32 to vector<4x32xf32>
    %1136 = arith.addf %1135, %1134 : vector<4x32xf32>
    %1137 = arith.divf %1135, %1136 : vector<4x32xf32>
    %1138 = vector.extract_strided_slice %1125 {offsets = [0, 64], sizes = [4, 32], strides = [1, 1]} : vector<4x128xf32> to vector<4x32xf32>
    %1139 = math.tanh %1138 : vector<4x32xf32>
    %1140 = vector.extract_strided_slice %1125 {offsets = [0, 96], sizes = [4, 32], strides = [1, 1]} : vector<4x128xf32> to vector<4x32xf32>
    %1141 = arith.negf %1140 : vector<4x32xf32>
    %1142 = math.exp %1141 : vector<4x32xf32>
    %cst_133 = arith.constant 1.000000e+00 : f32
    %1143 = vector.broadcast %cst_133 : f32 to vector<4x32xf32>
    %1144 = arith.addf %1143, %1142 : vector<4x32xf32>
    %1145 = arith.divf %1143, %1144 : vector<4x32xf32>
    %1146 = arith.mulf %1137, %1105 : vector<4x32xf32>
    %1147 = arith.mulf %1131, %1139 : vector<4x32xf32>
    %1148 = arith.addf %1146, %1147 : vector<4x32xf32>
    %1149 = math.tanh %1148 : vector<4x32xf32>
    %1150 = arith.mulf %1145, %1149 : vector<4x32xf32>
    %1151 = tpu.concatenate %1115, %1117 in 0 : vector<2x1xf32>, vector<2x1xf32> -> vector<4x1xf32>
    %1152 = vector.broadcast %1151 : vector<4x1xf32> to vector<4x32xf32>
    %1153 = arith.mulf %1152, %1150 : vector<4x32xf32>
    %cst_134 = arith.constant 1.000000e+00 : f32
    %1154 = vector.broadcast %cst_134 : f32 to vector<4x1xf32>
    %1155 = arith.subf %1154, %1151 : vector<4x1xf32>
    %1156 = vector.broadcast %1155 : vector<4x1xf32> to vector<4x32xf32>
    %1157 = arith.mulf %1156, %1098 : vector<4x32xf32>
    %1158 = arith.addf %1153, %1157 : vector<4x32xf32>
    %1159 = vector.broadcast %1151 : vector<4x1xf32> to vector<4x32xf32>
    %1160 = arith.mulf %1159, %1148 : vector<4x32xf32>
    %cst_135 = arith.constant 1.000000e+00 : f32
    %1161 = vector.broadcast %cst_135 : f32 to vector<4x1xf32>
    %1162 = arith.subf %1161, %1151 : vector<4x1xf32>
    %1163 = vector.broadcast %1162 : vector<4x1xf32> to vector<4x32xf32>
    %1164 = arith.mulf %1163, %1105 : vector<4x32xf32>
    %1165 = arith.addf %1160, %1164 : vector<4x32xf32>
    %1166 = vector.broadcast %1151 : vector<4x1xf32> to vector<4x32xf32>
    %1167 = arith.mulf %1166, %1150 : vector<4x32xf32>
    %1168 = vector.extract_strided_slice %1167 {offsets = [0, 0], sizes = [2, 32], strides = [1, 1]} : vector<4x32xf32> to vector<2x32xf32>
    %1169 = vector.extract_strided_slice %1167 {offsets = [2, 0], sizes = [2, 32], strides = [1, 1]} : vector<4x32xf32> to vector<2x32xf32>
    %1170 = vector.extract_strided_slice %983 {offsets = [3, 0, 0], sizes = [1, 2, 64], strides = [1, 1, 1]} : vector<8x2x64xf32> to vector<1x2x64xf32>
    %1171 = vector.shape_cast %1170 : vector<1x2x64xf32> to vector<2x64xf32>
    %1172 = vector.extract_strided_slice %983 {offsets = [4, 0, 0], sizes = [1, 2, 64], strides = [1, 1, 1]} : vector<8x2x64xf32> to vector<1x2x64xf32>
    %1173 = vector.shape_cast %1172 : vector<1x2x64xf32> to vector<2x64xf32>
    %1174 = vector.extract_strided_slice %1 {offsets = [3, 0, 0], sizes = [1, 2, 1], strides = [1, 1, 1]} : vector<8x2x1xf32> to vector<1x2x1xf32>
    %1175 = vector.shape_cast %1174 : vector<1x2x1xf32> to vector<2x1xf32>
    %1176 = vector.extract_strided_slice %1 {offsets = [4, 0, 0], sizes = [1, 2, 1], strides = [1, 1, 1]} : vector<8x2x1xf32> to vector<1x2x1xf32>
    %1177 = vector.shape_cast %1176 : vector<1x2x1xf32> to vector<2x1xf32>
    %1178 = tpu.concatenate %1171, %1173 in 0 : vector<2x64xf32>, vector<2x64xf32> -> vector<4x64xf32>
    %1179 = tpu.concatenate %1178, %1158 in 1 : vector<4x64xf32>, vector<4x32xf32> -> vector<4x96xf32>
    %cst_136 = arith.constant dense<0.000000e+00> : vector<4x256xf32>
    %1180 = tpu.matmul %1179, %985, %cst_136 {dimension_numbers = #tpu.dot_dimension_numbers<[1], [0], [0], [1], [0, 0, 1, 1], [], []>} : vector<4x96xf32>, vector<96x256xf32>, vector<4x256xf32> -> vector<4x256xf32>
    %1181 = vector.broadcast %987 : vector<1x256xf32> to vector<4x256xf32>
    %1182 = arith.addf %1180, %1181 : vector<4x256xf32>
    %1183 = vector.extract_strided_slice %1182 {offsets = [0, 0], sizes = [2, 128], strides = [1, 1]} : vector<4x256xf32> to vector<2x128xf32>
    %1184 = vector.extract_strided_slice %1182 {offsets = [2, 128], sizes = [2, 128], strides = [1, 1]} : vector<4x256xf32> to vector<2x128xf32>
    %1185 = tpu.concatenate %1183, %1184 in 0 : vector<2x128xf32>, vector<2x128xf32> -> vector<4x128xf32>
    %1186 = vector.extract_strided_slice %1185 {offsets = [0, 0], sizes = [4, 32], strides = [1, 1]} : vector<4x128xf32> to vector<4x32xf32>
    %1187 = arith.negf %1186 : vector<4x32xf32>
    %1188 = math.exp %1187 : vector<4x32xf32>
    %cst_137 = arith.constant 1.000000e+00 : f32
    %1189 = vector.broadcast %cst_137 : f32 to vector<4x32xf32>
    %1190 = arith.addf %1189, %1188 : vector<4x32xf32>
    %1191 = arith.divf %1189, %1190 : vector<4x32xf32>
    %1192 = vector.extract_strided_slice %1185 {offsets = [0, 32], sizes = [4, 32], strides = [1, 1]} : vector<4x128xf32> to vector<4x32xf32>
    %1193 = arith.negf %1192 : vector<4x32xf32>
    %1194 = math.exp %1193 : vector<4x32xf32>
    %cst_138 = arith.constant 1.000000e+00 : f32
    %1195 = vector.broadcast %cst_138 : f32 to vector<4x32xf32>
    %1196 = arith.addf %1195, %1194 : vector<4x32xf32>
    %1197 = arith.divf %1195, %1196 : vector<4x32xf32>
    %1198 = vector.extract_strided_slice %1185 {offsets = [0, 64], sizes = [4, 32], strides = [1, 1]} : vector<4x128xf32> to vector<4x32xf32>
    %1199 = math.tanh %1198 : vector<4x32xf32>
    %1200 = vector.extract_strided_slice %1185 {offsets = [0, 96], sizes = [4, 32], strides = [1, 1]} : vector<4x128xf32> to vector<4x32xf32>
    %1201 = arith.negf %1200 : vector<4x32xf32>
    %1202 = math.exp %1201 : vector<4x32xf32>
    %cst_139 = arith.constant 1.000000e+00 : f32
    %1203 = vector.broadcast %cst_139 : f32 to vector<4x32xf32>
    %1204 = arith.addf %1203, %1202 : vector<4x32xf32>
    %1205 = arith.divf %1203, %1204 : vector<4x32xf32>
    %1206 = arith.mulf %1197, %1165 : vector<4x32xf32>
    %1207 = arith.mulf %1191, %1199 : vector<4x32xf32>
    %1208 = arith.addf %1206, %1207 : vector<4x32xf32>
    %1209 = math.tanh %1208 : vector<4x32xf32>
    %1210 = arith.mulf %1205, %1209 : vector<4x32xf32>
    %1211 = tpu.concatenate %1175, %1177 in 0 : vector<2x1xf32>, vector<2x1xf32> -> vector<4x1xf32>
    %1212 = vector.broadcast %1211 : vector<4x1xf32> to vector<4x32xf32>
    %1213 = arith.mulf %1212, %1210 : vector<4x32xf32>
    %cst_140 = arith.constant 1.000000e+00 : f32
    %1214 = vector.broadcast %cst_140 : f32 to vector<4x1xf32>
    %1215 = arith.subf %1214, %1211 : vector<4x1xf32>
    %1216 = vector.broadcast %1215 : vector<4x1xf32> to vector<4x32xf32>
    %1217 = arith.mulf %1216, %1158 : vector<4x32xf32>
    %1218 = arith.addf %1213, %1217 : vector<4x32xf32>
    %1219 = vector.broadcast %1211 : vector<4x1xf32> to vector<4x32xf32>
    %1220 = arith.mulf %1219, %1208 : vector<4x32xf32>
    %cst_141 = arith.constant 1.000000e+00 : f32
    %1221 = vector.broadcast %cst_141 : f32 to vector<4x1xf32>
    %1222 = arith.subf %1221, %1211 : vector<4x1xf32>
    %1223 = vector.broadcast %1222 : vector<4x1xf32> to vector<4x32xf32>
    %1224 = arith.mulf %1223, %1165 : vector<4x32xf32>
    %1225 = arith.addf %1220, %1224 : vector<4x32xf32>
    %1226 = vector.broadcast %1211 : vector<4x1xf32> to vector<4x32xf32>
    %1227 = arith.mulf %1226, %1210 : vector<4x32xf32>
    %1228 = vector.extract_strided_slice %1227 {offsets = [0, 0], sizes = [2, 32], strides = [1, 1]} : vector<4x32xf32> to vector<2x32xf32>
    %1229 = vector.extract_strided_slice %1227 {offsets = [2, 0], sizes = [2, 32], strides = [1, 1]} : vector<4x32xf32> to vector<2x32xf32>
    %1230 = vector.extract_strided_slice %983 {offsets = [4, 0, 0], sizes = [1, 2, 64], strides = [1, 1, 1]} : vector<8x2x64xf32> to vector<1x2x64xf32>
    %1231 = vector.shape_cast %1230 : vector<1x2x64xf32> to vector<2x64xf32>
    %1232 = vector.extract_strided_slice %983 {offsets = [3, 0, 0], sizes = [1, 2, 64], strides = [1, 1, 1]} : vector<8x2x64xf32> to vector<1x2x64xf32>
    %1233 = vector.shape_cast %1232 : vector<1x2x64xf32> to vector<2x64xf32>
    %1234 = vector.extract_strided_slice %1 {offsets = [4, 0, 0], sizes = [1, 2, 1], strides = [1, 1, 1]} : vector<8x2x1xf32> to vector<1x2x1xf32>
    %1235 = vector.shape_cast %1234 : vector<1x2x1xf32> to vector<2x1xf32>
    %1236 = vector.extract_strided_slice %1 {offsets = [3, 0, 0], sizes = [1, 2, 1], strides = [1, 1, 1]} : vector<8x2x1xf32> to vector<1x2x1xf32>
    %1237 = vector.shape_cast %1236 : vector<1x2x1xf32> to vector<2x1xf32>
    %1238 = tpu.concatenate %1231, %1233 in 0 : vector<2x64xf32>, vector<2x64xf32> -> vector<4x64xf32>
    %1239 = tpu.concatenate %1238, %1218 in 1 : vector<4x64xf32>, vector<4x32xf32> -> vector<4x96xf32>
    %cst_142 = arith.constant dense<0.000000e+00> : vector<4x256xf32>
    %1240 = tpu.matmul %1239, %985, %cst_142 {dimension_numbers = #tpu.dot_dimension_numbers<[1], [0], [0], [1], [0, 0, 1, 1], [], []>} : vector<4x96xf32>, vector<96x256xf32>, vector<4x256xf32> -> vector<4x256xf32>
    %1241 = vector.broadcast %987 : vector<1x256xf32> to vector<4x256xf32>
    %1242 = arith.addf %1240, %1241 : vector<4x256xf32>
    %1243 = vector.extract_strided_slice %1242 {offsets = [0, 0], sizes = [2, 128], strides = [1, 1]} : vector<4x256xf32> to vector<2x128xf32>
    %1244 = vector.extract_strided_slice %1242 {offsets = [2, 128], sizes = [2, 128], strides = [1, 1]} : vector<4x256xf32> to vector<2x128xf32>
    %1245 = tpu.concatenate %1243, %1244 in 0 : vector<2x128xf32>, vector<2x128xf32> -> vector<4x128xf32>
    %1246 = vector.extract_strided_slice %1245 {offsets = [0, 0], sizes = [4, 32], strides = [1, 1]} : vector<4x128xf32> to vector<4x32xf32>
    %1247 = arith.negf %1246 : vector<4x32xf32>
    %1248 = math.exp %1247 : vector<4x32xf32>
    %cst_143 = arith.constant 1.000000e+00 : f32
    %1249 = vector.broadcast %cst_143 : f32 to vector<4x32xf32>
    %1250 = arith.addf %1249, %1248 : vector<4x32xf32>
    %1251 = arith.divf %1249, %1250 : vector<4x32xf32>
    %1252 = vector.extract_strided_slice %1245 {offsets = [0, 32], sizes = [4, 32], strides = [1, 1]} : vector<4x128xf32> to vector<4x32xf32>
    %1253 = arith.negf %1252 : vector<4x32xf32>
    %1254 = math.exp %1253 : vector<4x32xf32>
    %cst_144 = arith.constant 1.000000e+00 : f32
    %1255 = vector.broadcast %cst_144 : f32 to vector<4x32xf32>
    %1256 = arith.addf %1255, %1254 : vector<4x32xf32>
    %1257 = arith.divf %1255, %1256 : vector<4x32xf32>
    %1258 = vector.extract_strided_slice %1245 {offsets = [0, 64], sizes = [4, 32], strides = [1, 1]} : vector<4x128xf32> to vector<4x32xf32>
    %1259 = math.tanh %1258 : vector<4x32xf32>
    %1260 = vector.extract_strided_slice %1245 {offsets = [0, 96], sizes = [4, 32], strides = [1, 1]} : vector<4x128xf32> to vector<4x32xf32>
    %1261 = arith.negf %1260 : vector<4x32xf32>
    %1262 = math.exp %1261 : vector<4x32xf32>
    %cst_145 = arith.constant 1.000000e+00 : f32
    %1263 = vector.broadcast %cst_145 : f32 to vector<4x32xf32>
    %1264 = arith.addf %1263, %1262 : vector<4x32xf32>
    %1265 = arith.divf %1263, %1264 : vector<4x32xf32>
    %1266 = arith.mulf %1257, %1225 : vector<4x32xf32>
    %1267 = arith.mulf %1251, %1259 : vector<4x32xf32>
    %1268 = arith.addf %1266, %1267 : vector<4x32xf32>
    %1269 = math.tanh %1268 : vector<4x32xf32>
    %1270 = arith.mulf %1265, %1269 : vector<4x32xf32>
    %1271 = tpu.concatenate %1235, %1237 in 0 : vector<2x1xf32>, vector<2x1xf32> -> vector<4x1xf32>
    %1272 = vector.broadcast %1271 : vector<4x1xf32> to vector<4x32xf32>
    %1273 = arith.mulf %1272, %1270 : vector<4x32xf32>
    %cst_146 = arith.constant 1.000000e+00 : f32
    %1274 = vector.broadcast %cst_146 : f32 to vector<4x1xf32>
    %1275 = arith.subf %1274, %1271 : vector<4x1xf32>
    %1276 = vector.broadcast %1275 : vector<4x1xf32> to vector<4x32xf32>
    %1277 = arith.mulf %1276, %1218 : vector<4x32xf32>
    %1278 = arith.addf %1273, %1277 : vector<4x32xf32>
    %1279 = vector.broadcast %1271 : vector<4x1xf32> to vector<4x32xf32>
    %1280 = arith.mulf %1279, %1268 : vector<4x32xf32>
    %cst_147 = arith.constant 1.000000e+00 : f32
    %1281 = vector.broadcast %cst_147 : f32 to vector<4x1xf32>
    %1282 = arith.subf %1281, %1271 : vector<4x1xf32>
    %1283 = vector.broadcast %1282 : vector<4x1xf32> to vector<4x32xf32>
    %1284 = arith.mulf %1283, %1225 : vector<4x32xf32>
    %1285 = arith.addf %1280, %1284 : vector<4x32xf32>
    %1286 = vector.broadcast %1271 : vector<4x1xf32> to vector<4x32xf32>
    %1287 = arith.mulf %1286, %1270 : vector<4x32xf32>
    %1288 = vector.extract_strided_slice %1287 {offsets = [0, 0], sizes = [2, 32], strides = [1, 1]} : vector<4x32xf32> to vector<2x32xf32>
    %1289 = vector.extract_strided_slice %1287 {offsets = [2, 0], sizes = [2, 32], strides = [1, 1]} : vector<4x32xf32> to vector<2x32xf32>
    %1290 = vector.extract_strided_slice %983 {offsets = [5, 0, 0], sizes = [1, 2, 64], strides = [1, 1, 1]} : vector<8x2x64xf32> to vector<1x2x64xf32>
    %1291 = vector.shape_cast %1290 : vector<1x2x64xf32> to vector<2x64xf32>
    %1292 = vector.extract_strided_slice %983 {offsets = [2, 0, 0], sizes = [1, 2, 64], strides = [1, 1, 1]} : vector<8x2x64xf32> to vector<1x2x64xf32>
    %1293 = vector.shape_cast %1292 : vector<1x2x64xf32> to vector<2x64xf32>
    %1294 = vector.extract_strided_slice %1 {offsets = [5, 0, 0], sizes = [1, 2, 1], strides = [1, 1, 1]} : vector<8x2x1xf32> to vector<1x2x1xf32>
    %1295 = vector.shape_cast %1294 : vector<1x2x1xf32> to vector<2x1xf32>
    %1296 = vector.extract_strided_slice %1 {offsets = [2, 0, 0], sizes = [1, 2, 1], strides = [1, 1, 1]} : vector<8x2x1xf32> to vector<1x2x1xf32>
    %1297 = vector.shape_cast %1296 : vector<1x2x1xf32> to vector<2x1xf32>
    %1298 = tpu.concatenate %1291, %1293 in 0 : vector<2x64xf32>, vector<2x64xf32> -> vector<4x64xf32>
    %1299 = tpu.concatenate %1298, %1278 in 1 : vector<4x64xf32>, vector<4x32xf32> -> vector<4x96xf32>
    %cst_148 = arith.constant dense<0.000000e+00> : vector<4x256xf32>
    %1300 = tpu.matmul %1299, %985, %cst_148 {dimension_numbers = #tpu.dot_dimension_numbers<[1], [0], [0], [1], [0, 0, 1, 1], [], []>} : vector<4x96xf32>, vector<96x256xf32>, vector<4x256xf32> -> vector<4x256xf32>
    %1301 = vector.broadcast %987 : vector<1x256xf32> to vector<4x256xf32>
    %1302 = arith.addf %1300, %1301 : vector<4x256xf32>
    %1303 = vector.extract_strided_slice %1302 {offsets = [0, 0], sizes = [2, 128], strides = [1, 1]} : vector<4x256xf32> to vector<2x128xf32>
    %1304 = vector.extract_strided_slice %1302 {offsets = [2, 128], sizes = [2, 128], strides = [1, 1]} : vector<4x256xf32> to vector<2x128xf32>
    %1305 = tpu.concatenate %1303, %1304 in 0 : vector<2x128xf32>, vector<2x128xf32> -> vector<4x128xf32>
    %1306 = vector.extract_strided_slice %1305 {offsets = [0, 0], sizes = [4, 32], strides = [1, 1]} : vector<4x128xf32> to vector<4x32xf32>
    %1307 = arith.negf %1306 : vector<4x32xf32>
    %1308 = math.exp %1307 : vector<4x32xf32>
    %cst_149 = arith.constant 1.000000e+00 : f32
    %1309 = vector.broadcast %cst_149 : f32 to vector<4x32xf32>
    %1310 = arith.addf %1309, %1308 : vector<4x32xf32>
    %1311 = arith.divf %1309, %1310 : vector<4x32xf32>
    %1312 = vector.extract_strided_slice %1305 {offsets = [0, 32], sizes = [4, 32], strides = [1, 1]} : vector<4x128xf32> to vector<4x32xf32>
    %1313 = arith.negf %1312 : vector<4x32xf32>
    %1314 = math.exp %1313 : vector<4x32xf32>
    %cst_150 = arith.constant 1.000000e+00 : f32
    %1315 = vector.broadcast %cst_150 : f32 to vector<4x32xf32>
    %1316 = arith.addf %1315, %1314 : vector<4x32xf32>
    %1317 = arith.divf %1315, %1316 : vector<4x32xf32>
    %1318 = vector.extract_strided_slice %1305 {offsets = [0, 64], sizes = [4, 32], strides = [1, 1]} : vector<4x128xf32> to vector<4x32xf32>
    %1319 = math.tanh %1318 : vector<4x32xf32>
    %1320 = vector.extract_strided_slice %1305 {offsets = [0, 96], sizes = [4, 32], strides = [1, 1]} : vector<4x128xf32> to vector<4x32xf32>
    %1321 = arith.negf %1320 : vector<4x32xf32>
    %1322 = math.exp %1321 : vector<4x32xf32>
    %cst_151 = arith.constant 1.000000e+00 : f32
    %1323 = vector.broadcast %cst_151 : f32 to vector<4x32xf32>
    %1324 = arith.addf %1323, %1322 : vector<4x32xf32>
    %1325 = arith.divf %1323, %1324 : vector<4x32xf32>
    %1326 = arith.mulf %1317, %1285 : vector<4x32xf32>
    %1327 = arith.mulf %1311, %1319 : vector<4x32xf32>
    %1328 = arith.addf %1326, %1327 : vector<4x32xf32>
    %1329 = math.tanh %1328 : vector<4x32xf32>
    %1330 = arith.mulf %1325, %1329 : vector<4x32xf32>
    %1331 = tpu.concatenate %1295, %1297 in 0 : vector<2x1xf32>, vector<2x1xf32> -> vector<4x1xf32>
    %1332 = vector.broadcast %1331 : vector<4x1xf32> to vector<4x32xf32>
    %1333 = arith.mulf %1332, %1330 : vector<4x32xf32>
    %cst_152 = arith.constant 1.000000e+00 : f32
    %1334 = vector.broadcast %cst_152 : f32 to vector<4x1xf32>
    %1335 = arith.subf %1334, %1331 : vector<4x1xf32>
    %1336 = vector.broadcast %1335 : vector<4x1xf32> to vector<4x32xf32>
    %1337 = arith.mulf %1336, %1278 : vector<4x32xf32>
    %1338 = arith.addf %1333, %1337 : vector<4x32xf32>
    %1339 = vector.broadcast %1331 : vector<4x1xf32> to vector<4x32xf32>
    %1340 = arith.mulf %1339, %1328 : vector<4x32xf32>
    %cst_153 = arith.constant 1.000000e+00 : f32
    %1341 = vector.broadcast %cst_153 : f32 to vector<4x1xf32>
    %1342 = arith.subf %1341, %1331 : vector<4x1xf32>
    %1343 = vector.broadcast %1342 : vector<4x1xf32> to vector<4x32xf32>
    %1344 = arith.mulf %1343, %1285 : vector<4x32xf32>
    %1345 = arith.addf %1340, %1344 : vector<4x32xf32>
    %1346 = vector.broadcast %1331 : vector<4x1xf32> to vector<4x32xf32>
    %1347 = arith.mulf %1346, %1330 : vector<4x32xf32>
    %1348 = vector.extract_strided_slice %1347 {offsets = [0, 0], sizes = [2, 32], strides = [1, 1]} : vector<4x32xf32> to vector<2x32xf32>
    %1349 = vector.extract_strided_slice %1347 {offsets = [2, 0], sizes = [2, 32], strides = [1, 1]} : vector<4x32xf32> to vector<2x32xf32>
    %1350 = vector.extract_strided_slice %983 {offsets = [6, 0, 0], sizes = [1, 2, 64], strides = [1, 1, 1]} : vector<8x2x64xf32> to vector<1x2x64xf32>
    %1351 = vector.shape_cast %1350 : vector<1x2x64xf32> to vector<2x64xf32>
    %1352 = vector.extract_strided_slice %983 {offsets = [1, 0, 0], sizes = [1, 2, 64], strides = [1, 1, 1]} : vector<8x2x64xf32> to vector<1x2x64xf32>
    %1353 = vector.shape_cast %1352 : vector<1x2x64xf32> to vector<2x64xf32>
    %1354 = vector.extract_strided_slice %1 {offsets = [6, 0, 0], sizes = [1, 2, 1], strides = [1, 1, 1]} : vector<8x2x1xf32> to vector<1x2x1xf32>
    %1355 = vector.shape_cast %1354 : vector<1x2x1xf32> to vector<2x1xf32>
    %1356 = vector.extract_strided_slice %1 {offsets = [1, 0, 0], sizes = [1, 2, 1], strides = [1, 1, 1]} : vector<8x2x1xf32> to vector<1x2x1xf32>
    %1357 = vector.shape_cast %1356 : vector<1x2x1xf32> to vector<2x1xf32>
    %1358 = tpu.concatenate %1351, %1353 in 0 : vector<2x64xf32>, vector<2x64xf32> -> vector<4x64xf32>
    %1359 = tpu.concatenate %1358, %1338 in 1 : vector<4x64xf32>, vector<4x32xf32> -> vector<4x96xf32>
    %cst_154 = arith.constant dense<0.000000e+00> : vector<4x256xf32>
    %1360 = tpu.matmul %1359, %985, %cst_154 {dimension_numbers = #tpu.dot_dimension_numbers<[1], [0], [0], [1], [0, 0, 1, 1], [], []>} : vector<4x96xf32>, vector<96x256xf32>, vector<4x256xf32> -> vector<4x256xf32>
    %1361 = vector.broadcast %987 : vector<1x256xf32> to vector<4x256xf32>
    %1362 = arith.addf %1360, %1361 : vector<4x256xf32>
    %1363 = vector.extract_strided_slice %1362 {offsets = [0, 0], sizes = [2, 128], strides = [1, 1]} : vector<4x256xf32> to vector<2x128xf32>
    %1364 = vector.extract_strided_slice %1362 {offsets = [2, 128], sizes = [2, 128], strides = [1, 1]} : vector<4x256xf32> to vector<2x128xf32>
    %1365 = tpu.concatenate %1363, %1364 in 0 : vector<2x128xf32>, vector<2x128xf32> -> vector<4x128xf32>
    %1366 = vector.extract_strided_slice %1365 {offsets = [0, 0], sizes = [4, 32], strides = [1, 1]} : vector<4x128xf32> to vector<4x32xf32>
    %1367 = arith.negf %1366 : vector<4x32xf32>
    %1368 = math.exp %1367 : vector<4x32xf32>
    %cst_155 = arith.constant 1.000000e+00 : f32
    %1369 = vector.broadcast %cst_155 : f32 to vector<4x32xf32>
    %1370 = arith.addf %1369, %1368 : vector<4x32xf32>
    %1371 = arith.divf %1369, %1370 : vector<4x32xf32>
    %1372 = vector.extract_strided_slice %1365 {offsets = [0, 32], sizes = [4, 32], strides = [1, 1]} : vector<4x128xf32> to vector<4x32xf32>
    %1373 = arith.negf %1372 : vector<4x32xf32>
    %1374 = math.exp %1373 : vector<4x32xf32>
    %cst_156 = arith.constant 1.000000e+00 : f32
    %1375 = vector.broadcast %cst_156 : f32 to vector<4x32xf32>
    %1376 = arith.addf %1375, %1374 : vector<4x32xf32>
    %1377 = arith.divf %1375, %1376 : vector<4x32xf32>
    %1378 = vector.extract_strided_slice %1365 {offsets = [0, 64], sizes = [4, 32], strides = [1, 1]} : vector<4x128xf32> to vector<4x32xf32>
    %1379 = math.tanh %1378 : vector<4x32xf32>
    %1380 = vector.extract_strided_slice %1365 {offsets = [0, 96], sizes = [4, 32], strides = [1, 1]} : vector<4x128xf32> to vector<4x32xf32>
    %1381 = arith.negf %1380 : vector<4x32xf32>
    %1382 = math.exp %1381 : vector<4x32xf32>
    %cst_157 = arith.constant 1.000000e+00 : f32
    %1383 = vector.broadcast %cst_157 : f32 to vector<4x32xf32>
    %1384 = arith.addf %1383, %1382 : vector<4x32xf32>
    %1385 = arith.divf %1383, %1384 : vector<4x32xf32>
    %1386 = arith.mulf %1377, %1345 : vector<4x32xf32>
    %1387 = arith.mulf %1371, %1379 : vector<4x32xf32>
    %1388 = arith.addf %1386, %1387 : vector<4x32xf32>
    %1389 = math.tanh %1388 : vector<4x32xf32>
    %1390 = arith.mulf %1385, %1389 : vector<4x32xf32>
    %1391 = tpu.concatenate %1355, %1357 in 0 : vector<2x1xf32>, vector<2x1xf32> -> vector<4x1xf32>
    %1392 = vector.broadcast %1391 : vector<4x1xf32> to vector<4x32xf32>
    %1393 = arith.mulf %1392, %1390 : vector<4x32xf32>
    %cst_158 = arith.constant 1.000000e+00 : f32
    %1394 = vector.broadcast %cst_158 : f32 to vector<4x1xf32>
    %1395 = arith.subf %1394, %1391 : vector<4x1xf32>
    %1396 = vector.broadcast %1395 : vector<4x1xf32> to vector<4x32xf32>
    %1397 = arith.mulf %1396, %1338 : vector<4x32xf32>
    %1398 = arith.addf %1393, %1397 : vector<4x32xf32>
    %1399 = vector.broadcast %1391 : vector<4x1xf32> to vector<4x32xf32>
    %1400 = arith.mulf %1399, %1388 : vector<4x32xf32>
    %cst_159 = arith.constant 1.000000e+00 : f32
    %1401 = vector.broadcast %cst_159 : f32 to vector<4x1xf32>
    %1402 = arith.subf %1401, %1391 : vector<4x1xf32>
    %1403 = vector.broadcast %1402 : vector<4x1xf32> to vector<4x32xf32>
    %1404 = arith.mulf %1403, %1345 : vector<4x32xf32>
    %1405 = arith.addf %1400, %1404 : vector<4x32xf32>
    %1406 = vector.broadcast %1391 : vector<4x1xf32> to vector<4x32xf32>
    %1407 = arith.mulf %1406, %1390 : vector<4x32xf32>
    %1408 = vector.extract_strided_slice %1407 {offsets = [0, 0], sizes = [2, 32], strides = [1, 1]} : vector<4x32xf32> to vector<2x32xf32>
    %1409 = vector.extract_strided_slice %1407 {offsets = [2, 0], sizes = [2, 32], strides = [1, 1]} : vector<4x32xf32> to vector<2x32xf32>
    %1410 = vector.extract_strided_slice %983 {offsets = [7, 0, 0], sizes = [1, 2, 64], strides = [1, 1, 1]} : vector<8x2x64xf32> to vector<1x2x64xf32>
    %1411 = vector.shape_cast %1410 : vector<1x2x64xf32> to vector<2x64xf32>
    %1412 = vector.extract_strided_slice %983 {offsets = [0, 0, 0], sizes = [1, 2, 64], strides = [1, 1, 1]} : vector<8x2x64xf32> to vector<1x2x64xf32>
    %1413 = vector.shape_cast %1412 : vector<1x2x64xf32> to vector<2x64xf32>
    %1414 = vector.extract_strided_slice %1 {offsets = [7, 0, 0], sizes = [1, 2, 1], strides = [1, 1, 1]} : vector<8x2x1xf32> to vector<1x2x1xf32>
    %1415 = vector.shape_cast %1414 : vector<1x2x1xf32> to vector<2x1xf32>
    %1416 = vector.extract_strided_slice %1 {offsets = [0, 0, 0], sizes = [1, 2, 1], strides = [1, 1, 1]} : vector<8x2x1xf32> to vector<1x2x1xf32>
    %1417 = vector.shape_cast %1416 : vector<1x2x1xf32> to vector<2x1xf32>
    %1418 = tpu.concatenate %1411, %1413 in 0 : vector<2x64xf32>, vector<2x64xf32> -> vector<4x64xf32>
    %1419 = tpu.concatenate %1418, %1398 in 1 : vector<4x64xf32>, vector<4x32xf32> -> vector<4x96xf32>
    %cst_160 = arith.constant dense<0.000000e+00> : vector<4x256xf32>
    %1420 = tpu.matmul %1419, %985, %cst_160 {dimension_numbers = #tpu.dot_dimension_numbers<[1], [0], [0], [1], [0, 0, 1, 1], [], []>} : vector<4x96xf32>, vector<96x256xf32>, vector<4x256xf32> -> vector<4x256xf32>
    %1421 = vector.broadcast %987 : vector<1x256xf32> to vector<4x256xf32>
    %1422 = arith.addf %1420, %1421 : vector<4x256xf32>
    %1423 = vector.extract_strided_slice %1422 {offsets = [0, 0], sizes = [2, 128], strides = [1, 1]} : vector<4x256xf32> to vector<2x128xf32>
    %1424 = vector.extract_strided_slice %1422 {offsets = [2, 128], sizes = [2, 128], strides = [1, 1]} : vector<4x256xf32> to vector<2x128xf32>
    %1425 = tpu.concatenate %1423, %1424 in 0 : vector<2x128xf32>, vector<2x128xf32> -> vector<4x128xf32>
    %1426 = vector.extract_strided_slice %1425 {offsets = [0, 0], sizes = [4, 32], strides = [1, 1]} : vector<4x128xf32> to vector<4x32xf32>
    %1427 = arith.negf %1426 : vector<4x32xf32>
    %1428 = math.exp %1427 : vector<4x32xf32>
    %cst_161 = arith.constant 1.000000e+00 : f32
    %1429 = vector.broadcast %cst_161 : f32 to vector<4x32xf32>
    %1430 = arith.addf %1429, %1428 : vector<4x32xf32>
    %1431 = arith.divf %1429, %1430 : vector<4x32xf32>
    %1432 = vector.extract_strided_slice %1425 {offsets = [0, 32], sizes = [4, 32], strides = [1, 1]} : vector<4x128xf32> to vector<4x32xf32>
    %1433 = arith.negf %1432 : vector<4x32xf32>
    %1434 = math.exp %1433 : vector<4x32xf32>
    %cst_162 = arith.constant 1.000000e+00 : f32
    %1435 = vector.broadcast %cst_162 : f32 to vector<4x32xf32>
    %1436 = arith.addf %1435, %1434 : vector<4x32xf32>
    %1437 = arith.divf %1435, %1436 : vector<4x32xf32>
    %1438 = vector.extract_strided_slice %1425 {offsets = [0, 64], sizes = [4, 32], strides = [1, 1]} : vector<4x128xf32> to vector<4x32xf32>
    %1439 = math.tanh %1438 : vector<4x32xf32>
    %1440 = vector.extract_strided_slice %1425 {offsets = [0, 96], sizes = [4, 32], strides = [1, 1]} : vector<4x128xf32> to vector<4x32xf32>
    %1441 = arith.negf %1440 : vector<4x32xf32>
    %1442 = math.exp %1441 : vector<4x32xf32>
    %cst_163 = arith.constant 1.000000e+00 : f32
    %1443 = vector.broadcast %cst_163 : f32 to vector<4x32xf32>
    %1444 = arith.addf %1443, %1442 : vector<4x32xf32>
    %1445 = arith.divf %1443, %1444 : vector<4x32xf32>
    %1446 = arith.mulf %1437, %1405 : vector<4x32xf32>
    %1447 = arith.mulf %1431, %1439 : vector<4x32xf32>
    %1448 = arith.addf %1446, %1447 : vector<4x32xf32>
    %1449 = math.tanh %1448 : vector<4x32xf32>
    %1450 = arith.mulf %1445, %1449 : vector<4x32xf32>
    %1451 = tpu.concatenate %1415, %1417 in 0 : vector<2x1xf32>, vector<2x1xf32> -> vector<4x1xf32>
    %1452 = vector.broadcast %1451 : vector<4x1xf32> to vector<4x32xf32>
    %1453 = arith.mulf %1452, %1450 : vector<4x32xf32>
    %1454 = vector.extract_strided_slice %1453 {offsets = [0, 0], sizes = [2, 32], strides = [1, 1]} : vector<4x32xf32> to vector<2x32xf32>
    %1455 = vector.extract_strided_slice %1453 {offsets = [2, 0], sizes = [2, 32], strides = [1, 1]} : vector<4x32xf32> to vector<2x32xf32>
    %1456 = vector.shape_cast %1048 : vector<2x32xf32> to vector<1x2x32xf32>
    %1457 = vector.shape_cast %1108 : vector<2x32xf32> to vector<1x2x32xf32>
    %1458 = vector.shape_cast %1168 : vector<2x32xf32> to vector<1x2x32xf32>
    %1459 = vector.shape_cast %1228 : vector<2x32xf32> to vector<1x2x32xf32>
    %1460 = vector.shape_cast %1288 : vector<2x32xf32> to vector<1x2x32xf32>
    %1461 = vector.shape_cast %1348 : vector<2x32xf32> to vector<1x2x32xf32>
    %1462 = vector.shape_cast %1408 : vector<2x32xf32> to vector<1x2x32xf32>
    %1463 = vector.shape_cast %1454 : vector<2x32xf32> to vector<1x2x32xf32>
    %1464 = tpu.concatenate %1456, %1457, %1458, %1459, %1460, %1461, %1462, %1463 in 0 : vector<1x2x32xf32>, vector<1x2x32xf32>, vector<1x2x32xf32>, vector<1x2x32xf32>, vector<1x2x32xf32>, vector<1x2x32xf32>, vector<1x2x32xf32>, vector<1x2x32xf32> -> vector<8x2x32xf32>
    %1465 = vector.shape_cast %1455 : vector<2x32xf32> to vector<1x2x32xf32>
    %1466 = vector.shape_cast %1409 : vector<2x32xf32> to vector<1x2x32xf32>
    %1467 = vector.shape_cast %1349 : vector<2x32xf32> to vector<1x2x32xf32>
    %1468 = vector.shape_cast %1289 : vector<2x32xf32> to vector<1x2x32xf32>
    %1469 = vector.shape_cast %1229 : vector<2x32xf32> to vector<1x2x32xf32>
    %1470 = vector.shape_cast %1169 : vector<2x32xf32> to vector<1x2x32xf32>
    %1471 = vector.shape_cast %1109 : vector<2x32xf32> to vector<1x2x32xf32>
    %1472 = vector.shape_cast %1049 : vector<2x32xf32> to vector<1x2x32xf32>
    %1473 = tpu.concatenate %1465, %1466, %1467, %1468, %1469, %1470, %1471, %1472 in 0 : vector<1x2x32xf32>, vector<1x2x32xf32>, vector<1x2x32xf32>, vector<1x2x32xf32>, vector<1x2x32xf32>, vector<1x2x32xf32>, vector<1x2x32xf32>, vector<1x2x32xf32> -> vector<8x2x32xf32>
    %1474 = tpu.concatenate %1464, %1473 in 2 : vector<8x2x32xf32>, vector<8x2x32xf32> -> vector<8x2x64xf32>
    %c0_164 = arith.constant 0 : index
    %c0_165 = arith.constant 0 : index
    %c0_166 = arith.constant 0 : index
    %1475 = vector.load %arg4[%c0_164, %c0_165, %c0_166] : memref<8x2x64xf32, #tpu.memory_space<vmem>>, vector<8x2x64xf32>
    tpu.vector_store %arg4[%c0_164, %c0_165, %c0_166], %1474 {strides = array<i32>} : memref<8x2x64xf32, #tpu.memory_space<vmem>>, vector<8x2x64xf32>,
    return
  }
}

</mosaic_0001>

<llo_original>
// kernel: model_encode.2
$region0: #{model_encode.2}
  #allocation0 [shape = 'u32[]', space=smem, size = 0x4, offset = 0x4, fixed_abs, tag = 'smem constant byte address 0x4 - core index']
  #allocation1 [shape = 'u32[144,128]{1,0:T(1,128)}', space=vmem, size = 0x12000, scoped, tag = 'internal scratch']
  %s0 = inlined_call_operand.vmem [shape: f32[4,16,16], index: 0, kind: input, shape index: {}]
  %s1 = inlined_call_operand.vmem [shape: f32[4,16,1], index: 1, kind: input, shape index: {}]
  %s2 = inlined_call_operand.vmem [shape: f32[32,128], index: 2, kind: input, shape index: {}]
  %s3 = inlined_call_operand.vmem [shape: f32[1,128], index: 3, kind: input, shape index: {}]
  %s4 = inlined_call_operand.vmem [shape: f32[32,32], index: 4, kind: input, shape index: {}]
  %s5 = inlined_call_operand.vmem [shape: f32[1,32], index: 5, kind: input, shape index: {}]
  %s6 = inlined_call_operand.vmem [shape: f32[16,32], index: 6, kind: output, shape index: {}]
  %s7 = sld [smem:[#allocation0]]
  $region34: #{model_encode.2} parent=0
    _
  %s9 = ssub.s32 1, %s7
  %s10 = scalar_select 0, %s9, %s7
  // Predicated region
  $region2: #{model_encode.2} parent=0 // pred_check
    _
  $region3: #{model_encode.2} parent=0 // pred_check_branch
    %12 = sbr.rel (0) target = $region5
  $region4: #{model_encode.2} parent=0 // pred_region
    _
  $region5: #{model_encode.2} parent=0 // pred_fallthru
    _
  // Predicated region
  $region6: #{model_encode.2} parent=0 // pred_check
    _
  $region7: #{model_encode.2} parent=0 // pred_check_branch
    %14 = sbr.rel (0) target = $region9
  $region8: #{model_encode.2} parent=0 // pred_region
    _
  $region9: #{model_encode.2} parent=0 // pred_fallthru
    _
  // Predicated region
  $region10: #{model_encode.2} parent=0 // pred_check
    _
  $region11: #{model_encode.2} parent=0 // pred_check_branch
    %16 = sbr.rel (0) target = $region13
  $region12: #{model_encode.2} parent=0 // pred_region
    _
  $region13: #{model_encode.2} parent=0 // pred_fallthru
    _
  // Predicated region
  $region14: #{model_encode.2} parent=0 // pred_check
    _
  $region15: #{model_encode.2} parent=0 // pred_check_branch
    %18 = sbr.rel (0) target = $region17
  $region16: #{model_encode.2} parent=0 // pred_region
    _
  $region17: #{model_encode.2} parent=0 // pred_fallthru
    _
  // Predicated region
  $region18: #{model_encode.2} parent=0 // pred_check
    _
  $region19: #{model_encode.2} parent=0 // pred_check_branch
    %20 = sbr.rel (0) target = $region21
  $region20: #{model_encode.2} parent=0 // pred_region
    _
  $region21: #{model_encode.2} parent=0 // pred_fallthru
    _
  // Predicated region
  $region22: #{model_encode.2} parent=0 // pred_check
    _
  $region23: #{model_encode.2} parent=0 // pred_check_branch
    %22 = sbr.rel (0) target = $region25
  $region24: #{model_encode.2} parent=0 // pred_region
    _
  $region25: #{model_encode.2} parent=0 // pred_fallthru
    _
  %v23 = vld [vmem:[%s0] sm:$0xff]
  %v24 = vld [vmem:[%s0 + $0x8] sm:$0xff]
  %v25 = vld [vmem:[%s0 + $0x10] sm:$0xff]
  %v26 = vld [vmem:[%s0 + $0x18] sm:$0xff]
  %v27 = vld [vmem:[%s0 + $0x20] sm:$0xff]
  %v28 = vld [vmem:[%s0 + $0x28] sm:$0xff]
  %v29 = vld [vmem:[%s0 + $0x30] sm:$0xff]
  %v30 = vld [vmem:[%s0 + $0x38] sm:$0xff]
  %v31 = vld [vmem:[%s1] sm:$0xff]
  %v32 = vld [vmem:[%s1 + $0x8] sm:$0xff]
  %v33 = vld [vmem:[%s1 + $0x10] sm:$0xff]
  %v34 = vld [vmem:[%s1 + $0x18] sm:$0xff]
  %v35 = vld [vmem:[%s1 + $0x20] sm:$0xff]
  %v36 = vld [vmem:[%s1 + $0x28] sm:$0xff]
  %v37 = vld [vmem:[%s1 + $0x30] sm:$0xff]
  %v38 = vld [vmem:[%s1 + $0x38] sm:$0xff]
  %v39 = vld [vmem:[%s2] sm:$0xff]
  %v40 = vld [vmem:[%s2 + $0x8] sm:$0xff]
  %v41 = vld [vmem:[%s2 + $0x10] sm:$0xff]
  %v42 = vld [vmem:[%s2 + $0x18] sm:$0xff]
  %v43 = vld [vmem:[%s3] sm:$0x1]
  %vm44 = vcmask 130048
  %v45 = vsel %vm44, %v23, 0.0
  %v46 = vsel %vm44, %v24, 0.0
  %v47 = vsel %vm44, %v29, 0.0
  %v48 = vsel %vm44, %v30, 0.0
  %v50 = vlaneseq
  %v51 = vshrl.u32 %v50, 7
  %v52 = vsub.s32 0, %v51
  %v53 = vrot.slane %v43, %v52
  %vm55 = vcmask 261120
  %v57 = vsel %vm55, %v45, 0
  %v60 = vsel %vm55, %v46, 0
  %v63 = vsel %vm55, %v47, 0
  %v66 = vsel %vm55, %v48, 0
  %68 = vmatprep.subr.mxu0 0.0
  %69 = vmatpush1.msra.mxu0 %v39
  %70 = vmatprep.subr.mxu0 0.0
  %71 = vmatpush1.msra.mxu0 %v40
  %72 = vmatprep.subr.mxu0 0.0
  %73 = vmatpush1.msra.mxu0 %v41
  %74 = vmatprep.subr.mxu0 0.0
  %75 = vmatpush1.msra.mxu0 %v42
  %76 = vmatprep.subr.mxu0 0.0
  %77 = vmatpush1.msra.mxu0 0.0
  %78 = vmatprep.subr.mxu0 0.0
  %79 = vmatpush1.msra.mxu0 0.0
  %80 = vmatprep.subr.mxu0 0.0
  %81 = vmatpush1.msra.mxu0 0.0
  %82 = vmatprep.subr.mxu0 0.0
  %83 = vmatpush1.msra.mxu0 0.0
  %84 = vmatprep.subr.mxu0 0.0
  %85 = vmatpush1.msra.mxu0 0.0
  %86 = vmatprep.subr.mxu0 0.0
  %87 = vmatpush1.msra.mxu0 0.0
  %88 = vmatprep.subr.mxu0 0.0
  %89 = vmatpush1.msra.mxu0 0.0
  %90 = vmatprep.subr.mxu0 0.0
  %91 = vmatpush1.msra.mxu0 0.0
  %92 = vmatprep.subr.mxu0 0.0
  %93 = vmatpush1.msra.mxu0 0.0
  %94 = vmatprep.subr.mxu0 0.0
  %95 = vmatpush1.msra.mxu0 0.0
  %96 = vmatprep.subr.mxu0 0.0
  %97 = vmatpush1.msra.mxu0 0.0
  %98 = vmatprep.subr.mxu0 0.0
  %99 = vmatpush1.msra.mxu0 0.0
  %100 = vmatprep.subr.mxu0 0.0
  %101 = vmatpush1.msra.mxu0 0.0
  %102 = vmatprep.subr.mxu0 0.0
  %103 = vmatpush1.msra.mxu0 0.0
  %104 = vmatprep.subr.mxu0 0.0
  %105 = vmatpush1.msra.mxu0 0.0
  %106 = vmatprep.subr.mxu0 0.0
  %107 = vmatpush1.msra.mxu0 0.0
  %108 = vmatprep.subr.mxu0 0.0
  %109 = vmatpush1.msra.mxu0 0.0
  %110 = vmatprep.subr.mxu0 0.0
  %111 = vmatpush1.msra.mxu0 0.0
  %112 = vmatprep.subr.mxu0 0.0
  %113 = vmatpush1.msra.mxu0 0.0
  %114 = vmatprep.subr.mxu0 0.0
  %115 = vmatpush1.msra.mxu0 0.0
  %116 = vmatprep.subr.mxu0 0.0
  %117 = vmatpush1.msra.mxu0 0.0
  %118 = vmatprep.subr.mxu0 0.0
  %119 = vmatpush1.msra.mxu0 0.0
  %120 = vmatprep.subr.mxu0 0.0
  %121 = vmatpush1.msra.mxu0 0.0
  %122 = vmatprep.subr.mxu0 0.0
  %123 = vmatpush1.msra.mxu0 0.0
  %124 = vmatprep.subr.mxu0 0.0
  %125 = vmatpush1.msra.mxu0 0.0
  %126 = vmatprep.subr.mxu0 0.0
  %127 = vmatpush1.msra.mxu0 0.0
  %128 = vmatprep.subr.mxu0 0.0
  %129 = vmatpush1.msra.mxu0 0.0
  %130 = vmatprep.subr.mxu0 0.0
  %131 = vmatpush1.msra.mxu0 0.0
  %132 = vmatprep.mubr.f32.mxu0 0.0
  %133 = vmatmul.mubr.f32.gmra.mrb[0].mxu0 %v57
  %v134 = vpop.f32.mrb[0].mxu0
  %v135 = vadd.f32 %v53, %v134
  %v136 = vpop.f32.mrb[0].mxu0
  %137 = vmatprep.mubr.f32.mxu0 0.0
  %138 = vmatmul.mubr.f32.gmra.mrb[0].mxu0 %v60
  %v139 = vpop.f32.mrb[0].mxu0
  %v140 = vadd.f32 %v53, %v139
  %v141 = vpop.f32.mrb[0].mxu0
  %142 = vmatprep.mubr.f32.mxu0 0.0
  %143 = vmatmul.mubr.f32.gmra.mrb[0].mxu0 %v63
  %v144 = vpop.f32.mrb[0].mxu0
  %v145 = vadd.f32 %v53, %v144
  %v146 = vpop.f32.mrb[0].mxu0
  %147 = vmatprep.mubr.f32.mxu0 0.0
  %148 = vmatmul.mubr.f32.gmra.mrb[0].mxu0 %v66
  %v149 = vpop.f32.mrb[0].mxu0
  %v150 = vadd.f32 %v53, %v149
  %v151 = vpop.f32.mrb[0].mxu0
  %152 = vdwg.mxu0
  %155 = vrot.lane.b32.xlu0 %v145, 64
  %v156 = vpop.permute.xlu0 %155
  %157 = vrot.lane.b32.xlu0 %v150, 64
  %v158 = vpop.permute.xlu0 %157
  %v161 = vxor.u32 %v135, 2147483648
  %v162 = vxor.u32 %v140, 2147483648
  %v163 = vxor.u32 %v156, 2147483648
  %v164 = vxor.u32 %v158, 2147483648
  %v165 = vmul.f32 %v161, 1.442695
  %v166 = vpow.pop %v165
  %v167 = vmul.f32 %v162, 1.442695
  %v168 = vpow.pop %v167
  %v169 = vmul.f32 %v163, 1.442695
  %v170 = vpow.pop %v169
  %v171 = vmul.f32 %v164, 1.442695
  %v172 = vpow.pop %v171
  %v173 = vadd.f32 %v166, 1.0
  %v174 = vadd.f32 %v168, 1.0
  %v175 = vadd.f32 %v170, 1.0
  %v176 = vadd.f32 %v172, 1.0
  %v177 = vrcp.pop %v173
  %v178 = vmul.f32 1.0, %v177
  %v179 = vrcp.pop %v174
  %v180 = vmul.f32 1.0, %v179
  %v181 = vrcp.pop %v175
  %v182 = vmul.f32 1.0, %v181
  %v183 = vrcp.pop %v176
  %v184 = vmul.f32 1.0, %v183
  %v185 = vtanh.pop %v135
  %v186 = vtanh.pop %v140
  %v187 = vtanh.pop %v156
  %v188 = vtanh.pop %v158
  %v189 = vmul.f32 %v178, 0.0
  %v190 = vmul.f32 %v180, 0.0
  %v191 = vmul.f32 %v182, 0.0
  %v192 = vmul.f32 %v184, 0.0
  %197 = vrot.lane.b32.xlu0 %v185, 96
  %v198 = vpop.permute.xlu0 %197
  %199 = vrot.lane.b32.xlu0 %v186, 96
  %v200 = vpop.permute.xlu0 %199
  %201 = vrot.lane.b32.xlu0 %v187, 96
  %v202 = vpop.permute.xlu0 %201
  %203 = vrot.lane.b32.xlu0 %v188, 96
  %v204 = vpop.permute.xlu0 %203
  %v209 = vmul.f32 %v178, %v198
  %v210 = vmul.f32 %v180, %v200
  %v211 = vmul.f32 %v182, %v202
  %v212 = vmul.f32 %v184, %v204
  %217 = vrot.lane.b32.xlu0 %v209, 16
  %v218 = vpop.permute.xlu0 %217
  %219 = vrot.lane.b32.xlu0 %v210, 16
  %v220 = vpop.permute.xlu0 %219
  %221 = vrot.lane.b32.xlu0 %v211, 16
  %v222 = vpop.permute.xlu0 %221
  %223 = vrot.lane.b32.xlu0 %v212, 16
  %v224 = vpop.permute.xlu0 %223
  %v229 = vadd.f32 %v189, %v218
  %v230 = vadd.f32 %v190, %v220
  %v231 = vadd.f32 %v191, %v222
  %v232 = vadd.f32 %v192, %v224
  %v233 = vtanh.pop %v229
  %v234 = vtanh.pop %v230
  %v235 = vtanh.pop %v231
  %v236 = vtanh.pop %v232
  %241 = vrot.lane.b32.xlu0 %v233, 32
  %v242 = vpop.permute.xlu0 %241
  %243 = vrot.lane.b32.xlu0 %v234, 32
  %v244 = vpop.permute.xlu0 %243
  %245 = vrot.lane.b32.xlu0 %v235, 32
  %v246 = vpop.permute.xlu0 %245
  %247 = vrot.lane.b32.xlu0 %v236, 32
  %v248 = vpop.permute.xlu0 %247
  %v253 = vmul.f32 %v178, %v242
  %v254 = vmul.f32 %v180, %v244
  %v255 = vmul.f32 %v182, %v246
  %v256 = vmul.f32 %v184, %v248
  %258 = vset.pattern.permute.xlu0 0
  %259 = vperm.xlu0 %258, %v31
  %v260 = vpop.permute.xlu0 %259
  %263 = vset.pattern.permute.xlu0 0
  %264 = vperm.xlu0 %263, %v32
  %v265 = vpop.permute.xlu0 %264
  %268 = vset.pattern.permute.xlu0 0
  %269 = vperm.xlu0 %268, %v37
  %v270 = vpop.permute.xlu0 %269
  %273 = vset.pattern.permute.xlu0 0
  %274 = vperm.xlu0 %273, %v38
  %v275 = vpop.permute.xlu0 %274
  %v277 = vmul.f32 %v260, %v253
  %v278 = vmul.f32 %v265, %v254
  %v279 = vmul.f32 %v270, %v255
  %v280 = vmul.f32 %v275, %v256
  %v281 = vsub.f32 1.0, %v31
  %v282 = vsub.f32 1.0, %v32
  %v283 = vsub.f32 1.0, %v37
  %v284 = vsub.f32 1.0, %v38
  %286 = vset.pattern.permute.xlu0 0
  %287 = vperm.xlu0 %286, %v281
  %v288 = vpop.permute.xlu0 %287
  %291 = vset.pattern.permute.xlu0 0
  %292 = vperm.xlu0 %291, %v282
  %v293 = vpop.permute.xlu0 %292
  %296 = vset.pattern.permute.xlu0 0
  %297 = vperm.xlu0 %296, %v283
  %v298 = vpop.permute.xlu0 %297
  %301 = vset.pattern.permute.xlu0 0
  %302 = vperm.xlu0 %301, %v284
  %v303 = vpop.permute.xlu0 %302
  %v305 = vmul.f32 %v288, 0.0
  %v306 = vmul.f32 %v293, 0.0
  %v307 = vmul.f32 %v298, 0.0
  %v308 = vmul.f32 %v303, 0.0
  %v309 = vadd.f32 %v277, %v305
  %v310 = vadd.f32 %v278, %v306
  %v311 = vadd.f32 %v279, %v307
  %v312 = vadd.f32 %v280, %v308
  %v313 = vmul.f32 %v260, %v229
  %v314 = vmul.f32 %v265, %v230
  %v315 = vmul.f32 %v270, %v231
  %v316 = vmul.f32 %v275, %v232
  %v317 = vadd.f32 %v313, %v305
  %v318 = vadd.f32 %v314, %v306
  %v319 = vadd.f32 %v315, %v307
  %v320 = vadd.f32 %v316, %v308
  %325 = vrot.lane.b32.xlu0 %v309, 96
  %v326 = vpop.permute.xlu0 %325
  %327 = vrot.lane.b32.xlu0 %v310, 96
  %v328 = vpop.permute.xlu0 %327
  %329 = vrot.lane.b32.xlu0 %v311, 96
  %v330 = vpop.permute.xlu0 %329
  %331 = vrot.lane.b32.xlu0 %v312, 96
  %v332 = vpop.permute.xlu0 %331
  %v337 = vsel %vm44, %v25, %v326
  %v338 = vsel %vm44, %v26, %v328
  %v339 = vsel %vm44, %v27, %v330
  %v340 = vsel %vm44, %v28, %v332
  %v342 = vsel %vm55, %v337, 0
  %v345 = vsel %vm55, %v338, 0
  %v348 = vsel %vm55, %v339, 0
  %v351 = vsel %vm55, %v340, 0
  %353 = vmatprep.subr.mxu0 0.0
  %354 = vmatpush1.msra.mxu0 %v39
  %355 = vmatprep.subr.mxu0 0.0
  %356 = vmatpush1.msra.mxu0 %v40
  %357 = vmatprep.subr.mxu0 0.0
  %358 = vmatpush1.msra.mxu0 %v41
  %359 = vmatprep.subr.mxu0 0.0
  %360 = vmatpush1.msra.mxu0 %v42
  %361 = vmatprep.subr.mxu0 0.0
  %362 = vmatpush1.msra.mxu0 0.0
  %363 = vmatprep.subr.mxu0 0.0
  %364 = vmatpush1.msra.mxu0 0.0
  %365 = vmatprep.subr.mxu0 0.0
  %366 = vmatpush1.msra.mxu0 0.0
  %367 = vmatprep.subr.mxu0 0.0
  %368 = vmatpush1.msra.mxu0 0.0
  %369 = vmatprep.subr.mxu0 0.0
  %370 = vmatpush1.msra.mxu0 0.0
  %371 = vmatprep.subr.mxu0 0.0
  %372 = vmatpush1.msra.mxu0 0.0
  %373 = vmatprep.subr.mxu0 0.0
  %374 = vmatpush1.msra.mxu0 0.0
  %375 = vmatprep.subr.mxu0 0.0
  %376 = vmatpush1.msra.mxu0 0.0
  %377 = vmatprep.subr.mxu0 0.0
  %378 = vmatpush1.msra.mxu0 0.0
  %379 = vmatprep.subr.mxu0 0.0
  %380 = vmatpush1.msra.mxu0 0.0
  %381 = vmatprep.subr.mxu0 0.0
  %382 = vmatpush1.msra.mxu0 0.0
  %383 = vmatprep.subr.mxu0 0.0
  %384 = vmatpush1.msra.mxu0 0.0
  %385 = vmatprep.subr.mxu0 0.0
  %386 = vmatpush1.msra.mxu0 0.0
  %387 = vmatprep.subr.mxu0 0.0
  %388 = vmatpush1.msra.mxu0 0.0
  %389 = vmatprep.subr.mxu0 0.0
  %390 = vmatpush1.msra.mxu0 0.0
  %391 = vmatprep.subr.mxu0 0.0
  %392 = vmatpush1.msra.mxu0 0.0
  %393 = vmatprep.subr.mxu0 0.0
  %394 = vmatpush1.msra.mxu0 0.0
  %395 = vmatprep.subr.mxu0 0.0
  %396 = vmatpush1.msra.mxu0 0.0
  %397 = vmatprep.subr.mxu0 0.0
  %398 = vmatpush1.msra.mxu0 0.0
  %399 = vmatprep.subr.mxu0 0.0
  %400 = vmatpush1.msra.mxu0 0.0
  %401 = vmatprep.subr.mxu0 0.0
  %402 = vmatpush1.msra.mxu0 0.0
  %403 = vmatprep.subr.mxu0 0.0
  %404 = vmatpush1.msra.mxu0 0.0
  %405 = vmatprep.subr.mxu0 0.0
  %406 = vmatpush1.msra.mxu0 0.0
  %407 = vmatprep.subr.mxu0 0.0
  %408 = vmatpush1.msra.mxu0 0.0
  %409 = vmatprep.subr.mxu0 0.0
  %410 = vmatpush1.msra.mxu0 0.0
  %411 = vmatprep.subr.mxu0 0.0
  %412 = vmatpush1.msra.mxu0 0.0
  %413 = vmatprep.subr.mxu0 0.0
  %414 = vmatpush1.msra.mxu0 0.0
  %415 = vmatprep.subr.mxu0 0.0
  %416 = vmatpush1.msra.mxu0 0.0
  %417 = vmatprep.mubr.f32.mxu0 0.0
  %418 = vmatmul.mubr.f32.gmra.mrb[0].mxu0 %v342
  %v419 = vpop.f32.mrb[0].mxu0
  %v420 = vadd.f32 %v53, %v419
  %v421 = vpop.f32.mrb[0].mxu0
  %422 = vmatprep.mubr.f32.mxu0 0.0
  %423 = vmatmul.mubr.f32.gmra.mrb[0].mxu0 %v345
  %v424 = vpop.f32.mrb[0].mxu0
  %v425 = vadd.f32 %v53, %v424
  %v426 = vpop.f32.mrb[0].mxu0
  %427 = vmatprep.mubr.f32.mxu0 0.0
  %428 = vmatmul.mubr.f32.gmra.mrb[0].mxu0 %v348
  %v429 = vpop.f32.mrb[0].mxu0
  %v430 = vadd.f32 %v53, %v429
  %v431 = vpop.f32.mrb[0].mxu0
  %432 = vmatprep.mubr.f32.mxu0 0.0
  %433 = vmatmul.mubr.f32.gmra.mrb[0].mxu0 %v351
  %v434 = vpop.f32.mrb[0].mxu0
  %v435 = vadd.f32 %v53, %v434
  %v436 = vpop.f32.mrb[0].mxu0
  %437 = vdwg.mxu0
  %440 = vrot.lane.b32.xlu0 %v430, 64
  %v441 = vpop.permute.xlu0 %440
  %442 = vrot.lane.b32.xlu0 %v435, 64
  %v443 = vpop.permute.xlu0 %442
  %v446 = vxor.u32 %v420, 2147483648
  %v447 = vxor.u32 %v425, 2147483648
  %v448 = vxor.u32 %v441, 2147483648
  %v449 = vxor.u32 %v443, 2147483648
  %v450 = vmul.f32 %v446, 1.442695
  %v451 = vpow.pop %v450
  %v452 = vmul.f32 %v447, 1.442695
  %v453 = vpow.pop %v452
  %v454 = vmul.f32 %v448, 1.442695
  %v455 = vpow.pop %v454
  %v456 = vmul.f32 %v449, 1.442695
  %v457 = vpow.pop %v456
  %v458 = vadd.f32 %v451, 1.0
  %v459 = vadd.f32 %v453, 1.0
  %v460 = vadd.f32 %v455, 1.0
  %v461 = vadd.f32 %v457, 1.0
  %v462 = vrcp.pop %v458
  %v463 = vmul.f32 1.0, %v462
  %v464 = vrcp.pop %v459
  %v465 = vmul.f32 1.0, %v464
  %v466 = vrcp.pop %v460
  %v467 = vmul.f32 1.0, %v466
  %v468 = vrcp.pop %v461
  %v469 = vmul.f32 1.0, %v468
  %v470 = vtanh.pop %v420
  %v471 = vtanh.pop %v425
  %v472 = vtanh.pop %v441
  %v473 = vtanh.pop %v443
  %v474 = vmul.f32 %v463, %v317
  %v475 = vmul.f32 %v465, %v318
  %v476 = vmul.f32 %v467, %v319
  %v477 = vmul.f32 %v469, %v320
  %482 = vrot.lane.b32.xlu0 %v470, 96
  %v483 = vpop.permute.xlu0 %482
  %484 = vrot.lane.b32.xlu0 %v471, 96
  %v485 = vpop.permute.xlu0 %484
  %486 = vrot.lane.b32.xlu0 %v472, 96
  %v487 = vpop.permute.xlu0 %486
  %488 = vrot.lane.b32.xlu0 %v473, 96
  %v489 = vpop.permute.xlu0 %488
  %v494 = vmul.f32 %v463, %v483
  %v495 = vmul.f32 %v465, %v485
  %v496 = vmul.f32 %v467, %v487
  %v497 = vmul.f32 %v469, %v489
  %502 = vrot.lane.b32.xlu0 %v494, 16
  %v503 = vpop.permute.xlu0 %502
  %504 = vrot.lane.b32.xlu0 %v495, 16
  %v505 = vpop.permute.xlu0 %504
  %506 = vrot.lane.b32.xlu0 %v496, 16
  %v507 = vpop.permute.xlu0 %506
  %508 = vrot.lane.b32.xlu0 %v497, 16
  %v509 = vpop.permute.xlu0 %508
  %v514 = vadd.f32 %v474, %v503
  %v515 = vadd.f32 %v475, %v505
  %v516 = vadd.f32 %v476, %v507
  %v517 = vadd.f32 %v477, %v509
  %v518 = vtanh.pop %v514
  %v519 = vtanh.pop %v515
  %v520 = vtanh.pop %v516
  %v521 = vtanh.pop %v517
  %526 = vrot.lane.b32.xlu0 %v518, 32
  %v527 = vpop.permute.xlu0 %526
  %528 = vrot.lane.b32.xlu0 %v519, 32
  %v529 = vpop.permute.xlu0 %528
  %530 = vrot.lane.b32.xlu0 %v520, 32
  %v531 = vpop.permute.xlu0 %530
  %532 = vrot.lane.b32.xlu0 %v521, 32
  %v533 = vpop.permute.xlu0 %532
  %v538 = vmul.f32 %v463, %v527
  %v539 = vmul.f32 %v465, %v529
  %v540 = vmul.f32 %v467, %v531
  %v541 = vmul.f32 %v469, %v533
  %543 = vset.pattern.permute.xlu0 0
  %544 = vperm.xlu0 %543, %v33
  %v545 = vpop.permute.xlu0 %544
  %548 = vset.pattern.permute.xlu0 0
  %549 = vperm.xlu0 %548, %v34
  %v550 = vpop.permute.xlu0 %549
  %553 = vset.pattern.permute.xlu0 0
  %554 = vperm.xlu0 %553, %v35
  %v555 = vpop.permute.xlu0 %554
  %558 = vset.pattern.permute.xlu0 0
  %559 = vperm.xlu0 %558, %v36
  %v560 = vpop.permute.xlu0 %559
  %v562 = vmul.f32 %v545, %v538
  %v563 = vmul.f32 %v550, %v539
  %v564 = vmul.f32 %v555, %v540
  %v565 = vmul.f32 %v560, %v541
  %v566 = vsub.f32 1.0, %v33
  %v567 = vsub.f32 1.0, %v34
  %v568 = vsub.f32 1.0, %v35
  %v569 = vsub.f32 1.0, %v36
  %571 = vset.pattern.permute.xlu0 0
  %572 = vperm.xlu0 %571, %v566
  %v573 = vpop.permute.xlu0 %572
  %576 = vset.pattern.permute.xlu0 0
  %577 = vperm.xlu0 %576, %v567
  %v578 = vpop.permute.xlu0 %577
  %581 = vset.pattern.permute.xlu0 0
  %582 = vperm.xlu0 %581, %v568
  %v583 = vpop.permute.xlu0 %582
  %586 = vset.pattern.permute.xlu0 0
  %587 = vperm.xlu0 %586, %v569
  %v588 = vpop.permute.xlu0 %587
  %v590 = vmul.f32 %v573, %v309
  %v591 = vmul.f32 %v578, %v310
  %v592 = vmul.f32 %v583, %v311
  %v593 = vmul.f32 %v588, %v312
  %v594 = vadd.f32 %v562, %v590
  %v595 = vadd.f32 %v563, %v591
  %v596 = vadd.f32 %v564, %v592
  %v597 = vadd.f32 %v565, %v593
  %v598 = vmul.f32 %v545, %v514
  %v599 = vmul.f32 %v550, %v515
  %v600 = vmul.f32 %v555, %v516
  %v601 = vmul.f32 %v560, %v517
  %v602 = vmul.f32 %v573, %v317
  %v603 = vmul.f32 %v578, %v318
  %v604 = vmul.f32 %v583, %v319
  %v605 = vmul.f32 %v588, %v320
  %v606 = vadd.f32 %v598, %v602
  %v607 = vadd.f32 %v599, %v603
  %v608 = vadd.f32 %v600, %v604
  %v609 = vadd.f32 %v601, %v605
  %614 = vrot.lane.b32.xlu0 %v594, 96
  %v615 = vpop.permute.xlu0 %614
  %616 = vrot.lane.b32.xlu0 %v595, 96
  %v617 = vpop.permute.xlu0 %616
  %618 = vrot.lane.b32.xlu0 %v596, 96
  %v619 = vpop.permute.xlu0 %618
  %620 = vrot.lane.b32.xlu0 %v597, 96
  %v621 = vpop.permute.xlu0 %620
  %v626 = vsel %vm44, %v27, %v615
  %v627 = vsel %vm44, %v28, %v617
  %v628 = vsel %vm44, %v25, %v619
  %v629 = vsel %vm44, %v26, %v621
  %v631 = vsel %vm55, %v626, 0
  %v634 = vsel %vm55, %v627, 0
  %v637 = vsel %vm55, %v628, 0
  %v640 = vsel %vm55, %v629, 0
  %642 = vmatprep.subr.mxu0 0.0
  %643 = vmatpush1.msra.mxu0 %v39
  %644 = vmatprep.subr.mxu0 0.0
  %645 = vmatpush1.msra.mxu0 %v40
  %646 = vmatprep.subr.mxu0 0.0
  %647 = vmatpush1.msra.mxu0 %v41
  %648 = vmatprep.subr.mxu0 0.0
  %649 = vmatpush1.msra.mxu0 %v42
  %650 = vmatprep.subr.mxu0 0.0
  %651 = vmatpush1.msra.mxu0 0.0
  %652 = vmatprep.subr.mxu0 0.0
  %653 = vmatpush1.msra.mxu0 0.0
  %654 = vmatprep.subr.mxu0 0.0
  %655 = vmatpush1.msra.mxu0 0.0
  %656 = vmatprep.subr.mxu0 0.0
  %657 = vmatpush1.msra.mxu0 0.0
  %658 = vmatprep.subr.mxu0 0.0
  %659 = vmatpush1.msra.mxu0 0.0
  %660 = vmatprep.subr.mxu0 0.0
  %661 = vmatpush1.msra.mxu0 0.0
  %662 = vmatprep.subr.mxu0 0.0
  %663 = vmatpush1.msra.mxu0 0.0
  %664 = vmatprep.subr.mxu0 0.0
  %665 = vmatpush1.msra.mxu0 0.0
  %666 = vmatprep.subr.mxu0 0.0
  %667 = vmatpush1.msra.mxu0 0.0
  %668 = vmatprep.subr.mxu0 0.0
  %669 = vmatpush1.msra.mxu0 0.0
  %670 = vmatprep.subr.mxu0 0.0
  %671 = vmatpush1.msra.mxu0 0.0
  %672 = vmatprep.subr.mxu0 0.0
  %673 = vmatpush1.msra.mxu0 0.0
  %674 = vmatprep.subr.mxu0 0.0
  %675 = vmatpush1.msra.mxu0 0.0
  %676 = vmatprep.subr.mxu0 0.0
  %677 = vmatpush1.msra.mxu0 0.0
  %678 = vmatprep.subr.mxu0 0.0
  %679 = vmatpush1.msra.mxu0 0.0
  %680 = vmatprep.subr.mxu0 0.0
  %681 = vmatpush1.msra.mxu0 0.0
  %682 = vmatprep.subr.mxu0 0.0
  %683 = vmatpush1.msra.mxu0 0.0
  %684 = vmatprep.subr.mxu0 0.0
  %685 = vmatpush1.msra.mxu0 0.0
  %686 = vmatprep.subr.mxu0 0.0
  %687 = vmatpush1.msra.mxu0 0.0
  %688 = vmatprep.subr.mxu0 0.0
  %689 = vmatpush1.msra.mxu0 0.0
  %690 = vmatprep.subr.mxu0 0.0
  %691 = vmatpush1.msra.mxu0 0.0
  %692 = vmatprep.subr.mxu0 0.0
  %693 = vmatpush1.msra.mxu0 0.0
  %694 = vmatprep.subr.mxu0 0.0
  %695 = vmatpush1.msra.mxu0 0.0
  %696 = vmatprep.subr.mxu0 0.0
  %697 = vmatpush1.msra.mxu0 0.0
  %698 = vmatprep.subr.mxu0 0.0
  %699 = vmatpush1.msra.mxu0 0.0
  %700 = vmatprep.subr.mxu0 0.0
  %701 = vmatpush1.msra.mxu0 0.0
  %702 = vmatprep.subr.mxu0 0.0
  %703 = vmatpush1.msra.mxu0 0.0
  %704 = vmatprep.subr.mxu0 0.0
  %705 = vmatpush1.msra.mxu0 0.0
  %706 = vmatprep.mubr.f32.mxu0 0.0
  %707 = vmatmul.mubr.f32.gmra.mrb[0].mxu0 %v631
  %v708 = vpop.f32.mrb[0].mxu0
  %v709 = vadd.f32 %v53, %v708
  %v710 = vpop.f32.mrb[0].mxu0
  %711 = vmatprep.mubr.f32.mxu0 0.0
  %712 = vmatmul.mubr.f32.gmra.mrb[0].mxu0 %v634
  %v713 = vpop.f32.mrb[0].mxu0
  %v714 = vadd.f32 %v53, %v713
  %v715 = vpop.f32.mrb[0].mxu0
  %716 = vmatprep.mubr.f32.mxu0 0.0
  %717 = vmatmul.mubr.f32.gmra.mrb[0].mxu0 %v637
  %v718 = vpop.f32.mrb[0].mxu0
  %v719 = vadd.f32 %v53, %v718
  %v720 = vpop.f32.mrb[0].mxu0
  %721 = vmatprep.mubr.f32.mxu0 0.0
  %722 = vmatmul.mubr.f32.gmra.mrb[0].mxu0 %v640
  %v723 = vpop.f32.mrb[0].mxu0
  %v724 = vadd.f32 %v53, %v723
  %v725 = vpop.f32.mrb[0].mxu0
  %726 = vdwg.mxu0
  %729 = vrot.lane.b32.xlu0 %v719, 64
  %v730 = vpop.permute.xlu0 %729
  %731 = vrot.lane.b32.xlu0 %v724, 64
  %v732 = vpop.permute.xlu0 %731
  %v735 = vxor.u32 %v709, 2147483648
  %v736 = vxor.u32 %v714, 2147483648
  %v737 = vxor.u32 %v730, 2147483648
  %v738 = vxor.u32 %v732, 2147483648
  %v739 = vmul.f32 %v735, 1.442695
  %v740 = vpow.pop %v739
  %v741 = vmul.f32 %v736, 1.442695
  %v742 = vpow.pop %v741
  %v743 = vmul.f32 %v737, 1.442695
  %v744 = vpow.pop %v743
  %v745 = vmul.f32 %v738, 1.442695
  %v746 = vpow.pop %v745
  %v747 = vadd.f32 %v740, 1.0
  %v748 = vadd.f32 %v742, 1.0
  %v749 = vadd.f32 %v744, 1.0
  %v750 = vadd.f32 %v746, 1.0
  %v751 = vrcp.pop %v747
  %v752 = vmul.f32 1.0, %v751
  %v753 = vrcp.pop %v748
  %v754 = vmul.f32 1.0, %v753
  %v755 = vrcp.pop %v749
  %v756 = vmul.f32 1.0, %v755
  %v757 = vrcp.pop %v750
  %v758 = vmul.f32 1.0, %v757
  %v759 = vtanh.pop %v709
  %v760 = vtanh.pop %v714
  %v761 = vtanh.pop %v730
  %v762 = vtanh.pop %v732
  %v763 = vmul.f32 %v752, %v606
  %v764 = vmul.f32 %v754, %v607
  %v765 = vmul.f32 %v756, %v608
  %v766 = vmul.f32 %v758, %v609
  %771 = vrot.lane.b32.xlu0 %v759, 96
  %v772 = vpop.permute.xlu0 %771
  %773 = vrot.lane.b32.xlu0 %v760, 96
  %v774 = vpop.permute.xlu0 %773
  %775 = vrot.lane.b32.xlu0 %v761, 96
  %v776 = vpop.permute.xlu0 %775
  %777 = vrot.lane.b32.xlu0 %v762, 96
  %v778 = vpop.permute.xlu0 %777
  %v783 = vmul.f32 %v752, %v772
  %v784 = vmul.f32 %v754, %v774
  %v785 = vmul.f32 %v756, %v776
  %v786 = vmul.f32 %v758, %v778
  %791 = vrot.lane.b32.xlu0 %v783, 16
  %v792 = vpop.permute.xlu0 %791
  %793 = vrot.lane.b32.xlu0 %v784, 16
  %v794 = vpop.permute.xlu0 %793
  %795 = vrot.lane.b32.xlu0 %v785, 16
  %v796 = vpop.permute.xlu0 %795
  %797 = vrot.lane.b32.xlu0 %v786, 16
  %v798 = vpop.permute.xlu0 %797
  %v803 = vadd.f32 %v763, %v792
  %v804 = vadd.f32 %v764, %v794
  %v805 = vadd.f32 %v765, %v796
  %v806 = vadd.f32 %v766, %v798
  %v807 = vtanh.pop %v803
  %v808 = vtanh.pop %v804
  %v809 = vtanh.pop %v805
  %v810 = vtanh.pop %v806
  %815 = vrot.lane.b32.xlu0 %v807, 32
  %v816 = vpop.permute.xlu0 %815
  %817 = vrot.lane.b32.xlu0 %v808, 32
  %v818 = vpop.permute.xlu0 %817
  %819 = vrot.lane.b32.xlu0 %v809, 32
  %v820 = vpop.permute.xlu0 %819
  %821 = vrot.lane.b32.xlu0 %v810, 32
  %v822 = vpop.permute.xlu0 %821
  %v827 = vmul.f32 %v752, %v816
  %v828 = vmul.f32 %v754, %v818
  %v829 = vmul.f32 %v756, %v820
  %v830 = vmul.f32 %v758, %v822
  %v831 = vmul.f32 %v555, %v827
  %v832 = vmul.f32 %v560, %v828
  %v833 = vmul.f32 %v545, %v829
  %v834 = vmul.f32 %v550, %v830
  %v835 = vmul.f32 %v583, %v594
  %v836 = vmul.f32 %v588, %v595
  %v837 = vmul.f32 %v573, %v596
  %v838 = vmul.f32 %v578, %v597
  %v839 = vadd.f32 %v831, %v835
  %v840 = vadd.f32 %v832, %v836
  %v841 = vadd.f32 %v833, %v837
  %v842 = vadd.f32 %v834, %v838
  %v843 = vmul.f32 %v555, %v803
  %v844 = vmul.f32 %v560, %v804
  %v845 = vmul.f32 %v545, %v805
  %v846 = vmul.f32 %v550, %v806
  %v847 = vmul.f32 %v583, %v606
  %v848 = vmul.f32 %v588, %v607
  %v849 = vmul.f32 %v573, %v608
  %v850 = vmul.f32 %v578, %v609
  %v851 = vadd.f32 %v843, %v847
  %v852 = vadd.f32 %v844, %v848
  %v853 = vadd.f32 %v845, %v849
  %v854 = vadd.f32 %v846, %v850
  %859 = vrot.lane.b32.xlu0 %v839, 96
  %v860 = vpop.permute.xlu0 %859
  %861 = vrot.lane.b32.xlu0 %v840, 96
  %v862 = vpop.permute.xlu0 %861
  %863 = vrot.lane.b32.xlu0 %v841, 96
  %v864 = vpop.permute.xlu0 %863
  %865 = vrot.lane.b32.xlu0 %v842, 96
  %v866 = vpop.permute.xlu0 %865
  %v871 = vsel %vm44, %v29, %v860
  %v872 = vsel %vm44, %v30, %v862
  %v873 = vsel %vm44, %v23, %v864
  %v874 = vsel %vm44, %v24, %v866
  %v876 = vsel %vm55, %v871, 0
  %v879 = vsel %vm55, %v872, 0
  %v882 = vsel %vm55, %v873, 0
  %v885 = vsel %vm55, %v874, 0
  %887 = vmatprep.subr.mxu0 0.0
  %888 = vmatpush1.msra.mxu0 %v39
  %889 = vmatprep.subr.mxu0 0.0
  %890 = vmatpush1.msra.mxu0 %v40
  %891 = vmatprep.subr.mxu0 0.0
  %892 = vmatpush1.msra.mxu0 %v41
  %893 = vmatprep.subr.mxu0 0.0
  %894 = vmatpush1.msra.mxu0 %v42
  %895 = vmatprep.subr.mxu0 0.0
  %896 = vmatpush1.msra.mxu0 0.0
  %897 = vmatprep.subr.mxu0 0.0
  %898 = vmatpush1.msra.mxu0 0.0
  %899 = vmatprep.subr.mxu0 0.0
  %900 = vmatpush1.msra.mxu0 0.0
  %901 = vmatprep.subr.mxu0 0.0
  %902 = vmatpush1.msra.mxu0 0.0
  %903 = vmatprep.subr.mxu0 0.0
  %904 = vmatpush1.msra.mxu0 0.0
  %905 = vmatprep.subr.mxu0 0.0
  %906 = vmatpush1.msra.mxu0 0.0
  %907 = vmatprep.subr.mxu0 0.0
  %908 = vmatpush1.msra.mxu0 0.0
  %909 = vmatprep.subr.mxu0 0.0
  %910 = vmatpush1.msra.mxu0 0.0
  %911 = vmatprep.subr.mxu0 0.0
  %912 = vmatpush1.msra.mxu0 0.0
  %913 = vmatprep.subr.mxu0 0.0
  %914 = vmatpush1.msra.mxu0 0.0
  %915 = vmatprep.subr.mxu0 0.0
  %916 = vmatpush1.msra.mxu0 0.0
  %917 = vmatprep.subr.mxu0 0.0
  %918 = vmatpush1.msra.mxu0 0.0
  %919 = vmatprep.subr.mxu0 0.0
  %920 = vmatpush1.msra.mxu0 0.0
  %921 = vmatprep.subr.mxu0 0.0
  %922 = vmatpush1.msra.mxu0 0.0
  %923 = vmatprep.subr.mxu0 0.0
  %924 = vmatpush1.msra.mxu0 0.0
  %925 = vmatprep.subr.mxu0 0.0
  %926 = vmatpush1.msra.mxu0 0.0
  %927 = vmatprep.subr.mxu0 0.0
  %928 = vmatpush1.msra.mxu0 0.0
  %929 = vmatprep.subr.mxu0 0.0
  %930 = vmatpush1.msra.mxu0 0.0
  %931 = vmatprep.subr.mxu0 0.0
  %932 = vmatpush1.msra.mxu0 0.0
  %933 = vmatprep.subr.mxu0 0.0
  %934 = vmatpush1.msra.mxu0 0.0
  %935 = vmatprep.subr.mxu0 0.0
  %936 = vmatpush1.msra.mxu0 0.0
  %937 = vmatprep.subr.mxu0 0.0
  %938 = vmatpush1.msra.mxu0 0.0
  %939 = vmatprep.subr.mxu0 0.0
  %940 = vmatpush1.msra.mxu0 0.0
  %941 = vmatprep.subr.mxu0 0.0
  %942 = vmatpush1.msra.mxu0 0.0
  %943 = vmatprep.subr.mxu0 0.0
  %944 = vmatpush1.msra.mxu0 0.0
  %945 = vmatprep.subr.mxu0 0.0
  %946 = vmatpush1.msra.mxu0 0.0
  %947 = vmatprep.subr.mxu0 0.0
  %948 = vmatpush1.msra.mxu0 0.0
  %949 = vmatprep.subr.mxu0 0.0
  %950 = vmatpush1.msra.mxu0 0.0
  %951 = vmatprep.mubr.f32.mxu0 0.0
  %952 = vmatmul.mubr.f32.gmra.mrb[0].mxu0 %v876
  %v953 = vpop.f32.mrb[0].mxu0
  %v954 = vadd.f32 %v53, %v953
  %v955 = vpop.f32.mrb[0].mxu0
  %956 = vmatprep.mubr.f32.mxu0 0.0
  %957 = vmatmul.mubr.f32.gmra.mrb[0].mxu0 %v879
  %v958 = vpop.f32.mrb[0].mxu0
  %v959 = vadd.f32 %v53, %v958
  %v960 = vpop.f32.mrb[0].mxu0
  %961 = vmatprep.mubr.f32.mxu0 0.0
  %962 = vmatmul.mubr.f32.gmra.mrb[0].mxu0 %v882
  %v963 = vpop.f32.mrb[0].mxu0
  %v964 = vadd.f32 %v53, %v963
  %v965 = vpop.f32.mrb[0].mxu0
  %966 = vmatprep.mubr.f32.mxu0 0.0
  %967 = vmatmul.mubr.f32.gmra.mrb[0].mxu0 %v885
  %v968 = vpop.f32.mrb[0].mxu0
  %v969 = vadd.f32 %v53, %v968
  %v970 = vpop.f32.mrb[0].mxu0
  %971 = vdwg.mxu0
  %974 = vrot.lane.b32.xlu0 %v964, 64
  %v975 = vpop.permute.xlu0 %974
  %976 = vrot.lane.b32.xlu0 %v969, 64
  %v977 = vpop.permute.xlu0 %976
  %v980 = vxor.u32 %v954, 2147483648
  %v981 = vxor.u32 %v959, 2147483648
  %v982 = vxor.u32 %v975, 2147483648
  %v983 = vxor.u32 %v977, 2147483648
  %v984 = vmul.f32 %v980, 1.442695
  %v985 = vpow.pop %v984
  %v986 = vmul.f32 %v981, 1.442695
  %v987 = vpow.pop %v986
  %v988 = vmul.f32 %v982, 1.442695
  %v989 = vpow.pop %v988
  %v990 = vmul.f32 %v983, 1.442695
  %v991 = vpow.pop %v990
  %v992 = vadd.f32 %v985, 1.0
  %v993 = vadd.f32 %v987, 1.0
  %v994 = vadd.f32 %v989, 1.0
  %v995 = vadd.f32 %v991, 1.0
  %v996 = vrcp.pop %v992
  %v997 = vmul.f32 1.0, %v996
  %v998 = vrcp.pop %v993
  %v999 = vmul.f32 1.0, %v998
  %v1000 = vrcp.pop %v994
  %v1001 = vmul.f32 1.0, %v1000
  %v1002 = vrcp.pop %v995
  %v1003 = vmul.f32 1.0, %v1002
  %v1004 = vtanh.pop %v954
  %v1005 = vtanh.pop %v959
  %v1006 = vtanh.pop %v975
  %v1007 = vtanh.pop %v977
  %v1008 = vmul.f32 %v997, %v851
  %v1009 = vmul.f32 %v999, %v852
  %v1010 = vmul.f32 %v1001, %v853
  %v1011 = vmul.f32 %v1003, %v854
  %1016 = vrot.lane.b32.xlu0 %v1004, 96
  %v1017 = vpop.permute.xlu0 %1016
  %1018 = vrot.lane.b32.xlu0 %v1005, 96
  %v1019 = vpop.permute.xlu0 %1018
  %1020 = vrot.lane.b32.xlu0 %v1006, 96
  %v1021 = vpop.permute.xlu0 %1020
  %1022 = vrot.lane.b32.xlu0 %v1007, 96
  %v1023 = vpop.permute.xlu0 %1022
  %v1028 = vmul.f32 %v997, %v1017
  %v1029 = vmul.f32 %v999, %v1019
  %v1030 = vmul.f32 %v1001, %v1021
  %v1031 = vmul.f32 %v1003, %v1023
  %1036 = vrot.lane.b32.xlu0 %v1028, 16
  %v1037 = vpop.permute.xlu0 %1036
  %1038 = vrot.lane.b32.xlu0 %v1029, 16
  %v1039 = vpop.permute.xlu0 %1038
  %1040 = vrot.lane.b32.xlu0 %v1030, 16
  %v1041 = vpop.permute.xlu0 %1040
  %1042 = vrot.lane.b32.xlu0 %v1031, 16
  %v1043 = vpop.permute.xlu0 %1042
  %v1048 = vadd.f32 %v1008, %v1037
  %v1049 = vadd.f32 %v1009, %v1039
  %v1050 = vadd.f32 %v1010, %v1041
  %v1051 = vadd.f32 %v1011, %v1043
  %v1052 = vtanh.pop %v1048
  %v1053 = vtanh.pop %v1049
  %v1054 = vtanh.pop %v1050
  %v1055 = vtanh.pop %v1051
  %1060 = vrot.lane.b32.xlu0 %v1052, 32
  %v1061 = vpop.permute.xlu0 %1060
  %1062 = vrot.lane.b32.xlu0 %v1053, 32
  %v1063 = vpop.permute.xlu0 %1062
  %1064 = vrot.lane.b32.xlu0 %v1054, 32
  %v1065 = vpop.permute.xlu0 %1064
  %1066 = vrot.lane.b32.xlu0 %v1055, 32
  %v1067 = vpop.permute.xlu0 %1066
  %v1072 = vmul.f32 %v997, %v1061
  %v1073 = vmul.f32 %v999, %v1063
  %v1074 = vmul.f32 %v1001, %v1065
  %v1075 = vmul.f32 %v1003, %v1067
  %v1076 = vmul.f32 %v270, %v1072
  %v1077 = vmul.f32 %v275, %v1073
  %v1078 = vmul.f32 %v260, %v1074
  %v1079 = vmul.f32 %v265, %v1075
  %v1080 = vmul.f32 %v298, %v839
  %v1081 = vmul.f32 %v303, %v840
  %v1082 = vmul.f32 %v288, %v841
  %v1083 = vmul.f32 %v293, %v842
  %v1084 = vadd.f32 %v1076, %v1080
  %v1085 = vadd.f32 %v1077, %v1081
  %v1086 = vadd.f32 %v1078, %v1082
  %v1087 = vadd.f32 %v1079, %v1083
  %1090 = vrot.lane.b32.xlu0 %v1084, 80
  %v1091 = vpop.permute.xlu0 %1090
  %1092 = vrot.lane.b32.xlu0 %v1085, 80
  %v1093 = vpop.permute.xlu0 %1092
  %1098 = vrot.lane.b32.xlu0 %v1086, 96
  %v1099 = vpop.permute.xlu0 %1098
  %1100 = vrot.lane.b32.xlu0 %v1087, 96
  %v1101 = vpop.permute.xlu0 %1100
  %v1104 = vsel %vm44, %v1091, %v1099
  %v1105 = vsel %vm44, %v1093, %v1101
  %v1106 = vld [vmem:[%s4] sm:$0xff]
  %v1107 = vld [vmem:[%s4 + $0x8] sm:$0xff]
  %v1108 = vld [vmem:[%s4 + $0x10] sm:$0xff]
  %v1109 = vld [vmem:[%s4 + $0x18] sm:$0xff]
  %v1110 = vld [vmem:[%s5] sm:$0x1]
  %v1112 = vlaneseq
  %v1113 = vshrl.u32 %v1112, 7
  %v1114 = vsub.s32 0, %v1113
  %v1115 = vrot.slane %v1110, %v1114
  %v1118 = vsel %vm55, %v1104, 0
  %v1121 = vsel %vm55, %v1105, 0
  %1123 = vmatprep.subr.mxu0 0.0
  %1124 = vmatpush1.msra.mxu0 %v1106
  %1125 = vmatprep.subr.mxu0 0.0
  %1126 = vmatpush1.msra.mxu0 %v1107
  %1127 = vmatprep.subr.mxu0 0.0
  %1128 = vmatpush1.msra.mxu0 %v1108
  %1129 = vmatprep.subr.mxu0 0.0
  %1130 = vmatpush1.msra.mxu0 %v1109
  %1131 = vmatprep.subr.mxu0 0.0
  %1132 = vmatpush1.msra.mxu0 0.0
  %1133 = vmatprep.subr.mxu0 0.0
  %1134 = vmatpush1.msra.mxu0 0.0
  %1135 = vmatprep.subr.mxu0 0.0
  %1136 = vmatpush1.msra.mxu0 0.0
  %1137 = vmatprep.subr.mxu0 0.0
  %1138 = vmatpush1.msra.mxu0 0.0
  %1139 = vmatprep.subr.mxu0 0.0
  %1140 = vmatpush1.msra.mxu0 0.0
  %1141 = vmatprep.subr.mxu0 0.0
  %1142 = vmatpush1.msra.mxu0 0.0
  %1143 = vmatprep.subr.mxu0 0.0
  %1144 = vmatpush1.msra.mxu0 0.0
  %1145 = vmatprep.subr.mxu0 0.0
  %1146 = vmatpush1.msra.mxu0 0.0
  %1147 = vmatprep.subr.mxu0 0.0
  %1148 = vmatpush1.msra.mxu0 0.0
  %1149 = vmatprep.subr.mxu0 0.0
  %1150 = vmatpush1.msra.mxu0 0.0
  %1151 = vmatprep.subr.mxu0 0.0
  %1152 = vmatpush1.msra.mxu0 0.0
  %1153 = vmatprep.subr.mxu0 0.0
  %1154 = vmatpush1.msra.mxu0 0.0
  %1155 = vmatprep.subr.mxu0 0.0
  %1156 = vmatpush1.msra.mxu0 0.0
  %1157 = vmatprep.subr.mxu0 0.0
  %1158 = vmatpush1.msra.mxu0 0.0
  %1159 = vmatprep.subr.mxu0 0.0
  %1160 = vmatpush1.msra.mxu0 0.0
  %1161 = vmatprep.subr.mxu0 0.0
  %1162 = vmatpush1.msra.mxu0 0.0
  %1163 = vmatprep.subr.mxu0 0.0
  %1164 = vmatpush1.msra.mxu0 0.0
  %1165 = vmatprep.subr.mxu0 0.0
  %1166 = vmatpush1.msra.mxu0 0.0
  %1167 = vmatprep.subr.mxu0 0.0
  %1168 = vmatpush1.msra.mxu0 0.0
  %1169 = vmatprep.subr.mxu0 0.0
  %1170 = vmatpush1.msra.mxu0 0.0
  %1171 = vmatprep.subr.mxu0 0.0
  %1172 = vmatpush1.msra.mxu0 0.0
  %1173 = vmatprep.subr.mxu0 0.0
  %1174 = vmatpush1.msra.mxu0 0.0
  %1175 = vmatprep.subr.mxu0 0.0
  %1176 = vmatpush1.msra.mxu0 0.0
  %1177 = vmatprep.subr.mxu0 0.0
  %1178 = vmatpush1.msra.mxu0 0.0
  %1179 = vmatprep.subr.mxu0 0.0
  %1180 = vmatpush1.msra.mxu0 0.0
  %1181 = vmatprep.subr.mxu0 0.0
  %1182 = vmatpush1.msra.mxu0 0.0
  %1183 = vmatprep.subr.mxu0 0.0
  %1184 = vmatpush1.msra.mxu0 0.0
  %1185 = vmatprep.subr.mxu0 0.0
  %1186 = vmatpush1.msra.mxu0 0.0
  %1187 = vmatprep.mubr.f32.mxu0 0.0
  %1188 = vmatmul.mubr.f32.gmra.mrb[0].mxu0 %v1118
  %v1189 = vpop.f32.mrb[0].mxu0
  %v1190 = vadd.f32 %v1115, %v1189
  %v1191 = vpop.f32.mrb[0].mxu0
  %1192 = vmatprep.mubr.f32.mxu0 0.0
  %1193 = vmatmul.mubr.f32.gmra.mrb[0].mxu0 %v1121
  %v1194 = vpop.f32.mrb[0].mxu0
  %v1195 = vadd.f32 %v1115, %v1194
  %v1196 = vpop.f32.mrb[0].mxu0
  %1197 = vdwg.mxu0
  %v1198 = vmul.f32 %v1190, %v260
  %v1199 = vmul.f32 %v1195, %v265
  %1200 = vst.msk [vmem:[%s6] sm:$0xff] %vm55, %v1198
  %1201 = vst.msk [vmem:[%s6 + $0x8] sm:$0xff] %vm55, %v1199
  // Predicated region
  $region26: #{model_encode.2} parent=0 // pred_check
    _
  $region27: #{model_encode.2} parent=0 // pred_check_branch
    %1203 = sbr.rel (0) target = $region29
  $region28: #{model_encode.2} parent=0 // pred_region
    _
  $region29: #{model_encode.2} parent=0 // pred_fallthru
    _
  // Predicated region
  $region30: #{model_encode.2} parent=0 // pred_check
    _
  $region31: #{model_encode.2} parent=0 // pred_check_branch
    %1205 = sbr.rel (0) target = $region33
  $region32: #{model_encode.2} parent=0 // pred_region
    _
  $region33: #{model_encode.2} parent=0 // pred_fallthru
    _

// kernel: model_encode.3
$region0: #{model_encode.3}
  #allocation0 [shape = 'u32[]', space=smem, size = 0x4, offset = 0x4, fixed_abs, tag = 'smem constant byte address 0x4 - core index']
  #allocation1 [shape = 'u32[144,128]{1,0:T(1,128)}', space=vmem, size = 0x12000, scoped, tag = 'internal scratch']
  %s0 = inlined_call_operand.vmem [shape: f32[8,2,64], index: 0, kind: input, shape index: {}]
  %s1 = inlined_call_operand.vmem [shape: f32[8,2,1], index: 1, kind: input, shape index: {}]
  %s2 = inlined_call_operand.vmem [shape: f32[3,96,256], index: 2, kind: input, shape index: {}]
  %s3 = inlined_call_operand.vmem [shape: f32[3,1,256], index: 3, kind: input, shape index: {}]
  %s4 = inlined_call_operand.vmem [shape: f32[8,2,64], index: 4, kind: output, shape index: {}]
  %s5 = sld [smem:[#allocation0]]
  $region26: #{model_encode.3} parent=0
    _
  %s7 = ssub.s32 1, %s5
  %s8 = scalar_select 0, %s7, %s5
  // Predicated region
  $region2: #{model_encode.3} parent=0 // pred_check
    _
  $region3: #{model_encode.3} parent=0 // pred_check_branch
    %10 = sbr.rel (0) target = $region5
  $region4: #{model_encode.3} parent=0 // pred_region
    _
  $region5: #{model_encode.3} parent=0 // pred_fallthru
    _
  // Predicated region
  $region6: #{model_encode.3} parent=0 // pred_check
    _
  $region7: #{model_encode.3} parent=0 // pred_check_branch
    %12 = sbr.rel (0) target = $region9
  $region8: #{model_encode.3} parent=0 // pred_region
    _
  $region9: #{model_encode.3} parent=0 // pred_fallthru
    _
  // Predicated region
  $region10: #{model_encode.3} parent=0 // pred_check
    _
  $region11: #{model_encode.3} parent=0 // pred_check_branch
    %14 = sbr.rel (0) target = $region13
  $region12: #{model_encode.3} parent=0 // pred_region
    _
  $region13: #{model_encode.3} parent=0 // pred_fallthru
    _
  // Predicated region
  $region14: #{model_encode.3} parent=0 // pred_check
    _
  $region15: #{model_encode.3} parent=0 // pred_check_branch
    %16 = sbr.rel (0) target = $region17
  $region16: #{model_encode.3} parent=0 // pred_region
    _
  $region17: #{model_encode.3} parent=0 // pred_fallthru
    _
  %v17 = vld [vmem:[%s0] sm:$0x3]
  %v18 = vld [vmem:[%s0 + $0x2] sm:$0x3]
  %v19 = vld [vmem:[%s0 + $0x4] sm:$0x3]
  %v20 = vld [vmem:[%s0 + $0x6] sm:$0x3]
  %v21 = vld [vmem:[%s0 + $0x8] sm:$0x3]
  %v22 = vld [vmem:[%s0 + $0xa] sm:$0x3]
  %v23 = vld [vmem:[%s0 + $0xc] sm:$0x3]
  %v24 = vld [vmem:[%s0 + $0xe] sm:$0x3]
  %v25 = vld [vmem:[%s1] sm:$0x3]
  %v26 = vld [vmem:[%s1 + $0x2] sm:$0x3]
  %v27 = vld [vmem:[%s1 + $0x4] sm:$0x3]
  %v28 = vld [vmem:[%s1 + $0x6] sm:$0x3]
  %v29 = vld [vmem:[%s1 + $0x8] sm:$0x3]
  %v30 = vld [vmem:[%s1 + $0xa] sm:$0x3]
  %v31 = vld [vmem:[%s1 + $0xc] sm:$0x3]
  %v32 = vld [vmem:[%s1 + $0xe] sm:$0x3]
  %v33 = vld [vmem:[%s2] sm:$0xff]
  %v34 = vld [vmem:[%s2 + $0x8] sm:$0xff]
  %v35 = vld [vmem:[%s2 + $0x10] sm:$0xff]
  %v36 = vld [vmem:[%s2 + $0x18] sm:$0xff]
  %v37 = vld [vmem:[%s2 + $0x20] sm:$0xff]
  %v38 = vld [vmem:[%s2 + $0x28] sm:$0xff]
  %v39 = vld [vmem:[%s2 + $0x30] sm:$0xff]
  %v40 = vld [vmem:[%s2 + $0x38] sm:$0xff]
  %v41 = vld [vmem:[%s2 + $0x40] sm:$0xff]
  %v42 = vld [vmem:[%s2 + $0x48] sm:$0xff]
  %v43 = vld [vmem:[%s2 + $0x50] sm:$0xff]
  %v44 = vld [vmem:[%s2 + $0x58] sm:$0xff]
  %v45 = vld [vmem:[%s2 + $0x60] sm:$0xff]
  %v46 = vld [vmem:[%s2 + $0x68] sm:$0xff]
  %v47 = vld [vmem:[%s2 + $0x70] sm:$0xff]
  %v48 = vld [vmem:[%s2 + $0x78] sm:$0xff]
  %v49 = vld [vmem:[%s2 + $0x80] sm:$0xff]
  %v50 = vld [vmem:[%s2 + $0x88] sm:$0xff]
  %v51 = vld [vmem:[%s2 + $0x90] sm:$0xff]
  %v52 = vld [vmem:[%s2 + $0x98] sm:$0xff]
  %v53 = vld [vmem:[%s2 + $0xa0] sm:$0xff]
  %v54 = vld [vmem:[%s2 + $0xa8] sm:$0xff]
  %v55 = vld [vmem:[%s2 + $0xb0] sm:$0xff]
  %v56 = vld [vmem:[%s2 + $0xb8] sm:$0xff]
  %v57 = vld [vmem:[%s3] sm:$0x3]
  %v59 = vrot.slane %v24, 6
  %vm61 = vcmask 1041408
  %v62 = vsel %vm61, %v17, %v59
  %vm63 = vcmask 523264
  %v64 = vsel %vm63, %v62, 0.0
  %v66 = vlaneseq
  %v67 = vshrl.u32 %v66, 7
  %v68 = vsub.s32 0, %v67
  %v69 = vrot.slane %v57, %v68
  %v70 = vlaneseq
  %v71 = vshrl.u32 %v70, 7
  %v72 = vsub.s32 1, %v71
  %v73 = vrot.slane %v57, %v72
  %vm76 = vcmask 785408
  %v78 = vsel %vm76, %v64, 0
  %80 = vmatprep.subr.mxu0 %v34
  %81 = vmatpush1.msra.mxu0 %v33
  %82 = vmatprep.subr.mxu0 %v36
  %83 = vmatpush1.msra.mxu0 %v35
  %84 = vmatprep.subr.mxu0 %v38
  %85 = vmatpush1.msra.mxu0 %v37
  %86 = vmatprep.subr.mxu0 %v40
  %87 = vmatpush1.msra.mxu0 %v39
  %88 = vmatprep.subr.mxu0 %v42
  %89 = vmatpush1.msra.mxu0 %v41
  %90 = vmatprep.subr.mxu0 %v44
  %91 = vmatpush1.msra.mxu0 %v43
  %92 = vmatprep.subr.mxu0 %v46
  %93 = vmatpush1.msra.mxu0 %v45
  %94 = vmatprep.subr.mxu0 %v48
  %95 = vmatpush1.msra.mxu0 %v47
  %96 = vmatprep.subr.mxu0 %v50
  %97 = vmatpush1.msra.mxu0 %v49
  %98 = vmatprep.subr.mxu0 %v52
  %99 = vmatpush1.msra.mxu0 %v51
  %100 = vmatprep.subr.mxu0 %v54
  %101 = vmatpush1.msra.mxu0 %v53
  %102 = vmatprep.subr.mxu0 %v56
  %103 = vmatpush1.msra.mxu0 %v55
  %104 = vmatprep.subr.mxu0 0.0
  %105 = vmatpush1.msra.mxu0 0.0
  %106 = vmatprep.subr.mxu0 0.0
  %107 = vmatpush1.msra.mxu0 0.0
  %108 = vmatprep.subr.mxu0 0.0
  %109 = vmatpush1.msra.mxu0 0.0
  %110 = vmatprep.subr.mxu0 0.0
  %111 = vmatpush1.msra.mxu0 0.0
  %112 = vmatprep.subr.mxu0 0.0
  %113 = vmatpush1.msra.mxu0 0.0
  %114 = vmatprep.subr.mxu0 0.0
  %115 = vmatpush1.msra.mxu0 0.0
  %116 = vmatprep.subr.mxu0 0.0
  %117 = vmatpush1.msra.mxu0 0.0
  %118 = vmatprep.subr.mxu0 0.0
  %119 = vmatpush1.msra.mxu0 0.0
  %120 = vmatprep.subr.mxu0 0.0
  %121 = vmatpush1.msra.mxu0 0.0
  %122 = vmatprep.subr.mxu0 0.0
  %123 = vmatpush1.msra.mxu0 0.0
  %124 = vmatprep.subr.mxu0 0.0
  %125 = vmatpush1.msra.mxu0 0.0
  %126 = vmatprep.subr.mxu0 0.0
  %127 = vmatpush1.msra.mxu0 0.0
  %128 = vmatprep.subr.mxu0 0.0
  %129 = vmatpush1.msra.mxu0 0.0
  %130 = vmatprep.subr.mxu0 0.0
  %131 = vmatpush1.msra.mxu0 0.0
  %132 = vmatprep.subr.mxu0 0.0
  %133 = vmatpush1.msra.mxu0 0.0
  %134 = vmatprep.subr.mxu0 0.0
  %135 = vmatpush1.msra.mxu0 0.0
  %136 = vmatprep.subr.mxu0 0.0
  %137 = vmatpush1.msra.mxu0 0.0
  %138 = vmatprep.subr.mxu0 0.0
  %139 = vmatpush1.msra.mxu0 0.0
  %140 = vmatprep.subr.mxu0 0.0
  %141 = vmatpush1.msra.mxu0 0.0
  %142 = vmatprep.subr.mxu0 0.0
  %143 = vmatpush1.msra.mxu0 0.0
  %144 = vmatprep.mubr.f32.mxu0 0.0
  %145 = vmatmul.mubr.f32.gmra.mrb[0].mxu0 %v78
  %v146 = vpop.f32.mrb[0].mxu0
  %v147 = vadd.f32 %v69, %v146
  %v148 = vpop.f32.mrb[0].mxu0
  %v149 = vadd.f32 %v73, %v148
  %150 = vdwg.mxu0
  %v151 = vsel %vm61, %v147, %v149
  %v152 = vxor.u32 %v151, 2147483648
  %v153 = vmul.f32 %v152, 1.442695
  %v154 = vpow.pop %v153
  %v155 = vadd.f32 %v154, 1.0
  %v156 = vrcp.pop %v155
  %v157 = vmul.f32 1.0, %v156
  %v158 = vtanh.pop %v151
  %v159 = vmul.f32 %v157, 0.0
  %161 = vrot.lane.b32.xlu0 %v158, 64
  %v162 = vpop.permute.xlu0 %161
  %v164 = vmul.f32 %v157, %v162
  %166 = vrot.lane.b32.xlu0 %v164, 32
  %v167 = vpop.permute.xlu0 %166
  %v169 = vadd.f32 %v159, %v167
  %v170 = vtanh.pop %v169
  %172 = vrot.lane.b32.xlu0 %v170, 64
  %v173 = vpop.permute.xlu0 %172
  %v175 = vmul.f32 %v157, %v173
  %v177 = vrot.slane %v32, 6
  %v179 = vsel %vm61, %v25, %v177
  %181 = vset.pattern.permute.xlu0 0
  %182 = vperm.xlu0 %181, %v179
  %v183 = vpop.permute.xlu0 %182
  %v185 = vmul.f32 %v183, %v175
  %v186 = vsub.f32 1.0, %v179
  %188 = vset.pattern.permute.xlu0 0
  %189 = vperm.xlu0 %188, %v186
  %v190 = vpop.permute.xlu0 %189
  %v192 = vmul.f32 %v190, 0.0
  %v193 = vadd.f32 %v185, %v192
  %v194 = vmul.f32 %v183, %v169
  %v195 = vadd.f32 %v194, %v192
  %v197 = vrot.slane %v23, 6
  %v199 = vsel %vm61, %v18, %v197
  %201 = vrot.lane.b32.xlu0 %v193, 96
  %v202 = vpop.permute.xlu0 %201
  %v204 = vsel %vm63, %v199, %v202
  %v206 = vsel %vm76, %v204, 0
  %208 = vmatprep.subr.mxu0 %v34
  %209 = vmatpush1.msra.mxu0 %v33
  %210 = vmatprep.subr.mxu0 %v36
  %211 = vmatpush1.msra.mxu0 %v35
  %212 = vmatprep.subr.mxu0 %v38
  %213 = vmatpush1.msra.mxu0 %v37
  %214 = vmatprep.subr.mxu0 %v40
  %215 = vmatpush1.msra.mxu0 %v39
  %216 = vmatprep.subr.mxu0 %v42
  %217 = vmatpush1.msra.mxu0 %v41
  %218 = vmatprep.subr.mxu0 %v44
  %219 = vmatpush1.msra.mxu0 %v43
  %220 = vmatprep.subr.mxu0 %v46
  %221 = vmatpush1.msra.mxu0 %v45
  %222 = vmatprep.subr.mxu0 %v48
  %223 = vmatpush1.msra.mxu0 %v47
  %224 = vmatprep.subr.mxu0 %v50
  %225 = vmatpush1.msra.mxu0 %v49
  %226 = vmatprep.subr.mxu0 %v52
  %227 = vmatpush1.msra.mxu0 %v51
  %228 = vmatprep.subr.mxu0 %v54
  %229 = vmatpush1.msra.mxu0 %v53
  %230 = vmatprep.subr.mxu0 %v56
  %231 = vmatpush1.msra.mxu0 %v55
  %232 = vmatprep.subr.mxu0 0.0
  %233 = vmatpush1.msra.mxu0 0.0
  %234 = vmatprep.subr.mxu0 0.0
  %235 = vmatpush1.msra.mxu0 0.0
  %236 = vmatprep.subr.mxu0 0.0
  %237 = vmatpush1.msra.mxu0 0.0
  %238 = vmatprep.subr.mxu0 0.0
  %239 = vmatpush1.msra.mxu0 0.0
  %240 = vmatprep.subr.mxu0 0.0
  %241 = vmatpush1.msra.mxu0 0.0
  %242 = vmatprep.subr.mxu0 0.0
  %243 = vmatpush1.msra.mxu0 0.0
  %244 = vmatprep.subr.mxu0 0.0
  %245 = vmatpush1.msra.mxu0 0.0
  %246 = vmatprep.subr.mxu0 0.0
  %247 = vmatpush1.msra.mxu0 0.0
  %248 = vmatprep.subr.mxu0 0.0
  %249 = vmatpush1.msra.mxu0 0.0
  %250 = vmatprep.subr.mxu0 0.0
  %251 = vmatpush1.msra.mxu0 0.0
  %252 = vmatprep.subr.mxu0 0.0
  %253 = vmatpush1.msra.mxu0 0.0
  %254 = vmatprep.subr.mxu0 0.0
  %255 = vmatpush1.msra.mxu0 0.0
  %256 = vmatprep.subr.mxu0 0.0
  %257 = vmatpush1.msra.mxu0 0.0
  %258 = vmatprep.subr.mxu0 0.0
  %259 = vmatpush1.msra.mxu0 0.0
  %260 = vmatprep.subr.mxu0 0.0
  %261 = vmatpush1.msra.mxu0 0.0
  %262 = vmatprep.subr.mxu0 0.0
  %263 = vmatpush1.msra.mxu0 0.0
  %264 = vmatprep.subr.mxu0 0.0
  %265 = vmatpush1.msra.mxu0 0.0
  %266 = vmatprep.subr.mxu0 0.0
  %267 = vmatpush1.msra.mxu0 0.0
  %268 = vmatprep.subr.mxu0 0.0
  %269 = vmatpush1.msra.mxu0 0.0
  %270 = vmatprep.subr.mxu0 0.0
  %271 = vmatpush1.msra.mxu0 0.0
  %272 = vmatprep.mubr.f32.mxu0 0.0
  %273 = vmatmul.mubr.f32.gmra.mrb[0].mxu0 %v206
  %v274 = vpop.f32.mrb[0].mxu0
  %v275 = vadd.f32 %v69, %v274
  %v276 = vpop.f32.mrb[0].mxu0
  %v277 = vadd.f32 %v73, %v276
  %278 = vdwg.mxu0
  %v279 = vsel %vm61, %v275, %v277
  %v280 = vxor.u32 %v279, 2147483648
  %v281 = vmul.f32 %v280, 1.442695
  %v282 = vpow.pop %v281
  %v283 = vadd.f32 %v282, 1.0
  %v284 = vrcp.pop %v283
  %v285 = vmul.f32 1.0, %v284
  %v286 = vtanh.pop %v279
  %v287 = vmul.f32 %v285, %v195
  %289 = vrot.lane.b32.xlu0 %v286, 64
  %v290 = vpop.permute.xlu0 %289
  %v292 = vmul.f32 %v285, %v290
  %294 = vrot.lane.b32.xlu0 %v292, 32
  %v295 = vpop.permute.xlu0 %294
  %v297 = vadd.f32 %v287, %v295
  %v298 = vtanh.pop %v297
  %300 = vrot.lane.b32.xlu0 %v298, 64
  %v301 = vpop.permute.xlu0 %300
  %v303 = vmul.f32 %v285, %v301
  %v305 = vrot.slane %v31, 6
  %v307 = vsel %vm61, %v26, %v305
  %309 = vset.pattern.permute.xlu0 0
  %310 = vperm.xlu0 %309, %v307
  %v311 = vpop.permute.xlu0 %310
  %v313 = vmul.f32 %v311, %v303
  %v314 = vsub.f32 1.0, %v307
  %316 = vset.pattern.permute.xlu0 0
  %317 = vperm.xlu0 %316, %v314
  %v318 = vpop.permute.xlu0 %317
  %v320 = vmul.f32 %v318, %v193
  %v321 = vadd.f32 %v313, %v320
  %v322 = vmul.f32 %v311, %v297
  %v323 = vmul.f32 %v318, %v195
  %v324 = vadd.f32 %v322, %v323
  %v326 = vrot.slane %v22, 6
  %v328 = vsel %vm61, %v19, %v326
  %330 = vrot.lane.b32.xlu0 %v321, 96
  %v331 = vpop.permute.xlu0 %330
  %v333 = vsel %vm63, %v328, %v331
  %v335 = vsel %vm76, %v333, 0
  %337 = vmatprep.subr.mxu0 %v34
  %338 = vmatpush1.msra.mxu0 %v33
  %339 = vmatprep.subr.mxu0 %v36
  %340 = vmatpush1.msra.mxu0 %v35
  %341 = vmatprep.subr.mxu0 %v38
  %342 = vmatpush1.msra.mxu0 %v37
  %343 = vmatprep.subr.mxu0 %v40
  %344 = vmatpush1.msra.mxu0 %v39
  %345 = vmatprep.subr.mxu0 %v42
  %346 = vmatpush1.msra.mxu0 %v41
  %347 = vmatprep.subr.mxu0 %v44
  %348 = vmatpush1.msra.mxu0 %v43
  %349 = vmatprep.subr.mxu0 %v46
  %350 = vmatpush1.msra.mxu0 %v45
  %351 = vmatprep.subr.mxu0 %v48
  %352 = vmatpush1.msra.mxu0 %v47
  %353 = vmatprep.subr.mxu0 %v50
  %354 = vmatpush1.msra.mxu0 %v49
  %355 = vmatprep.subr.mxu0 %v52
  %356 = vmatpush1.msra.mxu0 %v51
  %357 = vmatprep.subr.mxu0 %v54
  %358 = vmatpush1.msra.mxu0 %v53
  %359 = vmatprep.subr.mxu0 %v56
  %360 = vmatpush1.msra.mxu0 %v55
  %361 = vmatprep.subr.mxu0 0.0
  %362 = vmatpush1.msra.mxu0 0.0
  %363 = vmatprep.subr.mxu0 0.0
  %364 = vmatpush1.msra.mxu0 0.0
  %365 = vmatprep.subr.mxu0 0.0
  %366 = vmatpush1.msra.mxu0 0.0
  %367 = vmatprep.subr.mxu0 0.0
  %368 = vmatpush1.msra.mxu0 0.0
  %369 = vmatprep.subr.mxu0 0.0
  %370 = vmatpush1.msra.mxu0 0.0
  %371 = vmatprep.subr.mxu0 0.0
  %372 = vmatpush1.msra.mxu0 0.0
  %373 = vmatprep.subr.mxu0 0.0
  %374 = vmatpush1.msra.mxu0 0.0
  %375 = vmatprep.subr.mxu0 0.0
  %376 = vmatpush1.msra.mxu0 0.0
  %377 = vmatprep.subr.mxu0 0.0
  %378 = vmatpush1.msra.mxu0 0.0
  %379 = vmatprep.subr.mxu0 0.0
  %380 = vmatpush1.msra.mxu0 0.0
  %381 = vmatprep.subr.mxu0 0.0
  %382 = vmatpush1.msra.mxu0 0.0
  %383 = vmatprep.subr.mxu0 0.0
  %384 = vmatpush1.msra.mxu0 0.0
  %385 = vmatprep.subr.mxu0 0.0
  %386 = vmatpush1.msra.mxu0 0.0
  %387 = vmatprep.subr.mxu0 0.0
  %388 = vmatpush1.msra.mxu0 0.0
  %389 = vmatprep.subr.mxu0 0.0
  %390 = vmatpush1.msra.mxu0 0.0
  %391 = vmatprep.subr.mxu0 0.0
  %392 = vmatpush1.msra.mxu0 0.0
  %393 = vmatprep.subr.mxu0 0.0
  %394 = vmatpush1.msra.mxu0 0.0
  %395 = vmatprep.subr.mxu0 0.0
  %396 = vmatpush1.msra.mxu0 0.0
  %397 = vmatprep.subr.mxu0 0.0
  %398 = vmatpush1.msra.mxu0 0.0
  %399 = vmatprep.subr.mxu0 0.0
  %400 = vmatpush1.msra.mxu0 0.0
  %401 = vmatprep.mubr.f32.mxu0 0.0
  %402 = vmatmul.mubr.f32.gmra.mrb[0].mxu0 %v335
  %v403 = vpop.f32.mrb[0].mxu0
  %v404 = vadd.f32 %v69, %v403
  %v405 = vpop.f32.mrb[0].mxu0
  %v406 = vadd.f32 %v73, %v405
  %407 = vdwg.mxu0
  %v408 = vsel %vm61, %v404, %v406
  %v409 = vxor.u32 %v408, 2147483648
  %v410 = vmul.f32 %v409, 1.442695
  %v411 = vpow.pop %v410
  %v412 = vadd.f32 %v411, 1.0
  %v413 = vrcp.pop %v412
  %v414 = vmul.f32 1.0, %v413
  %v415 = vtanh.pop %v408
  %v416 = vmul.f32 %v414, %v324
  %418 = vrot.lane.b32.xlu0 %v415, 64
  %v419 = vpop.permute.xlu0 %418
  %v421 = vmul.f32 %v414, %v419
  %423 = vrot.lane.b32.xlu0 %v421, 32
  %v424 = vpop.permute.xlu0 %423
  %v426 = vadd.f32 %v416, %v424
  %v427 = vtanh.pop %v426
  %429 = vrot.lane.b32.xlu0 %v427, 64
  %v430 = vpop.permute.xlu0 %429
  %v432 = vmul.f32 %v414, %v430
  %v434 = vrot.slane %v30, 6
  %v436 = vsel %vm61, %v27, %v434
  %438 = vset.pattern.permute.xlu0 0
  %439 = vperm.xlu0 %438, %v436
  %v440 = vpop.permute.xlu0 %439
  %v442 = vmul.f32 %v440, %v432
  %v443 = vsub.f32 1.0, %v436
  %445 = vset.pattern.permute.xlu0 0
  %446 = vperm.xlu0 %445, %v443
  %v447 = vpop.permute.xlu0 %446
  %v449 = vmul.f32 %v447, %v321
  %v450 = vadd.f32 %v442, %v449
  %v451 = vmul.f32 %v440, %v426
  %v452 = vmul.f32 %v447, %v324
  %v453 = vadd.f32 %v451, %v452
  %v455 = vrot.slane %v21, 6
  %v457 = vsel %vm61, %v20, %v455
  %459 = vrot.lane.b32.xlu0 %v450, 96
  %v460 = vpop.permute.xlu0 %459
  %v462 = vsel %vm63, %v457, %v460
  %v464 = vsel %vm76, %v462, 0
  %466 = vmatprep.subr.mxu0 %v34
  %467 = vmatpush1.msra.mxu0 %v33
  %468 = vmatprep.subr.mxu0 %v36
  %469 = vmatpush1.msra.mxu0 %v35
  %470 = vmatprep.subr.mxu0 %v38
  %471 = vmatpush1.msra.mxu0 %v37
  %472 = vmatprep.subr.mxu0 %v40
  %473 = vmatpush1.msra.mxu0 %v39
  %474 = vmatprep.subr.mxu0 %v42
  %475 = vmatpush1.msra.mxu0 %v41
  %476 = vmatprep.subr.mxu0 %v44
  %477 = vmatpush1.msra.mxu0 %v43
  %478 = vmatprep.subr.mxu0 %v46
  %479 = vmatpush1.msra.mxu0 %v45
  %480 = vmatprep.subr.mxu0 %v48
  %481 = vmatpush1.msra.mxu0 %v47
  %482 = vmatprep.subr.mxu0 %v50
  %483 = vmatpush1.msra.mxu0 %v49
  %484 = vmatprep.subr.mxu0 %v52
  %485 = vmatpush1.msra.mxu0 %v51
  %486 = vmatprep.subr.mxu0 %v54
  %487 = vmatpush1.msra.mxu0 %v53
  %488 = vmatprep.subr.mxu0 %v56
  %489 = vmatpush1.msra.mxu0 %v55
  %490 = vmatprep.subr.mxu0 0.0
  %491 = vmatpush1.msra.mxu0 0.0
  %492 = vmatprep.subr.mxu0 0.0
  %493 = vmatpush1.msra.mxu0 0.0
  %494 = vmatprep.subr.mxu0 0.0
  %495 = vmatpush1.msra.mxu0 0.0
  %496 = vmatprep.subr.mxu0 0.0
  %497 = vmatpush1.msra.mxu0 0.0
  %498 = vmatprep.subr.mxu0 0.0
  %499 = vmatpush1.msra.mxu0 0.0
  %500 = vmatprep.subr.mxu0 0.0
  %501 = vmatpush1.msra.mxu0 0.0
  %502 = vmatprep.subr.mxu0 0.0
  %503 = vmatpush1.msra.mxu0 0.0
  %504 = vmatprep.subr.mxu0 0.0
  %505 = vmatpush1.msra.mxu0 0.0
  %506 = vmatprep.subr.mxu0 0.0
  %507 = vmatpush1.msra.mxu0 0.0
  %508 = vmatprep.subr.mxu0 0.0
  %509 = vmatpush1.msra.mxu0 0.0
  %510 = vmatprep.subr.mxu0 0.0
  %511 = vmatpush1.msra.mxu0 0.0
  %512 = vmatprep.subr.mxu0 0.0
  %513 = vmatpush1.msra.mxu0 0.0
  %514 = vmatprep.subr.mxu0 0.0
  %515 = vmatpush1.msra.mxu0 0.0
  %516 = vmatprep.subr.mxu0 0.0
  %517 = vmatpush1.msra.mxu0 0.0
  %518 = vmatprep.subr.mxu0 0.0
  %519 = vmatpush1.msra.mxu0 0.0
  %520 = vmatprep.subr.mxu0 0.0
  %521 = vmatpush1.msra.mxu0 0.0
  %522 = vmatprep.subr.mxu0 0.0
  %523 = vmatpush1.msra.mxu0 0.0
  %524 = vmatprep.subr.mxu0 0.0
  %525 = vmatpush1.msra.mxu0 0.0
  %526 = vmatprep.subr.mxu0 0.0
  %527 = vmatpush1.msra.mxu0 0.0
  %528 = vmatprep.subr.mxu0 0.0
  %529 = vmatpush1.msra.mxu0 0.0
  %530 = vmatprep.mubr.f32.mxu0 0.0
  %531 = vmatmul.mubr.f32.gmra.mrb[0].mxu0 %v464
  %v532 = vpop.f32.mrb[0].mxu0
  %v533 = vadd.f32 %v69, %v532
  %v534 = vpop.f32.mrb[0].mxu0
  %v535 = vadd.f32 %v73, %v534
  %536 = vdwg.mxu0
  %v537 = vsel %vm61, %v533, %v535
  %v538 = vxor.u32 %v537, 2147483648
  %v539 = vmul.f32 %v538, 1.442695
  %v540 = vpow.pop %v539
  %v541 = vadd.f32 %v540, 1.0
  %v542 = vrcp.pop %v541
  %v543 = vmul.f32 1.0, %v542
  %v544 = vtanh.pop %v537
  %v545 = vmul.f32 %v543, %v453
  %547 = vrot.lane.b32.xlu0 %v544, 64
  %v548 = vpop.permute.xlu0 %547
  %v550 = vmul.f32 %v543, %v548
  %552 = vrot.lane.b32.xlu0 %v550, 32
  %v553 = vpop.permute.xlu0 %552
  %v555 = vadd.f32 %v545, %v553
  %v556 = vtanh.pop %v555
  %558 = vrot.lane.b32.xlu0 %v556, 64
  %v559 = vpop.permute.xlu0 %558
  %v561 = vmul.f32 %v543, %v559
  %v563 = vrot.slane %v29, 6
  %v565 = vsel %vm61, %v28, %v563
  %567 = vset.pattern.permute.xlu0 0
  %568 = vperm.xlu0 %567, %v565
  %v569 = vpop.permute.xlu0 %568
  %v571 = vmul.f32 %v569, %v561
  %v572 = vsub.f32 1.0, %v565
  %574 = vset.pattern.permute.xlu0 0
  %575 = vperm.xlu0 %574, %v572
  %v576 = vpop.permute.xlu0 %575
  %v578 = vmul.f32 %v576, %v450
  %v579 = vadd.f32 %v571, %v578
  %v580 = vmul.f32 %v569, %v555
  %v581 = vmul.f32 %v576, %v453
  %v582 = vadd.f32 %v580, %v581
  %v584 = vrot.slane %v20, 6
  %v586 = vsel %vm61, %v21, %v584
  %588 = vrot.lane.b32.xlu0 %v579, 96
  %v589 = vpop.permute.xlu0 %588
  %v591 = vsel %vm63, %v586, %v589
  %v593 = vsel %vm76, %v591, 0
  %595 = vmatprep.subr.mxu0 %v34
  %596 = vmatpush1.msra.mxu0 %v33
  %597 = vmatprep.subr.mxu0 %v36
  %598 = vmatpush1.msra.mxu0 %v35
  %599 = vmatprep.subr.mxu0 %v38
  %600 = vmatpush1.msra.mxu0 %v37
  %601 = vmatprep.subr.mxu0 %v40
  %602 = vmatpush1.msra.mxu0 %v39
  %603 = vmatprep.subr.mxu0 %v42
  %604 = vmatpush1.msra.mxu0 %v41
  %605 = vmatprep.subr.mxu0 %v44
  %606 = vmatpush1.msra.mxu0 %v43
  %607 = vmatprep.subr.mxu0 %v46
  %608 = vmatpush1.msra.mxu0 %v45
  %609 = vmatprep.subr.mxu0 %v48
  %610 = vmatpush1.msra.mxu0 %v47
  %611 = vmatprep.subr.mxu0 %v50
  %612 = vmatpush1.msra.mxu0 %v49
  %613 = vmatprep.subr.mxu0 %v52
  %614 = vmatpush1.msra.mxu0 %v51
  %615 = vmatprep.subr.mxu0 %v54
  %616 = vmatpush1.msra.mxu0 %v53
  %617 = vmatprep.subr.mxu0 %v56
  %618 = vmatpush1.msra.mxu0 %v55
  %619 = vmatprep.subr.mxu0 0.0
  %620 = vmatpush1.msra.mxu0 0.0
  %621 = vmatprep.subr.mxu0 0.0
  %622 = vmatpush1.msra.mxu0 0.0
  %623 = vmatprep.subr.mxu0 0.0
  %624 = vmatpush1.msra.mxu0 0.0
  %625 = vmatprep.subr.mxu0 0.0
  %626 = vmatpush1.msra.mxu0 0.0
  %627 = vmatprep.subr.mxu0 0.0
  %628 = vmatpush1.msra.mxu0 0.0
  %629 = vmatprep.subr.mxu0 0.0
  %630 = vmatpush1.msra.mxu0 0.0
  %631 = vmatprep.subr.mxu0 0.0
  %632 = vmatpush1.msra.mxu0 0.0
  %633 = vmatprep.subr.mxu0 0.0
  %634 = vmatpush1.msra.mxu0 0.0
  %635 = vmatprep.subr.mxu0 0.0
  %636 = vmatpush1.msra.mxu0 0.0
  %637 = vmatprep.subr.mxu0 0.0
  %638 = vmatpush1.msra.mxu0 0.0
  %639 = vmatprep.subr.mxu0 0.0
  %640 = vmatpush1.msra.mxu0 0.0
  %641 = vmatprep.subr.mxu0 0.0
  %642 = vmatpush1.msra.mxu0 0.0
  %643 = vmatprep.subr.mxu0 0.0
  %644 = vmatpush1.msra.mxu0 0.0
  %645 = vmatprep.subr.mxu0 0.0
  %646 = vmatpush1.msra.mxu0 0.0
  %647 = vmatprep.subr.mxu0 0.0
  %648 = vmatpush1.msra.mxu0 0.0
  %649 = vmatprep.subr.mxu0 0.0
  %650 = vmatpush1.msra.mxu0 0.0
  %651 = vmatprep.subr.mxu0 0.0
  %652 = vmatpush1.msra.mxu0 0.0
  %653 = vmatprep.subr.mxu0 0.0
  %654 = vmatpush1.msra.mxu0 0.0
  %655 = vmatprep.subr.mxu0 0.0
  %656 = vmatpush1.msra.mxu0 0.0
  %657 = vmatprep.subr.mxu0 0.0
  %658 = vmatpush1.msra.mxu0 0.0
  %659 = vmatprep.mubr.f32.mxu0 0.0
  %660 = vmatmul.mubr.f32.gmra.mrb[0].mxu0 %v593
  %v661 = vpop.f32.mrb[0].mxu0
  %v662 = vadd.f32 %v69, %v661
  %v663 = vpop.f32.mrb[0].mxu0
  %v664 = vadd.f32 %v73, %v663
  %665 = vdwg.mxu0
  %v666 = vsel %vm61, %v662, %v664
  %v667 = vxor.u32 %v666, 2147483648
  %v668 = vmul.f32 %v667, 1.442695
  %v669 = vpow.pop %v668
  %v670 = vadd.f32 %v669, 1.0
  %v671 = vrcp.pop %v670
  %v672 = vmul.f32 1.0, %v671
  %v673 = vtanh.pop %v666
  %v674 = vmul.f32 %v672, %v582
  %676 = vrot.lane.b32.xlu0 %v673, 64
  %v677 = vpop.permute.xlu0 %676
  %v679 = vmul.f32 %v672, %v677
  %681 = vrot.lane.b32.xlu0 %v679, 32
  %v682 = vpop.permute.xlu0 %681
  %v684 = vadd.f32 %v674, %v682
  %v685 = vtanh.pop %v684
  %687 = vrot.lane.b32.xlu0 %v685, 64
  %v688 = vpop.permute.xlu0 %687
  %v690 = vmul.f32 %v672, %v688
  %v692 = vrot.slane %v28, 6
  %v694 = vsel %vm61, %v29, %v692
  %696 = vset.pattern.permute.xlu0 0
  %697 = vperm.xlu0 %696, %v694
  %v698 = vpop.permute.xlu0 %697
  %v700 = vmul.f32 %v698, %v690
  %v701 = vsub.f32 1.0, %v694
  %703 = vset.pattern.permute.xlu0 0
  %704 = vperm.xlu0 %703, %v701
  %v705 = vpop.permute.xlu0 %704
  %v707 = vmul.f32 %v705, %v579
  %v708 = vadd.f32 %v700, %v707
  %v709 = vmul.f32 %v698, %v684
  %v710 = vmul.f32 %v705, %v582
  %v711 = vadd.f32 %v709, %v710
  %v713 = vrot.slane %v19, 6
  %v715 = vsel %vm61, %v22, %v713
  %717 = vrot.lane.b32.xlu0 %v708, 96
  %v718 = vpop.permute.xlu0 %717
  %v720 = vsel %vm63, %v715, %v718
  %v722 = vsel %vm76, %v720, 0
  %724 = vmatprep.subr.mxu0 %v34
  %725 = vmatpush1.msra.mxu0 %v33
  %726 = vmatprep.subr.mxu0 %v36
  %727 = vmatpush1.msra.mxu0 %v35
  %728 = vmatprep.subr.mxu0 %v38
  %729 = vmatpush1.msra.mxu0 %v37
  %730 = vmatprep.subr.mxu0 %v40
  %731 = vmatpush1.msra.mxu0 %v39
  %732 = vmatprep.subr.mxu0 %v42
  %733 = vmatpush1.msra.mxu0 %v41
  %734 = vmatprep.subr.mxu0 %v44
  %735 = vmatpush1.msra.mxu0 %v43
  %736 = vmatprep.subr.mxu0 %v46
  %737 = vmatpush1.msra.mxu0 %v45
  %738 = vmatprep.subr.mxu0 %v48
  %739 = vmatpush1.msra.mxu0 %v47
  %740 = vmatprep.subr.mxu0 %v50
  %741 = vmatpush1.msra.mxu0 %v49
  %742 = vmatprep.subr.mxu0 %v52
  %743 = vmatpush1.msra.mxu0 %v51
  %744 = vmatprep.subr.mxu0 %v54
  %745 = vmatpush1.msra.mxu0 %v53
  %746 = vmatprep.subr.mxu0 %v56
  %747 = vmatpush1.msra.mxu0 %v55
  %748 = vmatprep.subr.mxu0 0.0
  %749 = vmatpush1.msra.mxu0 0.0
  %750 = vmatprep.subr.mxu0 0.0
  %751 = vmatpush1.msra.mxu0 0.0
  %752 = vmatprep.subr.mxu0 0.0
  %753 = vmatpush1.msra.mxu0 0.0
  %754 = vmatprep.subr.mxu0 0.0
  %755 = vmatpush1.msra.mxu0 0.0
  %756 = vmatprep.subr.mxu0 0.0
  %757 = vmatpush1.msra.mxu0 0.0
  %758 = vmatprep.subr.mxu0 0.0
  %759 = vmatpush1.msra.mxu0 0.0
  %760 = vmatprep.subr.mxu0 0.0
  %761 = vmatpush1.msra.mxu0 0.0
  %762 = vmatprep.subr.mxu0 0.0
  %763 = vmatpush1.msra.mxu0 0.0
  %764 = vmatprep.subr.mxu0 0.0
  %765 = vmatpush1.msra.mxu0 0.0
  %766 = vmatprep.subr.mxu0 0.0
  %767 = vmatpush1.msra.mxu0 0.0
  %768 = vmatprep.subr.mxu0 0.0
  %769 = vmatpush1.msra.mxu0 0.0
  %770 = vmatprep.subr.mxu0 0.0
  %771 = vmatpush1.msra.mxu0 0.0
  %772 = vmatprep.subr.mxu0 0.0
  %773 = vmatpush1.msra.mxu0 0.0
  %774 = vmatprep.subr.mxu0 0.0
  %775 = vmatpush1.msra.mxu0 0.0
  %776 = vmatprep.subr.mxu0 0.0
  %777 = vmatpush1.msra.mxu0 0.0
  %778 = vmatprep.subr.mxu0 0.0
  %779 = vmatpush1.msra.mxu0 0.0
  %780 = vmatprep.subr.mxu0 0.0
  %781 = vmatpush1.msra.mxu0 0.0
  %782 = vmatprep.subr.mxu0 0.0
  %783 = vmatpush1.msra.mxu0 0.0
  %784 = vmatprep.subr.mxu0 0.0
  %785 = vmatpush1.msra.mxu0 0.0
  %786 = vmatprep.subr.mxu0 0.0
  %787 = vmatpush1.msra.mxu0 0.0
  %788 = vmatprep.mubr.f32.mxu0 0.0
  %789 = vmatmul.mubr.f32.gmra.mrb[0].mxu0 %v722
  %v790 = vpop.f32.mrb[0].mxu0
  %v791 = vadd.f32 %v69, %v790
  %v792 = vpop.f32.mrb[0].mxu0
  %v793 = vadd.f32 %v73, %v792
  %794 = vdwg.mxu0
  %v795 = vsel %vm61, %v791, %v793
  %v796 = vxor.u32 %v795, 2147483648
  %v797 = vmul.f32 %v796, 1.442695
  %v798 = vpow.pop %v797
  %v799 = vadd.f32 %v798, 1.0
  %v800 = vrcp.pop %v799
  %v801 = vmul.f32 1.0, %v800
  %v802 = vtanh.pop %v795
  %v803 = vmul.f32 %v801, %v711
  %805 = vrot.lane.b32.xlu0 %v802, 64
  %v806 = vpop.permute.xlu0 %805
  %v808 = vmul.f32 %v801, %v806
  %810 = vrot.lane.b32.xlu0 %v808, 32
  %v811 = vpop.permute.xlu0 %810
  %v813 = vadd.f32 %v803, %v811
  %v814 = vtanh.pop %v813
  %816 = vrot.lane.b32.xlu0 %v814, 64
  %v817 = vpop.permute.xlu0 %816
  %v819 = vmul.f32 %v801, %v817
  %v821 = vrot.slane %v27, 6
  %v823 = vsel %vm61, %v30, %v821
  %825 = vset.pattern.permute.xlu0 0
  %826 = vperm.xlu0 %825, %v823
  %v827 = vpop.permute.xlu0 %826
  %v829 = vmul.f32 %v827, %v819
  %v830 = vsub.f32 1.0, %v823
  %832 = vset.pattern.permute.xlu0 0
  %833 = vperm.xlu0 %832, %v830
  %v834 = vpop.permute.xlu0 %833
  %v836 = vmul.f32 %v834, %v708
  %v837 = vadd.f32 %v829, %v836
  %v838 = vmul.f32 %v827, %v813
  %v839 = vmul.f32 %v834, %v711
  %v840 = vadd.f32 %v838, %v839
  %v842 = vrot.slane %v18, 6
  %v844 = vsel %vm61, %v23, %v842
  %846 = vrot.lane.b32.xlu0 %v837, 96
  %v847 = vpop.permute.xlu0 %846
  %v849 = vsel %vm63, %v844, %v847
  %v851 = vsel %vm76, %v849, 0
  %853 = vmatprep.subr.mxu0 %v34
  %854 = vmatpush1.msra.mxu0 %v33
  %855 = vmatprep.subr.mxu0 %v36
  %856 = vmatpush1.msra.mxu0 %v35
  %857 = vmatprep.subr.mxu0 %v38
  %858 = vmatpush1.msra.mxu0 %v37
  %859 = vmatprep.subr.mxu0 %v40
  %860 = vmatpush1.msra.mxu0 %v39
  %861 = vmatprep.subr.mxu0 %v42
  %862 = vmatpush1.msra.mxu0 %v41
  %863 = vmatprep.subr.mxu0 %v44
  %864 = vmatpush1.msra.mxu0 %v43
  %865 = vmatprep.subr.mxu0 %v46
  %866 = vmatpush1.msra.mxu0 %v45
  %867 = vmatprep.subr.mxu0 %v48
  %868 = vmatpush1.msra.mxu0 %v47
  %869 = vmatprep.subr.mxu0 %v50
  %870 = vmatpush1.msra.mxu0 %v49
  %871 = vmatprep.subr.mxu0 %v52
  %872 = vmatpush1.msra.mxu0 %v51
  %873 = vmatprep.subr.mxu0 %v54
  %874 = vmatpush1.msra.mxu0 %v53
  %875 = vmatprep.subr.mxu0 %v56
  %876 = vmatpush1.msra.mxu0 %v55
  %877 = vmatprep.subr.mxu0 0.0
  %878 = vmatpush1.msra.mxu0 0.0
  %879 = vmatprep.subr.mxu0 0.0
  %880 = vmatpush1.msra.mxu0 0.0
  %881 = vmatprep.subr.mxu0 0.0
  %882 = vmatpush1.msra.mxu0 0.0
  %883 = vmatprep.subr.mxu0 0.0
  %884 = vmatpush1.msra.mxu0 0.0
  %885 = vmatprep.subr.mxu0 0.0
  %886 = vmatpush1.msra.mxu0 0.0
  %887 = vmatprep.subr.mxu0 0.0
  %888 = vmatpush1.msra.mxu0 0.0
  %889 = vmatprep.subr.mxu0 0.0
  %890 = vmatpush1.msra.mxu0 0.0
  %891 = vmatprep.subr.mxu0 0.0
  %892 = vmatpush1.msra.mxu0 0.0
  %893 = vmatprep.subr.mxu0 0.0
  %894 = vmatpush1.msra.mxu0 0.0
  %895 = vmatprep.subr.mxu0 0.0
  %896 = vmatpush1.msra.mxu0 0.0
  %897 = vmatprep.subr.mxu0 0.0
  %898 = vmatpush1.msra.mxu0 0.0
  %899 = vmatprep.subr.mxu0 0.0
  %900 = vmatpush1.msra.mxu0 0.0
  %901 = vmatprep.subr.mxu0 0.0
  %902 = vmatpush1.msra.mxu0 0.0
  %903 = vmatprep.subr.mxu0 0.0
  %904 = vmatpush1.msra.mxu0 0.0
  %905 = vmatprep.subr.mxu0 0.0
  %906 = vmatpush1.msra.mxu0 0.0
  %907 = vmatprep.subr.mxu0 0.0
  %908 = vmatpush1.msra.mxu0 0.0
  %909 = vmatprep.subr.mxu0 0.0
  %910 = vmatpush1.msra.mxu0 0.0
  %911 = vmatprep.subr.mxu0 0.0
  %912 = vmatpush1.msra.mxu0 0.0
  %913 = vmatprep.subr.mxu0 0.0
  %914 = vmatpush1.msra.mxu0 0.0
  %915 = vmatprep.subr.mxu0 0.0
  %916 = vmatpush1.msra.mxu0 0.0
  %917 = vmatprep.mubr.f32.mxu0 0.0
  %918 = vmatmul.mubr.f32.gmra.mrb[0].mxu0 %v851
  %v919 = vpop.f32.mrb[0].mxu0
  %v920 = vadd.f32 %v69, %v919
  %v921 = vpop.f32.mrb[0].mxu0
  %v922 = vadd.f32 %v73, %v921
  %923 = vdwg.mxu0
  %v924 = vsel %vm61, %v920, %v922
  %v925 = vxor.u32 %v924, 2147483648
  %v926 = vmul.f32 %v925, 1.442695
  %v927 = vpow.pop %v926
  %v928 = vadd.f32 %v927, 1.0
  %v929 = vrcp.pop %v928
  %v930 = vmul.f32 1.0, %v929
  %v931 = vtanh.pop %v924
  %v932 = vmul.f32 %v930, %v840
  %934 = vrot.lane.b32.xlu0 %v931, 64
  %v935 = vpop.permute.xlu0 %934
  %v937 = vmul.f32 %v930, %v935
  %939 = vrot.lane.b32.xlu0 %v937, 32
  %v940 = vpop.permute.xlu0 %939
  %v942 = vadd.f32 %v932, %v940
  %v943 = vtanh.pop %v942
  %945 = vrot.lane.b32.xlu0 %v943, 64
  %v946 = vpop.permute.xlu0 %945
  %v948 = vmul.f32 %v930, %v946
  %v950 = vrot.slane %v26, 6
  %v952 = vsel %vm61, %v31, %v950
  %954 = vset.pattern.permute.xlu0 0
  %955 = vperm.xlu0 %954, %v952
  %v956 = vpop.permute.xlu0 %955
  %v958 = vmul.f32 %v956, %v948
  %v959 = vsub.f32 1.0, %v952
  %961 = vset.pattern.permute.xlu0 0
  %962 = vperm.xlu0 %961, %v959
  %v963 = vpop.permute.xlu0 %962
  %v965 = vmul.f32 %v963, %v837
  %v966 = vadd.f32 %v958, %v965
  %v967 = vmul.f32 %v956, %v942
  %v968 = vmul.f32 %v963, %v840
  %v969 = vadd.f32 %v967, %v968
  %v971 = vrot.slane %v17, 6
  %v973 = vsel %vm61, %v24, %v971
  %975 = vrot.lane.b32.xlu0 %v966, 96
  %v976 = vpop.permute.xlu0 %975
  %v978 = vsel %vm63, %v973, %v976
  %v980 = vsel %vm76, %v978, 0
  %982 = vmatprep.subr.mxu0 %v34
  %983 = vmatpush1.msra.mxu0 %v33
  %984 = vmatprep.subr.mxu0 %v36
  %985 = vmatpush1.msra.mxu0 %v35
  %986 = vmatprep.subr.mxu0 %v38
  %987 = vmatpush1.msra.mxu0 %v37
  %988 = vmatprep.subr.mxu0 %v40
  %989 = vmatpush1.msra.mxu0 %v39
  %990 = vmatprep.subr.mxu0 %v42
  %991 = vmatpush1.msra.mxu0 %v41
  %992 = vmatprep.subr.mxu0 %v44
  %993 = vmatpush1.msra.mxu0 %v43
  %994 = vmatprep.subr.mxu0 %v46
  %995 = vmatpush1.msra.mxu0 %v45
  %996 = vmatprep.subr.mxu0 %v48
  %997 = vmatpush1.msra.mxu0 %v47
  %998 = vmatprep.subr.mxu0 %v50
  %999 = vmatpush1.msra.mxu0 %v49
  %1000 = vmatprep.subr.mxu0 %v52
  %1001 = vmatpush1.msra.mxu0 %v51
  %1002 = vmatprep.subr.mxu0 %v54
  %1003 = vmatpush1.msra.mxu0 %v53
  %1004 = vmatprep.subr.mxu0 %v56
  %1005 = vmatpush1.msra.mxu0 %v55
  %1006 = vmatprep.subr.mxu0 0.0
  %1007 = vmatpush1.msra.mxu0 0.0
  %1008 = vmatprep.subr.mxu0 0.0
  %1009 = vmatpush1.msra.mxu0 0.0
  %1010 = vmatprep.subr.mxu0 0.0
  %1011 = vmatpush1.msra.mxu0 0.0
  %1012 = vmatprep.subr.mxu0 0.0
  %1013 = vmatpush1.msra.mxu0 0.0
  %1014 = vmatprep.subr.mxu0 0.0
  %1015 = vmatpush1.msra.mxu0 0.0
  %1016 = vmatprep.subr.mxu0 0.0
  %1017 = vmatpush1.msra.mxu0 0.0
  %1018 = vmatprep.subr.mxu0 0.0
  %1019 = vmatpush1.msra.mxu0 0.0
  %1020 = vmatprep.subr.mxu0 0.0
  %1021 = vmatpush1.msra.mxu0 0.0
  %1022 = vmatprep.subr.mxu0 0.0
  %1023 = vmatpush1.msra.mxu0 0.0
  %1024 = vmatprep.subr.mxu0 0.0
  %1025 = vmatpush1.msra.mxu0 0.0
  %1026 = vmatprep.subr.mxu0 0.0
  %1027 = vmatpush1.msra.mxu0 0.0
  %1028 = vmatprep.subr.mxu0 0.0
  %1029 = vmatpush1.msra.mxu0 0.0
  %1030 = vmatprep.subr.mxu0 0.0
  %1031 = vmatpush1.msra.mxu0 0.0
  %1032 = vmatprep.subr.mxu0 0.0
  %1033 = vmatpush1.msra.mxu0 0.0
  %1034 = vmatprep.subr.mxu0 0.0
  %1035 = vmatpush1.msra.mxu0 0.0
  %1036 = vmatprep.subr.mxu0 0.0
  %1037 = vmatpush1.msra.mxu0 0.0
  %1038 = vmatprep.subr.mxu0 0.0
  %1039 = vmatpush1.msra.mxu0 0.0
  %1040 = vmatprep.subr.mxu0 0.0
  %1041 = vmatpush1.msra.mxu0 0.0
  %1042 = vmatprep.subr.mxu0 0.0
  %1043 = vmatpush1.msra.mxu0 0.0
  %1044 = vmatprep.subr.mxu0 0.0
  %1045 = vmatpush1.msra.mxu0 0.0
  %1046 = vmatprep.mubr.f32.mxu0 0.0
  %1047 = vmatmul.mubr.f32.gmra.mrb[0].mxu0 %v980
  %v1048 = vpop.f32.mrb[0].mxu0
  %v1049 = vadd.f32 %v69, %v1048
  %v1050 = vpop.f32.mrb[0].mxu0
  %v1051 = vadd.f32 %v73, %v1050
  %1052 = vdwg.mxu0
  %v1053 = vsel %vm61, %v1049, %v1051
  %v1054 = vxor.u32 %v1053, 2147483648
  %v1055 = vmul.f32 %v1054, 1.442695
  %v1056 = vpow.pop %v1055
  %v1057 = vadd.f32 %v1056, 1.0
  %v1058 = vrcp.pop %v1057
  %v1059 = vmul.f32 1.0, %v1058
  %v1060 = vtanh.pop %v1053
  %v1061 = vmul.f32 %v1059, %v969
  %1063 = vrot.lane.b32.xlu0 %v1060, 64
  %v1064 = vpop.permute.xlu0 %1063
  %v1066 = vmul.f32 %v1059, %v1064
  %1068 = vrot.lane.b32.xlu0 %v1066, 32
  %v1069 = vpop.permute.xlu0 %1068
  %v1071 = vadd.f32 %v1061, %v1069
  %v1072 = vtanh.pop %v1071
  %1074 = vrot.lane.b32.xlu0 %v1072, 64
  %v1075 = vpop.permute.xlu0 %1074
  %v1077 = vmul.f32 %v1059, %v1075
  %v1079 = vrot.slane %v25, 6
  %v1081 = vsel %vm61, %v32, %v1079
  %1083 = vset.pattern.permute.xlu0 0
  %1084 = vperm.xlu0 %1083, %v1081
  %v1085 = vpop.permute.xlu0 %1084
  %v1087 = vmul.f32 %v1085, %v1077
  %1096 = vrot.lane.b32.xlu0 %v185, 32
  %v1097 = vpop.permute.xlu0 %1096
  %1098 = vrot.lane.b32.xlu0 %v313, 32
  %v1099 = vpop.permute.xlu0 %1098
  %1100 = vrot.lane.b32.xlu0 %v442, 32
  %v1101 = vpop.permute.xlu0 %1100
  %1102 = vrot.lane.b32.xlu0 %v571, 32
  %v1103 = vpop.permute.xlu0 %1102
  %1104 = vrot.lane.b32.xlu0 %v700, 32
  %v1105 = vpop.permute.xlu0 %1104
  %1106 = vrot.lane.b32.xlu0 %v829, 32
  %v1107 = vpop.permute.xlu0 %1106
  %1108 = vrot.lane.b32.xlu0 %v958, 32
  %v1109 = vpop.permute.xlu0 %1108
  %1110 = vrot.lane.b32.xlu0 %v1087, 32
  %v1111 = vpop.permute.xlu0 %1110
  %v1120 = vrot.slane %v1087, 2
  %v1121 = vrot.slane %v958, 2
  %v1122 = vrot.slane %v829, 2
  %v1123 = vrot.slane %v700, 2
  %v1124 = vrot.slane %v571, 2
  %v1125 = vrot.slane %v442, 2
  %v1126 = vrot.slane %v313, 2
  %v1127 = vrot.slane %v185, 2
  %1128 = vrot.lane.b32.xlu0 %v1120, 64
  %v1129 = vpop.permute.xlu0 %1128
  %1130 = vrot.lane.b32.xlu0 %v1121, 64
  %v1131 = vpop.permute.xlu0 %1130
  %1132 = vrot.lane.b32.xlu0 %v1122, 64
  %v1133 = vpop.permute.xlu0 %1132
  %1134 = vrot.lane.b32.xlu0 %v1123, 64
  %v1135 = vpop.permute.xlu0 %1134
  %1136 = vrot.lane.b32.xlu0 %v1124, 64
  %v1137 = vpop.permute.xlu0 %1136
  %1138 = vrot.lane.b32.xlu0 %v1125, 64
  %v1139 = vpop.permute.xlu0 %1138
  %1140 = vrot.lane.b32.xlu0 %v1126, 64
  %v1141 = vpop.permute.xlu0 %1140
  %1142 = vrot.lane.b32.xlu0 %v1127, 64
  %v1143 = vpop.permute.xlu0 %1142
  %vm1152 = vcmask 261120
  %v1153 = vsel %vm1152, %v1097, %v1129
  %v1154 = vsel %vm1152, %v1099, %v1131
  %v1155 = vsel %vm1152, %v1101, %v1133
  %v1156 = vsel %vm1152, %v1103, %v1135
  %v1157 = vsel %vm1152, %v1105, %v1137
  %v1158 = vsel %vm1152, %v1107, %v1139
  %v1159 = vsel %vm1152, %v1109, %v1141
  %v1160 = vsel %vm1152, %v1111, %v1143
  %s1161 = scalar_lea.vmem %s2, 192
  %v1162 = vld [vmem:[%s1161] sm:$0xff]
  %v1163 = vld [vmem:[%s1161 + $0x8] sm:$0xff]
  %v1164 = vld [vmem:[%s1161 + $0x10] sm:$0xff]
  %v1165 = vld [vmem:[%s1161 + $0x18] sm:$0xff]
  %v1166 = vld [vmem:[%s1161 + $0x20] sm:$0xff]
  %v1167 = vld [vmem:[%s1161 + $0x28] sm:$0xff]
  %v1168 = vld [vmem:[%s1161 + $0x30] sm:$0xff]
  %v1169 = vld [vmem:[%s1161 + $0x38] sm:$0xff]
  %v1170 = vld [vmem:[%s1161 + $0x40] sm:$0xff]
  %v1171 = vld [vmem:[%s1161 + $0x48] sm:$0xff]
  %v1172 = vld [vmem:[%s1161 + $0x50] sm:$0xff]
  %v1173 = vld [vmem:[%s1161 + $0x58] sm:$0xff]
  %v1174 = vld [vmem:[%s1161 + $0x60] sm:$0xff]
  %v1175 = vld [vmem:[%s1161 + $0x68] sm:$0xff]
  %v1176 = vld [vmem:[%s1161 + $0x70] sm:$0xff]
  %v1177 = vld [vmem:[%s1161 + $0x78] sm:$0xff]
  %v1178 = vld [vmem:[%s1161 + $0x80] sm:$0xff]
  %v1179 = vld [vmem:[%s1161 + $0x88] sm:$0xff]
  %v1180 = vld [vmem:[%s1161 + $0x90] sm:$0xff]
  %v1181 = vld [vmem:[%s1161 + $0x98] sm:$0xff]
  %v1182 = vld [vmem:[%s1161 + $0xa0] sm:$0xff]
  %v1183 = vld [vmem:[%s1161 + $0xa8] sm:$0xff]
  %v1184 = vld [vmem:[%s1161 + $0xb0] sm:$0xff]
  %v1185 = vld [vmem:[%s1161 + $0xb8] sm:$0xff]
  %s1186 = scalar_lea.vmem %s3, 2
  %v1187 = vld [vmem:[%s1186] sm:$0x3]
  %v1189 = vrot.slane %v1160, 6
  %v1191 = vsel %vm61, %v1153, %v1189
  %v1192 = vsel %vm63, %v1191, 0.0
  %v1194 = vlaneseq
  %v1195 = vshrl.u32 %v1194, 7
  %v1196 = vsub.s32 0, %v1195
  %v1197 = vrot.slane %v1187, %v1196
  %v1198 = vlaneseq
  %v1199 = vshrl.u32 %v1198, 7
  %v1200 = vsub.s32 1, %v1199
  %v1201 = vrot.slane %v1187, %v1200
  %v1205 = vsel %vm76, %v1192, 0
  %1207 = vmatprep.subr.mxu0 %v1163
  %1208 = vmatpush1.msra.mxu0 %v1162
  %1209 = vmatprep.subr.mxu0 %v1165
  %1210 = vmatpush1.msra.mxu0 %v1164
  %1211 = vmatprep.subr.mxu0 %v1167
  %1212 = vmatpush1.msra.mxu0 %v1166
  %1213 = vmatprep.subr.mxu0 %v1169
  %1214 = vmatpush1.msra.mxu0 %v1168
  %1215 = vmatprep.subr.mxu0 %v1171
  %1216 = vmatpush1.msra.mxu0 %v1170
  %1217 = vmatprep.subr.mxu0 %v1173
  %1218 = vmatpush1.msra.mxu0 %v1172
  %1219 = vmatprep.subr.mxu0 %v1175
  %1220 = vmatpush1.msra.mxu0 %v1174
  %1221 = vmatprep.subr.mxu0 %v1177
  %1222 = vmatpush1.msra.mxu0 %v1176
  %1223 = vmatprep.subr.mxu0 %v1179
  %1224 = vmatpush1.msra.mxu0 %v1178
  %1225 = vmatprep.subr.mxu0 %v1181
  %1226 = vmatpush1.msra.mxu0 %v1180
  %1227 = vmatprep.subr.mxu0 %v1183
  %1228 = vmatpush1.msra.mxu0 %v1182
  %1229 = vmatprep.subr.mxu0 %v1185
  %1230 = vmatpush1.msra.mxu0 %v1184
  %1231 = vmatprep.subr.mxu0 0.0
  %1232 = vmatpush1.msra.mxu0 0.0
  %1233 = vmatprep.subr.mxu0 0.0
  %1234 = vmatpush1.msra.mxu0 0.0
  %1235 = vmatprep.subr.mxu0 0.0
  %1236 = vmatpush1.msra.mxu0 0.0
  %1237 = vmatprep.subr.mxu0 0.0
  %1238 = vmatpush1.msra.mxu0 0.0
  %1239 = vmatprep.subr.mxu0 0.0
  %1240 = vmatpush1.msra.mxu0 0.0
  %1241 = vmatprep.subr.mxu0 0.0
  %1242 = vmatpush1.msra.mxu0 0.0
  %1243 = vmatprep.subr.mxu0 0.0
  %1244 = vmatpush1.msra.mxu0 0.0
  %1245 = vmatprep.subr.mxu0 0.0
  %1246 = vmatpush1.msra.mxu0 0.0
  %1247 = vmatprep.subr.mxu0 0.0
  %1248 = vmatpush1.msra.mxu0 0.0
  %1249 = vmatprep.subr.mxu0 0.0
  %1250 = vmatpush1.msra.mxu0 0.0
  %1251 = vmatprep.subr.mxu0 0.0
  %1252 = vmatpush1.msra.mxu0 0.0
  %1253 = vmatprep.subr.mxu0 0.0
  %1254 = vmatpush1.msra.mxu0 0.0
  %1255 = vmatprep.subr.mxu0 0.0
  %1256 = vmatpush1.msra.mxu0 0.0
  %1257 = vmatprep.subr.mxu0 0.0
  %1258 = vmatpush1.msra.mxu0 0.0
  %1259 = vmatprep.subr.mxu0 0.0
  %1260 = vmatpush1.msra.mxu0 0.0
  %1261 = vmatprep.subr.mxu0 0.0
  %1262 = vmatpush1.msra.mxu0 0.0
  %1263 = vmatprep.subr.mxu0 0.0
  %1264 = vmatpush1.msra.mxu0 0.0
  %1265 = vmatprep.subr.mxu0 0.0
  %1266 = vmatpush1.msra.mxu0 0.0
  %1267 = vmatprep.subr.mxu0 0.0
  %1268 = vmatpush1.msra.mxu0 0.0
  %1269 = vmatprep.subr.mxu0 0.0
  %1270 = vmatpush1.msra.mxu0 0.0
  %1271 = vmatprep.mubr.f32.mxu0 0.0
  %1272 = vmatmul.mubr.f32.gmra.mrb[0].mxu0 %v1205
  %v1273 = vpop.f32.mrb[0].mxu0
  %v1274 = vadd.f32 %v1197, %v1273
  %v1275 = vpop.f32.mrb[0].mxu0
  %v1276 = vadd.f32 %v1201, %v1275
  %1277 = vdwg.mxu0
  %v1278 = vsel %vm61, %v1274, %v1276
  %v1279 = vxor.u32 %v1278, 2147483648
  %v1280 = vmul.f32 %v1279, 1.442695
  %v1281 = vpow.pop %v1280
  %v1282 = vadd.f32 %v1281, 1.0
  %v1283 = vrcp.pop %v1282
  %v1284 = vmul.f32 1.0, %v1283
  %v1285 = vtanh.pop %v1278
  %v1286 = vmul.f32 %v1284, 0.0
  %1288 = vrot.lane.b32.xlu0 %v1285, 64
  %v1289 = vpop.permute.xlu0 %1288
  %v1291 = vmul.f32 %v1284, %v1289
  %1293 = vrot.lane.b32.xlu0 %v1291, 32
  %v1294 = vpop.permute.xlu0 %1293
  %v1296 = vadd.f32 %v1286, %v1294
  %v1297 = vtanh.pop %v1296
  %1299 = vrot.lane.b32.xlu0 %v1297, 64
  %v1300 = vpop.permute.xlu0 %1299
  %v1302 = vmul.f32 %v1284, %v1300
  %v1303 = vmul.f32 %v183, %v1302
  %v1304 = vadd.f32 %v1303, %v192
  %v1305 = vmul.f32 %v183, %v1296
  %v1306 = vadd.f32 %v1305, %v192
  %v1308 = vrot.slane %v1159, 6
  %v1310 = vsel %vm61, %v1154, %v1308
  %1312 = vrot.lane.b32.xlu0 %v1304, 96
  %v1313 = vpop.permute.xlu0 %1312
  %v1315 = vsel %vm63, %v1310, %v1313
  %v1317 = vsel %vm76, %v1315, 0
  %1319 = vmatprep.subr.mxu0 %v1163
  %1320 = vmatpush1.msra.mxu0 %v1162
  %1321 = vmatprep.subr.mxu0 %v1165
  %1322 = vmatpush1.msra.mxu0 %v1164
  %1323 = vmatprep.subr.mxu0 %v1167
  %1324 = vmatpush1.msra.mxu0 %v1166
  %1325 = vmatprep.subr.mxu0 %v1169
  %1326 = vmatpush1.msra.mxu0 %v1168
  %1327 = vmatprep.subr.mxu0 %v1171
  %1328 = vmatpush1.msra.mxu0 %v1170
  %1329 = vmatprep.subr.mxu0 %v1173
  %1330 = vmatpush1.msra.mxu0 %v1172
  %1331 = vmatprep.subr.mxu0 %v1175
  %1332 = vmatpush1.msra.mxu0 %v1174
  %1333 = vmatprep.subr.mxu0 %v1177
  %1334 = vmatpush1.msra.mxu0 %v1176
  %1335 = vmatprep.subr.mxu0 %v1179
  %1336 = vmatpush1.msra.mxu0 %v1178
  %1337 = vmatprep.subr.mxu0 %v1181
  %1338 = vmatpush1.msra.mxu0 %v1180
  %1339 = vmatprep.subr.mxu0 %v1183
  %1340 = vmatpush1.msra.mxu0 %v1182
  %1341 = vmatprep.subr.mxu0 %v1185
  %1342 = vmatpush1.msra.mxu0 %v1184
  %1343 = vmatprep.subr.mxu0 0.0
  %1344 = vmatpush1.msra.mxu0 0.0
  %1345 = vmatprep.subr.mxu0 0.0
  %1346 = vmatpush1.msra.mxu0 0.0
  %1347 = vmatprep.subr.mxu0 0.0
  %1348 = vmatpush1.msra.mxu0 0.0
  %1349 = vmatprep.subr.mxu0 0.0
  %1350 = vmatpush1.msra.mxu0 0.0
  %1351 = vmatprep.subr.mxu0 0.0
  %1352 = vmatpush1.msra.mxu0 0.0
  %1353 = vmatprep.subr.mxu0 0.0
  %1354 = vmatpush1.msra.mxu0 0.0
  %1355 = vmatprep.subr.mxu0 0.0
  %1356 = vmatpush1.msra.mxu0 0.0
  %1357 = vmatprep.subr.mxu0 0.0
  %1358 = vmatpush1.msra.mxu0 0.0
  %1359 = vmatprep.subr.mxu0 0.0
  %1360 = vmatpush1.msra.mxu0 0.0
  %1361 = vmatprep.subr.mxu0 0.0
  %1362 = vmatpush1.msra.mxu0 0.0
  %1363 = vmatprep.subr.mxu0 0.0
  %1364 = vmatpush1.msra.mxu0 0.0
  %1365 = vmatprep.subr.mxu0 0.0
  %1366 = vmatpush1.msra.mxu0 0.0
  %1367 = vmatprep.subr.mxu0 0.0
  %1368 = vmatpush1.msra.mxu0 0.0
  %1369 = vmatprep.subr.mxu0 0.0
  %1370 = vmatpush1.msra.mxu0 0.0
  %1371 = vmatprep.subr.mxu0 0.0
  %1372 = vmatpush1.msra.mxu0 0.0
  %1373 = vmatprep.subr.mxu0 0.0
  %1374 = vmatpush1.msra.mxu0 0.0
  %1375 = vmatprep.subr.mxu0 0.0
  %1376 = vmatpush1.msra.mxu0 0.0
  %1377 = vmatprep.subr.mxu0 0.0
  %1378 = vmatpush1.msra.mxu0 0.0
  %1379 = vmatprep.subr.mxu0 0.0
  %1380 = vmatpush1.msra.mxu0 0.0
  %1381 = vmatprep.subr.mxu0 0.0
  %1382 = vmatpush1.msra.mxu0 0.0
  %1383 = vmatprep.mubr.f32.mxu0 0.0
  %1384 = vmatmul.mubr.f32.gmra.mrb[0].mxu0 %v1317
  %v1385 = vpop.f32.mrb[0].mxu0
  %v1386 = vadd.f32 %v1197, %v1385
  %v1387 = vpop.f32.mrb[0].mxu0
  %v1388 = vadd.f32 %v1201, %v1387
  %1389 = vdwg.mxu0
  %v1390 = vsel %vm61, %v1386, %v1388
  %v1391 = vxor.u32 %v1390, 2147483648
  %v1392 = vmul.f32 %v1391, 1.442695
  %v1393 = vpow.pop %v1392
  %v1394 = vadd.f32 %v1393, 1.0
  %v1395 = vrcp.pop %v1394
  %v1396 = vmul.f32 1.0, %v1395
  %v1397 = vtanh.pop %v1390
  %v1398 = vmul.f32 %v1396, %v1306
  %1400 = vrot.lane.b32.xlu0 %v1397, 64
  %v1401 = vpop.permute.xlu0 %1400
  %v1403 = vmul.f32 %v1396, %v1401
  %1405 = vrot.lane.b32.xlu0 %v1403, 32
  %v1406 = vpop.permute.xlu0 %1405
  %v1408 = vadd.f32 %v1398, %v1406
  %v1409 = vtanh.pop %v1408
  %1411 = vrot.lane.b32.xlu0 %v1409, 64
  %v1412 = vpop.permute.xlu0 %1411
  %v1414 = vmul.f32 %v1396, %v1412
  %v1415 = vmul.f32 %v311, %v1414
  %v1416 = vmul.f32 %v318, %v1304
  %v1417 = vadd.f32 %v1415, %v1416
  %v1418 = vmul.f32 %v311, %v1408
  %v1419 = vmul.f32 %v318, %v1306
  %v1420 = vadd.f32 %v1418, %v1419
  %v1422 = vrot.slane %v1158, 6
  %v1424 = vsel %vm61, %v1155, %v1422
  %1426 = vrot.lane.b32.xlu0 %v1417, 96
  %v1427 = vpop.permute.xlu0 %1426
  %v1429 = vsel %vm63, %v1424, %v1427
  %v1431 = vsel %vm76, %v1429, 0
  %1433 = vmatprep.subr.mxu0 %v1163
  %1434 = vmatpush1.msra.mxu0 %v1162
  %1435 = vmatprep.subr.mxu0 %v1165
  %1436 = vmatpush1.msra.mxu0 %v1164
  %1437 = vmatprep.subr.mxu0 %v1167
  %1438 = vmatpush1.msra.mxu0 %v1166
  %1439 = vmatprep.subr.mxu0 %v1169
  %1440 = vmatpush1.msra.mxu0 %v1168
  %1441 = vmatprep.subr.mxu0 %v1171
  %1442 = vmatpush1.msra.mxu0 %v1170
  %1443 = vmatprep.subr.mxu0 %v1173
  %1444 = vmatpush1.msra.mxu0 %v1172
  %1445 = vmatprep.subr.mxu0 %v1175
  %1446 = vmatpush1.msra.mxu0 %v1174
  %1447 = vmatprep.subr.mxu0 %v1177
  %1448 = vmatpush1.msra.mxu0 %v1176
  %1449 = vmatprep.subr.mxu0 %v1179
  %1450 = vmatpush1.msra.mxu0 %v1178
  %1451 = vmatprep.subr.mxu0 %v1181
  %1452 = vmatpush1.msra.mxu0 %v1180
  %1453 = vmatprep.subr.mxu0 %v1183
  %1454 = vmatpush1.msra.mxu0 %v1182
  %1455 = vmatprep.subr.mxu0 %v1185
  %1456 = vmatpush1.msra.mxu0 %v1184
  %1457 = vmatprep.subr.mxu0 0.0
  %1458 = vmatpush1.msra.mxu0 0.0
  %1459 = vmatprep.subr.mxu0 0.0
  %1460 = vmatpush1.msra.mxu0 0.0
  %1461 = vmatprep.subr.mxu0 0.0
  %1462 = vmatpush1.msra.mxu0 0.0
  %1463 = vmatprep.subr.mxu0 0.0
  %1464 = vmatpush1.msra.mxu0 0.0
  %1465 = vmatprep.subr.mxu0 0.0
  %1466 = vmatpush1.msra.mxu0 0.0
  %1467 = vmatprep.subr.mxu0 0.0
  %1468 = vmatpush1.msra.mxu0 0.0
  %1469 = vmatprep.subr.mxu0 0.0
  %1470 = vmatpush1.msra.mxu0 0.0
  %1471 = vmatprep.subr.mxu0 0.0
  %1472 = vmatpush1.msra.mxu0 0.0
  %1473 = vmatprep.subr.mxu0 0.0
  %1474 = vmatpush1.msra.mxu0 0.0
  %1475 = vmatprep.subr.mxu0 0.0
  %1476 = vmatpush1.msra.mxu0 0.0
  %1477 = vmatprep.subr.mxu0 0.0
  %1478 = vmatpush1.msra.mxu0 0.0
  %1479 = vmatprep.subr.mxu0 0.0
  %1480 = vmatpush1.msra.mxu0 0.0
  %1481 = vmatprep.subr.mxu0 0.0
  %1482 = vmatpush1.msra.mxu0 0.0
  %1483 = vmatprep.subr.mxu0 0.0
  %1484 = vmatpush1.msra.mxu0 0.0
  %1485 = vmatprep.subr.mxu0 0.0
  %1486 = vmatpush1.msra.mxu0 0.0
  %1487 = vmatprep.subr.mxu0 0.0
  %1488 = vmatpush1.msra.mxu0 0.0
  %1489 = vmatprep.subr.mxu0 0.0
  %1490 = vmatpush1.msra.mxu0 0.0
  %1491 = vmatprep.subr.mxu0 0.0
  %1492 = vmatpush1.msra.mxu0 0.0
  %1493 = vmatprep.subr.mxu0 0.0
  %1494 = vmatpush1.msra.mxu0 0.0
  %1495 = vmatprep.subr.mxu0 0.0
  %1496 = vmatpush1.msra.mxu0 0.0
  %1497 = vmatprep.mubr.f32.mxu0 0.0
  %1498 = vmatmul.mubr.f32.gmra.mrb[0].mxu0 %v1431
  %v1499 = vpop.f32.mrb[0].mxu0
  %v1500 = vadd.f32 %v1197, %v1499
  %v1501 = vpop.f32.mrb[0].mxu0
  %v1502 = vadd.f32 %v1201, %v1501
  %1503 = vdwg.mxu0
  %v1504 = vsel %vm61, %v1500, %v1502
  %v1505 = vxor.u32 %v1504, 2147483648
  %v1506 = vmul.f32 %v1505, 1.442695
  %v1507 = vpow.pop %v1506
  %v1508 = vadd.f32 %v1507, 1.0
  %v1509 = vrcp.pop %v1508
  %v1510 = vmul.f32 1.0, %v1509
  %v1511 = vtanh.pop %v1504
  %v1512 = vmul.f32 %v1510, %v1420
  %1514 = vrot.lane.b32.xlu0 %v1511, 64
  %v1515 = vpop.permute.xlu0 %1514
  %v1517 = vmul.f32 %v1510, %v1515
  %1519 = vrot.lane.b32.xlu0 %v1517, 32
  %v1520 = vpop.permute.xlu0 %1519
  %v1522 = vadd.f32 %v1512, %v1520
  %v1523 = vtanh.pop %v1522
  %1525 = vrot.lane.b32.xlu0 %v1523, 64
  %v1526 = vpop.permute.xlu0 %1525
  %v1528 = vmul.f32 %v1510, %v1526
  %v1529 = vmul.f32 %v440, %v1528
  %v1530 = vmul.f32 %v447, %v1417
  %v1531 = vadd.f32 %v1529, %v1530
  %v1532 = vmul.f32 %v440, %v1522
  %v1533 = vmul.f32 %v447, %v1420
  %v1534 = vadd.f32 %v1532, %v1533
  %v1536 = vrot.slane %v1157, 6
  %v1538 = vsel %vm61, %v1156, %v1536
  %1540 = vrot.lane.b32.xlu0 %v1531, 96
  %v1541 = vpop.permute.xlu0 %1540
  %v1543 = vsel %vm63, %v1538, %v1541
  %v1545 = vsel %vm76, %v1543, 0
  %1547 = vmatprep.subr.mxu0 %v1163
  %1548 = vmatpush1.msra.mxu0 %v1162
  %1549 = vmatprep.subr.mxu0 %v1165
  %1550 = vmatpush1.msra.mxu0 %v1164
  %1551 = vmatprep.subr.mxu0 %v1167
  %1552 = vmatpush1.msra.mxu0 %v1166
  %1553 = vmatprep.subr.mxu0 %v1169
  %1554 = vmatpush1.msra.mxu0 %v1168
  %1555 = vmatprep.subr.mxu0 %v1171
  %1556 = vmatpush1.msra.mxu0 %v1170
  %1557 = vmatprep.subr.mxu0 %v1173
  %1558 = vmatpush1.msra.mxu0 %v1172
  %1559 = vmatprep.subr.mxu0 %v1175
  %1560 = vmatpush1.msra.mxu0 %v1174
  %1561 = vmatprep.subr.mxu0 %v1177
  %1562 = vmatpush1.msra.mxu0 %v1176
  %1563 = vmatprep.subr.mxu0 %v1179
  %1564 = vmatpush1.msra.mxu0 %v1178
  %1565 = vmatprep.subr.mxu0 %v1181
  %1566 = vmatpush1.msra.mxu0 %v1180
  %1567 = vmatprep.subr.mxu0 %v1183
  %1568 = vmatpush1.msra.mxu0 %v1182
  %1569 = vmatprep.subr.mxu0 %v1185
  %1570 = vmatpush1.msra.mxu0 %v1184
  %1571 = vmatprep.subr.mxu0 0.0
  %1572 = vmatpush1.msra.mxu0 0.0
  %1573 = vmatprep.subr.mxu0 0.0
  %1574 = vmatpush1.msra.mxu0 0.0
  %1575 = vmatprep.subr.mxu0 0.0
  %1576 = vmatpush1.msra.mxu0 0.0
  %1577 = vmatprep.subr.mxu0 0.0
  %1578 = vmatpush1.msra.mxu0 0.0
  %1579 = vmatprep.subr.mxu0 0.0
  %1580 = vmatpush1.msra.mxu0 0.0
  %1581 = vmatprep.subr.mxu0 0.0
  %1582 = vmatpush1.msra.mxu0 0.0
  %1583 = vmatprep.subr.mxu0 0.0
  %1584 = vmatpush1.msra.mxu0 0.0
  %1585 = vmatprep.subr.mxu0 0.0
  %1586 = vmatpush1.msra.mxu0 0.0
  %1587 = vmatprep.subr.mxu0 0.0
  %1588 = vmatpush1.msra.mxu0 0.0
  %1589 = vmatprep.subr.mxu0 0.0
  %1590 = vmatpush1.msra.mxu0 0.0
  %1591 = vmatprep.subr.mxu0 0.0
  %1592 = vmatpush1.msra.mxu0 0.0
  %1593 = vmatprep.subr.mxu0 0.0
  %1594 = vmatpush1.msra.mxu0 0.0
  %1595 = vmatprep.subr.mxu0 0.0
  %1596 = vmatpush1.msra.mxu0 0.0
  %1597 = vmatprep.subr.mxu0 0.0
  %1598 = vmatpush1.msra.mxu0 0.0
  %1599 = vmatprep.subr.mxu0 0.0
  %1600 = vmatpush1.msra.mxu0 0.0
  %1601 = vmatprep.subr.mxu0 0.0
  %1602 = vmatpush1.msra.mxu0 0.0
  %1603 = vmatprep.subr.mxu0 0.0
  %1604 = vmatpush1.msra.mxu0 0.0
  %1605 = vmatprep.subr.mxu0 0.0
  %1606 = vmatpush1.msra.mxu0 0.0
  %1607 = vmatprep.subr.mxu0 0.0
  %1608 = vmatpush1.msra.mxu0 0.0
  %1609 = vmatprep.subr.mxu0 0.0
  %1610 = vmatpush1.msra.mxu0 0.0
  %1611 = vmatprep.mubr.f32.mxu0 0.0
  %1612 = vmatmul.mubr.f32.gmra.mrb[0].mxu0 %v1545
  %v1613 = vpop.f32.mrb[0].mxu0
  %v1614 = vadd.f32 %v1197, %v1613
  %v1615 = vpop.f32.mrb[0].mxu0
  %v1616 = vadd.f32 %v1201, %v1615
  %1617 = vdwg.mxu0
  %v1618 = vsel %vm61, %v1614, %v1616
  %v1619 = vxor.u32 %v1618, 2147483648
  %v1620 = vmul.f32 %v1619, 1.442695
  %v1621 = vpow.pop %v1620
  %v1622 = vadd.f32 %v1621, 1.0
  %v1623 = vrcp.pop %v1622
  %v1624 = vmul.f32 1.0, %v1623
  %v1625 = vtanh.pop %v1618
  %v1626 = vmul.f32 %v1624, %v1534
  %1628 = vrot.lane.b32.xlu0 %v1625, 64
  %v1629 = vpop.permute.xlu0 %1628
  %v1631 = vmul.f32 %v1624, %v1629
  %1633 = vrot.lane.b32.xlu0 %v1631, 32
  %v1634 = vpop.permute.xlu0 %1633
  %v1636 = vadd.f32 %v1626, %v1634
  %v1637 = vtanh.pop %v1636
  %1639 = vrot.lane.b32.xlu0 %v1637, 64
  %v1640 = vpop.permute.xlu0 %1639
  %v1642 = vmul.f32 %v1624, %v1640
  %v1643 = vmul.f32 %v569, %v1642
  %v1644 = vmul.f32 %v576, %v1531
  %v1645 = vadd.f32 %v1643, %v1644
  %v1646 = vmul.f32 %v569, %v1636
  %v1647 = vmul.f32 %v576, %v1534
  %v1648 = vadd.f32 %v1646, %v1647
  %v1650 = vrot.slane %v1156, 6
  %v1652 = vsel %vm61, %v1157, %v1650
  %1654 = vrot.lane.b32.xlu0 %v1645, 96
  %v1655 = vpop.permute.xlu0 %1654
  %v1657 = vsel %vm63, %v1652, %v1655
  %v1659 = vsel %vm76, %v1657, 0
  %1661 = vmatprep.subr.mxu0 %v1163
  %1662 = vmatpush1.msra.mxu0 %v1162
  %1663 = vmatprep.subr.mxu0 %v1165
  %1664 = vmatpush1.msra.mxu0 %v1164
  %1665 = vmatprep.subr.mxu0 %v1167
  %1666 = vmatpush1.msra.mxu0 %v1166
  %1667 = vmatprep.subr.mxu0 %v1169
  %1668 = vmatpush1.msra.mxu0 %v1168
  %1669 = vmatprep.subr.mxu0 %v1171
  %1670 = vmatpush1.msra.mxu0 %v1170
  %1671 = vmatprep.subr.mxu0 %v1173
  %1672 = vmatpush1.msra.mxu0 %v1172
  %1673 = vmatprep.subr.mxu0 %v1175
  %1674 = vmatpush1.msra.mxu0 %v1174
  %1675 = vmatprep.subr.mxu0 %v1177
  %1676 = vmatpush1.msra.mxu0 %v1176
  %1677 = vmatprep.subr.mxu0 %v1179
  %1678 = vmatpush1.msra.mxu0 %v1178
  %1679 = vmatprep.subr.mxu0 %v1181
  %1680 = vmatpush1.msra.mxu0 %v1180
  %1681 = vmatprep.subr.mxu0 %v1183
  %1682 = vmatpush1.msra.mxu0 %v1182
  %1683 = vmatprep.subr.mxu0 %v1185
  %1684 = vmatpush1.msra.mxu0 %v1184
  %1685 = vmatprep.subr.mxu0 0.0
  %1686 = vmatpush1.msra.mxu0 0.0
  %1687 = vmatprep.subr.mxu0 0.0
  %1688 = vmatpush1.msra.mxu0 0.0
  %1689 = vmatprep.subr.mxu0 0.0
  %1690 = vmatpush1.msra.mxu0 0.0
  %1691 = vmatprep.subr.mxu0 0.0
  %1692 = vmatpush1.msra.mxu0 0.0
  %1693 = vmatprep.subr.mxu0 0.0
  %1694 = vmatpush1.msra.mxu0 0.0
  %1695 = vmatprep.subr.mxu0 0.0
  %1696 = vmatpush1.msra.mxu0 0.0
  %1697 = vmatprep.subr.mxu0 0.0
  %1698 = vmatpush1.msra.mxu0 0.0
  %1699 = vmatprep.subr.mxu0 0.0
  %1700 = vmatpush1.msra.mxu0 0.0
  %1701 = vmatprep.subr.mxu0 0.0
  %1702 = vmatpush1.msra.mxu0 0.0
  %1703 = vmatprep.subr.mxu0 0.0
  %1704 = vmatpush1.msra.mxu0 0.0
  %1705 = vmatprep.subr.mxu0 0.0
  %1706 = vmatpush1.msra.mxu0 0.0
  %1707 = vmatprep.subr.mxu0 0.0
  %1708 = vmatpush1.msra.mxu0 0.0
  %1709 = vmatprep.subr.mxu0 0.0
  %1710 = vmatpush1.msra.mxu0 0.0
  %1711 = vmatprep.subr.mxu0 0.0
  %1712 = vmatpush1.msra.mxu0 0.0
  %1713 = vmatprep.subr.mxu0 0.0
  %1714 = vmatpush1.msra.mxu0 0.0
  %1715 = vmatprep.subr.mxu0 0.0
  %1716 = vmatpush1.msra.mxu0 0.0
  %1717 = vmatprep.subr.mxu0 0.0
  %1718 = vmatpush1.msra.mxu0 0.0
  %1719 = vmatprep.subr.mxu0 0.0
  %1720 = vmatpush1.msra.mxu0 0.0
  %1721 = vmatprep.subr.mxu0 0.0
  %1722 = vmatpush1.msra.mxu0 0.0
  %1723 = vmatprep.subr.mxu0 0.0
  %1724 = vmatpush1.msra.mxu0 0.0
  %1725 = vmatprep.mubr.f32.mxu0 0.0
  %1726 = vmatmul.mubr.f32.gmra.mrb[0].mxu0 %v1659
  %v1727 = vpop.f32.mrb[0].mxu0
  %v1728 = vadd.f32 %v1197, %v1727
  %v1729 = vpop.f32.mrb[0].mxu0
  %v1730 = vadd.f32 %v1201, %v1729
  %1731 = vdwg.mxu0
  %v1732 = vsel %vm61, %v1728, %v1730
  %v1733 = vxor.u32 %v1732, 2147483648
  %v1734 = vmul.f32 %v1733, 1.442695
  %v1735 = vpow.pop %v1734
  %v1736 = vadd.f32 %v1735, 1.0
  %v1737 = vrcp.pop %v1736
  %v1738 = vmul.f32 1.0, %v1737
  %v1739 = vtanh.pop %v1732
  %v1740 = vmul.f32 %v1738, %v1648
  %1742 = vrot.lane.b32.xlu0 %v1739, 64
  %v1743 = vpop.permute.xlu0 %1742
  %v1745 = vmul.f32 %v1738, %v1743
  %1747 = vrot.lane.b32.xlu0 %v1745, 32
  %v1748 = vpop.permute.xlu0 %1747
  %v1750 = vadd.f32 %v1740, %v1748
  %v1751 = vtanh.pop %v1750
  %1753 = vrot.lane.b32.xlu0 %v1751, 64
  %v1754 = vpop.permute.xlu0 %1753
  %v1756 = vmul.f32 %v1738, %v1754
  %v1757 = vmul.f32 %v698, %v1756
  %v1758 = vmul.f32 %v705, %v1645
  %v1759 = vadd.f32 %v1757, %v1758
  %v1760 = vmul.f32 %v698, %v1750
  %v1761 = vmul.f32 %v705, %v1648
  %v1762 = vadd.f32 %v1760, %v1761
  %v1764 = vrot.slane %v1155, 6
  %v1766 = vsel %vm61, %v1158, %v1764
  %1768 = vrot.lane.b32.xlu0 %v1759, 96
  %v1769 = vpop.permute.xlu0 %1768
  %v1771 = vsel %vm63, %v1766, %v1769
  %v1773 = vsel %vm76, %v1771, 0
  %1775 = vmatprep.subr.mxu0 %v1163
  %1776 = vmatpush1.msra.mxu0 %v1162
  %1777 = vmatprep.subr.mxu0 %v1165
  %1778 = vmatpush1.msra.mxu0 %v1164
  %1779 = vmatprep.subr.mxu0 %v1167
  %1780 = vmatpush1.msra.mxu0 %v1166
  %1781 = vmatprep.subr.mxu0 %v1169
  %1782 = vmatpush1.msra.mxu0 %v1168
  %1783 = vmatprep.subr.mxu0 %v1171
  %1784 = vmatpush1.msra.mxu0 %v1170
  %1785 = vmatprep.subr.mxu0 %v1173
  %1786 = vmatpush1.msra.mxu0 %v1172
  %1787 = vmatprep.subr.mxu0 %v1175
  %1788 = vmatpush1.msra.mxu0 %v1174
  %1789 = vmatprep.subr.mxu0 %v1177
  %1790 = vmatpush1.msra.mxu0 %v1176
  %1791 = vmatprep.subr.mxu0 %v1179
  %1792 = vmatpush1.msra.mxu0 %v1178
  %1793 = vmatprep.subr.mxu0 %v1181
  %1794 = vmatpush1.msra.mxu0 %v1180
  %1795 = vmatprep.subr.mxu0 %v1183
  %1796 = vmatpush1.msra.mxu0 %v1182
  %1797 = vmatprep.subr.mxu0 %v1185
  %1798 = vmatpush1.msra.mxu0 %v1184
  %1799 = vmatprep.subr.mxu0 0.0
  %1800 = vmatpush1.msra.mxu0 0.0
  %1801 = vmatprep.subr.mxu0 0.0
  %1802 = vmatpush1.msra.mxu0 0.0
  %1803 = vmatprep.subr.mxu0 0.0
  %1804 = vmatpush1.msra.mxu0 0.0
  %1805 = vmatprep.subr.mxu0 0.0
  %1806 = vmatpush1.msra.mxu0 0.0
  %1807 = vmatprep.subr.mxu0 0.0
  %1808 = vmatpush1.msra.mxu0 0.0
  %1809 = vmatprep.subr.mxu0 0.0
  %1810 = vmatpush1.msra.mxu0 0.0
  %1811 = vmatprep.subr.mxu0 0.0
  %1812 = vmatpush1.msra.mxu0 0.0
  %1813 = vmatprep.subr.mxu0 0.0
  %1814 = vmatpush1.msra.mxu0 0.0
  %1815 = vmatprep.subr.mxu0 0.0
  %1816 = vmatpush1.msra.mxu0 0.0
  %1817 = vmatprep.subr.mxu0 0.0
  %1818 = vmatpush1.msra.mxu0 0.0
  %1819 = vmatprep.subr.mxu0 0.0
  %1820 = vmatpush1.msra.mxu0 0.0
  %1821 = vmatprep.subr.mxu0 0.0
  %1822 = vmatpush1.msra.mxu0 0.0
  %1823 = vmatprep.subr.mxu0 0.0
  %1824 = vmatpush1.msra.mxu0 0.0
  %1825 = vmatprep.subr.mxu0 0.0
  %1826 = vmatpush1.msra.mxu0 0.0
  %1827 = vmatprep.subr.mxu0 0.0
  %1828 = vmatpush1.msra.mxu0 0.0
  %1829 = vmatprep.subr.mxu0 0.0
  %1830 = vmatpush1.msra.mxu0 0.0
  %1831 = vmatprep.subr.mxu0 0.0
  %1832 = vmatpush1.msra.mxu0 0.0
  %1833 = vmatprep.subr.mxu0 0.0
  %1834 = vmatpush1.msra.mxu0 0.0
  %1835 = vmatprep.subr.mxu0 0.0
  %1836 = vmatpush1.msra.mxu0 0.0
  %1837 = vmatprep.subr.mxu0 0.0
  %1838 = vmatpush1.msra.mxu0 0.0
  %1839 = vmatprep.mubr.f32.mxu0 0.0
  %1840 = vmatmul.mubr.f32.gmra.mrb[0].mxu0 %v1773
  %v1841 = vpop.f32.mrb[0].mxu0
  %v1842 = vadd.f32 %v1197, %v1841
  %v1843 = vpop.f32.mrb[0].mxu0
  %v1844 = vadd.f32 %v1201, %v1843
  %1845 = vdwg.mxu0
  %v1846 = vsel %vm61, %v1842, %v1844
  %v1847 = vxor.u32 %v1846, 2147483648
  %v1848 = vmul.f32 %v1847, 1.442695
  %v1849 = vpow.pop %v1848
  %v1850 = vadd.f32 %v1849, 1.0
  %v1851 = vrcp.pop %v1850
  %v1852 = vmul.f32 1.0, %v1851
  %v1853 = vtanh.pop %v1846
  %v1854 = vmul.f32 %v1852, %v1762
  %1856 = vrot.lane.b32.xlu0 %v1853, 64
  %v1857 = vpop.permute.xlu0 %1856
  %v1859 = vmul.f32 %v1852, %v1857
  %1861 = vrot.lane.b32.xlu0 %v1859, 32
  %v1862 = vpop.permute.xlu0 %1861
  %v1864 = vadd.f32 %v1854, %v1862
  %v1865 = vtanh.pop %v1864
  %1867 = vrot.lane.b32.xlu0 %v1865, 64
  %v1868 = vpop.permute.xlu0 %1867
  %v1870 = vmul.f32 %v1852, %v1868
  %v1871 = vmul.f32 %v827, %v1870
  %v1872 = vmul.f32 %v834, %v1759
  %v1873 = vadd.f32 %v1871, %v1872
  %v1874 = vmul.f32 %v827, %v1864
  %v1875 = vmul.f32 %v834, %v1762
  %v1876 = vadd.f32 %v1874, %v1875
  %v1878 = vrot.slane %v1154, 6
  %v1880 = vsel %vm61, %v1159, %v1878
  %1882 = vrot.lane.b32.xlu0 %v1873, 96
  %v1883 = vpop.permute.xlu0 %1882
  %v1885 = vsel %vm63, %v1880, %v1883
  %v1887 = vsel %vm76, %v1885, 0
  %1889 = vmatprep.subr.mxu0 %v1163
  %1890 = vmatpush1.msra.mxu0 %v1162
  %1891 = vmatprep.subr.mxu0 %v1165
  %1892 = vmatpush1.msra.mxu0 %v1164
  %1893 = vmatprep.subr.mxu0 %v1167
  %1894 = vmatpush1.msra.mxu0 %v1166
  %1895 = vmatprep.subr.mxu0 %v1169
  %1896 = vmatpush1.msra.mxu0 %v1168
  %1897 = vmatprep.subr.mxu0 %v1171
  %1898 = vmatpush1.msra.mxu0 %v1170
  %1899 = vmatprep.subr.mxu0 %v1173
  %1900 = vmatpush1.msra.mxu0 %v1172
  %1901 = vmatprep.subr.mxu0 %v1175
  %1902 = vmatpush1.msra.mxu0 %v1174
  %1903 = vmatprep.subr.mxu0 %v1177
  %1904 = vmatpush1.msra.mxu0 %v1176
  %1905 = vmatprep.subr.mxu0 %v1179
  %1906 = vmatpush1.msra.mxu0 %v1178
  %1907 = vmatprep.subr.mxu0 %v1181
  %1908 = vmatpush1.msra.mxu0 %v1180
  %1909 = vmatprep.subr.mxu0 %v1183
  %1910 = vmatpush1.msra.mxu0 %v1182
  %1911 = vmatprep.subr.mxu0 %v1185
  %1912 = vmatpush1.msra.mxu0 %v1184
  %1913 = vmatprep.subr.mxu0 0.0
  %1914 = vmatpush1.msra.mxu0 0.0
  %1915 = vmatprep.subr.mxu0 0.0
  %1916 = vmatpush1.msra.mxu0 0.0
  %1917 = vmatprep.subr.mxu0 0.0
  %1918 = vmatpush1.msra.mxu0 0.0
  %1919 = vmatprep.subr.mxu0 0.0
  %1920 = vmatpush1.msra.mxu0 0.0
  %1921 = vmatprep.subr.mxu0 0.0
  %1922 = vmatpush1.msra.mxu0 0.0
  %1923 = vmatprep.subr.mxu0 0.0
  %1924 = vmatpush1.msra.mxu0 0.0
  %1925 = vmatprep.subr.mxu0 0.0
  %1926 = vmatpush1.msra.mxu0 0.0
  %1927 = vmatprep.subr.mxu0 0.0
  %1928 = vmatpush1.msra.mxu0 0.0
  %1929 = vmatprep.subr.mxu0 0.0
  %1930 = vmatpush1.msra.mxu0 0.0
  %1931 = vmatprep.subr.mxu0 0.0
  %1932 = vmatpush1.msra.mxu0 0.0
  %1933 = vmatprep.subr.mxu0 0.0
  %1934 = vmatpush1.msra.mxu0 0.0
  %1935 = vmatprep.subr.mxu0 0.0
  %1936 = vmatpush1.msra.mxu0 0.0
  %1937 = vmatprep.subr.mxu0 0.0
  %1938 = vmatpush1.msra.mxu0 0.0
  %1939 = vmatprep.subr.mxu0 0.0
  %1940 = vmatpush1.msra.mxu0 0.0
  %1941 = vmatprep.subr.mxu0 0.0
  %1942 = vmatpush1.msra.mxu0 0.0
  %1943 = vmatprep.subr.mxu0 0.0
  %1944 = vmatpush1.msra.mxu0 0.0
  %1945 = vmatprep.subr.mxu0 0.0
  %1946 = vmatpush1.msra.mxu0 0.0
  %1947 = vmatprep.subr.mxu0 0.0
  %1948 = vmatpush1.msra.mxu0 0.0
  %1949 = vmatprep.subr.mxu0 0.0
  %1950 = vmatpush1.msra.mxu0 0.0
  %1951 = vmatprep.subr.mxu0 0.0
  %1952 = vmatpush1.msra.mxu0 0.0
  %1953 = vmatprep.mubr.f32.mxu0 0.0
  %1954 = vmatmul.mubr.f32.gmra.mrb[0].mxu0 %v1887
  %v1955 = vpop.f32.mrb[0].mxu0
  %v1956 = vadd.f32 %v1197, %v1955
  %v1957 = vpop.f32.mrb[0].mxu0
  %v1958 = vadd.f32 %v1201, %v1957
  %1959 = vdwg.mxu0
  %v1960 = vsel %vm61, %v1956, %v1958
  %v1961 = vxor.u32 %v1960, 2147483648
  %v1962 = vmul.f32 %v1961, 1.442695
  %v1963 = vpow.pop %v1962
  %v1964 = vadd.f32 %v1963, 1.0
  %v1965 = vrcp.pop %v1964
  %v1966 = vmul.f32 1.0, %v1965
  %v1967 = vtanh.pop %v1960
  %v1968 = vmul.f32 %v1966, %v1876
  %1970 = vrot.lane.b32.xlu0 %v1967, 64
  %v1971 = vpop.permute.xlu0 %1970
  %v1973 = vmul.f32 %v1966, %v1971
  %1975 = vrot.lane.b32.xlu0 %v1973, 32
  %v1976 = vpop.permute.xlu0 %1975
  %v1978 = vadd.f32 %v1968, %v1976
  %v1979 = vtanh.pop %v1978
  %1981 = vrot.lane.b32.xlu0 %v1979, 64
  %v1982 = vpop.permute.xlu0 %1981
  %v1984 = vmul.f32 %v1966, %v1982
  %v1985 = vmul.f32 %v956, %v1984
  %v1986 = vmul.f32 %v963, %v1873
  %v1987 = vadd.f32 %v1985, %v1986
  %v1988 = vmul.f32 %v956, %v1978
  %v1989 = vmul.f32 %v963, %v1876
  %v1990 = vadd.f32 %v1988, %v1989
  %v1992 = vrot.slane %v1153, 6
  %v1994 = vsel %vm61, %v1160, %v1992
  %1996 = vrot.lane.b32.xlu0 %v1987, 96
  %v1997 = vpop.permute.xlu0 %1996
  %v1999 = vsel %vm63, %v1994, %v1997
  %v2001 = vsel %vm76, %v1999, 0
  %2003 = vmatprep.subr.mxu0 %v1163
  %2004 = vmatpush1.msra.mxu0 %v1162
  %2005 = vmatprep.subr.mxu0 %v1165
  %2006 = vmatpush1.msra.mxu0 %v1164
  %2007 = vmatprep.subr.mxu0 %v1167
  %2008 = vmatpush1.msra.mxu0 %v1166
  %2009 = vmatprep.subr.mxu0 %v1169
  %2010 = vmatpush1.msra.mxu0 %v1168
  %2011 = vmatprep.subr.mxu0 %v1171
  %2012 = vmatpush1.msra.mxu0 %v1170
  %2013 = vmatprep.subr.mxu0 %v1173
  %2014 = vmatpush1.msra.mxu0 %v1172
  %2015 = vmatprep.subr.mxu0 %v1175
  %2016 = vmatpush1.msra.mxu0 %v1174
  %2017 = vmatprep.subr.mxu0 %v1177
  %2018 = vmatpush1.msra.mxu0 %v1176
  %2019 = vmatprep.subr.mxu0 %v1179
  %2020 = vmatpush1.msra.mxu0 %v1178
  %2021 = vmatprep.subr.mxu0 %v1181
  %2022 = vmatpush1.msra.mxu0 %v1180
  %2023 = vmatprep.subr.mxu0 %v1183
  %2024 = vmatpush1.msra.mxu0 %v1182
  %2025 = vmatprep.subr.mxu0 %v1185
  %2026 = vmatpush1.msra.mxu0 %v1184
  %2027 = vmatprep.subr.mxu0 0.0
  %2028 = vmatpush1.msra.mxu0 0.0
  %2029 = vmatprep.subr.mxu0 0.0
  %2030 = vmatpush1.msra.mxu0 0.0
  %2031 = vmatprep.subr.mxu0 0.0
  %2032 = vmatpush1.msra.mxu0 0.0
  %2033 = vmatprep.subr.mxu0 0.0
  %2034 = vmatpush1.msra.mxu0 0.0
  %2035 = vmatprep.subr.mxu0 0.0
  %2036 = vmatpush1.msra.mxu0 0.0
  %2037 = vmatprep.subr.mxu0 0.0
  %2038 = vmatpush1.msra.mxu0 0.0
  %2039 = vmatprep.subr.mxu0 0.0
  %2040 = vmatpush1.msra.mxu0 0.0
  %2041 = vmatprep.subr.mxu0 0.0
  %2042 = vmatpush1.msra.mxu0 0.0
  %2043 = vmatprep.subr.mxu0 0.0
  %2044 = vmatpush1.msra.mxu0 0.0
  %2045 = vmatprep.subr.mxu0 0.0
  %2046 = vmatpush1.msra.mxu0 0.0
  %2047 = vmatprep.subr.mxu0 0.0
  %2048 = vmatpush1.msra.mxu0 0.0
  %2049 = vmatprep.subr.mxu0 0.0
  %2050 = vmatpush1.msra.mxu0 0.0
  %2051 = vmatprep.subr.mxu0 0.0
  %2052 = vmatpush1.msra.mxu0 0.0
  %2053 = vmatprep.subr.mxu0 0.0
  %2054 = vmatpush1.msra.mxu0 0.0
  %2055 = vmatprep.subr.mxu0 0.0
  %2056 = vmatpush1.msra.mxu0 0.0
  %2057 = vmatprep.subr.mxu0 0.0
  %2058 = vmatpush1.msra.mxu0 0.0
  %2059 = vmatprep.subr.mxu0 0.0
  %2060 = vmatpush1.msra.mxu0 0.0
  %2061 = vmatprep.subr.mxu0 0.0
  %2062 = vmatpush1.msra.mxu0 0.0
  %2063 = vmatprep.subr.mxu0 0.0
  %2064 = vmatpush1.msra.mxu0 0.0
  %2065 = vmatprep.subr.mxu0 0.0
  %2066 = vmatpush1.msra.mxu0 0.0
  %2067 = vmatprep.mubr.f32.mxu0 0.0
  %2068 = vmatmul.mubr.f32.gmra.mrb[0].mxu0 %v2001
  %v2069 = vpop.f32.mrb[0].mxu0
  %v2070 = vadd.f32 %v1197, %v2069
  %v2071 = vpop.f32.mrb[0].mxu0
  %v2072 = vadd.f32 %v1201, %v2071
  %2073 = vdwg.mxu0
  %v2074 = vsel %vm61, %v2070, %v2072
  %v2075 = vxor.u32 %v2074, 2147483648
  %v2076 = vmul.f32 %v2075, 1.442695
  %v2077 = vpow.pop %v2076
  %v2078 = vadd.f32 %v2077, 1.0
  %v2079 = vrcp.pop %v2078
  %v2080 = vmul.f32 1.0, %v2079
  %v2081 = vtanh.pop %v2074
  %v2082 = vmul.f32 %v2080, %v1990
  %2084 = vrot.lane.b32.xlu0 %v2081, 64
  %v2085 = vpop.permute.xlu0 %2084
  %v2087 = vmul.f32 %v2080, %v2085
  %2089 = vrot.lane.b32.xlu0 %v2087, 32
  %v2090 = vpop.permute.xlu0 %2089
  %v2092 = vadd.f32 %v2082, %v2090
  %v2093 = vtanh.pop %v2092
  %2095 = vrot.lane.b32.xlu0 %v2093, 64
  %v2096 = vpop.permute.xlu0 %2095
  %v2098 = vmul.f32 %v2080, %v2096
  %v2099 = vmul.f32 %v1085, %v2098
  %2108 = vrot.lane.b32.xlu0 %v1303, 32
  %v2109 = vpop.permute.xlu0 %2108
  %2110 = vrot.lane.b32.xlu0 %v1415, 32
  %v2111 = vpop.permute.xlu0 %2110
  %2112 = vrot.lane.b32.xlu0 %v1529, 32
  %v2113 = vpop.permute.xlu0 %2112
  %2114 = vrot.lane.b32.xlu0 %v1643, 32
  %v2115 = vpop.permute.xlu0 %2114
  %2116 = vrot.lane.b32.xlu0 %v1757, 32
  %v2117 = vpop.permute.xlu0 %2116
  %2118 = vrot.lane.b32.xlu0 %v1871, 32
  %v2119 = vpop.permute.xlu0 %2118
  %2120 = vrot.lane.b32.xlu0 %v1985, 32
  %v2121 = vpop.permute.xlu0 %2120
  %2122 = vrot.lane.b32.xlu0 %v2099, 32
  %v2123 = vpop.permute.xlu0 %2122
  %v2132 = vrot.slane %v2099, 2
  %v2133 = vrot.slane %v1985, 2
  %v2134 = vrot.slane %v1871, 2
  %v2135 = vrot.slane %v1757, 2
  %v2136 = vrot.slane %v1643, 2
  %v2137 = vrot.slane %v1529, 2
  %v2138 = vrot.slane %v1415, 2
  %v2139 = vrot.slane %v1303, 2
  %2140 = vrot.lane.b32.xlu0 %v2132, 64
  %v2141 = vpop.permute.xlu0 %2140
  %2142 = vrot.lane.b32.xlu0 %v2133, 64
  %v2143 = vpop.permute.xlu0 %2142
  %2144 = vrot.lane.b32.xlu0 %v2134, 64
  %v2145 = vpop.permute.xlu0 %2144
  %2146 = vrot.lane.b32.xlu0 %v2135, 64
  %v2147 = vpop.permute.xlu0 %2146
  %2148 = vrot.lane.b32.xlu0 %v2136, 64
  %v2149 = vpop.permute.xlu0 %2148
  %2150 = vrot.lane.b32.xlu0 %v2137, 64
  %v2151 = vpop.permute.xlu0 %2150
  %2152 = vrot.lane.b32.xlu0 %v2138, 64
  %v2153 = vpop.permute.xlu0 %2152
  %2154 = vrot.lane.b32.xlu0 %v2139, 64
  %v2155 = vpop.permute.xlu0 %2154
  %v2164 = vsel %vm1152, %v2109, %v2141
  %v2165 = vsel %vm1152, %v2111, %v2143
  %v2166 = vsel %vm1152, %v2113, %v2145
  %v2167 = vsel %vm1152, %v2115, %v2147
  %v2168 = vsel %vm1152, %v2117, %v2149
  %v2169 = vsel %vm1152, %v2119, %v2151
  %v2170 = vsel %vm1152, %v2121, %v2153
  %v2171 = vsel %vm1152, %v2123, %v2155
  %s2172 = scalar_lea.vmem %s2, 384
  %v2173 = vld [vmem:[%s2172] sm:$0xff]
  %v2174 = vld [vmem:[%s2172 + $0x8] sm:$0xff]
  %v2175 = vld [vmem:[%s2172 + $0x10] sm:$0xff]
  %v2176 = vld [vmem:[%s2172 + $0x18] sm:$0xff]
  %v2177 = vld [vmem:[%s2172 + $0x20] sm:$0xff]
  %v2178 = vld [vmem:[%s2172 + $0x28] sm:$0xff]
  %v2179 = vld [vmem:[%s2172 + $0x30] sm:$0xff]
  %v2180 = vld [vmem:[%s2172 + $0x38] sm:$0xff]
  %v2181 = vld [vmem:[%s2172 + $0x40] sm:$0xff]
  %v2182 = vld [vmem:[%s2172 + $0x48] sm:$0xff]
  %v2183 = vld [vmem:[%s2172 + $0x50] sm:$0xff]
  %v2184 = vld [vmem:[%s2172 + $0x58] sm:$0xff]
  %v2185 = vld [vmem:[%s2172 + $0x60] sm:$0xff]
  %v2186 = vld [vmem:[%s2172 + $0x68] sm:$0xff]
  %v2187 = vld [vmem:[%s2172 + $0x70] sm:$0xff]
  %v2188 = vld [vmem:[%s2172 + $0x78] sm:$0xff]
  %v2189 = vld [vmem:[%s2172 + $0x80] sm:$0xff]
  %v2190 = vld [vmem:[%s2172 + $0x88] sm:$0xff]
  %v2191 = vld [vmem:[%s2172 + $0x90] sm:$0xff]
  %v2192 = vld [vmem:[%s2172 + $0x98] sm:$0xff]
  %v2193 = vld [vmem:[%s2172 + $0xa0] sm:$0xff]
  %v2194 = vld [vmem:[%s2172 + $0xa8] sm:$0xff]
  %v2195 = vld [vmem:[%s2172 + $0xb0] sm:$0xff]
  %v2196 = vld [vmem:[%s2172 + $0xb8] sm:$0xff]
  %s2197 = scalar_lea.vmem %s3, 4
  %v2198 = vld [vmem:[%s2197] sm:$0x3]
  %v2200 = vrot.slane %v2171, 6
  %v2202 = vsel %vm61, %v2164, %v2200
  %v2203 = vsel %vm63, %v2202, 0.0
  %v2205 = vlaneseq
  %v2206 = vshrl.u32 %v2205, 7
  %v2207 = vsub.s32 0, %v2206
  %v2208 = vrot.slane %v2198, %v2207
  %v2209 = vlaneseq
  %v2210 = vshrl.u32 %v2209, 7
  %v2211 = vsub.s32 1, %v2210
  %v2212 = vrot.slane %v2198, %v2211
  %v2216 = vsel %vm76, %v2203, 0
  %2218 = vmatprep.subr.mxu0 %v2174
  %2219 = vmatpush1.msra.mxu0 %v2173
  %2220 = vmatprep.subr.mxu0 %v2176
  %2221 = vmatpush1.msra.mxu0 %v2175
  %2222 = vmatprep.subr.mxu0 %v2178
  %2223 = vmatpush1.msra.mxu0 %v2177
  %2224 = vmatprep.subr.mxu0 %v2180
  %2225 = vmatpush1.msra.mxu0 %v2179
  %2226 = vmatprep.subr.mxu0 %v2182
  %2227 = vmatpush1.msra.mxu0 %v2181
  %2228 = vmatprep.subr.mxu0 %v2184
  %2229 = vmatpush1.msra.mxu0 %v2183
  %2230 = vmatprep.subr.mxu0 %v2186
  %2231 = vmatpush1.msra.mxu0 %v2185
  %2232 = vmatprep.subr.mxu0 %v2188
  %2233 = vmatpush1.msra.mxu0 %v2187
  %2234 = vmatprep.subr.mxu0 %v2190
  %2235 = vmatpush1.msra.mxu0 %v2189
  %2236 = vmatprep.subr.mxu0 %v2192
  %2237 = vmatpush1.msra.mxu0 %v2191
  %2238 = vmatprep.subr.mxu0 %v2194
  %2239 = vmatpush1.msra.mxu0 %v2193
  %2240 = vmatprep.subr.mxu0 %v2196
  %2241 = vmatpush1.msra.mxu0 %v2195
  %2242 = vmatprep.subr.mxu0 0.0
  %2243 = vmatpush1.msra.mxu0 0.0
  %2244 = vmatprep.subr.mxu0 0.0
  %2245 = vmatpush1.msra.mxu0 0.0
  %2246 = vmatprep.subr.mxu0 0.0
  %2247 = vmatpush1.msra.mxu0 0.0
  %2248 = vmatprep.subr.mxu0 0.0
  %2249 = vmatpush1.msra.mxu0 0.0
  %2250 = vmatprep.subr.mxu0 0.0
  %2251 = vmatpush1.msra.mxu0 0.0
  %2252 = vmatprep.subr.mxu0 0.0
  %2253 = vmatpush1.msra.mxu0 0.0
  %2254 = vmatprep.subr.mxu0 0.0
  %2255 = vmatpush1.msra.mxu0 0.0
  %2256 = vmatprep.subr.mxu0 0.0
  %2257 = vmatpush1.msra.mxu0 0.0
  %2258 = vmatprep.subr.mxu0 0.0
  %2259 = vmatpush1.msra.mxu0 0.0
  %2260 = vmatprep.subr.mxu0 0.0
  %2261 = vmatpush1.msra.mxu0 0.0
  %2262 = vmatprep.subr.mxu0 0.0
  %2263 = vmatpush1.msra.mxu0 0.0
  %2264 = vmatprep.subr.mxu0 0.0
  %2265 = vmatpush1.msra.mxu0 0.0
  %2266 = vmatprep.subr.mxu0 0.0
  %2267 = vmatpush1.msra.mxu0 0.0
  %2268 = vmatprep.subr.mxu0 0.0
  %2269 = vmatpush1.msra.mxu0 0.0
  %2270 = vmatprep.subr.mxu0 0.0
  %2271 = vmatpush1.msra.mxu0 0.0
  %2272 = vmatprep.subr.mxu0 0.0
  %2273 = vmatpush1.msra.mxu0 0.0
  %2274 = vmatprep.subr.mxu0 0.0
  %2275 = vmatpush1.msra.mxu0 0.0
  %2276 = vmatprep.subr.mxu0 0.0
  %2277 = vmatpush1.msra.mxu0 0.0
  %2278 = vmatprep.subr.mxu0 0.0
  %2279 = vmatpush1.msra.mxu0 0.0
  %2280 = vmatprep.subr.mxu0 0.0
  %2281 = vmatpush1.msra.mxu0 0.0
  %2282 = vmatprep.mubr.f32.mxu0 0.0
  %2283 = vmatmul.mubr.f32.gmra.mrb[0].mxu0 %v2216
  %v2284 = vpop.f32.mrb[0].mxu0
  %v2285 = vadd.f32 %v2208, %v2284
  %v2286 = vpop.f32.mrb[0].mxu0
  %v2287 = vadd.f32 %v2212, %v2286
  %2288 = vdwg.mxu0
  %v2289 = vsel %vm61, %v2285, %v2287
  %v2290 = vxor.u32 %v2289, 2147483648
  %v2291 = vmul.f32 %v2290, 1.442695
  %v2292 = vpow.pop %v2291
  %v2293 = vadd.f32 %v2292, 1.0
  %v2294 = vrcp.pop %v2293
  %v2295 = vmul.f32 1.0, %v2294
  %v2296 = vtanh.pop %v2289
  %v2297 = vmul.f32 %v2295, 0.0
  %2299 = vrot.lane.b32.xlu0 %v2296, 64
  %v2300 = vpop.permute.xlu0 %2299
  %v2302 = vmul.f32 %v2295, %v2300
  %2304 = vrot.lane.b32.xlu0 %v2302, 32
  %v2305 = vpop.permute.xlu0 %2304
  %v2307 = vadd.f32 %v2297, %v2305
  %v2308 = vtanh.pop %v2307
  %2310 = vrot.lane.b32.xlu0 %v2308, 64
  %v2311 = vpop.permute.xlu0 %2310
  %v2313 = vmul.f32 %v2295, %v2311
  %v2314 = vmul.f32 %v183, %v2313
  %v2315 = vadd.f32 %v2314, %v192
  %v2316 = vmul.f32 %v183, %v2307
  %v2317 = vadd.f32 %v2316, %v192
  %v2319 = vrot.slane %v2170, 6
  %v2321 = vsel %vm61, %v2165, %v2319
  %2323 = vrot.lane.b32.xlu0 %v2315, 96
  %v2324 = vpop.permute.xlu0 %2323
  %v2326 = vsel %vm63, %v2321, %v2324
  %v2328 = vsel %vm76, %v2326, 0
  %2330 = vmatprep.subr.mxu0 %v2174
  %2331 = vmatpush1.msra.mxu0 %v2173
  %2332 = vmatprep.subr.mxu0 %v2176
  %2333 = vmatpush1.msra.mxu0 %v2175
  %2334 = vmatprep.subr.mxu0 %v2178
  %2335 = vmatpush1.msra.mxu0 %v2177
  %2336 = vmatprep.subr.mxu0 %v2180
  %2337 = vmatpush1.msra.mxu0 %v2179
  %2338 = vmatprep.subr.mxu0 %v2182
  %2339 = vmatpush1.msra.mxu0 %v2181
  %2340 = vmatprep.subr.mxu0 %v2184
  %2341 = vmatpush1.msra.mxu0 %v2183
  %2342 = vmatprep.subr.mxu0 %v2186
  %2343 = vmatpush1.msra.mxu0 %v2185
  %2344 = vmatprep.subr.mxu0 %v2188
  %2345 = vmatpush1.msra.mxu0 %v2187
  %2346 = vmatprep.subr.mxu0 %v2190
  %2347 = vmatpush1.msra.mxu0 %v2189
  %2348 = vmatprep.subr.mxu0 %v2192
  %2349 = vmatpush1.msra.mxu0 %v2191
  %2350 = vmatprep.subr.mxu0 %v2194
  %2351 = vmatpush1.msra.mxu0 %v2193
  %2352 = vmatprep.subr.mxu0 %v2196
  %2353 = vmatpush1.msra.mxu0 %v2195
  %2354 = vmatprep.subr.mxu0 0.0
  %2355 = vmatpush1.msra.mxu0 0.0
  %2356 = vmatprep.subr.mxu0 0.0
  %2357 = vmatpush1.msra.mxu0 0.0
  %2358 = vmatprep.subr.mxu0 0.0
  %2359 = vmatpush1.msra.mxu0 0.0
  %2360 = vmatprep.subr.mxu0 0.0
  %2361 = vmatpush1.msra.mxu0 0.0
  %2362 = vmatprep.subr.mxu0 0.0
  %2363 = vmatpush1.msra.mxu0 0.0
  %2364 = vmatprep.subr.mxu0 0.0
  %2365 = vmatpush1.msra.mxu0 0.0
  %2366 = vmatprep.subr.mxu0 0.0
  %2367 = vmatpush1.msra.mxu0 0.0
  %2368 = vmatprep.subr.mxu0 0.0
  %2369 = vmatpush1.msra.mxu0 0.0
  %2370 = vmatprep.subr.mxu0 0.0
  %2371 = vmatpush1.msra.mxu0 0.0
  %2372 = vmatprep.subr.mxu0 0.0
  %2373 = vmatpush1.msra.mxu0 0.0
  %2374 = vmatprep.subr.mxu0 0.0
  %2375 = vmatpush1.msra.mxu0 0.0
  %2376 = vmatprep.subr.mxu0 0.0
  %2377 = vmatpush1.msra.mxu0 0.0
  %2378 = vmatprep.subr.mxu0 0.0
  %2379 = vmatpush1.msra.mxu0 0.0
  %2380 = vmatprep.subr.mxu0 0.0
  %2381 = vmatpush1.msra.mxu0 0.0
  %2382 = vmatprep.subr.mxu0 0.0
  %2383 = vmatpush1.msra.mxu0 0.0
  %2384 = vmatprep.subr.mxu0 0.0
  %2385 = vmatpush1.msra.mxu0 0.0
  %2386 = vmatprep.subr.mxu0 0.0
  %2387 = vmatpush1.msra.mxu0 0.0
  %2388 = vmatprep.subr.mxu0 0.0
  %2389 = vmatpush1.msra.mxu0 0.0
  %2390 = vmatprep.subr.mxu0 0.0
  %2391 = vmatpush1.msra.mxu0 0.0
  %2392 = vmatprep.subr.mxu0 0.0
  %2393 = vmatpush1.msra.mxu0 0.0
  %2394 = vmatprep.mubr.f32.mxu0 0.0
  %2395 = vmatmul.mubr.f32.gmra.mrb[0].mxu0 %v2328
  %v2396 = vpop.f32.mrb[0].mxu0
  %v2397 = vadd.f32 %v2208, %v2396
  %v2398 = vpop.f32.mrb[0].mxu0
  %v2399 = vadd.f32 %v2212, %v2398
  %2400 = vdwg.mxu0
  %v2401 = vsel %vm61, %v2397, %v2399
  %v2402 = vxor.u32 %v2401, 2147483648
  %v2403 = vmul.f32 %v2402, 1.442695
  %v2404 = vpow.pop %v2403
  %v2405 = vadd.f32 %v2404, 1.0
  %v2406 = vrcp.pop %v2405
  %v2407 = vmul.f32 1.0, %v2406
  %v2408 = vtanh.pop %v2401
  %v2409 = vmul.f32 %v2407, %v2317
  %2411 = vrot.lane.b32.xlu0 %v2408, 64
  %v2412 = vpop.permute.xlu0 %2411
  %v2414 = vmul.f32 %v2407, %v2412
  %2416 = vrot.lane.b32.xlu0 %v2414, 32
  %v2417 = vpop.permute.xlu0 %2416
  %v2419 = vadd.f32 %v2409, %v2417
  %v2420 = vtanh.pop %v2419
  %2422 = vrot.lane.b32.xlu0 %v2420, 64
  %v2423 = vpop.permute.xlu0 %2422
  %v2425 = vmul.f32 %v2407, %v2423
  %v2426 = vmul.f32 %v311, %v2425
  %v2427 = vmul.f32 %v318, %v2315
  %v2428 = vadd.f32 %v2426, %v2427
  %v2429 = vmul.f32 %v311, %v2419
  %v2430 = vmul.f32 %v318, %v2317
  %v2431 = vadd.f32 %v2429, %v2430
  %v2433 = vrot.slane %v2169, 6
  %v2435 = vsel %vm61, %v2166, %v2433
  %2437 = vrot.lane.b32.xlu0 %v2428, 96
  %v2438 = vpop.permute.xlu0 %2437
  %v2440 = vsel %vm63, %v2435, %v2438
  %v2442 = vsel %vm76, %v2440, 0
  %2444 = vmatprep.subr.mxu0 %v2174
  %2445 = vmatpush1.msra.mxu0 %v2173
  %2446 = vmatprep.subr.mxu0 %v2176
  %2447 = vmatpush1.msra.mxu0 %v2175
  %2448 = vmatprep.subr.mxu0 %v2178
  %2449 = vmatpush1.msra.mxu0 %v2177
  %2450 = vmatprep.subr.mxu0 %v2180
  %2451 = vmatpush1.msra.mxu0 %v2179
  %2452 = vmatprep.subr.mxu0 %v2182
  %2453 = vmatpush1.msra.mxu0 %v2181
  %2454 = vmatprep.subr.mxu0 %v2184
  %2455 = vmatpush1.msra.mxu0 %v2183
  %2456 = vmatprep.subr.mxu0 %v2186
  %2457 = vmatpush1.msra.mxu0 %v2185
  %2458 = vmatprep.subr.mxu0 %v2188
  %2459 = vmatpush1.msra.mxu0 %v2187
  %2460 = vmatprep.subr.mxu0 %v2190
  %2461 = vmatpush1.msra.mxu0 %v2189
  %2462 = vmatprep.subr.mxu0 %v2192
  %2463 = vmatpush1.msra.mxu0 %v2191
  %2464 = vmatprep.subr.mxu0 %v2194
  %2465 = vmatpush1.msra.mxu0 %v2193
  %2466 = vmatprep.subr.mxu0 %v2196
  %2467 = vmatpush1.msra.mxu0 %v2195
  %2468 = vmatprep.subr.mxu0 0.0
  %2469 = vmatpush1.msra.mxu0 0.0
  %2470 = vmatprep.subr.mxu0 0.0
  %2471 = vmatpush1.msra.mxu0 0.0
  %2472 = vmatprep.subr.mxu0 0.0
  %2473 = vmatpush1.msra.mxu0 0.0
  %2474 = vmatprep.subr.mxu0 0.0
  %2475 = vmatpush1.msra.mxu0 0.0
  %2476 = vmatprep.subr.mxu0 0.0
  %2477 = vmatpush1.msra.mxu0 0.0
  %2478 = vmatprep.subr.mxu0 0.0
  %2479 = vmatpush1.msra.mxu0 0.0
  %2480 = vmatprep.subr.mxu0 0.0
  %2481 = vmatpush1.msra.mxu0 0.0
  %2482 = vmatprep.subr.mxu0 0.0
  %2483 = vmatpush1.msra.mxu0 0.0
  %2484 = vmatprep.subr.mxu0 0.0
  %2485 = vmatpush1.msra.mxu0 0.0
  %2486 = vmatprep.subr.mxu0 0.0
  %2487 = vmatpush1.msra.mxu0 0.0
  %2488 = vmatprep.subr.mxu0 0.0
  %2489 = vmatpush1.msra.mxu0 0.0
  %2490 = vmatprep.subr.mxu0 0.0
  %2491 = vmatpush1.msra.mxu0 0.0
  %2492 = vmatprep.subr.mxu0 0.0
  %2493 = vmatpush1.msra.mxu0 0.0
  %2494 = vmatprep.subr.mxu0 0.0
  %2495 = vmatpush1.msra.mxu0 0.0
  %2496 = vmatprep.subr.mxu0 0.0
  %2497 = vmatpush1.msra.mxu0 0.0
  %2498 = vmatprep.subr.mxu0 0.0
  %2499 = vmatpush1.msra.mxu0 0.0
  %2500 = vmatprep.subr.mxu0 0.0
  %2501 = vmatpush1.msra.mxu0 0.0
  %2502 = vmatprep.subr.mxu0 0.0
  %2503 = vmatpush1.msra.mxu0 0.0
  %2504 = vmatprep.subr.mxu0 0.0
  %2505 = vmatpush1.msra.mxu0 0.0
  %2506 = vmatprep.subr.mxu0 0.0
  %2507 = vmatpush1.msra.mxu0 0.0
  %2508 = vmatprep.mubr.f32.mxu0 0.0
  %2509 = vmatmul.mubr.f32.gmra.mrb[0].mxu0 %v2442
  %v2510 = vpop.f32.mrb[0].mxu0
  %v2511 = vadd.f32 %v2208, %v2510
  %v2512 = vpop.f32.mrb[0].mxu0
  %v2513 = vadd.f32 %v2212, %v2512
  %2514 = vdwg.mxu0
  %v2515 = vsel %vm61, %v2511, %v2513
  %v2516 = vxor.u32 %v2515, 2147483648
  %v2517 = vmul.f32 %v2516, 1.442695
  %v2518 = vpow.pop %v2517
  %v2519 = vadd.f32 %v2518, 1.0
  %v2520 = vrcp.pop %v2519
  %v2521 = vmul.f32 1.0, %v2520
  %v2522 = vtanh.pop %v2515
  %v2523 = vmul.f32 %v2521, %v2431
  %2525 = vrot.lane.b32.xlu0 %v2522, 64
  %v2526 = vpop.permute.xlu0 %2525
  %v2528 = vmul.f32 %v2521, %v2526
  %2530 = vrot.lane.b32.xlu0 %v2528, 32
  %v2531 = vpop.permute.xlu0 %2530
  %v2533 = vadd.f32 %v2523, %v2531
  %v2534 = vtanh.pop %v2533
  %2536 = vrot.lane.b32.xlu0 %v2534, 64
  %v2537 = vpop.permute.xlu0 %2536
  %v2539 = vmul.f32 %v2521, %v2537
  %v2540 = vmul.f32 %v440, %v2539
  %v2541 = vmul.f32 %v447, %v2428
  %v2542 = vadd.f32 %v2540, %v2541
  %v2543 = vmul.f32 %v440, %v2533
  %v2544 = vmul.f32 %v447, %v2431
  %v2545 = vadd.f32 %v2543, %v2544
  %v2547 = vrot.slane %v2168, 6
  %v2549 = vsel %vm61, %v2167, %v2547
  %2551 = vrot.lane.b32.xlu0 %v2542, 96
  %v2552 = vpop.permute.xlu0 %2551
  %v2554 = vsel %vm63, %v2549, %v2552
  %v2556 = vsel %vm76, %v2554, 0
  %2558 = vmatprep.subr.mxu0 %v2174
  %2559 = vmatpush1.msra.mxu0 %v2173
  %2560 = vmatprep.subr.mxu0 %v2176
  %2561 = vmatpush1.msra.mxu0 %v2175
  %2562 = vmatprep.subr.mxu0 %v2178
  %2563 = vmatpush1.msra.mxu0 %v2177
  %2564 = vmatprep.subr.mxu0 %v2180
  %2565 = vmatpush1.msra.mxu0 %v2179
  %2566 = vmatprep.subr.mxu0 %v2182
  %2567 = vmatpush1.msra.mxu0 %v2181
  %2568 = vmatprep.subr.mxu0 %v2184
  %2569 = vmatpush1.msra.mxu0 %v2183
  %2570 = vmatprep.subr.mxu0 %v2186
  %2571 = vmatpush1.msra.mxu0 %v2185
  %2572 = vmatprep.subr.mxu0 %v2188
  %2573 = vmatpush1.msra.mxu0 %v2187
  %2574 = vmatprep.subr.mxu0 %v2190
  %2575 = vmatpush1.msra.mxu0 %v2189
  %2576 = vmatprep.subr.mxu0 %v2192
  %2577 = vmatpush1.msra.mxu0 %v2191
  %2578 = vmatprep.subr.mxu0 %v2194
  %2579 = vmatpush1.msra.mxu0 %v2193
  %2580 = vmatprep.subr.mxu0 %v2196
  %2581 = vmatpush1.msra.mxu0 %v2195
  %2582 = vmatprep.subr.mxu0 0.0
  %2583 = vmatpush1.msra.mxu0 0.0
  %2584 = vmatprep.subr.mxu0 0.0
  %2585 = vmatpush1.msra.mxu0 0.0
  %2586 = vmatprep.subr.mxu0 0.0
  %2587 = vmatpush1.msra.mxu0 0.0
  %2588 = vmatprep.subr.mxu0 0.0
  %2589 = vmatpush1.msra.mxu0 0.0
  %2590 = vmatprep.subr.mxu0 0.0
  %2591 = vmatpush1.msra.mxu0 0.0
  %2592 = vmatprep.subr.mxu0 0.0
  %2593 = vmatpush1.msra.mxu0 0.0
  %2594 = vmatprep.subr.mxu0 0.0
  %2595 = vmatpush1.msra.mxu0 0.0
  %2596 = vmatprep.subr.mxu0 0.0
  %2597 = vmatpush1.msra.mxu0 0.0
  %2598 = vmatprep.subr.mxu0 0.0
  %2599 = vmatpush1.msra.mxu0 0.0
  %2600 = vmatprep.subr.mxu0 0.0
  %2601 = vmatpush1.msra.mxu0 0.0
  %2602 = vmatprep.subr.mxu0 0.0
  %2603 = vmatpush1.msra.mxu0 0.0
  %2604 = vmatprep.subr.mxu0 0.0
  %2605 = vmatpush1.msra.mxu0 0.0
  %2606 = vmatprep.subr.mxu0 0.0
  %2607 = vmatpush1.msra.mxu0 0.0
  %2608 = vmatprep.subr.mxu0 0.0
  %2609 = vmatpush1.msra.mxu0 0.0
  %2610 = vmatprep.subr.mxu0 0.0
  %2611 = vmatpush1.msra.mxu0 0.0
  %2612 = vmatprep.subr.mxu0 0.0
  %2613 = vmatpush1.msra.mxu0 0.0
  %2614 = vmatprep.subr.mxu0 0.0
  %2615 = vmatpush1.msra.mxu0 0.0
  %2616 = vmatprep.subr.mxu0 0.0
  %2617 = vmatpush1.msra.mxu0 0.0
  %2618 = vmatprep.subr.mxu0 0.0
  %2619 = vmatpush1.msra.mxu0 0.0
  %2620 = vmatprep.subr.mxu0 0.0
  %2621 = vmatpush1.msra.mxu0 0.0
  %2622 = vmatprep.mubr.f32.mxu0 0.0
  %2623 = vmatmul.mubr.f32.gmra.mrb[0].mxu0 %v2556
  %v2624 = vpop.f32.mrb[0].mxu0
  %v2625 = vadd.f32 %v2208, %v2624
  %v2626 = vpop.f32.mrb[0].mxu0
  %v2627 = vadd.f32 %v2212, %v2626
  %2628 = vdwg.mxu0
  %v2629 = vsel %vm61, %v2625, %v2627
  %v2630 = vxor.u32 %v2629, 2147483648
  %v2631 = vmul.f32 %v2630, 1.442695
  %v2632 = vpow.pop %v2631
  %v2633 = vadd.f32 %v2632, 1.0
  %v2634 = vrcp.pop %v2633
  %v2635 = vmul.f32 1.0, %v2634
  %v2636 = vtanh.pop %v2629
  %v2637 = vmul.f32 %v2635, %v2545
  %2639 = vrot.lane.b32.xlu0 %v2636, 64
  %v2640 = vpop.permute.xlu0 %2639
  %v2642 = vmul.f32 %v2635, %v2640
  %2644 = vrot.lane.b32.xlu0 %v2642, 32
  %v2645 = vpop.permute.xlu0 %2644
  %v2647 = vadd.f32 %v2637, %v2645
  %v2648 = vtanh.pop %v2647
  %2650 = vrot.lane.b32.xlu0 %v2648, 64
  %v2651 = vpop.permute.xlu0 %2650
  %v2653 = vmul.f32 %v2635, %v2651
  %v2654 = vmul.f32 %v569, %v2653
  %v2655 = vmul.f32 %v576, %v2542
  %v2656 = vadd.f32 %v2654, %v2655
  %v2657 = vmul.f32 %v569, %v2647
  %v2658 = vmul.f32 %v576, %v2545
  %v2659 = vadd.f32 %v2657, %v2658
  %v2661 = vrot.slane %v2167, 6
  %v2663 = vsel %vm61, %v2168, %v2661
  %2665 = vrot.lane.b32.xlu0 %v2656, 96
  %v2666 = vpop.permute.xlu0 %2665
  %v2668 = vsel %vm63, %v2663, %v2666
  %v2670 = vsel %vm76, %v2668, 0
  %2672 = vmatprep.subr.mxu0 %v2174
  %2673 = vmatpush1.msra.mxu0 %v2173
  %2674 = vmatprep.subr.mxu0 %v2176
  %2675 = vmatpush1.msra.mxu0 %v2175
  %2676 = vmatprep.subr.mxu0 %v2178
  %2677 = vmatpush1.msra.mxu0 %v2177
  %2678 = vmatprep.subr.mxu0 %v2180
  %2679 = vmatpush1.msra.mxu0 %v2179
  %2680 = vmatprep.subr.mxu0 %v2182
  %2681 = vmatpush1.msra.mxu0 %v2181
  %2682 = vmatprep.subr.mxu0 %v2184
  %2683 = vmatpush1.msra.mxu0 %v2183
  %2684 = vmatprep.subr.mxu0 %v2186
  %2685 = vmatpush1.msra.mxu0 %v2185
  %2686 = vmatprep.subr.mxu0 %v2188
  %2687 = vmatpush1.msra.mxu0 %v2187
  %2688 = vmatprep.subr.mxu0 %v2190
  %2689 = vmatpush1.msra.mxu0 %v2189
  %2690 = vmatprep.subr.mxu0 %v2192
  %2691 = vmatpush1.msra.mxu0 %v2191
  %2692 = vmatprep.subr.mxu0 %v2194
  %2693 = vmatpush1.msra.mxu0 %v2193
  %2694 = vmatprep.subr.mxu0 %v2196
  %2695 = vmatpush1.msra.mxu0 %v2195
  %2696 = vmatprep.subr.mxu0 0.0
  %2697 = vmatpush1.msra.mxu0 0.0
  %2698 = vmatprep.subr.mxu0 0.0
  %2699 = vmatpush1.msra.mxu0 0.0
  %2700 = vmatprep.subr.mxu0 0.0
  %2701 = vmatpush1.msra.mxu0 0.0
  %2702 = vmatprep.subr.mxu0 0.0
  %2703 = vmatpush1.msra.mxu0 0.0
  %2704 = vmatprep.subr.mxu0 0.0
  %2705 = vmatpush1.msra.mxu0 0.0
  %2706 = vmatprep.subr.mxu0 0.0
  %2707 = vmatpush1.msra.mxu0 0.0
  %2708 = vmatprep.subr.mxu0 0.0
  %2709 = vmatpush1.msra.mxu0 0.0
  %2710 = vmatprep.subr.mxu0 0.0
  %2711 = vmatpush1.msra.mxu0 0.0
  %2712 = vmatprep.subr.mxu0 0.0
  %2713 = vmatpush1.msra.mxu0 0.0
  %2714 = vmatprep.subr.mxu0 0.0
  %2715 = vmatpush1.msra.mxu0 0.0
  %2716 = vmatprep.subr.mxu0 0.0
  %2717 = vmatpush1.msra.mxu0 0.0
  %2718 = vmatprep.subr.mxu0 0.0
  %2719 = vmatpush1.msra.mxu0 0.0
  %2720 = vmatprep.subr.mxu0 0.0
  %2721 = vmatpush1.msra.mxu0 0.0
  %2722 = vmatprep.subr.mxu0 0.0
  %2723 = vmatpush1.msra.mxu0 0.0
  %2724 = vmatprep.subr.mxu0 0.0
  %2725 = vmatpush1.msra.mxu0 0.0
  %2726 = vmatprep.subr.mxu0 0.0
  %2727 = vmatpush1.msra.mxu0 0.0
  %2728 = vmatprep.subr.mxu0 0.0
  %2729 = vmatpush1.msra.mxu0 0.0
  %2730 = vmatprep.subr.mxu0 0.0
  %2731 = vmatpush1.msra.mxu0 0.0
  %2732 = vmatprep.subr.mxu0 0.0
  %2733 = vmatpush1.msra.mxu0 0.0
  %2734 = vmatprep.subr.mxu0 0.0
  %2735 = vmatpush1.msra.mxu0 0.0
  %2736 = vmatprep.mubr.f32.mxu0 0.0
  %2737 = vmatmul.mubr.f32.gmra.mrb[0].mxu0 %v2670
  %v2738 = vpop.f32.mrb[0].mxu0
  %v2739 = vadd.f32 %v2208, %v2738
  %v2740 = vpop.f32.mrb[0].mxu0
  %v2741 = vadd.f32 %v2212, %v2740
  %2742 = vdwg.mxu0
  %v2743 = vsel %vm61, %v2739, %v2741
  %v2744 = vxor.u32 %v2743, 2147483648
  %v2745 = vmul.f32 %v2744, 1.442695
  %v2746 = vpow.pop %v2745
  %v2747 = vadd.f32 %v2746, 1.0
  %v2748 = vrcp.pop %v2747
  %v2749 = vmul.f32 1.0, %v2748
  %v2750 = vtanh.pop %v2743
  %v2751 = vmul.f32 %v2749, %v2659
  %2753 = vrot.lane.b32.xlu0 %v2750, 64
  %v2754 = vpop.permute.xlu0 %2753
  %v2756 = vmul.f32 %v2749, %v2754
  %2758 = vrot.lane.b32.xlu0 %v2756, 32
  %v2759 = vpop.permute.xlu0 %2758
  %v2761 = vadd.f32 %v2751, %v2759
  %v2762 = vtanh.pop %v2761
  %2764 = vrot.lane.b32.xlu0 %v2762, 64
  %v2765 = vpop.permute.xlu0 %2764
  %v2767 = vmul.f32 %v2749, %v2765
  %v2768 = vmul.f32 %v698, %v2767
  %v2769 = vmul.f32 %v705, %v2656
  %v2770 = vadd.f32 %v2768, %v2769
  %v2771 = vmul.f32 %v698, %v2761
  %v2772 = vmul.f32 %v705, %v2659
  %v2773 = vadd.f32 %v2771, %v2772
  %v2775 = vrot.slane %v2166, 6
  %v2777 = vsel %vm61, %v2169, %v2775
  %2779 = vrot.lane.b32.xlu0 %v2770, 96
  %v2780 = vpop.permute.xlu0 %2779
  %v2782 = vsel %vm63, %v2777, %v2780
  %v2784 = vsel %vm76, %v2782, 0
  %2786 = vmatprep.subr.mxu0 %v2174
  %2787 = vmatpush1.msra.mxu0 %v2173
  %2788 = vmatprep.subr.mxu0 %v2176
  %2789 = vmatpush1.msra.mxu0 %v2175
  %2790 = vmatprep.subr.mxu0 %v2178
  %2791 = vmatpush1.msra.mxu0 %v2177
  %2792 = vmatprep.subr.mxu0 %v2180
  %2793 = vmatpush1.msra.mxu0 %v2179
  %2794 = vmatprep.subr.mxu0 %v2182
  %2795 = vmatpush1.msra.mxu0 %v2181
  %2796 = vmatprep.subr.mxu0 %v2184
  %2797 = vmatpush1.msra.mxu0 %v2183
  %2798 = vmatprep.subr.mxu0 %v2186
  %2799 = vmatpush1.msra.mxu0 %v2185
  %2800 = vmatprep.subr.mxu0 %v2188
  %2801 = vmatpush1.msra.mxu0 %v2187
  %2802 = vmatprep.subr.mxu0 %v2190
  %2803 = vmatpush1.msra.mxu0 %v2189
  %2804 = vmatprep.subr.mxu0 %v2192
  %2805 = vmatpush1.msra.mxu0 %v2191
  %2806 = vmatprep.subr.mxu0 %v2194
  %2807 = vmatpush1.msra.mxu0 %v2193
  %2808 = vmatprep.subr.mxu0 %v2196
  %2809 = vmatpush1.msra.mxu0 %v2195
  %2810 = vmatprep.subr.mxu0 0.0
  %2811 = vmatpush1.msra.mxu0 0.0
  %2812 = vmatprep.subr.mxu0 0.0
  %2813 = vmatpush1.msra.mxu0 0.0
  %2814 = vmatprep.subr.mxu0 0.0
  %2815 = vmatpush1.msra.mxu0 0.0
  %2816 = vmatprep.subr.mxu0 0.0
  %2817 = vmatpush1.msra.mxu0 0.0
  %2818 = vmatprep.subr.mxu0 0.0
  %2819 = vmatpush1.msra.mxu0 0.0
  %2820 = vmatprep.subr.mxu0 0.0
  %2821 = vmatpush1.msra.mxu0 0.0
  %2822 = vmatprep.subr.mxu0 0.0
  %2823 = vmatpush1.msra.mxu0 0.0
  %2824 = vmatprep.subr.mxu0 0.0
  %2825 = vmatpush1.msra.mxu0 0.0
  %2826 = vmatprep.subr.mxu0 0.0
  %2827 = vmatpush1.msra.mxu0 0.0
  %2828 = vmatprep.subr.mxu0 0.0
  %2829 = vmatpush1.msra.mxu0 0.0
  %2830 = vmatprep.subr.mxu0 0.0
  %2831 = vmatpush1.msra.mxu0 0.0
  %2832 = vmatprep.subr.mxu0 0.0
  %2833 = vmatpush1.msra.mxu0 0.0
  %2834 = vmatprep.subr.mxu0 0.0
  %2835 = vmatpush1.msra.mxu0 0.0
  %2836 = vmatprep.subr.mxu0 0.0
  %2837 = vmatpush1.msra.mxu0 0.0
  %2838 = vmatprep.subr.mxu0 0.0
  %2839 = vmatpush1.msra.mxu0 0.0
  %2840 = vmatprep.subr.mxu0 0.0
  %2841 = vmatpush1.msra.mxu0 0.0
  %2842 = vmatprep.subr.mxu0 0.0
  %2843 = vmatpush1.msra.mxu0 0.0
  %2844 = vmatprep.subr.mxu0 0.0
  %2845 = vmatpush1.msra.mxu0 0.0
  %2846 = vmatprep.subr.mxu0 0.0
  %2847 = vmatpush1.msra.mxu0 0.0
  %2848 = vmatprep.subr.mxu0 0.0
  %2849 = vmatpush1.msra.mxu0 0.0
  %2850 = vmatprep.mubr.f32.mxu0 0.0
  %2851 = vmatmul.mubr.f32.gmra.mrb[0].mxu0 %v2784
  %v2852 = vpop.f32.mrb[0].mxu0
  %v2853 = vadd.f32 %v2208, %v2852
  %v2854 = vpop.f32.mrb[0].mxu0
  %v2855 = vadd.f32 %v2212, %v2854
  %2856 = vdwg.mxu0
  %v2857 = vsel %vm61, %v2853, %v2855
  %v2858 = vxor.u32 %v2857, 2147483648
  %v2859 = vmul.f32 %v2858, 1.442695
  %v2860 = vpow.pop %v2859
  %v2861 = vadd.f32 %v2860, 1.0
  %v2862 = vrcp.pop %v2861
  %v2863 = vmul.f32 1.0, %v2862
  %v2864 = vtanh.pop %v2857
  %v2865 = vmul.f32 %v2863, %v2773
  %2867 = vrot.lane.b32.xlu0 %v2864, 64
  %v2868 = vpop.permute.xlu0 %2867
  %v2870 = vmul.f32 %v2863, %v2868
  %2872 = vrot.lane.b32.xlu0 %v2870, 32
  %v2873 = vpop.permute.xlu0 %2872
  %v2875 = vadd.f32 %v2865, %v2873
  %v2876 = vtanh.pop %v2875
  %2878 = vrot.lane.b32.xlu0 %v2876, 64
  %v2879 = vpop.permute.xlu0 %2878
  %v2881 = vmul.f32 %v2863, %v2879
  %v2882 = vmul.f32 %v827, %v2881
  %v2883 = vmul.f32 %v834, %v2770
  %v2884 = vadd.f32 %v2882, %v2883
  %v2885 = vmul.f32 %v827, %v2875
  %v2886 = vmul.f32 %v834, %v2773
  %v2887 = vadd.f32 %v2885, %v2886
  %v2889 = vrot.slane %v2165, 6
  %v2891 = vsel %vm61, %v2170, %v2889
  %2893 = vrot.lane.b32.xlu0 %v2884, 96
  %v2894 = vpop.permute.xlu0 %2893
  %v2896 = vsel %vm63, %v2891, %v2894
  %v2898 = vsel %vm76, %v2896, 0
  %2900 = vmatprep.subr.mxu0 %v2174
  %2901 = vmatpush1.msra.mxu0 %v2173
  %2902 = vmatprep.subr.mxu0 %v2176
  %2903 = vmatpush1.msra.mxu0 %v2175
  %2904 = vmatprep.subr.mxu0 %v2178
  %2905 = vmatpush1.msra.mxu0 %v2177
  %2906 = vmatprep.subr.mxu0 %v2180
  %2907 = vmatpush1.msra.mxu0 %v2179
  %2908 = vmatprep.subr.mxu0 %v2182
  %2909 = vmatpush1.msra.mxu0 %v2181
  %2910 = vmatprep.subr.mxu0 %v2184
  %2911 = vmatpush1.msra.mxu0 %v2183
  %2912 = vmatprep.subr.mxu0 %v2186
  %2913 = vmatpush1.msra.mxu0 %v2185
  %2914 = vmatprep.subr.mxu0 %v2188
  %2915 = vmatpush1.msra.mxu0 %v2187
  %2916 = vmatprep.subr.mxu0 %v2190
  %2917 = vmatpush1.msra.mxu0 %v2189
  %2918 = vmatprep.subr.mxu0 %v2192
  %2919 = vmatpush1.msra.mxu0 %v2191
  %2920 = vmatprep.subr.mxu0 %v2194
  %2921 = vmatpush1.msra.mxu0 %v2193
  %2922 = vmatprep.subr.mxu0 %v2196
  %2923 = vmatpush1.msra.mxu0 %v2195
  %2924 = vmatprep.subr.mxu0 0.0
  %2925 = vmatpush1.msra.mxu0 0.0
  %2926 = vmatprep.subr.mxu0 0.0
  %2927 = vmatpush1.msra.mxu0 0.0
  %2928 = vmatprep.subr.mxu0 0.0
  %2929 = vmatpush1.msra.mxu0 0.0
  %2930 = vmatprep.subr.mxu0 0.0
  %2931 = vmatpush1.msra.mxu0 0.0
  %2932 = vmatprep.subr.mxu0 0.0
  %2933 = vmatpush1.msra.mxu0 0.0
  %2934 = vmatprep.subr.mxu0 0.0
  %2935 = vmatpush1.msra.mxu0 0.0
  %2936 = vmatprep.subr.mxu0 0.0
  %2937 = vmatpush1.msra.mxu0 0.0
  %2938 = vmatprep.subr.mxu0 0.0
  %2939 = vmatpush1.msra.mxu0 0.0
  %2940 = vmatprep.subr.mxu0 0.0
  %2941 = vmatpush1.msra.mxu0 0.0
  %2942 = vmatprep.subr.mxu0 0.0
  %2943 = vmatpush1.msra.mxu0 0.0
  %2944 = vmatprep.subr.mxu0 0.0
  %2945 = vmatpush1.msra.mxu0 0.0
  %2946 = vmatprep.subr.mxu0 0.0
  %2947 = vmatpush1.msra.mxu0 0.0
  %2948 = vmatprep.subr.mxu0 0.0
  %2949 = vmatpush1.msra.mxu0 0.0
  %2950 = vmatprep.subr.mxu0 0.0
  %2951 = vmatpush1.msra.mxu0 0.0
  %2952 = vmatprep.subr.mxu0 0.0
  %2953 = vmatpush1.msra.mxu0 0.0
  %2954 = vmatprep.subr.mxu0 0.0
  %2955 = vmatpush1.msra.mxu0 0.0
  %2956 = vmatprep.subr.mxu0 0.0
  %2957 = vmatpush1.msra.mxu0 0.0
  %2958 = vmatprep.subr.mxu0 0.0
  %2959 = vmatpush1.msra.mxu0 0.0
  %2960 = vmatprep.subr.mxu0 0.0
  %2961 = vmatpush1.msra.mxu0 0.0
  %2962 = vmatprep.subr.mxu0 0.0
  %2963 = vmatpush1.msra.mxu0 0.0
  %2964 = vmatprep.mubr.f32.mxu0 0.0
  %2965 = vmatmul.mubr.f32.gmra.mrb[0].mxu0 %v2898
  %v2966 = vpop.f32.mrb[0].mxu0
  %v2967 = vadd.f32 %v2208, %v2966
  %v2968 = vpop.f32.mrb[0].mxu0
  %v2969 = vadd.f32 %v2212, %v2968
  %2970 = vdwg.mxu0
  %v2971 = vsel %vm61, %v2967, %v2969
  %v2972 = vxor.u32 %v2971, 2147483648
  %v2973 = vmul.f32 %v2972, 1.442695
  %v2974 = vpow.pop %v2973
  %v2975 = vadd.f32 %v2974, 1.0
  %v2976 = vrcp.pop %v2975
  %v2977 = vmul.f32 1.0, %v2976
  %v2978 = vtanh.pop %v2971
  %v2979 = vmul.f32 %v2977, %v2887
  %2981 = vrot.lane.b32.xlu0 %v2978, 64
  %v2982 = vpop.permute.xlu0 %2981
  %v2984 = vmul.f32 %v2977, %v2982
  %2986 = vrot.lane.b32.xlu0 %v2984, 32
  %v2987 = vpop.permute.xlu0 %2986
  %v2989 = vadd.f32 %v2979, %v2987
  %v2990 = vtanh.pop %v2989
  %2992 = vrot.lane.b32.xlu0 %v2990, 64
  %v2993 = vpop.permute.xlu0 %2992
  %v2995 = vmul.f32 %v2977, %v2993
  %v2996 = vmul.f32 %v956, %v2995
  %v2997 = vmul.f32 %v963, %v2884
  %v2998 = vadd.f32 %v2996, %v2997
  %v2999 = vmul.f32 %v956, %v2989
  %v3000 = vmul.f32 %v963, %v2887
  %v3001 = vadd.f32 %v2999, %v3000
  %v3003 = vrot.slane %v2164, 6
  %v3005 = vsel %vm61, %v2171, %v3003
  %3007 = vrot.lane.b32.xlu0 %v2998, 96
  %v3008 = vpop.permute.xlu0 %3007
  %v3010 = vsel %vm63, %v3005, %v3008
  %v3012 = vsel %vm76, %v3010, 0
  %3014 = vmatprep.subr.mxu0 %v2174
  %3015 = vmatpush1.msra.mxu0 %v2173
  %3016 = vmatprep.subr.mxu0 %v2176
  %3017 = vmatpush1.msra.mxu0 %v2175
  %3018 = vmatprep.subr.mxu0 %v2178
  %3019 = vmatpush1.msra.mxu0 %v2177
  %3020 = vmatprep.subr.mxu0 %v2180
  %3021 = vmatpush1.msra.mxu0 %v2179
  %3022 = vmatprep.subr.mxu0 %v2182
  %3023 = vmatpush1.msra.mxu0 %v2181
  %3024 = vmatprep.subr.mxu0 %v2184
  %3025 = vmatpush1.msra.mxu0 %v2183
  %3026 = vmatprep.subr.mxu0 %v2186
  %3027 = vmatpush1.msra.mxu0 %v2185
  %3028 = vmatprep.subr.mxu0 %v2188
  %3029 = vmatpush1.msra.mxu0 %v2187
  %3030 = vmatprep.subr.mxu0 %v2190
  %3031 = vmatpush1.msra.mxu0 %v2189
  %3032 = vmatprep.subr.mxu0 %v2192
  %3033 = vmatpush1.msra.mxu0 %v2191
  %3034 = vmatprep.subr.mxu0 %v2194
  %3035 = vmatpush1.msra.mxu0 %v2193
  %3036 = vmatprep.subr.mxu0 %v2196
  %3037 = vmatpush1.msra.mxu0 %v2195
  %3038 = vmatprep.subr.mxu0 0.0
  %3039 = vmatpush1.msra.mxu0 0.0
  %3040 = vmatprep.subr.mxu0 0.0
  %3041 = vmatpush1.msra.mxu0 0.0
  %3042 = vmatprep.subr.mxu0 0.0
  %3043 = vmatpush1.msra.mxu0 0.0
  %3044 = vmatprep.subr.mxu0 0.0
  %3045 = vmatpush1.msra.mxu0 0.0
  %3046 = vmatprep.subr.mxu0 0.0
  %3047 = vmatpush1.msra.mxu0 0.0
  %3048 = vmatprep.subr.mxu0 0.0
  %3049 = vmatpush1.msra.mxu0 0.0
  %3050 = vmatprep.subr.mxu0 0.0
  %3051 = vmatpush1.msra.mxu0 0.0
  %3052 = vmatprep.subr.mxu0 0.0
  %3053 = vmatpush1.msra.mxu0 0.0
  %3054 = vmatprep.subr.mxu0 0.0
  %3055 = vmatpush1.msra.mxu0 0.0
  %3056 = vmatprep.subr.mxu0 0.0
  %3057 = vmatpush1.msra.mxu0 0.0
  %3058 = vmatprep.subr.mxu0 0.0
  %3059 = vmatpush1.msra.mxu0 0.0
  %3060 = vmatprep.subr.mxu0 0.0
  %3061 = vmatpush1.msra.mxu0 0.0
  %3062 = vmatprep.subr.mxu0 0.0
  %3063 = vmatpush1.msra.mxu0 0.0
  %3064 = vmatprep.subr.mxu0 0.0
  %3065 = vmatpush1.msra.mxu0 0.0
  %3066 = vmatprep.subr.mxu0 0.0
  %3067 = vmatpush1.msra.mxu0 0.0
  %3068 = vmatprep.subr.mxu0 0.0
  %3069 = vmatpush1.msra.mxu0 0.0
  %3070 = vmatprep.subr.mxu0 0.0
  %3071 = vmatpush1.msra.mxu0 0.0
  %3072 = vmatprep.subr.mxu0 0.0
  %3073 = vmatpush1.msra.mxu0 0.0
  %3074 = vmatprep.subr.mxu0 0.0
  %3075 = vmatpush1.msra.mxu0 0.0
  %3076 = vmatprep.subr.mxu0 0.0
  %3077 = vmatpush1.msra.mxu0 0.0
  %3078 = vmatprep.mubr.f32.mxu0 0.0
  %3079 = vmatmul.mubr.f32.gmra.mrb[0].mxu0 %v3012
  %v3080 = vpop.f32.mrb[0].mxu0
  %v3081 = vadd.f32 %v2208, %v3080
  %v3082 = vpop.f32.mrb[0].mxu0
  %v3083 = vadd.f32 %v2212, %v3082
  %3084 = vdwg.mxu0
  %v3085 = vsel %vm61, %v3081, %v3083
  %v3086 = vxor.u32 %v3085, 2147483648
  %v3087 = vmul.f32 %v3086, 1.442695
  %v3088 = vpow.pop %v3087
  %v3089 = vadd.f32 %v3088, 1.0
  %v3090 = vrcp.pop %v3089
  %v3091 = vmul.f32 1.0, %v3090
  %v3092 = vtanh.pop %v3085
  %v3093 = vmul.f32 %v3091, %v3001
  %3095 = vrot.lane.b32.xlu0 %v3092, 64
  %v3096 = vpop.permute.xlu0 %3095
  %v3098 = vmul.f32 %v3091, %v3096
  %3100 = vrot.lane.b32.xlu0 %v3098, 32
  %v3101 = vpop.permute.xlu0 %3100
  %v3103 = vadd.f32 %v3093, %v3101
  %v3104 = vtanh.pop %v3103
  %3106 = vrot.lane.b32.xlu0 %v3104, 64
  %v3107 = vpop.permute.xlu0 %3106
  %v3109 = vmul.f32 %v3091, %v3107
  %v3110 = vmul.f32 %v1085, %v3109
  %3119 = vrot.lane.b32.xlu0 %v2314, 32
  %v3120 = vpop.permute.xlu0 %3119
  %3121 = vrot.lane.b32.xlu0 %v2426, 32
  %v3122 = vpop.permute.xlu0 %3121
  %3123 = vrot.lane.b32.xlu0 %v2540, 32
  %v3124 = vpop.permute.xlu0 %3123
  %3125 = vrot.lane.b32.xlu0 %v2654, 32
  %v3126 = vpop.permute.xlu0 %3125
  %3127 = vrot.lane.b32.xlu0 %v2768, 32
  %v3128 = vpop.permute.xlu0 %3127
  %3129 = vrot.lane.b32.xlu0 %v2882, 32
  %v3130 = vpop.permute.xlu0 %3129
  %3131 = vrot.lane.b32.xlu0 %v2996, 32
  %v3132 = vpop.permute.xlu0 %3131
  %3133 = vrot.lane.b32.xlu0 %v3110, 32
  %v3134 = vpop.permute.xlu0 %3133
  %v3143 = vrot.slane %v3110, 2
  %v3144 = vrot.slane %v2996, 2
  %v3145 = vrot.slane %v2882, 2
  %v3146 = vrot.slane %v2768, 2
  %v3147 = vrot.slane %v2654, 2
  %v3148 = vrot.slane %v2540, 2
  %v3149 = vrot.slane %v2426, 2
  %v3150 = vrot.slane %v2314, 2
  %3151 = vrot.lane.b32.xlu0 %v3143, 64
  %v3152 = vpop.permute.xlu0 %3151
  %3153 = vrot.lane.b32.xlu0 %v3144, 64
  %v3154 = vpop.permute.xlu0 %3153
  %3155 = vrot.lane.b32.xlu0 %v3145, 64
  %v3156 = vpop.permute.xlu0 %3155
  %3157 = vrot.lane.b32.xlu0 %v3146, 64
  %v3158 = vpop.permute.xlu0 %3157
  %3159 = vrot.lane.b32.xlu0 %v3147, 64
  %v3160 = vpop.permute.xlu0 %3159
  %3161 = vrot.lane.b32.xlu0 %v3148, 64
  %v3162 = vpop.permute.xlu0 %3161
  %3163 = vrot.lane.b32.xlu0 %v3149, 64
  %v3164 = vpop.permute.xlu0 %3163
  %3165 = vrot.lane.b32.xlu0 %v3150, 64
  %v3166 = vpop.permute.xlu0 %3165
  %v3175 = vsel %vm1152, %v3120, %v3152
  %v3176 = vsel %vm1152, %v3122, %v3154
  %v3177 = vsel %vm1152, %v3124, %v3156
  %v3178 = vsel %vm1152, %v3126, %v3158
  %v3179 = vsel %vm1152, %v3128, %v3160
  %v3180 = vsel %vm1152, %v3130, %v3162
  %v3181 = vsel %vm1152, %v3132, %v3164
  %v3182 = vsel %vm1152, %v3134, %v3166
  %vm3183 = vcmask 517120
  %3184 = vst.msk [vmem:[%s4] sm:$0x3] %vm3183, %v3175
  %3185 = vst.msk [vmem:[%s4 + $0x2] sm:$0x3] %vm3183, %v3176
  %3186 = vst.msk [vmem:[%s4 + $0x4] sm:$0x3] %vm3183, %v3177
  %3187 = vst.msk [vmem:[%s4 + $0x6] sm:$0x3] %vm3183, %v3178
  %3188 = vst.msk [vmem:[%s4 + $0x8] sm:$0x3] %vm3183, %v3179
  %3189 = vst.msk [vmem:[%s4 + $0xa] sm:$0x3] %vm3183, %v3180
  %3190 = vst.msk [vmem:[%s4 + $0xc] sm:$0x3] %vm3183, %v3181
  %3191 = vst.msk [vmem:[%s4 + $0xe] sm:$0x3] %vm3183, %v3182
  // Predicated region
  $region18: #{model_encode.3} parent=0 // pred_check
    _
  $region19: #{model_encode.3} parent=0 // pred_check_branch
    %3193 = sbr.rel (0) target = $region21
  $region20: #{model_encode.3} parent=0 // pred_region
    _
  $region21: #{model_encode.3} parent=0 // pred_fallthru
    _
  // Predicated region
  $region22: #{model_encode.3} parent=0 // pred_check
    _
  $region23: #{model_encode.3} parent=0 // pred_check_branch
    %3195 = sbr.rel (0) target = $region25
  $region24: #{model_encode.3} parent=0 // pred_region
    _
  $region25: #{model_encode.3} parent=0 // pred_fallthru
    _

</llo_original>
